<compile_context>
chip_gen: v7x
topology: tpu7x:2x2x1
jax: 0.10.0
libtpu: 0.0.40
codegen_flags: <defaults>
</compile_context>

<pallas_src>
import functools

import jax
import jax.numpy as jnp
from jax.experimental import pallas as pl
from jax.experimental.pallas import tpu as pltpu

_INV_SQRT2 = 0.7071067811865476
_BN_EPS = 1e-5
_LANE = 128
_VMEM_LIMIT_BYTES = 64 * 1024 * 1024


def _round_up(x, m):
    return ((x + m - 1) // m) * m


# ---------------------------------------------------------------------------
# In-kernel math helpers (only called from inside Pallas kernels)
# ---------------------------------------------------------------------------
def _erf_approx(x):
    # Abramowitz & Stegun 7.1.26 rational approximation (|err| <= 1.5e-7).
    a1, a2, a3, a4, a5 = (0.254829592, -0.284496736, 1.421413741,
                          -1.453152027, 1.061405429)
    p = 0.3275911
    sgn = jnp.where(x >= 0.0, 1.0, -1.0)
    ax = jnp.abs(x)
    t = pl.reciprocal(1.0 + p * ax, approx=True)      # EUP slot, frees VALU
    poly = ((((a5 * t + a4) * t + a3) * t + a2) * t + a1) * t
    return sgn * (1.0 - poly * jnp.exp(-ax * ax))


def _gelu_exact(x):
    # nn.GELU() default = 0.5*x*(1+erf(x/sqrt(2)))  (NOT the tanh approximation)
    return 0.5 * x * (1.0 + _erf_approx(x * _INV_SQRT2))


# ---------------------------------------------------------------------------
# Pallas kernels
# ---------------------------------------------------------------------------
def _matmul_bias_kernel(x_ref, w_ref, b_ref, o_ref):
    # ConvTranspose2d as a row-tiled matmul: (tm, Cin_p) @ (Cin_p, 4*Cout_p) + bias.
    acc = jnp.dot(x_ref[...], w_ref[...], preferred_element_type=jnp.float32)
    o_ref[...] = (acc + b_ref[...]).astype(o_ref.dtype)


def _conv3x3_stats_kernel(xp_ref, w_ref, y_ref, stats_ref):
    # Pass 1 of conv->BN->GELU; one image per grid step (grid axis is "parallel").
    #   xp_ref   : (1, H+2, W+2, Cp) bf16  spatially padded, channel-padded input
    #   w_ref    : (9, Cp, Cp)       bf16  tap k = ki*3 + kj
    #   y_ref    : (1, H*W, Cp)      bf16  conv output rows (bias-free: BN cancels it)
    #   stats_ref: (1, 2, Cp)        f32   per-image [sum; sumsq] partials
    _, hp2, wp2, cp = xp_ref.shape
    h, w = hp2 - 2, wp2 - 2
    hw = h * w

    # In-kernel im2col with only 3 materialized column bands (one per kj).
    # Band rows flatten as q = r*w + j with r in [0, h+2); tap (ki, kj) contributes
    # yfull[q] to output pixel p = q - ki*w, so each tap is one aligned shifted add
    # of the band matmul result into a local f32 accumulator.
    acc = jnp.zeros((hw, cp), jnp.float32)
    for kj in range(3):
        band = xp_ref[0, :, kj:kj + w, :].reshape(hp2 * w, cp)
        for ki in range(3):
            yfull = jnp.dot(band, w_ref[ki * 3 + kj],
                            preferred_element_type=jnp.float32)
            acc = acc + yfull[ki * w:ki * w + hw, :]

    y_ref[...] = acc.astype(y_ref.dtype).reshape(1, hw, cp)       # single store
    s1 = jnp.sum(acc, axis=0, keepdims=True)                      # f32 stats from acc
    s2 = jnp.sum(acc * acc, axis=0, keepdims=True)
    stats_ref[...] = jnp.concatenate([s1, s2], axis=0).reshape(1, 2, cp)


def _bn_gelu_kernel(y_ref, sc_ref, sh_ref, o_ref, *, h, w, pad_out):
    # Pass 2: z = y*scale + shift (scale/shift precomputed from global batch stats),
    # exact GELU. One image per grid step. When pad_out=True the result is written
    # into the interior of a zeroed (1, H+2, W+2, Cp) block so the next conv stage
    # reads a ready-made halo (no XLA jnp.pad between stages).
    cp = y_ref.shape[-1]
    z = y_ref[0].astype(jnp.float32) * sc_ref[...] + sh_ref[...]
    g = _gelu_exact(z).astype(o_ref.dtype)
    if pad_out:
        o_ref[...] = jnp.zeros_like(o_ref)
        o_ref[0, 1:h + 1, 1:w + 1, :] = g.reshape(h, w, cp)
    else:
        o_ref[...] = g.reshape(1, h, w, cp)


# ---------------------------------------------------------------------------
# pallas_call wrappers
# ---------------------------------------------------------------------------
def _conv_transpose_matmul(x2d, w2d, brow, out_dtype=jnp.bfloat16):
    m, k = x2d.shape
    n = w2d.shape[1]
    ntiles = max(1, -(-m // 1024))
    if ntiles == 1 and m > 16:
        ntiles = 2                       # always >=2 pipeline steps / both v7x TCs
    tm = _round_up(-(-m // ntiles), 8)   # sublane-aligned tile
    mp = tm * ntiles
    if mp != m:
        x2d = jnp.pad(x2d, ((0, mp - m), (0, 0)))   # zero rows are harmless
    out = pl.pallas_call(
        _matmul_bias_kernel,
        out_shape=jax.ShapeDtypeStruct((mp, n), out_dtype),
        grid=(ntiles,),
        in_specs=[pl.BlockSpec((tm, k), lambda i: (i, 0)),
                  pl.BlockSpec((k, n), lambda i: (0, 0)),
                  pl.BlockSpec((1, n), lambda i: (0, 0))],
        out_specs=pl.BlockSpec((tm, n), lambda i: (i, 0)),
        compiler_params=pltpu.CompilerParams(
            dimension_semantics=("parallel",),
            vmem_limit_bytes=_VMEM_LIMIT_BYTES),
    )(x2d, w2d, brow)
    return out[:m] if mp != m else out


def _conv3x3_stats(xp, w9):
    n, hp2, wp2, cp = xp.shape
    h, w = hp2 - 2, wp2 - 2
    return pl.pallas_call(
        _conv3x3_stats_kernel,
        out_shape=(jax.ShapeDtypeStruct((n, h * w, cp), jnp.bfloat16),
                   jax.ShapeDtypeStruct((n, 2, cp), jnp.float32)),
        grid=(n,),
        in_specs=[pl.BlockSpec((1, hp2, wp2, cp), lambda i: (i, 0, 0, 0)),
                  pl.BlockSpec((9, cp, cp), lambda i: (0, 0, 0))],
        out_specs=(pl.BlockSpec((1, h * w, cp), lambda i: (i, 0, 0)),
                   pl.BlockSpec((1, 2, cp), lambda i: (i, 0, 0))),
        # per-image partial stats -> no cross-step accumulation -> fully parallel
        compiler_params=pltpu.CompilerParams(
            dimension_semantics=("parallel",),
            vmem_limit_bytes=_VMEM_LIMIT_BYTES),
    )(xp, w9)


def _bn_gelu(y, scale_row, shift_row, h, w, pad_out, out_dtype):
    n, hw, cp = y.shape
    oshape = (n, h + 2, w + 2, cp) if pad_out else (n, h, w, cp)
    kernel = functools.partial(_bn_gelu_kernel, h=h, w=w, pad_out=pad_out)
    return pl.pallas_call(
        kernel,
        out_shape=jax.ShapeDtypeStruct(oshape, out_dtype),
        grid=(n,),
        in_specs=[pl.BlockSpec((1, hw, cp), lambda i: (i, 0, 0)),
                  pl.BlockSpec((1, cp), lambda i: (0, 0)),
                  pl.BlockSpec((1, cp), lambda i: (0, 0))],
        out_specs=pl.BlockSpec((1,) + oshape[1:], lambda i: (i, 0, 0, 0)),
        compiler_params=pltpu.CompilerParams(
            dimension_semantics=("parallel",),
            vmem_limit_bytes=_VMEM_LIMIT_BYTES),
    )(y, scale_row, shift_row)


# ---------------------------------------------------------------------------
# UnetUp forward (NHWC, channel-padded; remaining XLA glue is layout-only)
# ---------------------------------------------------------------------------
def _conv_bn_gelu_stage(xp, w, gamma, beta, pad_out, out_dtype):
    # xp: (N, H+2, W+2, Cp) bf16 with a zeroed halo. Conv is Cout->Cout.
    n, hp2, wp2, cp = xp.shape
    h, wsp = hp2 - 2, wp2 - 2
    cout, cin = w.shape[0], w.shape[1]

    wt = jnp.transpose(w, (2, 3, 1, 0))                            # (3,3,Cin,Cout)
    wt = jnp.pad(wt, ((0, 0), (0, 0), (0, cp - cin), (0, cp - cout)))
    w9 = wt.reshape(9, cp, cp).astype(jnp.bfloat16)

    y, pstats = _conv3x3_stats(xp, w9)
    # Tiny (N,2,Cp) reduction + BN scale/shift in XLA (keeps the conv grid parallel).
    stats = jnp.sum(pstats, axis=0)                                # (2, Cp) f32
    inv_m = 1.0 / float(n * h * wsp)
    mean = stats[0] * inv_m
    var = jnp.maximum(stats[1] * inv_m - mean * mean, 0.0)
    gamma_p = jnp.pad(gamma, (0, cp - cout))
    beta_p = jnp.pad(beta, (0, cp - cout))
    scale = gamma_p * jax.lax.rsqrt(var + _BN_EPS)
    shift = beta_p - mean * scale
    return _bn_gelu(y, scale.reshape(1, cp).astype(jnp.float32),
                    shift.reshape(1, cp).astype(jnp.float32),
                    h, wsp, pad_out, out_dtype)


def unet_up_forward(x, skip, params):
    n, c1, h, w = x.shape
    cin = c1 + skip.shape[1]
    cout = params["ct_b"].shape[0]
    cin_p = _round_up(cin, _LANE)
    cout_p = _round_up(cout, _LANE)

    # torch.cat((x, skip), 1); single NCHW->NHWC transpose; lane-pad channels.
    cat = jnp.concatenate((x, skip), axis=1)
    cat = jnp.transpose(cat, (0, 2, 3, 1))                         # NHWC
    cat = jnp.pad(cat, ((0, 0), (0, 0), (0, 0), (0, cin_p - cin)))
    x2d = cat.reshape(n * h * w, cin_p).astype(jnp.bfloat16)

    # ConvTranspose2d(Cin, Cout, 2, 2): lane-dense matmul + pixel shuffle.
    # col index = (ki*2+kj)*Cout_p + co ; out[n,co,2i+ki,2j+kj] = b[co] + sum_ci x*w
    wct = jnp.transpose(params["ct_w"], (2, 3, 0, 1))              # (2,2,Cin,Cout)
    wct = jnp.pad(wct, ((0, 0), (0, 0), (0, cin_p - cin), (0, cout_p - cout)))
    w2d = jnp.transpose(wct, (2, 0, 1, 3)).reshape(cin_p, 4 * cout_p)
    w2d = w2d.astype(jnp.bfloat16)
    brow = jnp.tile(jnp.pad(params["ct_b"], (0, cout_p - cout)), 4)
    brow = brow.reshape(1, 4 * cout_p).astype(jnp.float32)

    y2d = _conv_transpose_matmul(x2d, w2d, brow)                   # (N*H*W, 4*Cout_p)
    up = y2d.reshape(n, h, w, 2, 2, cout_p)
    up = jnp.transpose(up, (0, 1, 3, 2, 4, 5)).reshape(n, 2 * h, 2 * w, cout_p)
    # TODO(synk): fold this pixel-shuffle transpose and the single halo pad below
    # into the first conv stage's input indexing to remove the remaining XLA copies.
    act = jnp.pad(up, ((0, 0), (1, 1), (1, 1), (0, 0)))            # only XLA halo pad

    # Two ResidualConvBlocks with is_res=False == 4 conv->BN->GELU stages.
    # Conv biases (b) are skipped: training-mode BN cancels them exactly.
    stages = list(params["res1"]) + list(params["res2"])
    for idx, (wc, _b_unused, gamma, beta) in enumerate(stages):
        last = idx == len(stages) - 1
        act = _conv_bn_gelu_stage(act, wc, gamma, beta,
                                  pad_out=not last,
                                  out_dtype=jnp.float32 if last else jnp.bfloat16)

    out = act[..., :cout]                                          # drop lane padding
    return jnp.transpose(out, (0, 3, 1, 2))                        # back to NCHW


# ---------------------------------------------------------------------------
# Deterministic parameter init (shapes follow the PyTorch module __init__)
# ---------------------------------------------------------------------------
def init_unet_up_params(key, in_channels, out_channels):
    def w(k, shape, scale):
        return scale * jax.random.normal(k, shape, dtype=jnp.float32)

    ks = jax.random.split(key, 4)
    params = {
        "ct_w": w(ks[0], (in_channels, out_channels, 2, 2), 0.2),
        "ct_b": w(ks[1], (out_channels,), 0.05),
    }

    def res_params(kbase):
        kk = jax.random.split(kbase, 8)
        stages = []
        for s in range(2):
            stages.append((
                w(kk[4 * s + 0], (out_channels, out_channels, 3, 3), 0.2),
                w(kk[4 * s + 1], (out_channels,), 0.05),
                1.0 + 0.1 * jax.random.normal(kk[4 * s + 2], (out_channels,),
                                              dtype=jnp.float32),
                0.05 * jax.random.normal(kk[4 * s + 3], (out_channels,),
                                         dtype=jnp.float32),
            ))
        return stages

    params["res1"] = res_params(ks[2])
    params["res2"] = res_params(ks[3])
    return params


if __name__ == "__main__":
    key = jax.random.PRNGKey(0)
    k_x, k_s, k_p = jax.random.split(key, 3)

    B, C_half, H, W = 2, 4, 8, 8
    in_channels, out_channels = 2 * C_half, 4     # cat(x, skip) -> in_channels

    x = jax.random.normal(k_x, (B, C_half, H, W), dtype=jnp.float32)
    skip = jax.random.normal(k_s, (B, C_half, H, W), dtype=jnp.float32)
    params = init_unet_up_params(k_p, in_channels, out_channels)

    fwd = jax.jit(functools.partial(unet_up_forward, params=params))
    out = jax.block_until_ready(fwd(x, skip))

    assert out.shape == (B, out_channels, 2 * H, 2 * W), out.shape
    assert out.dtype == jnp.float32
    assert bool(jnp.all(jnp.isfinite(out)))
    print("KERNEL_OK")
</pallas_src>

<mosaic_0001>
module attributes {stable_mosaic.version = 11 : i64} {
  func.func @_matmul_bias_kernel(%arg0: i32, %arg1: memref<64x128xbf16, #tpu.memory_space<vmem>>, %arg2: memref<128x512xbf16, #tpu.memory_space<vmem>>, %arg3: memref<1x512xf32, #tpu.memory_space<vmem>>, %arg4: memref<64x512xbf16, #tpu.memory_space<vmem>>) attributes {dimension_semantics = [#tpu.dimension_semantics<parallel>], iteration_bounds = array<i64: 2>, scalar_prefetch = 0 : i64, scratch_operands = 0 : i64, tpu.core_type = #tpu.core_type<tc>, window_params = [{transform_indices = @transform_0, window_bounds = array<i64: 64, 128>}, {pipeline_mode = #tpu.pipeline_mode<synchronous>, transform_indices = @transform_1, window_bounds = array<i64: 128, 512>}, {pipeline_mode = #tpu.pipeline_mode<synchronous>, transform_indices = @transform_2, window_bounds = array<i64: 1, 512>}, {transform_indices = @transform_3, window_bounds = array<i64: 64, 512>}]} {
    %c0 = arith.constant 0 : index
    %c0_0 = arith.constant 0 : index
    %0 = vector.load %arg1[%c0, %c0_0] : memref<64x128xbf16, #tpu.memory_space<vmem>>, vector<64x128xbf16>
    %c0_1 = arith.constant 0 : index
    %c0_2 = arith.constant 0 : index
    %1 = vector.load %arg2[%c0_1, %c0_2] : memref<128x512xbf16, #tpu.memory_space<vmem>>, vector<128x512xbf16>
    %cst = arith.constant dense<0.000000e+00> : vector<64x512xf32>
    %2 = tpu.matmul %0, %1, %cst {dimension_numbers = #tpu.dot_dimension_numbers<[1], [0], [0], [1], [0, 0, 1, 1], [], []>} : vector<64x128xbf16>, vector<128x512xbf16>, vector<64x512xf32> -> vector<64x512xf32>
    %c0_3 = arith.constant 0 : index
    %c0_4 = arith.constant 0 : index
    %3 = vector.load %arg3[%c0_3, %c0_4] : memref<1x512xf32, #tpu.memory_space<vmem>>, vector<1x512xf32>
    %4 = vector.broadcast %3 : vector<1x512xf32> to vector<64x512xf32>
    %5 = arith.addf %2, %4 : vector<64x512xf32>
    %6 = arith.truncf %5 : vector<64x512xf32> to vector<64x512xbf16>
    %c0_5 = arith.constant 0 : index
    %c0_6 = arith.constant 0 : index
    %7 = vector.load %arg4[%c0_5, %c0_6] : memref<64x512xbf16, #tpu.memory_space<vmem>>, vector<64x512xbf16>
    tpu.vector_store %arg4[%c0_5, %c0_6], %6 {strides = array<i32>} : memref<64x512xbf16, #tpu.memory_space<vmem>>, vector<64x512xbf16>,
    return
  }
  func.func @transform_0(%arg0: i32) -> (i32, i32) {
    %c0_i32 = arith.constant 0 : i32
    %c0_i32_0 = arith.constant 0 : i32
    return %arg0, %c0_i32 : i32, i32
  }
  func.func @transform_1(%arg0: i32) -> (i32, i32) {
    %c0_i32 = arith.constant 0 : i32
    %c0_i32_0 = arith.constant 0 : i32
    %c0_i32_1 = arith.constant 0 : i32
    return %c0_i32, %c0_i32_0 : i32, i32
  }
  func.func @transform_2(%arg0: i32) -> (i32, i32) {
    %c0_i32 = arith.constant 0 : i32
    %c0_i32_0 = arith.constant 0 : i32
    %c0_i32_1 = arith.constant 0 : i32
    return %c0_i32, %c0_i32_0 : i32, i32
  }
  func.func @transform_3(%arg0: i32) -> (i32, i32) {
    %c0_i32 = arith.constant 0 : i32
    %c0_i32_0 = arith.constant 0 : i32
    return %arg0, %c0_i32 : i32, i32
  }
}

module attributes {stable_mosaic.version = 11 : i64} {
  func.func @_conv3x3_stats_kernel(%arg0: i32, %arg1: memref<1x18x18x128xbf16, #tpu.memory_space<vmem>>, %arg2: memref<9x128x128xbf16, #tpu.memory_space<vmem>>, %arg3: memref<1x256x128xbf16, #tpu.memory_space<vmem>>, %arg4: memref<1x2x128xf32, #tpu.memory_space<vmem>>) attributes {dimension_semantics = [#tpu.dimension_semantics<parallel>], iteration_bounds = array<i64: 2>, scalar_prefetch = 0 : i64, scratch_operands = 0 : i64, tpu.core_type = #tpu.core_type<tc>, window_params = [{transform_indices = @transform_0, window_bounds = array<i64: 1, 18, 18, 128>}, {pipeline_mode = #tpu.pipeline_mode<synchronous>, transform_indices = @transform_1, window_bounds = array<i64: 9, 128, 128>}, {transform_indices = @transform_2, window_bounds = array<i64: 1, 256, 128>}, {transform_indices = @transform_3, window_bounds = array<i64: 1, 2, 128>}]} {
    %cst = arith.constant 0.000000e+00 : f32
    %0 = vector.broadcast %cst : f32 to vector<256x128xf32>
    %c0 = arith.constant 0 : index
    %c0_0 = arith.constant 0 : index
    %c0_1 = arith.constant 0 : index
    %c0_2 = arith.constant 0 : index
    %1 = vector.load %arg1[%c0, %c0_0, %c0_1, %c0_2] : memref<1x18x18x128xbf16, #tpu.memory_space<vmem>>, vector<1x18x16x128xbf16>
    %2 = vector.shape_cast %1 : vector<1x18x16x128xbf16> to vector<18x16x128xbf16>
    %3 = vector.shape_cast %2 : vector<18x16x128xbf16> to vector<288x128xbf16>
    %c0_3 = arith.constant 0 : index
    %c0_4 = arith.constant 0 : index
    %c0_5 = arith.constant 0 : index
    %4 = vector.load %arg2[%c0_3, %c0_4, %c0_5] : memref<9x128x128xbf16, #tpu.memory_space<vmem>>, vector<1x128x128xbf16>
    %5 = vector.shape_cast %4 : vector<1x128x128xbf16> to vector<128x128xbf16>
    %cst_6 = arith.constant dense<0.000000e+00> : vector<288x128xf32>
    %6 = tpu.matmul %3, %5, %cst_6 {dimension_numbers = #tpu.dot_dimension_numbers<[1], [0], [0], [1], [0, 0, 1, 1], [], []>} : vector<288x128xbf16>, vector<128x128xbf16>, vector<288x128xf32> -> vector<288x128xf32>
    %7 = vector.extract_strided_slice %6 {offsets = [0, 0], sizes = [256, 128], strides = [1, 1]} : vector<288x128xf32> to vector<256x128xf32>
    %8 = arith.addf %0, %7 : vector<256x128xf32>
    %c3 = arith.constant 3 : index
    %c0_7 = arith.constant 0 : index
    %c0_8 = arith.constant 0 : index
    %9 = vector.load %arg2[%c3, %c0_7, %c0_8] : memref<9x128x128xbf16, #tpu.memory_space<vmem>>, vector<1x128x128xbf16>
    %10 = vector.shape_cast %9 : vector<1x128x128xbf16> to vector<128x128xbf16>
    %cst_9 = arith.constant dense<0.000000e+00> : vector<288x128xf32>
    %11 = tpu.matmul %3, %10, %cst_9 {dimension_numbers = #tpu.dot_dimension_numbers<[1], [0], [0], [1], [0, 0, 1, 1], [], []>} : vector<288x128xbf16>, vector<128x128xbf16>, vector<288x128xf32> -> vector<288x128xf32>
    %12 = vector.extract_strided_slice %11 {offsets = [16, 0], sizes = [256, 128], strides = [1, 1]} : vector<288x128xf32> to vector<256x128xf32>
    %13 = arith.addf %8, %12 : vector<256x128xf32>
    %c6 = arith.constant 6 : index
    %c0_10 = arith.constant 0 : index
    %c0_11 = arith.constant 0 : index
    %14 = vector.load %arg2[%c6, %c0_10, %c0_11] : memref<9x128x128xbf16, #tpu.memory_space<vmem>>, vector<1x128x128xbf16>
    %15 = vector.shape_cast %14 : vector<1x128x128xbf16> to vector<128x128xbf16>
    %cst_12 = arith.constant dense<0.000000e+00> : vector<288x128xf32>
    %16 = tpu.matmul %3, %15, %cst_12 {dimension_numbers = #tpu.dot_dimension_numbers<[1], [0], [0], [1], [0, 0, 1, 1], [], []>} : vector<288x128xbf16>, vector<128x128xbf16>, vector<288x128xf32> -> vector<288x128xf32>
    %17 = vector.extract_strided_slice %16 {offsets = [32, 0], sizes = [256, 128], strides = [1, 1]} : vector<288x128xf32> to vector<256x128xf32>
    %18 = arith.addf %13, %17 : vector<256x128xf32>
    %c0_13 = arith.constant 0 : index
    %c0_14 = arith.constant 0 : index
    %c1 = arith.constant 1 : index
    %c0_15 = arith.constant 0 : index
    %19 = vector.load %arg1[%c0_13, %c0_14, %c1, %c0_15] : memref<1x18x18x128xbf16, #tpu.memory_space<vmem>>, vector<1x18x16x128xbf16>
    %20 = vector.shape_cast %19 : vector<1x18x16x128xbf16> to vector<18x16x128xbf16>
    %21 = vector.shape_cast %20 : vector<18x16x128xbf16> to vector<288x128xbf16>
    %c1_16 = arith.constant 1 : index
    %c0_17 = arith.constant 0 : index
    %c0_18 = arith.constant 0 : index
    %22 = vector.load %arg2[%c1_16, %c0_17, %c0_18] : memref<9x128x128xbf16, #tpu.memory_space<vmem>>, vector<1x128x128xbf16>
    %23 = vector.shape_cast %22 : vector<1x128x128xbf16> to vector<128x128xbf16>
    %cst_19 = arith.constant dense<0.000000e+00> : vector<288x128xf32>
    %24 = tpu.matmul %21, %23, %cst_19 {dimension_numbers = #tpu.dot_dimension_numbers<[1], [0], [0], [1], [0, 0, 1, 1], [], []>} : vector<288x128xbf16>, vector<128x128xbf16>, vector<288x128xf32> -> vector<288x128xf32>
    %25 = vector.extract_strided_slice %24 {offsets = [0, 0], sizes = [256, 128], strides = [1, 1]} : vector<288x128xf32> to vector<256x128xf32>
    %26 = arith.addf %18, %25 : vector<256x128xf32>
    %c4 = arith.constant 4 : index
    %c0_20 = arith.constant 0 : index
    %c0_21 = arith.constant 0 : index
    %27 = vector.load %arg2[%c4, %c0_20, %c0_21] : memref<9x128x128xbf16, #tpu.memory_space<vmem>>, vector<1x128x128xbf16>
    %28 = vector.shape_cast %27 : vector<1x128x128xbf16> to vector<128x128xbf16>
    %cst_22 = arith.constant dense<0.000000e+00> : vector<288x128xf32>
    %29 = tpu.matmul %21, %28, %cst_22 {dimension_numbers = #tpu.dot_dimension_numbers<[1], [0], [0], [1], [0, 0, 1, 1], [], []>} : vector<288x128xbf16>, vector<128x128xbf16>, vector<288x128xf32> -> vector<288x128xf32>
    %30 = vector.extract_strided_slice %29 {offsets = [16, 0], sizes = [256, 128], strides = [1, 1]} : vector<288x128xf32> to vector<256x128xf32>
    %31 = arith.addf %26, %30 : vector<256x128xf32>
    %c7 = arith.constant 7 : index
    %c0_23 = arith.constant 0 : index
    %c0_24 = arith.constant 0 : index
    %32 = vector.load %arg2[%c7, %c0_23, %c0_24] : memref<9x128x128xbf16, #tpu.memory_space<vmem>>, vector<1x128x128xbf16>
    %33 = vector.shape_cast %32 : vector<1x128x128xbf16> to vector<128x128xbf16>
    %cst_25 = arith.constant dense<0.000000e+00> : vector<288x128xf32>
    %34 = tpu.matmul %21, %33, %cst_25 {dimension_numbers = #tpu.dot_dimension_numbers<[1], [0], [0], [1], [0, 0, 1, 1], [], []>} : vector<288x128xbf16>, vector<128x128xbf16>, vector<288x128xf32> -> vector<288x128xf32>
    %35 = vector.extract_strided_slice %34 {offsets = [32, 0], sizes = [256, 128], strides = [1, 1]} : vector<288x128xf32> to vector<256x128xf32>
    %36 = arith.addf %31, %35 : vector<256x128xf32>
    %c0_26 = arith.constant 0 : index
    %c0_27 = arith.constant 0 : index
    %c2 = arith.constant 2 : index
    %c0_28 = arith.constant 0 : index
    %37 = vector.load %arg1[%c0_26, %c0_27, %c2, %c0_28] : memref<1x18x18x128xbf16, #tpu.memory_space<vmem>>, vector<1x18x16x128xbf16>
    %38 = vector.shape_cast %37 : vector<1x18x16x128xbf16> to vector<18x16x128xbf16>
    %39 = vector.shape_cast %38 : vector<18x16x128xbf16> to vector<288x128xbf16>
    %c2_29 = arith.constant 2 : index
    %c0_30 = arith.constant 0 : index
    %c0_31 = arith.constant 0 : index
    %40 = vector.load %arg2[%c2_29, %c0_30, %c0_31] : memref<9x128x128xbf16, #tpu.memory_space<vmem>>, vector<1x128x128xbf16>
    %41 = vector.shape_cast %40 : vector<1x128x128xbf16> to vector<128x128xbf16>
    %cst_32 = arith.constant dense<0.000000e+00> : vector<288x128xf32>
    %42 = tpu.matmul %39, %41, %cst_32 {dimension_numbers = #tpu.dot_dimension_numbers<[1], [0], [0], [1], [0, 0, 1, 1], [], []>} : vector<288x128xbf16>, vector<128x128xbf16>, vector<288x128xf32> -> vector<288x128xf32>
    %43 = vector.extract_strided_slice %42 {offsets = [0, 0], sizes = [256, 128], strides = [1, 1]} : vector<288x128xf32> to vector<256x128xf32>
    %44 = arith.addf %36, %43 : vector<256x128xf32>
    %c5 = arith.constant 5 : index
    %c0_33 = arith.constant 0 : index
    %c0_34 = arith.constant 0 : index
    %45 = vector.load %arg2[%c5, %c0_33, %c0_34] : memref<9x128x128xbf16, #tpu.memory_space<vmem>>, vector<1x128x128xbf16>
    %46 = vector.shape_cast %45 : vector<1x128x128xbf16> to vector<128x128xbf16>
    %cst_35 = arith.constant dense<0.000000e+00> : vector<288x128xf32>
    %47 = tpu.matmul %39, %46, %cst_35 {dimension_numbers = #tpu.dot_dimension_numbers<[1], [0], [0], [1], [0, 0, 1, 1], [], []>} : vector<288x128xbf16>, vector<128x128xbf16>, vector<288x128xf32> -> vector<288x128xf32>
    %48 = vector.extract_strided_slice %47 {offsets = [16, 0], sizes = [256, 128], strides = [1, 1]} : vector<288x128xf32> to vector<256x128xf32>
    %49 = arith.addf %44, %48 : vector<256x128xf32>
    %c8 = arith.constant 8 : index
    %c0_36 = arith.constant 0 : index
    %c0_37 = arith.constant 0 : index
    %50 = vector.load %arg2[%c8, %c0_36, %c0_37] : memref<9x128x128xbf16, #tpu.memory_space<vmem>>, vector<1x128x128xbf16>
    %51 = vector.shape_cast %50 : vector<1x128x128xbf16> to vector<128x128xbf16>
    %cst_38 = arith.constant dense<0.000000e+00> : vector<288x128xf32>
    %52 = tpu.matmul %39, %51, %cst_38 {dimension_numbers = #tpu.dot_dimension_numbers<[1], [0], [0], [1], [0, 0, 1, 1], [], []>} : vector<288x128xbf16>, vector<128x128xbf16>, vector<288x128xf32> -> vector<288x128xf32>
    %53 = vector.extract_strided_slice %52 {offsets = [32, 0], sizes = [256, 128], strides = [1, 1]} : vector<288x128xf32> to vector<256x128xf32>
    %54 = arith.addf %49, %53 : vector<256x128xf32>
    %55 = arith.truncf %54 : vector<256x128xf32> to vector<256x128xbf16>
    %56 = vector.shape_cast %55 : vector<256x128xbf16> to vector<1x256x128xbf16>
    %c0_39 = arith.constant 0 : index
    %c0_40 = arith.constant 0 : index
    %c0_41 = arith.constant 0 : index
    %57 = vector.load %arg3[%c0_39, %c0_40, %c0_41] : memref<1x256x128xbf16, #tpu.memory_space<vmem>>, vector<1x256x128xbf16>
    tpu.vector_store %arg3[%c0_39, %c0_40, %c0_41], %56 {strides = array<i32>} : memref<1x256x128xbf16, #tpu.memory_space<vmem>>, vector<1x256x128xbf16>,
    %cst_42 = arith.constant dense<0.000000e+00> : vector<128xf32>
    %58 = vector.multi_reduction <add>, %54, %cst_42 [0] : vector<256x128xf32> to vector<128xf32>
    %59 = vector.shape_cast %58 : vector<128xf32> to vector<1x128xf32>
    %60 = arith.mulf %54, %54 : vector<256x128xf32>
    %cst_43 = arith.constant dense<0.000000e+00> : vector<128xf32>
    %61 = vector.multi_reduction <add>, %60, %cst_43 [0] : vector<256x128xf32> to vector<128xf32>
    %62 = vector.shape_cast %61 : vector<128xf32> to vector<1x128xf32>
    %63 = tpu.concatenate %59, %62 in 0 : vector<1x128xf32>, vector<1x128xf32> -> vector<2x128xf32>
    %64 = vector.shape_cast %63 : vector<2x128xf32> to vector<1x2x128xf32>
    %c0_44 = arith.constant 0 : index
    %c0_45 = arith.constant 0 : index
    %c0_46 = arith.constant 0 : index
    %65 = vector.load %arg4[%c0_44, %c0_45, %c0_46] : memref<1x2x128xf32, #tpu.memory_space<vmem>>, vector<1x2x128xf32>
    tpu.vector_store %arg4[%c0_44, %c0_45, %c0_46], %64 {strides = array<i32>} : memref<1x2x128xf32, #tpu.memory_space<vmem>>, vector<1x2x128xf32>,
    return
  }
  func.func @transform_0(%arg0: i32) -> (i32, i32, i32, i32) {
    %c0_i32 = arith.constant 0 : i32
    %c0_i32_0 = arith.constant 0 : i32
    %c0_i32_1 = arith.constant 0 : i32
    %c0_i32_2 = arith.constant 0 : i32
    return %arg0, %c0_i32, %c0_i32_0, %c0_i32_1 : i32, i32, i32, i32
  }
  func.func @transform_1(%arg0: i32) -> (i32, i32, i32) {
    %c0_i32 = arith.constant 0 : i32
    %c0_i32_0 = arith.constant 0 : i32
    %c0_i32_1 = arith.constant 0 : i32
    %c0_i32_2 = arith.constant 0 : i32
    return %c0_i32, %c0_i32_0, %c0_i32_1 : i32, i32, i32
  }
  func.func @transform_2(%arg0: i32) -> (i32, i32, i32) {
    %c0_i32 = arith.constant 0 : i32
    %c0_i32_0 = arith.constant 0 : i32
    %c0_i32_1 = arith.constant 0 : i32
    return %arg0, %c0_i32, %c0_i32_0 : i32, i32, i32
  }
  func.func @transform_3(%arg0: i32) -> (i32, i32, i32) {
    %c0_i32 = arith.constant 0 : i32
    %c0_i32_0 = arith.constant 0 : i32
    %c0_i32_1 = arith.constant 0 : i32
    return %arg0, %c0_i32, %c0_i32_0 : i32, i32, i32
  }
}

module attributes {stable_mosaic.version = 11 : i64} {
  func.func @_bn_gelu_kernel(%arg0: i32, %arg1: memref<1x256x128xbf16, #tpu.memory_space<vmem>>, %arg2: memref<1x128xf32, #tpu.memory_space<vmem>>, %arg3: memref<1x128xf32, #tpu.memory_space<vmem>>, %arg4: memref<1x18x18x128xbf16, #tpu.memory_space<vmem>>) attributes {dimension_semantics = [#tpu.dimension_semantics<parallel>], iteration_bounds = array<i64: 2>, scalar_prefetch = 0 : i64, scratch_operands = 0 : i64, tpu.core_type = #tpu.core_type<tc>, window_params = [{transform_indices = @transform_0, window_bounds = array<i64: 1, 256, 128>}, {pipeline_mode = #tpu.pipeline_mode<synchronous>, transform_indices = @transform_1, window_bounds = array<i64: 1, 128>}, {pipeline_mode = #tpu.pipeline_mode<synchronous>, transform_indices = @transform_2, window_bounds = array<i64: 1, 128>}, {transform_indices = @transform_3, window_bounds = array<i64: 1, 18, 18, 128>}]} {
    %c0 = arith.constant 0 : index
    %c0_0 = arith.constant 0 : index
    %c0_1 = arith.constant 0 : index
    %0 = vector.load %arg1[%c0, %c0_0, %c0_1] : memref<1x256x128xbf16, #tpu.memory_space<vmem>>, vector<1x256x128xbf16>
    %1 = vector.shape_cast %0 : vector<1x256x128xbf16> to vector<256x128xbf16>
    %2 = arith.extf %1 : vector<256x128xbf16> to vector<256x128xf32>
    %c0_2 = arith.constant 0 : index
    %c0_3 = arith.constant 0 : index
    %3 = vector.load %arg2[%c0_2, %c0_3] : memref<1x128xf32, #tpu.memory_space<vmem>>, vector<1x128xf32>
    %4 = vector.broadcast %3 : vector<1x128xf32> to vector<256x128xf32>
    %5 = arith.mulf %2, %4 : vector<256x128xf32>
    %c0_4 = arith.constant 0 : index
    %c0_5 = arith.constant 0 : index
    %6 = vector.load %arg3[%c0_4, %c0_5] : memref<1x128xf32, #tpu.memory_space<vmem>>, vector<1x128xf32>
    %7 = vector.broadcast %6 : vector<1x128xf32> to vector<256x128xf32>
    %8 = arith.addf %5, %7 : vector<256x128xf32>
    %cst = arith.constant 5.000000e-01 : f32
    %9 = vector.broadcast %cst : f32 to vector<256x128xf32>
    %10 = arith.mulf %9, %8 : vector<256x128xf32>
    %cst_6 = arith.constant 0.707106769 : f32
    %11 = vector.broadcast %cst_6 : f32 to vector<256x128xf32>
    %12 = arith.mulf %8, %11 : vector<256x128xf32>
    %cst_7 = arith.constant 0.000000e+00 : f32
    %13 = vector.broadcast %cst_7 : f32 to vector<256x128xf32>
    %14 = arith.cmpf oge, %12, %13 : vector<256x128xf32>
    %cst_8 = arith.constant 1.000000e+00 : f32
    %cst_9 = arith.constant -1.000000e+00 : f32
    %15 = vector.broadcast %cst_8 : f32 to vector<256x128xf32>
    %16 = vector.broadcast %cst_9 : f32 to vector<256x128xf32>
    %17 = arith.select %14, %15, %16 : vector<256x128xi1>, vector<256x128xf32>
    %18 = math.absf %12 : vector<256x128xf32>
    %cst_10 = arith.constant 0.327591091 : f32
    %19 = vector.broadcast %cst_10 : f32 to vector<256x128xf32>
    %20 = arith.mulf %19, %18 : vector<256x128xf32>
    %cst_11 = arith.constant 1.000000e+00 : f32
    %21 = vector.broadcast %cst_11 : f32 to vector<256x128xf32>
    %22 = arith.addf %21, %20 : vector<256x128xf32>
    %23 = tpu.reciprocal %22 {approx = true} : vector<256x128xf32> -> vector<256x128xf32>
    %cst_12 = arith.constant 1.06140542 : f32
    %24 = vector.broadcast %cst_12 : f32 to vector<256x128xf32>
    %25 = arith.mulf %24, %23 : vector<256x128xf32>
    %cst_13 = arith.constant -1.45315206 : f32
    %26 = vector.broadcast %cst_13 : f32 to vector<256x128xf32>
    %27 = arith.addf %25, %26 : vector<256x128xf32>
    %28 = arith.mulf %27, %23 : vector<256x128xf32>
    %cst_14 = arith.constant 1.42141378 : f32
    %29 = vector.broadcast %cst_14 : f32 to vector<256x128xf32>
    %30 = arith.addf %28, %29 : vector<256x128xf32>
    %31 = arith.mulf %30, %23 : vector<256x128xf32>
    %cst_15 = arith.constant -0.284496725 : f32
    %32 = vector.broadcast %cst_15 : f32 to vector<256x128xf32>
    %33 = arith.addf %31, %32 : vector<256x128xf32>
    %34 = arith.mulf %33, %23 : vector<256x128xf32>
    %cst_16 = arith.constant 0.254829586 : f32
    %35 = vector.broadcast %cst_16 : f32 to vector<256x128xf32>
    %36 = arith.addf %34, %35 : vector<256x128xf32>
    %37 = arith.mulf %36, %23 : vector<256x128xf32>
    %cst_17 = arith.constant 0.000000e+00 : f32
    %38 = vector.broadcast %cst_17 : f32 to vector<256x128xf32>
    %39 = arith.subf %38, %18 : vector<256x128xf32>
    %40 = arith.mulf %39, %18 : vector<256x128xf32>
    %41 = math.exp %40 : vector<256x128xf32>
    %42 = arith.mulf %37, %41 : vector<256x128xf32>
    %cst_18 = arith.constant 1.000000e+00 : f32
    %43 = vector.broadcast %cst_18 : f32 to vector<256x128xf32>
    %44 = arith.subf %43, %42 : vector<256x128xf32>
    %45 = arith.mulf %17, %44 : vector<256x128xf32>
    %cst_19 = arith.constant 1.000000e+00 : f32
    %46 = vector.broadcast %cst_19 : f32 to vector<256x128xf32>
    %47 = arith.addf %46, %45 : vector<256x128xf32>
    %48 = arith.mulf %10, %47 : vector<256x128xf32>
    %49 = arith.truncf %48 : vector<256x128xf32> to vector<256x128xbf16>
    %cst_20 = arith.constant 0.000000e+00 : bf16
    %50 = vector.broadcast %cst_20 : bf16 to vector<1x18x18x128xbf16>
    %c0_21 = arith.constant 0 : index
    %c0_22 = arith.constant 0 : index
    %c0_23 = arith.constant 0 : index
    %c0_24 = arith.constant 0 : index
    %51 = vector.load %arg4[%c0_21, %c0_22, %c0_23, %c0_24] : memref<1x18x18x128xbf16, #tpu.memory_space<vmem>>, vector<1x18x18x128xbf16>
    tpu.vector_store %arg4[%c0_21, %c0_22, %c0_23, %c0_24], %50 {strides = array<i32>} : memref<1x18x18x128xbf16, #tpu.memory_space<vmem>>, vector<1x18x18x128xbf16>,
    %52 = vector.shape_cast %49 : vector<256x128xbf16> to vector<16x16x128xbf16>
    %c0_25 = arith.constant 0 : index
    %c1 = arith.constant 1 : index
    %c1_26 = arith.constant 1 : index
    %c0_27 = arith.constant 0 : index
    %53 = vector.load %arg4[%c0_25, %c1, %c1_26, %c0_27] : memref<1x18x18x128xbf16, #tpu.memory_space<vmem>>, vector<1x16x16x128xbf16>
    %54 = vector.shape_cast %53 : vector<1x16x16x128xbf16> to vector<16x16x128xbf16>
    %55 = vector.shape_cast %52 : vector<16x16x128xbf16> to vector<1x16x16x128xbf16>
    tpu.vector_store %arg4[%c0_25, %c1, %c1_26, %c0_27], %55 {strides = array<i32>} : memref<1x18x18x128xbf16, #tpu.memory_space<vmem>>, vector<1x16x16x128xbf16>,
    return
  }
  func.func @transform_0(%arg0: i32) -> (i32, i32, i32) {
    %c0_i32 = arith.constant 0 : i32
    %c0_i32_0 = arith.constant 0 : i32
    %c0_i32_1 = arith.constant 0 : i32
    return %arg0, %c0_i32, %c0_i32_0 : i32, i32, i32
  }
  func.func @transform_1(%arg0: i32) -> (i32, i32) {
    %c0_i32 = arith.constant 0 : i32
    %c0_i32_0 = arith.constant 0 : i32
    %c0_i32_1 = arith.constant 0 : i32
    return %c0_i32, %c0_i32_0 : i32, i32
  }
  func.func @transform_2(%arg0: i32) -> (i32, i32) {
    %c0_i32 = arith.constant 0 : i32
    %c0_i32_0 = arith.constant 0 : i32
    %c0_i32_1 = arith.constant 0 : i32
    return %c0_i32, %c0_i32_0 : i32, i32
  }
  func.func @transform_3(%arg0: i32) -> (i32, i32, i32, i32) {
    %c0_i32 = arith.constant 0 : i32
    %c0_i32_0 = arith.constant 0 : i32
    %c0_i32_1 = arith.constant 0 : i32
    %c0_i32_2 = arith.constant 0 : i32
    return %arg0, %c0_i32, %c0_i32_0, %c0_i32_1 : i32, i32, i32, i32
  }
}

module attributes {stable_mosaic.version = 11 : i64} {
  func.func @_bn_gelu_kernel(%arg0: i32, %arg1: memref<1x256x128xbf16, #tpu.memory_space<vmem>>, %arg2: memref<1x128xf32, #tpu.memory_space<vmem>>, %arg3: memref<1x128xf32, #tpu.memory_space<vmem>>, %arg4: memref<1x16x16x128xf32, #tpu.memory_space<vmem>>) attributes {dimension_semantics = [#tpu.dimension_semantics<parallel>], iteration_bounds = array<i64: 2>, scalar_prefetch = 0 : i64, scratch_operands = 0 : i64, tpu.core_type = #tpu.core_type<tc>, window_params = [{transform_indices = @transform_0, window_bounds = array<i64: 1, 256, 128>}, {pipeline_mode = #tpu.pipeline_mode<synchronous>, transform_indices = @transform_1, window_bounds = array<i64: 1, 128>}, {pipeline_mode = #tpu.pipeline_mode<synchronous>, transform_indices = @transform_2, window_bounds = array<i64: 1, 128>}, {transform_indices = @transform_3, window_bounds = array<i64: 1, 16, 16, 128>}]} {
    %c0 = arith.constant 0 : index
    %c0_0 = arith.constant 0 : index
    %c0_1 = arith.constant 0 : index
    %0 = vector.load %arg1[%c0, %c0_0, %c0_1] : memref<1x256x128xbf16, #tpu.memory_space<vmem>>, vector<1x256x128xbf16>
    %1 = vector.shape_cast %0 : vector<1x256x128xbf16> to vector<256x128xbf16>
    %2 = arith.extf %1 : vector<256x128xbf16> to vector<256x128xf32>
    %c0_2 = arith.constant 0 : index
    %c0_3 = arith.constant 0 : index
    %3 = vector.load %arg2[%c0_2, %c0_3] : memref<1x128xf32, #tpu.memory_space<vmem>>, vector<1x128xf32>
    %4 = vector.broadcast %3 : vector<1x128xf32> to vector<256x128xf32>
    %5 = arith.mulf %2, %4 : vector<256x128xf32>
    %c0_4 = arith.constant 0 : index
    %c0_5 = arith.constant 0 : index
    %6 = vector.load %arg3[%c0_4, %c0_5] : memref<1x128xf32, #tpu.memory_space<vmem>>, vector<1x128xf32>
    %7 = vector.broadcast %6 : vector<1x128xf32> to vector<256x128xf32>
    %8 = arith.addf %5, %7 : vector<256x128xf32>
    %cst = arith.constant 5.000000e-01 : f32
    %9 = vector.broadcast %cst : f32 to vector<256x128xf32>
    %10 = arith.mulf %9, %8 : vector<256x128xf32>
    %cst_6 = arith.constant 0.707106769 : f32
    %11 = vector.broadcast %cst_6 : f32 to vector<256x128xf32>
    %12 = arith.mulf %8, %11 : vector<256x128xf32>
    %cst_7 = arith.constant 0.000000e+00 : f32
    %13 = vector.broadcast %cst_7 : f32 to vector<256x128xf32>
    %14 = arith.cmpf oge, %12, %13 : vector<256x128xf32>
    %cst_8 = arith.constant 1.000000e+00 : f32
    %cst_9 = arith.constant -1.000000e+00 : f32
    %15 = vector.broadcast %cst_8 : f32 to vector<256x128xf32>
    %16 = vector.broadcast %cst_9 : f32 to vector<256x128xf32>
    %17 = arith.select %14, %15, %16 : vector<256x128xi1>, vector<256x128xf32>
    %18 = math.absf %12 : vector<256x128xf32>
    %cst_10 = arith.constant 0.327591091 : f32
    %19 = vector.broadcast %cst_10 : f32 to vector<256x128xf32>
    %20 = arith.mulf %19, %18 : vector<256x128xf32>
    %cst_11 = arith.constant 1.000000e+00 : f32
    %21 = vector.broadcast %cst_11 : f32 to vector<256x128xf32>
    %22 = arith.addf %21, %20 : vector<256x128xf32>
    %23 = tpu.reciprocal %22 {approx = true} : vector<256x128xf32> -> vector<256x128xf32>
    %cst_12 = arith.constant 1.06140542 : f32
    %24 = vector.broadcast %cst_12 : f32 to vector<256x128xf32>
    %25 = arith.mulf %24, %23 : vector<256x128xf32>
    %cst_13 = arith.constant -1.45315206 : f32
    %26 = vector.broadcast %cst_13 : f32 to vector<256x128xf32>
    %27 = arith.addf %25, %26 : vector<256x128xf32>
    %28 = arith.mulf %27, %23 : vector<256x128xf32>
    %cst_14 = arith.constant 1.42141378 : f32
    %29 = vector.broadcast %cst_14 : f32 to vector<256x128xf32>
    %30 = arith.addf %28, %29 : vector<256x128xf32>
    %31 = arith.mulf %30, %23 : vector<256x128xf32>
    %cst_15 = arith.constant -0.284496725 : f32
    %32 = vector.broadcast %cst_15 : f32 to vector<256x128xf32>
    %33 = arith.addf %31, %32 : vector<256x128xf32>
    %34 = arith.mulf %33, %23 : vector<256x128xf32>
    %cst_16 = arith.constant 0.254829586 : f32
    %35 = vector.broadcast %cst_16 : f32 to vector<256x128xf32>
    %36 = arith.addf %34, %35 : vector<256x128xf32>
    %37 = arith.mulf %36, %23 : vector<256x128xf32>
    %cst_17 = arith.constant 0.000000e+00 : f32
    %38 = vector.broadcast %cst_17 : f32 to vector<256x128xf32>
    %39 = arith.subf %38, %18 : vector<256x128xf32>
    %40 = arith.mulf %39, %18 : vector<256x128xf32>
    %41 = math.exp %40 : vector<256x128xf32>
    %42 = arith.mulf %37, %41 : vector<256x128xf32>
    %cst_18 = arith.constant 1.000000e+00 : f32
    %43 = vector.broadcast %cst_18 : f32 to vector<256x128xf32>
    %44 = arith.subf %43, %42 : vector<256x128xf32>
    %45 = arith.mulf %17, %44 : vector<256x128xf32>
    %cst_19 = arith.constant 1.000000e+00 : f32
    %46 = vector.broadcast %cst_19 : f32 to vector<256x128xf32>
    %47 = arith.addf %46, %45 : vector<256x128xf32>
    %48 = arith.mulf %10, %47 : vector<256x128xf32>
    %49 = vector.shape_cast %48 : vector<256x128xf32> to vector<1x16x16x128xf32>
    %c0_20 = arith.constant 0 : index
    %c0_21 = arith.constant 0 : index
    %c0_22 = arith.constant 0 : index
    %c0_23 = arith.constant 0 : index
    %50 = vector.load %arg4[%c0_20, %c0_21, %c0_22, %c0_23] : memref<1x16x16x128xf32, #tpu.memory_space<vmem>>, vector<1x16x16x128xf32>
    tpu.vector_store %arg4[%c0_20, %c0_21, %c0_22, %c0_23], %49 {strides = array<i32>} : memref<1x16x16x128xf32, #tpu.memory_space<vmem>>, vector<1x16x16x128xf32>,
    return
  }
  func.func @transform_0(%arg0: i32) -> (i32, i32, i32) {
    %c0_i32 = arith.constant 0 : i32
    %c0_i32_0 = arith.constant 0 : i32
    %c0_i32_1 = arith.constant 0 : i32
    return %arg0, %c0_i32, %c0_i32_0 : i32, i32, i32
  }
  func.func @transform_1(%arg0: i32) -> (i32, i32) {
    %c0_i32 = arith.constant 0 : i32
    %c0_i32_0 = arith.constant 0 : i32
    %c0_i32_1 = arith.constant 0 : i32
    return %c0_i32, %c0_i32_0 : i32, i32
  }
  func.func @transform_2(%arg0: i32) -> (i32, i32) {
    %c0_i32 = arith.constant 0 : i32
    %c0_i32_0 = arith.constant 0 : i32
    %c0_i32_1 = arith.constant 0 : i32
    return %c0_i32, %c0_i32_0 : i32, i32
  }
  func.func @transform_3(%arg0: i32) -> (i32, i32, i32, i32) {
    %c0_i32 = arith.constant 0 : i32
    %c0_i32_0 = arith.constant 0 : i32
    %c0_i32_1 = arith.constant 0 : i32
    %c0_i32_2 = arith.constant 0 : i32
    return %arg0, %c0_i32, %c0_i32_0, %c0_i32_1 : i32, i32, i32, i32
  }
}

</mosaic_0001>

<llo_original>
// kernel: tile.8
$region0: #{tile.8}
  #allocation2 [shape = 's32[1]{0}', space=sflag, size = 0x4, scoped, tag = 'scoped memory for tile.8']
  %s0 = inlined_call_operand.vmem [shape: f32[128], index: 0, kind: input, shape index: {}]
  %s1 = inlined_call_operand.hbm [shape: f32[4,128], index: 1, kind: output, shape index: {}]
  $region1: #{tile.8} parent=0
    #allocation0 [shape = 'u8[2048]{0}', space=vmem, size = 0x800, scoped, tag = 'operand span for operand 1']
    #allocation1 [shape = 's32[1]{0}', space=sflag, size = 0x4, scoped, tag = 'scoped memory for tile.8']
    %2 = vsyncpa [#allocation1], 0
    // Predicated region
    $region2: #{tile.8} parent=1 // pred_check
      _
    $region3: #{tile.8} parent=1 // pred_check_branch
      %4 = sbr.rel (0) target = $region5
    $region4: #{tile.8} parent=1 // pred_region
      _
    $region5: #{tile.8} parent=1 // pred_fallthru
      _
    %v5 = vld [vmem:[%s0] ss:$0 sm:$0xff]
    %6 = vst [vmem:[#allocation0] sm:$0xf] %v5
    %s8 = ssub.s32 64, 64
    %9 = vsyncadd [#allocation1], %s8
    %s11 = sshll.u32 [#allocation0], 4
    %s12 = int_to_ptr.vmem [resolvable:$true] %s11
    %14 = dma.vmem_to_hbm [thread:$0]  %s12, 64, %s1, [#allocation1]
    %15 = dma.done [#allocation1], 64
    %16 = vsyncpa [#allocation1], 1

// kernel: unet_up_forward.9
$region0: #{unet_up_forward.9}
  #allocation0 [shape = 'u32[]', space=smem, size = 0x4, offset = 0x4, fixed_abs, tag = 'smem constant byte address 0x4 - core index']
  #allocation1 [shape = 'u32[144,128]{1,0:T(1,128)}', space=vmem, size = 0x12000, scoped, tag = 'internal scratch']
  %s0 = inlined_call_operand.hbm [shape: bf16[128,128], index: 0, kind: input, shape index: {}]
  %s1 = inlined_call_operand.hbm [shape: bf16[128,512], index: 1, kind: input, shape index: {}]
  %s2 = inlined_call_operand.hbm [shape: f32[1,512], index: 2, kind: input, shape index: {}]
  %s3 = inlined_call_operand.hbm [shape: bf16[128,512], index: 3, kind: output, shape index: {}]
  %s4 = sld [smem:[#allocation0]]
  $region57: #{unet_up_forward.9} parent=0
    _
  %s6 = ssub.s32 1, %s4
  %s7 = scalar_select 0, %s6, %s4
  $region1: #{unet_up_forward.9} parent=0
    #allocation2 [shape = 'u8[32768]{0}', space=vmem, size = 0x8000, scoped, tag = 'input window, operand 0']
    #allocation3 [shape = 's32[2]{0}', space=sflag, size = 0x8, scoped, tag = 'scoped memory for unet_up_forward.9']
    #allocation4 [shape = 's32[2]{0}', space=sflag, size = 0x8, scoped, tag = 'scoped memory for unet_up_forward.9']
    #allocation5 [shape = 'u8[131072]{0}', space=vmem, size = 0x20000, scoped, tag = 'input window, operand 1, single buffered']
    #allocation6 [shape = 's32[1]{0}', space=sflag, size = 0x4, scoped, tag = 'scoped memory for unet_up_forward.9']
    #allocation7 [shape = 'u8[2048]{0}', space=vmem, size = 0x800, scoped, tag = 'input window, operand 2, single buffered']
    #allocation8 [shape = 'u8[131072]{0}', space=vmem, size = 0x20000, scoped, tag = 'output window, operand 0']
    %8 = vsyncpa [#allocation3], 0
    %s9 = scalar_lea.sflag [#allocation3], 1
    %10 = vsyncpa %s9, 0
    %11 = vsyncpa [#allocation6], 0
    %12 = vsyncpa [#allocation4], 0
    %s13 = scalar_lea.sflag [#allocation4], 1
    %14 = vsyncpa %s13, 0
    loop: start=0, step=1, limit=4
    $region2: #{unet_up_forward.9} parent=1 // loop_pre_header
      _
    $region3: #{unet_up_forward.9} parent=1 // loop_header
      %s16 = sphi 0, %s20
      %p17 = scmp.ge.s32.totalorder %s16, 4
      %s26 = sphi 0, %s28
      %s29 = sphi 0, %s26
      %s30 = sphi 0, %s29
      %s46 = sphi 0, %s30
      %s50 = sphi 0, %s50
      %s52 = sphi 0, %s50
      %s53 = sphi 0, %s52
      %s67 = sphi 0, %s53
      %s71 = sphi 0, %s71
      %s73 = sphi 0, %s71
      %s74 = sphi 0, %s73
      %s88 = sphi 0, %s74
      %s94 = sphi 0, %s96
      %s97 = sphi 0, %s94
      %s98 = sphi 0, %s97
      %s114 = sphi 0, %s98
    $region4: #{unet_up_forward.9} parent=1 // loop_header_branch
      %19 = sbr.rel (%p17) target = $region8
    $region5: #{unet_up_forward.9} parent=1 // loop_body
      %s21 = ssub.s32 %s16, 1
      %s22 = ssub.s32 %s16, 2
      %s23 = sadd.s32 %s16, 1
      %s24 = ssub.s32 %s16, %s23
      %p25 = scmp.eq.s32.totalorder %s24, 0
      %s27 = sadd.s32 %s26, 1
      %s28 = scalar_select %p25, %s26, %s27
      %p31 = pneg %p25
      %p32 = scmp.eq.s32.totalorder %s16, 1
      %p33 = por %p31, %p32
      %p34 = scmp.ne.s32.totalorder %s26, %s29
      %p35 = scmp.eq.s32.totalorder %s16, 0
      %p36 = por %p34, %p35
      %p37 = scmp.ne.s32.totalorder %s26, %s29
      %p38 = scmp.eq.s32.totalorder %s21, 1
      %p39 = por %p37, %p38
      %p40 = scmp.ne.s32.totalorder %s29, %s30
      %p41 = scmp.eq.s32.totalorder %s21, 0
      %p42 = por %p40, %p41
      %p43 = scmp.ne.s32.totalorder %s29, %s30
      %p44 = scmp.eq.s32.totalorder %s22, 1
      %p45 = por %p43, %p44
      %p47 = scmp.ne.s32.totalorder %s30, %s46
      %p48 = scmp.eq.s32.totalorder %s22, 0
      %p49 = por %p47, %p48
      %s51 = sadd.s32 %s50, 1
      %p54 = scmp.eq.s32.totalorder %s16, 1
      %p55 = scmp.ne.s32.totalorder %s50, %s52
      %p56 = scmp.eq.s32.totalorder %s16, 0
      %p57 = por %p55, %p56
      %p58 = scmp.ne.s32.totalorder %s50, %s52
      %p59 = scmp.eq.s32.totalorder %s21, 1
      %p60 = por %p58, %p59
      %p61 = scmp.ne.s32.totalorder %s52, %s53
      %p62 = scmp.eq.s32.totalorder %s21, 0
      %p63 = por %p61, %p62
      %p64 = scmp.ne.s32.totalorder %s52, %s53
      %p65 = scmp.eq.s32.totalorder %s22, 1
      %p66 = por %p64, %p65
      %p68 = scmp.ne.s32.totalorder %s53, %s67
      %p69 = scmp.eq.s32.totalorder %s22, 0
      %p70 = por %p68, %p69
      %s72 = sadd.s32 %s71, 1
      %p75 = scmp.eq.s32.totalorder %s16, 1
      %p76 = scmp.ne.s32.totalorder %s71, %s73
      %p77 = scmp.eq.s32.totalorder %s16, 0
      %p78 = por %p76, %p77
      %p79 = scmp.ne.s32.totalorder %s71, %s73
      %p80 = scmp.eq.s32.totalorder %s21, 1
      %p81 = por %p79, %p80
      %p82 = scmp.ne.s32.totalorder %s73, %s74
      %p83 = scmp.eq.s32.totalorder %s21, 0
      %p84 = por %p82, %p83
      %p85 = scmp.ne.s32.totalorder %s73, %s74
      %p86 = scmp.eq.s32.totalorder %s22, 1
      %p87 = por %p85, %p86
      %p89 = scmp.ne.s32.totalorder %s74, %s88
      %p90 = scmp.eq.s32.totalorder %s22, 0
      %p91 = por %p89, %p90
      %s92 = ssub.s32 %s16, %s23
      %p93 = scmp.eq.s32.totalorder %s92, 0
      %s95 = sadd.s32 %s94, 1
      %s96 = scalar_select %p93, %s94, %s95
      %p99 = pneg %p93
      %p100 = scmp.eq.s32.totalorder %s16, 1
      %p101 = por %p99, %p100
      %p102 = scmp.ne.s32.totalorder %s94, %s97
      %p103 = scmp.eq.s32.totalorder %s16, 0
      %p104 = por %p102, %p103
      %p105 = scmp.ne.s32.totalorder %s94, %s97
      %p106 = scmp.eq.s32.totalorder %s21, 1
      %p107 = por %p105, %p106
      %p108 = scmp.ne.s32.totalorder %s97, %s98
      %p109 = scmp.eq.s32.totalorder %s21, 0
      %p110 = por %p108, %p109
      %p111 = scmp.ne.s32.totalorder %s97, %s98
      %p112 = scmp.eq.s32.totalorder %s22, 1
      %p113 = por %p111, %p112
      %p115 = scmp.ne.s32.totalorder %s98, %s114
      %p116 = scmp.eq.s32.totalorder %s22, 0
      %p117 = por %p115, %p116
      %p118 = scmp.le.s32.totalorder 1, %s16
      %p119 = scmp.lt.s32.totalorder %s16, 3
      %p120 = pnand %p118, %p119
      %p121 = pneg %p120
      // Predicated region
      $region9: #{unet_up_forward.9} parent=5 // pred_check
        _
      $region10: #{unet_up_forward.9} parent=5 // pred_check_branch
        %123 = sbr.rel (%p120) target = $region12
      $region11: #{unet_up_forward.9} parent=5 // pred_region
        %s124 = ssub.s32 %s16, 1
        // Predicated region
        $region13: #{unet_up_forward.9} parent=11 // pred_check
          %p125 = pneg %p63
        $region14: #{unet_up_forward.9} parent=11 // pred_check_branch
          %127 = sbr.rel (%p125) target = $region16
        $region15: #{unet_up_forward.9} parent=11 // pred_region
          %s129 = ssub.s32 4096, 4096
          %130 = vsyncadd [#allocation6], %s129
          %s131 = sshll.u32 [#allocation5], 4
          %s132 = int_to_ptr.vmem [resolvable:$true] %s131
          %137 = dma.hbm_to_vmem [thread:$0]  %s1, 4096, %s132, [#allocation6], 256, 256, 16
        $region16: #{unet_up_forward.9} parent=11 // pred_fallthru
          _
        // Predicated region
        $region17: #{unet_up_forward.9} parent=11 // pred_check
          %p138 = pneg %p84
        $region18: #{unet_up_forward.9} parent=11 // pred_check_branch
          %140 = sbr.rel (%p138) target = $region20
        $region19: #{unet_up_forward.9} parent=11 // pred_region
          %s142 = ssub.s32 64, 64
          %143 = vsyncadd [#allocation6], %s142
          %s145 = sshll.u32 [#allocation7], 4
          %s146 = int_to_ptr.vmem [resolvable:$true] %s145
          %148 = dma.hbm_to_vmem [thread:$0]  %s2, 64, %s146, [#allocation6]
        $region20: #{unet_up_forward.9} parent=11 // pred_fallthru
          _
      $region12: #{unet_up_forward.9} parent=5 // pred_fallthru
        _
      %p149 = scmp.lt.s32.totalorder %s16, 2
      // Predicated region
      $region21: #{unet_up_forward.9} parent=5 // pred_check
        %p150 = pneg %p149
      $region22: #{unet_up_forward.9} parent=5 // pred_check_branch
        %152 = sbr.rel (%p150) target = $region24
      $region23: #{unet_up_forward.9} parent=5 // pred_region
        // Predicated region
        $region25: #{unet_up_forward.9} parent=23 // pred_check
          %p153 = pneg %p36
        $region26: #{unet_up_forward.9} parent=23 // pred_check_branch
          %155 = sbr.rel (%p153) target = $region28
        $region27: #{unet_up_forward.9} parent=23 // pred_region
          %s156 = sand.u32 %s26, 1
          %s157 = scalar_lea.sflag [#allocation3], %s156
          %s158 = sand.u32 %s26, 1
          %s159 = smul.addr %s158, 32
          %s160 = scalar_lea.vmem [#allocation2], %s159
          %s161 = smul.u32 8, %s16
          %s163 = ssub.s32 512, 512
          %164 = vsyncadd %s157, %s163
          %s165 = smul.addr %s161, 64
          %s166 = scalar_lea.hbm %s0, %s165
          %s167 = sshll.u32 %s160, 4
          %s168 = int_to_ptr.vmem [resolvable:$true] %s167
          %173 = dma.hbm_to_vmem [thread:$0]  %s166, 512, %s168, %s157, 64, 64, 4
        $region28: #{unet_up_forward.9} parent=23 // pred_fallthru
          _
      $region24: #{unet_up_forward.9} parent=5 // pred_fallthru
        _
      %p174 = scmp.le.s32.totalorder 1, %s16
      %p175 = scmp.lt.s32.totalorder %s16, 3
      %p176 = pnand %p174, %p175
      %p177 = pneg %p176
      // Predicated region
      $region29: #{unet_up_forward.9} parent=5 // pred_check
        _
      $region30: #{unet_up_forward.9} parent=5 // pred_check_branch
        %179 = sbr.rel (%p176) target = $region32
      $region31: #{unet_up_forward.9} parent=5 // pred_region
        %s180 = ssub.s32 %s16, 1
        %s181 = sand.u32 %s29, 1
        %s182 = scalar_lea.sflag [#allocation3], %s181
        %s183 = sand.u32 %s29, 1
        %s184 = smul.addr %s183, 32
        %s185 = scalar_lea.vmem [#allocation2], %s184
        // Predicated region
        $region33: #{unet_up_forward.9} parent=31 // pred_check
          %p186 = pneg %p42
        $region34: #{unet_up_forward.9} parent=31 // pred_check_branch
          %188 = sbr.rel (%p186) target = $region36
        $region35: #{unet_up_forward.9} parent=31 // pred_region
          %189 = dma.done %s182, 512
        $region36: #{unet_up_forward.9} parent=31 // pred_fallthru
          _
        // Predicated region
        $region37: #{unet_up_forward.9} parent=31 // pred_check
          %p190 = pneg %p63
        $region38: #{unet_up_forward.9} parent=31 // pred_check_branch
          %192 = sbr.rel (%p190) target = $region40
        $region39: #{unet_up_forward.9} parent=31 // pred_region
          %193 = dma.done [#allocation6], 4096
        $region40: #{unet_up_forward.9} parent=31 // pred_fallthru
          _
        // Predicated region
        $region41: #{unet_up_forward.9} parent=31 // pred_check
          %p194 = pneg %p84
        $region42: #{unet_up_forward.9} parent=31 // pred_check_branch
          %196 = sbr.rel (%p194) target = $region44
        $region43: #{unet_up_forward.9} parent=31 // pred_region
          %197 = dma.done [#allocation6], 64
        $region44: #{unet_up_forward.9} parent=31 // pred_fallthru
          _
        %s198 = sand.u32 %s29, 1
        %s199 = scalar_lea.sflag [#allocation3], %s198
        %s200 = sand.u32 %s29, 1
        %s201 = smul.addr %s200, 32
        %s202 = scalar_lea.vmem [#allocation2], %s201
        %p203 = pneg %p42
        %p204 = pneg %p39
        %p205 = pneg %p63
        %p206 = pneg %p60
        %p207 = pneg %p84
        %p208 = pneg %p81
        %p209 = pneg %p110
        %p210 = pneg %p107
        %s211 = sand.u32 %s97, 1
        %s212 = scalar_lea.sflag [#allocation4], %s211
        %s213 = sand.u32 %s97, 1
        %s214 = smul.addr %s213, 128
        %s215 = scalar_lea.vmem [#allocation8], %s214
        %s216 = smul.u32 8, %s21
        %s217 = smul.u32 8, %s21
        %v219 = vld [vmem:[%s185] sm:$0xf]
        %v220 = vld [vmem:[%s185 + $0x4] sm:$0xf]
        %v221 = vld [vmem:[%s185 + $0x8] sm:$0xf]
        %v222 = vld [vmem:[%s185 + $0xc] sm:$0xf]
        %v223 = vld [vmem:[%s185 + $0x10] sm:$0xf]
        %v224 = vld [vmem:[%s185 + $0x14] sm:$0xf]
        %v225 = vld [vmem:[%s185 + $0x18] sm:$0xf]
        %v226 = vld [vmem:[%s185 + $0x1c] sm:$0xf]
        %v227 = vld [vmem:[#allocation5] sm:$0xff]
        %v228 = vld [vmem:[#allocation5 + $0x8] sm:$0xff]
        %v229 = vld [vmem:[#allocation5 + $0x10] sm:$0xff]
        %v230 = vld [vmem:[#allocation5 + $0x18] sm:$0xff]
        %v231 = vld [vmem:[#allocation5 + $0x20] sm:$0xff]
        %v232 = vld [vmem:[#allocation5 + $0x28] sm:$0xff]
        %v233 = vld [vmem:[#allocation5 + $0x30] sm:$0xff]
        %v234 = vld [vmem:[#allocation5 + $0x38] sm:$0xff]
        %v235 = vld [vmem:[#allocation5 + $0x40] sm:$0xff]
        %v236 = vld [vmem:[#allocation5 + $0x48] sm:$0xff]
        %v237 = vld [vmem:[#allocation5 + $0x50] sm:$0xff]
        %v238 = vld [vmem:[#allocation5 + $0x58] sm:$0xff]
        %v239 = vld [vmem:[#allocation5 + $0x60] sm:$0xff]
        %v240 = vld [vmem:[#allocation5 + $0x68] sm:$0xff]
        %v241 = vld [vmem:[#allocation5 + $0x70] sm:$0xff]
        %v242 = vld [vmem:[#allocation5 + $0x78] sm:$0xff]
        %v243 = vld [vmem:[#allocation5 + $0x80] sm:$0xff]
        %v244 = vld [vmem:[#allocation5 + $0x88] sm:$0xff]
        %v245 = vld [vmem:[#allocation5 + $0x90] sm:$0xff]
        %v246 = vld [vmem:[#allocation5 + $0x98] sm:$0xff]
        %v247 = vld [vmem:[#allocation5 + $0xa0] sm:$0xff]
        %v248 = vld [vmem:[#allocation5 + $0xa8] sm:$0xff]
        %v249 = vld [vmem:[#allocation5 + $0xb0] sm:$0xff]
        %v250 = vld [vmem:[#allocation5 + $0xb8] sm:$0xff]
        %v251 = vld [vmem:[#allocation5 + $0xc0] sm:$0xff]
        %v252 = vld [vmem:[#allocation5 + $0xc8] sm:$0xff]
        %v253 = vld [vmem:[#allocation5 + $0xd0] sm:$0xff]
        %v254 = vld [vmem:[#allocation5 + $0xd8] sm:$0xff]
        %v255 = vld [vmem:[#allocation5 + $0xe0] sm:$0xff]
        %v256 = vld [vmem:[#allocation5 + $0xe8] sm:$0xff]
        %v257 = vld [vmem:[#allocation5 + $0xf0] sm:$0xff]
        %v258 = vld [vmem:[#allocation5 + $0xf8] sm:$0xff]
        %v259 = vld [vmem:[#allocation7] sm:$0xf]
        %v261 = vlaneseq
        %v262 = vshrl.u32 %v261, 7
        %v263 = vsub.s32 0, %v262
        %v264 = vrot.slane %v259, %v263
        %v265 = vlaneseq
        %v266 = vshrl.u32 %v265, 7
        %v267 = vsub.s32 1, %v266
        %v268 = vrot.slane %v259, %v267
        %v269 = vlaneseq
        %v270 = vshrl.u32 %v269, 7
        %v271 = vsub.s32 2, %v270
        %v272 = vrot.slane %v259, %v271
        %v273 = vlaneseq
        %v274 = vshrl.u32 %v273, 7
        %v275 = vsub.s32 3, %v274
        %v276 = vrot.slane %v259, %v275
        %v289 = vunpack.c.l.b16 %v219
        %v290 = vunpack.c.l.b16 %v220
        %v291 = vunpack.c.l.b16 %v221
        %v292 = vunpack.c.l.b16 %v222
        %v293 = vunpack.c.l.b16 %v223
        %v294 = vunpack.c.l.b16 %v224
        %v295 = vunpack.c.l.b16 %v225
        %v296 = vunpack.c.l.b16 %v226
        %v297 = vpack.c.b16 %v290, %v289
        %v298 = vpack.c.b16 %v292, %v291
        %v299 = vpack.c.b16 %v294, %v293
        %v300 = vpack.c.b16 %v296, %v295
        %v337 = vunpack.c.l.b16 %v227
        %v338 = vunpack.c.h.b16 %v227
        %v339 = vunpack.c.l.b16 %v228
        %v340 = vunpack.c.h.b16 %v228
        %v341 = vunpack.c.l.b16 %v229
        %v342 = vunpack.c.h.b16 %v229
        %v343 = vunpack.c.l.b16 %v230
        %v344 = vunpack.c.h.b16 %v230
        %v345 = vunpack.c.l.b16 %v231
        %v346 = vunpack.c.h.b16 %v231
        %v347 = vunpack.c.l.b16 %v232
        %v348 = vunpack.c.h.b16 %v232
        %v349 = vunpack.c.l.b16 %v233
        %v350 = vunpack.c.h.b16 %v233
        %v351 = vunpack.c.l.b16 %v234
        %v352 = vunpack.c.h.b16 %v234
        %v353 = vunpack.c.l.b16 %v235
        %v354 = vunpack.c.h.b16 %v235
        %v355 = vunpack.c.l.b16 %v236
        %v356 = vunpack.c.h.b16 %v236
        %v357 = vunpack.c.l.b16 %v237
        %v358 = vunpack.c.h.b16 %v237
        %v359 = vunpack.c.l.b16 %v238
        %v360 = vunpack.c.h.b16 %v238
        %v361 = vunpack.c.l.b16 %v239
        %v362 = vunpack.c.h.b16 %v239
        %v363 = vunpack.c.l.b16 %v240
        %v364 = vunpack.c.h.b16 %v240
        %v365 = vunpack.c.l.b16 %v241
        %v366 = vunpack.c.h.b16 %v241
        %v367 = vunpack.c.l.b16 %v242
        %v368 = vunpack.c.h.b16 %v242
        %v369 = vunpack.c.l.b16 %v243
        %v370 = vunpack.c.h.b16 %v243
        %v371 = vunpack.c.l.b16 %v244
        %v372 = vunpack.c.h.b16 %v244
        %v373 = vunpack.c.l.b16 %v245
        %v374 = vunpack.c.h.b16 %v245
        %v375 = vunpack.c.l.b16 %v246
        %v376 = vunpack.c.h.b16 %v246
        %v377 = vunpack.c.l.b16 %v247
        %v378 = vunpack.c.h.b16 %v247
        %v379 = vunpack.c.l.b16 %v248
        %v380 = vunpack.c.h.b16 %v248
        %v381 = vunpack.c.l.b16 %v249
        %v382 = vunpack.c.h.b16 %v249
        %v383 = vunpack.c.l.b16 %v250
        %v384 = vunpack.c.h.b16 %v250
        %v385 = vunpack.c.l.b16 %v251
        %v386 = vunpack.c.h.b16 %v251
        %v387 = vunpack.c.l.b16 %v252
        %v388 = vunpack.c.h.b16 %v252
        %v389 = vunpack.c.l.b16 %v253
        %v390 = vunpack.c.h.b16 %v253
        %v391 = vunpack.c.l.b16 %v254
        %v392 = vunpack.c.h.b16 %v254
        %v393 = vunpack.c.l.b16 %v255
        %v394 = vunpack.c.h.b16 %v255
        %v395 = vunpack.c.l.b16 %v256
        %v396 = vunpack.c.h.b16 %v256
        %v397 = vunpack.c.l.b16 %v257
        %v398 = vunpack.c.h.b16 %v257
        %v399 = vunpack.c.l.b16 %v258
        %v400 = vunpack.c.h.b16 %v258
        %v401 = vpack.c.b16 %v341, %v337
        %v402 = vpack.c.b16 %v342, %v338
        %v403 = vpack.c.b16 %v343, %v339
        %v404 = vpack.c.b16 %v344, %v340
        %v405 = vpack.c.b16 %v349, %v345
        %v406 = vpack.c.b16 %v350, %v346
        %v407 = vpack.c.b16 %v351, %v347
        %v408 = vpack.c.b16 %v352, %v348
        %v409 = vpack.c.b16 %v357, %v353
        %v410 = vpack.c.b16 %v358, %v354
        %v411 = vpack.c.b16 %v359, %v355
        %v412 = vpack.c.b16 %v360, %v356
        %v413 = vpack.c.b16 %v365, %v361
        %v414 = vpack.c.b16 %v366, %v362
        %v415 = vpack.c.b16 %v367, %v363
        %v416 = vpack.c.b16 %v368, %v364
        %v417 = vpack.c.b16 %v373, %v369
        %v418 = vpack.c.b16 %v374, %v370
        %v419 = vpack.c.b16 %v375, %v371
        %v420 = vpack.c.b16 %v376, %v372
        %v421 = vpack.c.b16 %v381, %v377
        %v422 = vpack.c.b16 %v382, %v378
        %v423 = vpack.c.b16 %v383, %v379
        %v424 = vpack.c.b16 %v384, %v380
        %v425 = vpack.c.b16 %v389, %v385
        %v426 = vpack.c.b16 %v390, %v386
        %v427 = vpack.c.b16 %v391, %v387
        %v428 = vpack.c.b16 %v392, %v388
        %v429 = vpack.c.b16 %v397, %v393
        %v430 = vpack.c.b16 %v398, %v394
        %v431 = vpack.c.b16 %v399, %v395
        %v432 = vpack.c.b16 %v400, %v396
        %465 = vmatprep.subr.bf16.mxu0 %v402
        %466 = vmatpush1.bf16.msra.mxu0 %v401
        %467 = vmatprep.subr.bf16.mxu0 %v406
        %468 = vmatpush1.bf16.msra.mxu0 %v405
        %469 = vmatprep.subr.bf16.mxu0 %v410
        %470 = vmatpush1.bf16.msra.mxu0 %v409
        %471 = vmatprep.subr.bf16.mxu0 %v414
        %472 = vmatpush1.bf16.msra.mxu0 %v413
        %473 = vmatprep.subr.bf16.mxu0 %v418
        %474 = vmatpush1.bf16.msra.mxu0 %v417
        %475 = vmatprep.subr.bf16.mxu0 %v422
        %476 = vmatpush1.bf16.msra.mxu0 %v421
        %477 = vmatprep.subr.bf16.mxu0 %v426
        %478 = vmatpush1.bf16.msra.mxu0 %v425
        %479 = vmatprep.subr.bf16.mxu0 %v430
        %480 = vmatpush1.bf16.msra.mxu0 %v429
        %481 = vmatprep.subr.bf16.mxu0 0
        %482 = vmatpush1.bf16.msra.mxu0 0
        %483 = vmatprep.subr.bf16.mxu0 0
        %484 = vmatpush1.bf16.msra.mxu0 0
        %485 = vmatprep.subr.bf16.mxu0 0
        %486 = vmatpush1.bf16.msra.mxu0 0
        %487 = vmatprep.subr.bf16.mxu0 0
        %488 = vmatpush1.bf16.msra.mxu0 0
        %489 = vmatprep.subr.bf16.mxu0 0
        %490 = vmatpush1.bf16.msra.mxu0 0
        %491 = vmatprep.subr.bf16.mxu0 0
        %492 = vmatpush1.bf16.msra.mxu0 0
        %493 = vmatprep.subr.bf16.mxu0 0
        %494 = vmatpush1.bf16.msra.mxu0 0
        %495 = vmatprep.subr.bf16.mxu0 0
        %496 = vmatpush1.bf16.msra.mxu0 0
        %497 = vmatprep.mubr.bf16.mxu0 0
        %498 = vmatmul.mubr.bf16.gmra.mrb[0].mxu0 %v297
        %v499 = vpop.f32.mrb[0].mxu0
        %v500 = vadd.f32 %v264, %v499
        %v501 = vpop.f32.mrb[0].mxu0
        %v502 = vadd.f32 %v268, %v501
        %v503 = vpop.f32.mrb[0].mxu0
        %v504 = vadd.f32 %v264, %v503
        %v505 = vpop.f32.mrb[0].mxu0
        %v506 = vadd.f32 %v268, %v505
        %507 = vmatprep.mubr.bf16.mxu0 0
        %508 = vmatmul.mubr.bf16.gmra.mrb[0].mxu0 %v298
        %v509 = vpop.f32.mrb[0].mxu0
        %v510 = vadd.f32 %v264, %v509
        %v511 = vpop.f32.mrb[0].mxu0
        %v512 = vadd.f32 %v268, %v511
        %v513 = vpop.f32.mrb[0].mxu0
        %v514 = vadd.f32 %v264, %v513
        %v515 = vpop.f32.mrb[0].mxu0
        %v516 = vadd.f32 %v268, %v515
        %517 = vmatprep.mubr.bf16.mxu0 0
        %518 = vmatmul.mubr.bf16.gmra.mrb[0].mxu0 %v299
        %v519 = vpop.f32.mrb[0].mxu0
        %v520 = vadd.f32 %v264, %v519
        %v521 = vpop.f32.mrb[0].mxu0
        %v522 = vadd.f32 %v268, %v521
        %v523 = vpop.f32.mrb[0].mxu0
        %v524 = vadd.f32 %v264, %v523
        %v525 = vpop.f32.mrb[0].mxu0
        %v526 = vadd.f32 %v268, %v525
        %527 = vmatprep.mubr.bf16.mxu0 0
        %528 = vmatmul.mubr.bf16.gmra.mrb[0].mxu0 %v300
        %v529 = vpop.f32.mrb[0].mxu0
        %v530 = vadd.f32 %v264, %v529
        %v531 = vpop.f32.mrb[0].mxu0
        %v532 = vadd.f32 %v268, %v531
        %v533 = vpop.f32.mrb[0].mxu0
        %v534 = vadd.f32 %v264, %v533
        %v535 = vpop.f32.mrb[0].mxu0
        %v536 = vadd.f32 %v268, %v535
        %537 = vdwg.mxu0
        %538 = vmatprep.subr.bf16.mxu0 %v404
        %539 = vmatpush1.bf16.msra.mxu0 %v403
        %540 = vmatprep.subr.bf16.mxu0 %v408
        %541 = vmatpush1.bf16.msra.mxu0 %v407
        %542 = vmatprep.subr.bf16.mxu0 %v412
        %543 = vmatpush1.bf16.msra.mxu0 %v411
        %544 = vmatprep.subr.bf16.mxu0 %v416
        %545 = vmatpush1.bf16.msra.mxu0 %v415
        %546 = vmatprep.subr.bf16.mxu0 %v420
        %547 = vmatpush1.bf16.msra.mxu0 %v419
        %548 = vmatprep.subr.bf16.mxu0 %v424
        %549 = vmatpush1.bf16.msra.mxu0 %v423
        %550 = vmatprep.subr.bf16.mxu0 %v428
        %551 = vmatpush1.bf16.msra.mxu0 %v427
        %552 = vmatprep.subr.bf16.mxu0 %v432
        %553 = vmatpush1.bf16.msra.mxu0 %v431
        %554 = vmatprep.subr.bf16.mxu0 0
        %555 = vmatpush1.bf16.msra.mxu0 0
        %556 = vmatprep.subr.bf16.mxu0 0
        %557 = vmatpush1.bf16.msra.mxu0 0
        %558 = vmatprep.subr.bf16.mxu0 0
        %559 = vmatpush1.bf16.msra.mxu0 0
        %560 = vmatprep.subr.bf16.mxu0 0
        %561 = vmatpush1.bf16.msra.mxu0 0
        %562 = vmatprep.subr.bf16.mxu0 0
        %563 = vmatpush1.bf16.msra.mxu0 0
        %564 = vmatprep.subr.bf16.mxu0 0
        %565 = vmatpush1.bf16.msra.mxu0 0
        %566 = vmatprep.subr.bf16.mxu0 0
        %567 = vmatpush1.bf16.msra.mxu0 0
        %568 = vmatprep.subr.bf16.mxu0 0
        %569 = vmatpush1.bf16.msra.mxu0 0
        %570 = vmatprep.mubr.bf16.mxu0 0
        %571 = vmatmul.mubr.bf16.gmra.mrb[0].mxu0 %v297
        %v572 = vpop.f32.mrb[0].mxu0
        %v573 = vadd.f32 %v272, %v572
        %v574 = vpop.f32.mrb[0].mxu0
        %v575 = vadd.f32 %v276, %v574
        %v576 = vpop.f32.mrb[0].mxu0
        %v577 = vadd.f32 %v272, %v576
        %v578 = vpop.f32.mrb[0].mxu0
        %v579 = vadd.f32 %v276, %v578
        %580 = vmatprep.mubr.bf16.mxu0 0
        %581 = vmatmul.mubr.bf16.gmra.mrb[0].mxu0 %v298
        %v582 = vpop.f32.mrb[0].mxu0
        %v583 = vadd.f32 %v272, %v582
        %v584 = vpop.f32.mrb[0].mxu0
        %v585 = vadd.f32 %v276, %v584
        %v586 = vpop.f32.mrb[0].mxu0
        %v587 = vadd.f32 %v272, %v586
        %v588 = vpop.f32.mrb[0].mxu0
        %v589 = vadd.f32 %v276, %v588
        %590 = vmatprep.mubr.bf16.mxu0 0
        %591 = vmatmul.mubr.bf16.gmra.mrb[0].mxu0 %v299
        %v592 = vpop.f32.mrb[0].mxu0
        %v593 = vadd.f32 %v272, %v592
        %v594 = vpop.f32.mrb[0].mxu0
        %v595 = vadd.f32 %v276, %v594
        %v596 = vpop.f32.mrb[0].mxu0
        %v597 = vadd.f32 %v272, %v596
        %v598 = vpop.f32.mrb[0].mxu0
        %v599 = vadd.f32 %v276, %v598
        %600 = vmatprep.mubr.bf16.mxu0 0
        %601 = vmatmul.mubr.bf16.gmra.mrb[0].mxu0 %v300
        %v602 = vpop.f32.mrb[0].mxu0
        %v603 = vadd.f32 %v272, %v602
        %v604 = vpop.f32.mrb[0].mxu0
        %v605 = vadd.f32 %v276, %v604
        %v606 = vpop.f32.mrb[0].mxu0
        %v607 = vadd.f32 %v272, %v606
        %v608 = vpop.f32.mrb[0].mxu0
        %v609 = vadd.f32 %v276, %v608
        %610 = vdwg.mxu0
        %v611 = vpack.c.bf16 %v504, %v500
        %v612 = vpack.c.bf16 %v506, %v502
        %v613 = vpack.c.bf16 %v577, %v573
        %v614 = vpack.c.bf16 %v579, %v575
        %v615 = vpack.c.bf16 %v514, %v510
        %v616 = vpack.c.bf16 %v516, %v512
        %v617 = vpack.c.bf16 %v587, %v583
        %v618 = vpack.c.bf16 %v589, %v585
        %v619 = vpack.c.bf16 %v524, %v520
        %v620 = vpack.c.bf16 %v526, %v522
        %v621 = vpack.c.bf16 %v597, %v593
        %v622 = vpack.c.bf16 %v599, %v595
        %v623 = vpack.c.bf16 %v534, %v530
        %v624 = vpack.c.bf16 %v536, %v532
        %v625 = vpack.c.bf16 %v607, %v603
        %v626 = vpack.c.bf16 %v609, %v605
        %v643 = vunpack.c.l.b16 %v611
        %v644 = vunpack.c.l.b16 %v612
        %v645 = vunpack.c.l.b16 %v613
        %v646 = vunpack.c.l.b16 %v614
        %v647 = vunpack.c.h.b16 %v611
        %v648 = vunpack.c.h.b16 %v612
        %v649 = vunpack.c.h.b16 %v613
        %v650 = vunpack.c.h.b16 %v614
        %v651 = vunpack.c.l.b16 %v615
        %v652 = vunpack.c.l.b16 %v616
        %v653 = vunpack.c.l.b16 %v617
        %v654 = vunpack.c.l.b16 %v618
        %v655 = vunpack.c.h.b16 %v615
        %v656 = vunpack.c.h.b16 %v616
        %v657 = vunpack.c.h.b16 %v617
        %v658 = vunpack.c.h.b16 %v618
        %v659 = vunpack.c.l.b16 %v619
        %v660 = vunpack.c.l.b16 %v620
        %v661 = vunpack.c.l.b16 %v621
        %v662 = vunpack.c.l.b16 %v622
        %v663 = vunpack.c.h.b16 %v619
        %v664 = vunpack.c.h.b16 %v620
        %v665 = vunpack.c.h.b16 %v621
        %v666 = vunpack.c.h.b16 %v622
        %v667 = vunpack.c.l.b16 %v623
        %v668 = vunpack.c.l.b16 %v624
        %v669 = vunpack.c.l.b16 %v625
        %v670 = vunpack.c.l.b16 %v626
        %v671 = vunpack.c.h.b16 %v623
        %v672 = vunpack.c.h.b16 %v624
        %v673 = vunpack.c.h.b16 %v625
        %v674 = vunpack.c.h.b16 %v626
        %v675 = vpack.c.b16 %v644, %v643
        %v676 = vpack.c.b16 %v646, %v645
        %v677 = vpack.c.b16 %v648, %v647
        %v678 = vpack.c.b16 %v650, %v649
        %v679 = vpack.c.b16 %v652, %v651
        %v680 = vpack.c.b16 %v654, %v653
        %v681 = vpack.c.b16 %v656, %v655
        %v682 = vpack.c.b16 %v658, %v657
        %v683 = vpack.c.b16 %v660, %v659
        %v684 = vpack.c.b16 %v662, %v661
        %v685 = vpack.c.b16 %v664, %v663
        %v686 = vpack.c.b16 %v666, %v665
        %v687 = vpack.c.b16 %v668, %v667
        %v688 = vpack.c.b16 %v670, %v669
        %v689 = vpack.c.b16 %v672, %v671
        %v690 = vpack.c.b16 %v674, %v673
        %707 = vst [vmem:[%s215] sm:$0xff] %v675
        %708 = vst [vmem:[%s215 + $0x8] sm:$0xff] %v676
        %709 = vst [vmem:[%s215 + $0x10] sm:$0xff] %v677
        %710 = vst [vmem:[%s215 + $0x18] sm:$0xff] %v678
        %711 = vst [vmem:[%s215 + $0x20] sm:$0xff] %v679
        %712 = vst [vmem:[%s215 + $0x28] sm:$0xff] %v680
        %713 = vst [vmem:[%s215 + $0x30] sm:$0xff] %v681
        %714 = vst [vmem:[%s215 + $0x38] sm:$0xff] %v682
        %715 = vst [vmem:[%s215 + $0x40] sm:$0xff] %v683
        %716 = vst [vmem:[%s215 + $0x48] sm:$0xff] %v684
        %717 = vst [vmem:[%s215 + $0x50] sm:$0xff] %v685
        %718 = vst [vmem:[%s215 + $0x58] sm:$0xff] %v686
        %719 = vst [vmem:[%s215 + $0x60] sm:$0xff] %v687
        %720 = vst [vmem:[%s215 + $0x68] sm:$0xff] %v688
        %721 = vst [vmem:[%s215 + $0x70] sm:$0xff] %v689
        %722 = vst [vmem:[%s215 + $0x78] sm:$0xff] %v690
        %s723 = sand.u32 %s97, 1
        %s724 = scalar_lea.sflag [#allocation4], %s723
        %s725 = sand.u32 %s97, 1
        %s726 = smul.addr %s725, 128
        %s727 = scalar_lea.vmem [#allocation8], %s726
        // Predicated region
        $region45: #{unet_up_forward.9} parent=31 // pred_check
          %p728 = pneg %p107
        $region46: #{unet_up_forward.9} parent=31 // pred_check_branch
          %730 = sbr.rel (%p728) target = $region48
        $region47: #{unet_up_forward.9} parent=31 // pred_region
          %s731 = smul.u32 8, %s21
          %s733 = ssub.s32 2048, 2048
          %734 = vsyncadd %s724, %s733
          %s735 = smul.addr %s731, 4
          %s736 = smul.addr %s735, 64
          %s737 = scalar_lea.hbm %s3, %s736
          %s738 = sshll.u32 %s727, 4
          %s739 = int_to_ptr.vmem [resolvable:$true] %s738
          %744 = dma.vmem_to_hbm [thread:$0]  %s739, 2048, %s737, %s724, 256, 256, 16
        $region48: #{unet_up_forward.9} parent=31 // pred_fallthru
          _
      $region32: #{unet_up_forward.9} parent=5 // pred_fallthru
        _
      %p745 = scmp.le.s32.totalorder 2, %s16
      // Predicated region
      $region49: #{unet_up_forward.9} parent=5 // pred_check
        %p746 = pneg %p745
      $region50: #{unet_up_forward.9} parent=5 // pred_check_branch
        %748 = sbr.rel (%p746) target = $region52
      $region51: #{unet_up_forward.9} parent=5 // pred_region
        %s749 = ssub.s32 %s16, 2
        // Predicated region
        $region53: #{unet_up_forward.9} parent=51 // pred_check
          %p750 = pneg %p113
        $region54: #{unet_up_forward.9} parent=51 // pred_check_branch
          %752 = sbr.rel (%p750) target = $region56
        $region55: #{unet_up_forward.9} parent=51 // pred_region
          %s753 = sand.u32 %s98, 1
          %s754 = scalar_lea.sflag [#allocation4], %s753
          %s755 = sand.u32 %s98, 1
          %s756 = smul.addr %s755, 128
          %s757 = scalar_lea.vmem [#allocation8], %s756
          %758 = dma.done %s754, 2048
        $region56: #{unet_up_forward.9} parent=51 // pred_fallthru
          _
      $region52: #{unet_up_forward.9} parent=5 // pred_fallthru
        _
    $region6: #{unet_up_forward.9} parent=1 // loop_footer
      %s20 = sadd.s32 1, %s16
    $region7: #{unet_up_forward.9} parent=1 // loop_footer_branch
      %15 = sbr.rel target = $region3
    $region8: #{unet_up_forward.9} parent=1 // loop_exit
      _
    %759 = vsyncpa [#allocation3], 1
    %s760 = scalar_lea.sflag [#allocation3], 1
    %761 = vsyncpa %s760, 1
    %762 = vsyncpa [#allocation6], 1
    %763 = vsyncpa [#allocation4], 1
    %s764 = scalar_lea.sflag [#allocation4], 1
    %765 = vsyncpa %s764, 1

// kernel: unet_up_forward.17
$region0: #{unet_up_forward.17}
  #allocation0 [shape = 'u32[]', space=smem, size = 0x4, offset = 0x4, fixed_abs, tag = 'smem constant byte address 0x4 - core index']
  #allocation1 [shape = 'u32[144,128]{1,0:T(1,128)}', space=vmem, size = 0x12000, scoped, tag = 'internal scratch']
  %s0 = inlined_call_operand.hbm [shape: bf16[2,256,128], index: 0, kind: input, shape index: {}]
  %s1 = inlined_call_operand.hbm [shape: f32[1,128], index: 1, kind: input, shape index: {}]
  %s2 = inlined_call_operand.hbm [shape: f32[1,128], index: 2, kind: input, shape index: {}]
  %s3 = inlined_call_operand.hbm [shape: f32[2,16,16,128], index: 3, kind: output, shape index: {}]
  %s4 = sld [smem:[#allocation0]]
  $region57: #{unet_up_forward.17} parent=0
    _
  %s6 = ssub.s32 1, %s4
  %s7 = scalar_select 0, %s6, %s4
  $region1: #{unet_up_forward.17} parent=0
    #allocation2 [shape = 'u8[131072]{0}', space=vmem, size = 0x20000, scoped, tag = 'input window, operand 0']
    #allocation3 [shape = 's32[2]{0}', space=sflag, size = 0x8, scoped, tag = 'scoped memory for unet_up_forward.17']
    #allocation4 [shape = 's32[2]{0}', space=sflag, size = 0x8, scoped, tag = 'scoped memory for unet_up_forward.17']
    #allocation5 [shape = 'u8[512]{0}', space=vmem, size = 0x400, scoped, tag = 'input window, operand 1, single buffered']
    #allocation6 [shape = 's32[1]{0}', space=sflag, size = 0x4, scoped, tag = 'scoped memory for unet_up_forward.17']
    #allocation7 [shape = 'u8[512]{0}', space=vmem, size = 0x400, scoped, tag = 'input window, operand 2, single buffered']
    #allocation8 [shape = 'u8[262144]{0}', space=vmem, size = 0x40000, scoped, tag = 'output window, operand 0']
    %8 = vsyncpa [#allocation3], 0
    %s9 = scalar_lea.sflag [#allocation3], 1
    %10 = vsyncpa %s9, 0
    %11 = vsyncpa [#allocation6], 0
    %12 = vsyncpa [#allocation4], 0
    %s13 = scalar_lea.sflag [#allocation4], 1
    %14 = vsyncpa %s13, 0
    loop: start=0, step=1, limit=4
    $region2: #{unet_up_forward.17} parent=1 // loop_pre_header
      _
    $region3: #{unet_up_forward.17} parent=1 // loop_header
      %s16 = sphi 0, %s20
      %p17 = scmp.ge.s32.totalorder %s16, 4
      %s26 = sphi 0, %s28
      %s29 = sphi 0, %s26
      %s30 = sphi 0, %s29
      %s46 = sphi 0, %s30
      %s50 = sphi 0, %s50
      %s52 = sphi 0, %s50
      %s53 = sphi 0, %s52
      %s67 = sphi 0, %s53
      %s71 = sphi 0, %s71
      %s73 = sphi 0, %s71
      %s74 = sphi 0, %s73
      %s88 = sphi 0, %s74
      %s94 = sphi 0, %s96
      %s97 = sphi 0, %s94
      %s98 = sphi 0, %s97
      %s114 = sphi 0, %s98
    $region4: #{unet_up_forward.17} parent=1 // loop_header_branch
      %19 = sbr.rel (%p17) target = $region8
    $region5: #{unet_up_forward.17} parent=1 // loop_body
      %s21 = ssub.s32 %s16, 1
      %s22 = ssub.s32 %s16, 2
      %s23 = sadd.s32 %s16, 1
      %s24 = ssub.s32 %s16, %s23
      %p25 = scmp.eq.s32.totalorder %s24, 0
      %s27 = sadd.s32 %s26, 1
      %s28 = scalar_select %p25, %s26, %s27
      %p31 = pneg %p25
      %p32 = scmp.eq.s32.totalorder %s16, 1
      %p33 = por %p31, %p32
      %p34 = scmp.ne.s32.totalorder %s26, %s29
      %p35 = scmp.eq.s32.totalorder %s16, 0
      %p36 = por %p34, %p35
      %p37 = scmp.ne.s32.totalorder %s26, %s29
      %p38 = scmp.eq.s32.totalorder %s21, 1
      %p39 = por %p37, %p38
      %p40 = scmp.ne.s32.totalorder %s29, %s30
      %p41 = scmp.eq.s32.totalorder %s21, 0
      %p42 = por %p40, %p41
      %p43 = scmp.ne.s32.totalorder %s29, %s30
      %p44 = scmp.eq.s32.totalorder %s22, 1
      %p45 = por %p43, %p44
      %p47 = scmp.ne.s32.totalorder %s30, %s46
      %p48 = scmp.eq.s32.totalorder %s22, 0
      %p49 = por %p47, %p48
      %s51 = sadd.s32 %s50, 1
      %p54 = scmp.eq.s32.totalorder %s16, 1
      %p55 = scmp.ne.s32.totalorder %s50, %s52
      %p56 = scmp.eq.s32.totalorder %s16, 0
      %p57 = por %p55, %p56
      %p58 = scmp.ne.s32.totalorder %s50, %s52
      %p59 = scmp.eq.s32.totalorder %s21, 1
      %p60 = por %p58, %p59
      %p61 = scmp.ne.s32.totalorder %s52, %s53
      %p62 = scmp.eq.s32.totalorder %s21, 0
      %p63 = por %p61, %p62
      %p64 = scmp.ne.s32.totalorder %s52, %s53
      %p65 = scmp.eq.s32.totalorder %s22, 1
      %p66 = por %p64, %p65
      %p68 = scmp.ne.s32.totalorder %s53, %s67
      %p69 = scmp.eq.s32.totalorder %s22, 0
      %p70 = por %p68, %p69
      %s72 = sadd.s32 %s71, 1
      %p75 = scmp.eq.s32.totalorder %s16, 1
      %p76 = scmp.ne.s32.totalorder %s71, %s73
      %p77 = scmp.eq.s32.totalorder %s16, 0
      %p78 = por %p76, %p77
      %p79 = scmp.ne.s32.totalorder %s71, %s73
      %p80 = scmp.eq.s32.totalorder %s21, 1
      %p81 = por %p79, %p80
      %p82 = scmp.ne.s32.totalorder %s73, %s74
      %p83 = scmp.eq.s32.totalorder %s21, 0
      %p84 = por %p82, %p83
      %p85 = scmp.ne.s32.totalorder %s73, %s74
      %p86 = scmp.eq.s32.totalorder %s22, 1
      %p87 = por %p85, %p86
      %p89 = scmp.ne.s32.totalorder %s74, %s88
      %p90 = scmp.eq.s32.totalorder %s22, 0
      %p91 = por %p89, %p90
      %s92 = ssub.s32 %s16, %s23
      %p93 = scmp.eq.s32.totalorder %s92, 0
      %s95 = sadd.s32 %s94, 1
      %s96 = scalar_select %p93, %s94, %s95
      %p99 = pneg %p93
      %p100 = scmp.eq.s32.totalorder %s16, 1
      %p101 = por %p99, %p100
      %p102 = scmp.ne.s32.totalorder %s94, %s97
      %p103 = scmp.eq.s32.totalorder %s16, 0
      %p104 = por %p102, %p103
      %p105 = scmp.ne.s32.totalorder %s94, %s97
      %p106 = scmp.eq.s32.totalorder %s21, 1
      %p107 = por %p105, %p106
      %p108 = scmp.ne.s32.totalorder %s97, %s98
      %p109 = scmp.eq.s32.totalorder %s21, 0
      %p110 = por %p108, %p109
      %p111 = scmp.ne.s32.totalorder %s97, %s98
      %p112 = scmp.eq.s32.totalorder %s22, 1
      %p113 = por %p111, %p112
      %p115 = scmp.ne.s32.totalorder %s98, %s114
      %p116 = scmp.eq.s32.totalorder %s22, 0
      %p117 = por %p115, %p116
      %p118 = scmp.le.s32.totalorder 1, %s16
      %p119 = scmp.lt.s32.totalorder %s16, 3
      %p120 = pnand %p118, %p119
      %p121 = pneg %p120
      // Predicated region
      $region9: #{unet_up_forward.17} parent=5 // pred_check
        _
      $region10: #{unet_up_forward.17} parent=5 // pred_check_branch
        %123 = sbr.rel (%p120) target = $region12
      $region11: #{unet_up_forward.17} parent=5 // pred_region
        %s124 = ssub.s32 %s16, 1
        // Predicated region
        $region13: #{unet_up_forward.17} parent=11 // pred_check
          %p125 = pneg %p63
        $region14: #{unet_up_forward.17} parent=11 // pred_check_branch
          %127 = sbr.rel (%p125) target = $region16
        $region15: #{unet_up_forward.17} parent=11 // pred_region
          %s129 = ssub.s32 16, 16
          %130 = vsyncadd [#allocation6], %s129
          %s132 = sshll.u32 [#allocation5], 4
          %s133 = int_to_ptr.vmem [resolvable:$true] %s132
          %135 = dma.hbm_to_vmem [thread:$0]  %s1, 16, %s133, [#allocation6]
        $region16: #{unet_up_forward.17} parent=11 // pred_fallthru
          _
        // Predicated region
        $region17: #{unet_up_forward.17} parent=11 // pred_check
          %p136 = pneg %p84
        $region18: #{unet_up_forward.17} parent=11 // pred_check_branch
          %138 = sbr.rel (%p136) target = $region20
        $region19: #{unet_up_forward.17} parent=11 // pred_region
          %s140 = ssub.s32 16, 16
          %141 = vsyncadd [#allocation6], %s140
          %s143 = sshll.u32 [#allocation7], 4
          %s144 = int_to_ptr.vmem [resolvable:$true] %s143
          %146 = dma.hbm_to_vmem [thread:$0]  %s2, 16, %s144, [#allocation6]
        $region20: #{unet_up_forward.17} parent=11 // pred_fallthru
          _
      $region12: #{unet_up_forward.17} parent=5 // pred_fallthru
        _
      %p147 = scmp.lt.s32.totalorder %s16, 2
      // Predicated region
      $region21: #{unet_up_forward.17} parent=5 // pred_check
        %p148 = pneg %p147
      $region22: #{unet_up_forward.17} parent=5 // pred_check_branch
        %150 = sbr.rel (%p148) target = $region24
      $region23: #{unet_up_forward.17} parent=5 // pred_region
        // Predicated region
        $region25: #{unet_up_forward.17} parent=23 // pred_check
          %p151 = pneg %p36
        $region26: #{unet_up_forward.17} parent=23 // pred_check_branch
          %153 = sbr.rel (%p151) target = $region28
        $region27: #{unet_up_forward.17} parent=23 // pred_region
          %s154 = sand.u32 %s26, 1
          %s155 = scalar_lea.sflag [#allocation3], %s154
          %s156 = sand.u32 %s26, 1
          %s157 = smul.addr %s156, 128
          %s158 = scalar_lea.vmem [#allocation2], %s157
          %s160 = ssub.s32 2048, 2048
          %161 = vsyncadd %s155, %s160
          %s162 = smul.addr %s16, 32
          %s163 = smul.addr %s162, 64
          %s164 = scalar_lea.hbm %s0, %s163
          %s165 = sshll.u32 %s158, 4
          %s166 = int_to_ptr.vmem [resolvable:$true] %s165
          %171 = dma.hbm_to_vmem [thread:$0]  %s164, 2048, %s166, %s155, 64, 64, 4
        $region28: #{unet_up_forward.17} parent=23 // pred_fallthru
          _
      $region24: #{unet_up_forward.17} parent=5 // pred_fallthru
        _
      %p172 = scmp.le.s32.totalorder 1, %s16
      %p173 = scmp.lt.s32.totalorder %s16, 3
      %p174 = pnand %p172, %p173
      %p175 = pneg %p174
      // Predicated region
      $region29: #{unet_up_forward.17} parent=5 // pred_check
        _
      $region30: #{unet_up_forward.17} parent=5 // pred_check_branch
        %177 = sbr.rel (%p174) target = $region32
      $region31: #{unet_up_forward.17} parent=5 // pred_region
        %s178 = ssub.s32 %s16, 1
        %s179 = sand.u32 %s29, 1
        %s180 = scalar_lea.sflag [#allocation3], %s179
        %s181 = sand.u32 %s29, 1
        %s182 = smul.addr %s181, 128
        %s183 = scalar_lea.vmem [#allocation2], %s182
        // Predicated region
        $region33: #{unet_up_forward.17} parent=31 // pred_check
          %p184 = pneg %p42
        $region34: #{unet_up_forward.17} parent=31 // pred_check_branch
          %186 = sbr.rel (%p184) target = $region36
        $region35: #{unet_up_forward.17} parent=31 // pred_region
          %187 = dma.done %s180, 2048
        $region36: #{unet_up_forward.17} parent=31 // pred_fallthru
          _
        // Predicated region
        $region37: #{unet_up_forward.17} parent=31 // pred_check
          %p188 = pneg %p63
        $region38: #{unet_up_forward.17} parent=31 // pred_check_branch
          %190 = sbr.rel (%p188) target = $region40
        $region39: #{unet_up_forward.17} parent=31 // pred_region
          %191 = dma.done [#allocation6], 16
        $region40: #{unet_up_forward.17} parent=31 // pred_fallthru
          _
        // Predicated region
        $region41: #{unet_up_forward.17} parent=31 // pred_check
          %p192 = pneg %p84
        $region42: #{unet_up_forward.17} parent=31 // pred_check_branch
          %194 = sbr.rel (%p192) target = $region44
        $region43: #{unet_up_forward.17} parent=31 // pred_region
          %195 = dma.done [#allocation6], 16
        $region44: #{unet_up_forward.17} parent=31 // pred_fallthru
          _
        %s196 = sand.u32 %s29, 1
        %s197 = scalar_lea.sflag [#allocation3], %s196
        %s198 = sand.u32 %s29, 1
        %s199 = smul.addr %s198, 128
        %s200 = scalar_lea.vmem [#allocation2], %s199
        %p201 = pneg %p42
        %p202 = pneg %p39
        %p203 = pneg %p63
        %p204 = pneg %p60
        %p205 = pneg %p84
        %p206 = pneg %p81
        %p207 = pneg %p110
        %p208 = pneg %p107
        %s209 = sand.u32 %s97, 1
        %s210 = scalar_lea.sflag [#allocation4], %s209
        %s211 = sand.u32 %s97, 1
        %s212 = smul.addr %s211, 256
        %s213 = scalar_lea.vmem [#allocation8], %s212
        %v214 = vld [vmem:[%s183] sm:$0xf]
        %v215 = vld [vmem:[%s183 + $0x4] sm:$0xf]
        %v216 = vld [vmem:[%s183 + $0x8] sm:$0xf]
        %v217 = vld [vmem:[%s183 + $0xc] sm:$0xf]
        %v218 = vld [vmem:[%s183 + $0x10] sm:$0xf]
        %v219 = vld [vmem:[%s183 + $0x14] sm:$0xf]
        %v220 = vld [vmem:[%s183 + $0x18] sm:$0xf]
        %v221 = vld [vmem:[%s183 + $0x1c] sm:$0xf]
        %v222 = vld [vmem:[%s183 + $0x20] sm:$0xf]
        %v223 = vld [vmem:[%s183 + $0x24] sm:$0xf]
        %v224 = vld [vmem:[%s183 + $0x28] sm:$0xf]
        %v225 = vld [vmem:[%s183 + $0x2c] sm:$0xf]
        %v226 = vld [vmem:[%s183 + $0x30] sm:$0xf]
        %v227 = vld [vmem:[%s183 + $0x34] sm:$0xf]
        %v228 = vld [vmem:[%s183 + $0x38] sm:$0xf]
        %v229 = vld [vmem:[%s183 + $0x3c] sm:$0xf]
        %v230 = vld [vmem:[%s183 + $0x40] sm:$0xf]
        %v231 = vld [vmem:[%s183 + $0x44] sm:$0xf]
        %v232 = vld [vmem:[%s183 + $0x48] sm:$0xf]
        %v233 = vld [vmem:[%s183 + $0x4c] sm:$0xf]
        %v234 = vld [vmem:[%s183 + $0x50] sm:$0xf]
        %v235 = vld [vmem:[%s183 + $0x54] sm:$0xf]
        %v236 = vld [vmem:[%s183 + $0x58] sm:$0xf]
        %v237 = vld [vmem:[%s183 + $0x5c] sm:$0xf]
        %v238 = vld [vmem:[%s183 + $0x60] sm:$0xf]
        %v239 = vld [vmem:[%s183 + $0x64] sm:$0xf]
        %v240 = vld [vmem:[%s183 + $0x68] sm:$0xf]
        %v241 = vld [vmem:[%s183 + $0x6c] sm:$0xf]
        %v242 = vld [vmem:[%s183 + $0x70] sm:$0xf]
        %v243 = vld [vmem:[%s183 + $0x74] sm:$0xf]
        %v244 = vld [vmem:[%s183 + $0x78] sm:$0xf]
        %v245 = vld [vmem:[%s183 + $0x7c] sm:$0xf]
        %v246 = vunpack.c.l.bf16 %v214
        %v247 = vunpack.c.l.bf16 %v215
        %v248 = vunpack.c.l.bf16 %v216
        %v249 = vunpack.c.l.bf16 %v217
        %v250 = vunpack.c.l.bf16 %v218
        %v251 = vunpack.c.l.bf16 %v219
        %v252 = vunpack.c.l.bf16 %v220
        %v253 = vunpack.c.l.bf16 %v221
        %v254 = vunpack.c.l.bf16 %v222
        %v255 = vunpack.c.l.bf16 %v223
        %v256 = vunpack.c.l.bf16 %v224
        %v257 = vunpack.c.l.bf16 %v225
        %v258 = vunpack.c.l.bf16 %v226
        %v259 = vunpack.c.l.bf16 %v227
        %v260 = vunpack.c.l.bf16 %v228
        %v261 = vunpack.c.l.bf16 %v229
        %v262 = vunpack.c.l.bf16 %v230
        %v263 = vunpack.c.l.bf16 %v231
        %v264 = vunpack.c.l.bf16 %v232
        %v265 = vunpack.c.l.bf16 %v233
        %v266 = vunpack.c.l.bf16 %v234
        %v267 = vunpack.c.l.bf16 %v235
        %v268 = vunpack.c.l.bf16 %v236
        %v269 = vunpack.c.l.bf16 %v237
        %v270 = vunpack.c.l.bf16 %v238
        %v271 = vunpack.c.l.bf16 %v239
        %v272 = vunpack.c.l.bf16 %v240
        %v273 = vunpack.c.l.bf16 %v241
        %v274 = vunpack.c.l.bf16 %v242
        %v275 = vunpack.c.l.bf16 %v243
        %v276 = vunpack.c.l.bf16 %v244
        %v277 = vunpack.c.l.bf16 %v245
        %v278 = vld [vmem:[#allocation5] sm:$0x1]
        %v280 = vlaneseq
        %v281 = vshrl.u32 %v280, 7
        %v282 = vsub.s32 0, %v281
        %v283 = vrot.slane %v278, %v282
        %v285 = vmul.f32 %v246, %v283
        %v286 = vmul.f32 %v247, %v283
        %v287 = vmul.f32 %v248, %v283
        %v288 = vmul.f32 %v249, %v283
        %v289 = vmul.f32 %v250, %v283
        %v290 = vmul.f32 %v251, %v283
        %v291 = vmul.f32 %v252, %v283
        %v292 = vmul.f32 %v253, %v283
        %v293 = vmul.f32 %v254, %v283
        %v294 = vmul.f32 %v255, %v283
        %v295 = vmul.f32 %v256, %v283
        %v296 = vmul.f32 %v257, %v283
        %v297 = vmul.f32 %v258, %v283
        %v298 = vmul.f32 %v259, %v283
        %v299 = vmul.f32 %v260, %v283
        %v300 = vmul.f32 %v261, %v283
        %v301 = vmul.f32 %v262, %v283
        %v302 = vmul.f32 %v263, %v283
        %v303 = vmul.f32 %v264, %v283
        %v304 = vmul.f32 %v265, %v283
        %v305 = vmul.f32 %v266, %v283
        %v306 = vmul.f32 %v267, %v283
        %v307 = vmul.f32 %v268, %v283
        %v308 = vmul.f32 %v269, %v283
        %v309 = vmul.f32 %v270, %v283
        %v310 = vmul.f32 %v271, %v283
        %v311 = vmul.f32 %v272, %v283
        %v312 = vmul.f32 %v273, %v283
        %v313 = vmul.f32 %v274, %v283
        %v314 = vmul.f32 %v275, %v283
        %v315 = vmul.f32 %v276, %v283
        %v316 = vmul.f32 %v277, %v283
        %v317 = vld [vmem:[#allocation7] sm:$0x1]
        %v319 = vlaneseq
        %v320 = vshrl.u32 %v319, 7
        %v321 = vsub.s32 0, %v320
        %v322 = vrot.slane %v317, %v321
        %v324 = vadd.f32 %v285, %v322
        %v325 = vadd.f32 %v286, %v322
        %v326 = vadd.f32 %v287, %v322
        %v327 = vadd.f32 %v288, %v322
        %v328 = vadd.f32 %v289, %v322
        %v329 = vadd.f32 %v290, %v322
        %v330 = vadd.f32 %v291, %v322
        %v331 = vadd.f32 %v292, %v322
        %v332 = vadd.f32 %v293, %v322
        %v333 = vadd.f32 %v294, %v322
        %v334 = vadd.f32 %v295, %v322
        %v335 = vadd.f32 %v296, %v322
        %v336 = vadd.f32 %v297, %v322
        %v337 = vadd.f32 %v298, %v322
        %v338 = vadd.f32 %v299, %v322
        %v339 = vadd.f32 %v300, %v322
        %v340 = vadd.f32 %v301, %v322
        %v341 = vadd.f32 %v302, %v322
        %v342 = vadd.f32 %v303, %v322
        %v343 = vadd.f32 %v304, %v322
        %v344 = vadd.f32 %v305, %v322
        %v345 = vadd.f32 %v306, %v322
        %v346 = vadd.f32 %v307, %v322
        %v347 = vadd.f32 %v308, %v322
        %v348 = vadd.f32 %v309, %v322
        %v349 = vadd.f32 %v310, %v322
        %v350 = vadd.f32 %v311, %v322
        %v351 = vadd.f32 %v312, %v322
        %v352 = vadd.f32 %v313, %v322
        %v353 = vadd.f32 %v314, %v322
        %v354 = vadd.f32 %v315, %v322
        %v355 = vadd.f32 %v316, %v322
        %v356 = vmul.f32 %v324, 0.5
        %v357 = vmul.f32 %v325, 0.5
        %v358 = vmul.f32 %v326, 0.5
        %v359 = vmul.f32 %v327, 0.5
        %v360 = vmul.f32 %v328, 0.5
        %v361 = vmul.f32 %v329, 0.5
        %v362 = vmul.f32 %v330, 0.5
        %v363 = vmul.f32 %v331, 0.5
        %v364 = vmul.f32 %v332, 0.5
        %v365 = vmul.f32 %v333, 0.5
        %v366 = vmul.f32 %v334, 0.5
        %v367 = vmul.f32 %v335, 0.5
        %v368 = vmul.f32 %v336, 0.5
        %v369 = vmul.f32 %v337, 0.5
        %v370 = vmul.f32 %v338, 0.5
        %v371 = vmul.f32 %v339, 0.5
        %v372 = vmul.f32 %v340, 0.5
        %v373 = vmul.f32 %v341, 0.5
        %v374 = vmul.f32 %v342, 0.5
        %v375 = vmul.f32 %v343, 0.5
        %v376 = vmul.f32 %v344, 0.5
        %v377 = vmul.f32 %v345, 0.5
        %v378 = vmul.f32 %v346, 0.5
        %v379 = vmul.f32 %v347, 0.5
        %v380 = vmul.f32 %v348, 0.5
        %v381 = vmul.f32 %v349, 0.5
        %v382 = vmul.f32 %v350, 0.5
        %v383 = vmul.f32 %v351, 0.5
        %v384 = vmul.f32 %v352, 0.5
        %v385 = vmul.f32 %v353, 0.5
        %v386 = vmul.f32 %v354, 0.5
        %v387 = vmul.f32 %v355, 0.5
        %v388 = vmul.f32 %v324, 0.70710677
        %v389 = vmul.f32 %v325, 0.70710677
        %v390 = vmul.f32 %v326, 0.70710677
        %v391 = vmul.f32 %v327, 0.70710677
        %v392 = vmul.f32 %v328, 0.70710677
        %v393 = vmul.f32 %v329, 0.70710677
        %v394 = vmul.f32 %v330, 0.70710677
        %v395 = vmul.f32 %v331, 0.70710677
        %v396 = vmul.f32 %v332, 0.70710677
        %v397 = vmul.f32 %v333, 0.70710677
        %v398 = vmul.f32 %v334, 0.70710677
        %v399 = vmul.f32 %v335, 0.70710677
        %v400 = vmul.f32 %v336, 0.70710677
        %v401 = vmul.f32 %v337, 0.70710677
        %v402 = vmul.f32 %v338, 0.70710677
        %v403 = vmul.f32 %v339, 0.70710677
        %v404 = vmul.f32 %v340, 0.70710677
        %v405 = vmul.f32 %v341, 0.70710677
        %v406 = vmul.f32 %v342, 0.70710677
        %v407 = vmul.f32 %v343, 0.70710677
        %v408 = vmul.f32 %v344, 0.70710677
        %v409 = vmul.f32 %v345, 0.70710677
        %v410 = vmul.f32 %v346, 0.70710677
        %v411 = vmul.f32 %v347, 0.70710677
        %v412 = vmul.f32 %v348, 0.70710677
        %v413 = vmul.f32 %v349, 0.70710677
        %v414 = vmul.f32 %v350, 0.70710677
        %v415 = vmul.f32 %v351, 0.70710677
        %v416 = vmul.f32 %v352, 0.70710677
        %v417 = vmul.f32 %v353, 0.70710677
        %v418 = vmul.f32 %v354, 0.70710677
        %v419 = vmul.f32 %v355, 0.70710677
        %vm420 = vcmp.ge.f32.partialorder %v388, 0.0
        %vm421 = vcmp.ge.f32.partialorder %v389, 0.0
        %vm422 = vcmp.ge.f32.partialorder %v390, 0.0
        %vm423 = vcmp.ge.f32.partialorder %v391, 0.0
        %vm424 = vcmp.ge.f32.partialorder %v392, 0.0
        %vm425 = vcmp.ge.f32.partialorder %v393, 0.0
        %vm426 = vcmp.ge.f32.partialorder %v394, 0.0
        %vm427 = vcmp.ge.f32.partialorder %v395, 0.0
        %vm428 = vcmp.ge.f32.partialorder %v396, 0.0
        %vm429 = vcmp.ge.f32.partialorder %v397, 0.0
        %vm430 = vcmp.ge.f32.partialorder %v398, 0.0
        %vm431 = vcmp.ge.f32.partialorder %v399, 0.0
        %vm432 = vcmp.ge.f32.partialorder %v400, 0.0
        %vm433 = vcmp.ge.f32.partialorder %v401, 0.0
        %vm434 = vcmp.ge.f32.partialorder %v402, 0.0
        %vm435 = vcmp.ge.f32.partialorder %v403, 0.0
        %vm436 = vcmp.ge.f32.partialorder %v404, 0.0
        %vm437 = vcmp.ge.f32.partialorder %v405, 0.0
        %vm438 = vcmp.ge.f32.partialorder %v406, 0.0
        %vm439 = vcmp.ge.f32.partialorder %v407, 0.0
        %vm440 = vcmp.ge.f32.partialorder %v408, 0.0
        %vm441 = vcmp.ge.f32.partialorder %v409, 0.0
        %vm442 = vcmp.ge.f32.partialorder %v410, 0.0
        %vm443 = vcmp.ge.f32.partialorder %v411, 0.0
        %vm444 = vcmp.ge.f32.partialorder %v412, 0.0
        %vm445 = vcmp.ge.f32.partialorder %v413, 0.0
        %vm446 = vcmp.ge.f32.partialorder %v414, 0.0
        %vm447 = vcmp.ge.f32.partialorder %v415, 0.0
        %vm448 = vcmp.ge.f32.partialorder %v416, 0.0
        %vm449 = vcmp.ge.f32.partialorder %v417, 0.0
        %vm450 = vcmp.ge.f32.partialorder %v418, 0.0
        %vm451 = vcmp.ge.f32.partialorder %v419, 0.0
        %v452 = vsel %vm420, 1.0, -1.0
        %v453 = vsel %vm421, 1.0, -1.0
        %v454 = vsel %vm422, 1.0, -1.0
        %v455 = vsel %vm423, 1.0, -1.0
        %v456 = vsel %vm424, 1.0, -1.0
        %v457 = vsel %vm425, 1.0, -1.0
        %v458 = vsel %vm426, 1.0, -1.0
        %v459 = vsel %vm427, 1.0, -1.0
        %v460 = vsel %vm428, 1.0, -1.0
        %v461 = vsel %vm429, 1.0, -1.0
        %v462 = vsel %vm430, 1.0, -1.0
        %v463 = vsel %vm431, 1.0, -1.0
        %v464 = vsel %vm432, 1.0, -1.0
        %v465 = vsel %vm433, 1.0, -1.0
        %v466 = vsel %vm434, 1.0, -1.0
        %v467 = vsel %vm435, 1.0, -1.0
        %v468 = vsel %vm436, 1.0, -1.0
        %v469 = vsel %vm437, 1.0, -1.0
        %v470 = vsel %vm438, 1.0, -1.0
        %v471 = vsel %vm439, 1.0, -1.0
        %v472 = vsel %vm440, 1.0, -1.0
        %v473 = vsel %vm441, 1.0, -1.0
        %v474 = vsel %vm442, 1.0, -1.0
        %v475 = vsel %vm443, 1.0, -1.0
        %v476 = vsel %vm444, 1.0, -1.0
        %v477 = vsel %vm445, 1.0, -1.0
        %v478 = vsel %vm446, 1.0, -1.0
        %v479 = vsel %vm447, 1.0, -1.0
        %v480 = vsel %vm448, 1.0, -1.0
        %v481 = vsel %vm449, 1.0, -1.0
        %v482 = vsel %vm450, 1.0, -1.0
        %v483 = vsel %vm451, 1.0, -1.0
        %v484 = vand.u32 2147483647, %v388
        %v485 = vand.u32 2147483647, %v389
        %v486 = vand.u32 2147483647, %v390
        %v487 = vand.u32 2147483647, %v391
        %v488 = vand.u32 2147483647, %v392
        %v489 = vand.u32 2147483647, %v393
        %v490 = vand.u32 2147483647, %v394
        %v491 = vand.u32 2147483647, %v395
        %v492 = vand.u32 2147483647, %v396
        %v493 = vand.u32 2147483647, %v397
        %v494 = vand.u32 2147483647, %v398
        %v495 = vand.u32 2147483647, %v399
        %v496 = vand.u32 2147483647, %v400
        %v497 = vand.u32 2147483647, %v401
        %v498 = vand.u32 2147483647, %v402
        %v499 = vand.u32 2147483647, %v403
        %v500 = vand.u32 2147483647, %v404
        %v501 = vand.u32 2147483647, %v405
        %v502 = vand.u32 2147483647, %v406
        %v503 = vand.u32 2147483647, %v407
        %v504 = vand.u32 2147483647, %v408
        %v505 = vand.u32 2147483647, %v409
        %v506 = vand.u32 2147483647, %v410
        %v507 = vand.u32 2147483647, %v411
        %v508 = vand.u32 2147483647, %v412
        %v509 = vand.u32 2147483647, %v413
        %v510 = vand.u32 2147483647, %v414
        %v511 = vand.u32 2147483647, %v415
        %v512 = vand.u32 2147483647, %v416
        %v513 = vand.u32 2147483647, %v417
        %v514 = vand.u32 2147483647, %v418
        %v515 = vand.u32 2147483647, %v419
        %v516 = vmul.f32 %v484, 0.3275911
        %v517 = vmul.f32 %v485, 0.3275911
        %v518 = vmul.f32 %v486, 0.3275911
        %v519 = vmul.f32 %v487, 0.3275911
        %v520 = vmul.f32 %v488, 0.3275911
        %v521 = vmul.f32 %v489, 0.3275911
        %v522 = vmul.f32 %v490, 0.3275911
        %v523 = vmul.f32 %v491, 0.3275911
        %v524 = vmul.f32 %v492, 0.3275911
        %v525 = vmul.f32 %v493, 0.3275911
        %v526 = vmul.f32 %v494, 0.3275911
        %v527 = vmul.f32 %v495, 0.3275911
        %v528 = vmul.f32 %v496, 0.3275911
        %v529 = vmul.f32 %v497, 0.3275911
        %v530 = vmul.f32 %v498, 0.3275911
        %v531 = vmul.f32 %v499, 0.3275911
        %v532 = vmul.f32 %v500, 0.3275911
        %v533 = vmul.f32 %v501, 0.3275911
        %v534 = vmul.f32 %v502, 0.3275911
        %v535 = vmul.f32 %v503, 0.3275911
        %v536 = vmul.f32 %v504, 0.3275911
        %v537 = vmul.f32 %v505, 0.3275911
        %v538 = vmul.f32 %v506, 0.3275911
        %v539 = vmul.f32 %v507, 0.3275911
        %v540 = vmul.f32 %v508, 0.3275911
        %v541 = vmul.f32 %v509, 0.3275911
        %v542 = vmul.f32 %v510, 0.3275911
        %v543 = vmul.f32 %v511, 0.3275911
        %v544 = vmul.f32 %v512, 0.3275911
        %v545 = vmul.f32 %v513, 0.3275911
        %v546 = vmul.f32 %v514, 0.3275911
        %v547 = vmul.f32 %v515, 0.3275911
        %v548 = vadd.f32 %v516, 1.0
        %v549 = vadd.f32 %v517, 1.0
        %v550 = vadd.f32 %v518, 1.0
        %v551 = vadd.f32 %v519, 1.0
        %v552 = vadd.f32 %v520, 1.0
        %v553 = vadd.f32 %v521, 1.0
        %v554 = vadd.f32 %v522, 1.0
        %v555 = vadd.f32 %v523, 1.0
        %v556 = vadd.f32 %v524, 1.0
        %v557 = vadd.f32 %v525, 1.0
        %v558 = vadd.f32 %v526, 1.0
        %v559 = vadd.f32 %v527, 1.0
        %v560 = vadd.f32 %v528, 1.0
        %v561 = vadd.f32 %v529, 1.0
        %v562 = vadd.f32 %v530, 1.0
        %v563 = vadd.f32 %v531, 1.0
        %v564 = vadd.f32 %v532, 1.0
        %v565 = vadd.f32 %v533, 1.0
        %v566 = vadd.f32 %v534, 1.0
        %v567 = vadd.f32 %v535, 1.0
        %v568 = vadd.f32 %v536, 1.0
        %v569 = vadd.f32 %v537, 1.0
        %v570 = vadd.f32 %v538, 1.0
        %v571 = vadd.f32 %v539, 1.0
        %v572 = vadd.f32 %v540, 1.0
        %v573 = vadd.f32 %v541, 1.0
        %v574 = vadd.f32 %v542, 1.0
        %v575 = vadd.f32 %v543, 1.0
        %v576 = vadd.f32 %v544, 1.0
        %v577 = vadd.f32 %v545, 1.0
        %v578 = vadd.f32 %v546, 1.0
        %v579 = vadd.f32 %v547, 1.0
        %v580 = vrcp.pop %v548
        %v581 = vrcp.pop %v549
        %v582 = vrcp.pop %v550
        %v583 = vrcp.pop %v551
        %v584 = vrcp.pop %v552
        %v585 = vrcp.pop %v553
        %v586 = vrcp.pop %v554
        %v587 = vrcp.pop %v555
        %v588 = vrcp.pop %v556
        %v589 = vrcp.pop %v557
        %v590 = vrcp.pop %v558
        %v591 = vrcp.pop %v559
        %v592 = vrcp.pop %v560
        %v593 = vrcp.pop %v561
        %v594 = vrcp.pop %v562
        %v595 = vrcp.pop %v563
        %v596 = vrcp.pop %v564
        %v597 = vrcp.pop %v565
        %v598 = vrcp.pop %v566
        %v599 = vrcp.pop %v567
        %v600 = vrcp.pop %v568
        %v601 = vrcp.pop %v569
        %v602 = vrcp.pop %v570
        %v603 = vrcp.pop %v571
        %v604 = vrcp.pop %v572
        %v605 = vrcp.pop %v573
        %v606 = vrcp.pop %v574
        %v607 = vrcp.pop %v575
        %v608 = vrcp.pop %v576
        %v609 = vrcp.pop %v577
        %v610 = vrcp.pop %v578
        %v611 = vrcp.pop %v579
        %v612 = vmul.f32 %v580, 1.0614054
        %v613 = vmul.f32 %v581, 1.0614054
        %v614 = vmul.f32 %v582, 1.0614054
        %v615 = vmul.f32 %v583, 1.0614054
        %v616 = vmul.f32 %v584, 1.0614054
        %v617 = vmul.f32 %v585, 1.0614054
        %v618 = vmul.f32 %v586, 1.0614054
        %v619 = vmul.f32 %v587, 1.0614054
        %v620 = vmul.f32 %v588, 1.0614054
        %v621 = vmul.f32 %v589, 1.0614054
        %v622 = vmul.f32 %v590, 1.0614054
        %v623 = vmul.f32 %v591, 1.0614054
        %v624 = vmul.f32 %v592, 1.0614054
        %v625 = vmul.f32 %v593, 1.0614054
        %v626 = vmul.f32 %v594, 1.0614054
        %v627 = vmul.f32 %v595, 1.0614054
        %v628 = vmul.f32 %v596, 1.0614054
        %v629 = vmul.f32 %v597, 1.0614054
        %v630 = vmul.f32 %v598, 1.0614054
        %v631 = vmul.f32 %v599, 1.0614054
        %v632 = vmul.f32 %v600, 1.0614054
        %v633 = vmul.f32 %v601, 1.0614054
        %v634 = vmul.f32 %v602, 1.0614054
        %v635 = vmul.f32 %v603, 1.0614054
        %v636 = vmul.f32 %v604, 1.0614054
        %v637 = vmul.f32 %v605, 1.0614054
        %v638 = vmul.f32 %v606, 1.0614054
        %v639 = vmul.f32 %v607, 1.0614054
        %v640 = vmul.f32 %v608, 1.0614054
        %v641 = vmul.f32 %v609, 1.0614054
        %v642 = vmul.f32 %v610, 1.0614054
        %v643 = vmul.f32 %v611, 1.0614054
        %v644 = vadd.f32 %v612, -1.4531521
        %v645 = vadd.f32 %v613, -1.4531521
        %v646 = vadd.f32 %v614, -1.4531521
        %v647 = vadd.f32 %v615, -1.4531521
        %v648 = vadd.f32 %v616, -1.4531521
        %v649 = vadd.f32 %v617, -1.4531521
        %v650 = vadd.f32 %v618, -1.4531521
        %v651 = vadd.f32 %v619, -1.4531521
        %v652 = vadd.f32 %v620, -1.4531521
        %v653 = vadd.f32 %v621, -1.4531521
        %v654 = vadd.f32 %v622, -1.4531521
        %v655 = vadd.f32 %v623, -1.4531521
        %v656 = vadd.f32 %v624, -1.4531521
        %v657 = vadd.f32 %v625, -1.4531521
        %v658 = vadd.f32 %v626, -1.4531521
        %v659 = vadd.f32 %v627, -1.4531521
        %v660 = vadd.f32 %v628, -1.4531521
        %v661 = vadd.f32 %v629, -1.4531521
        %v662 = vadd.f32 %v630, -1.4531521
        %v663 = vadd.f32 %v631, -1.4531521
        %v664 = vadd.f32 %v632, -1.4531521
        %v665 = vadd.f32 %v633, -1.4531521
        %v666 = vadd.f32 %v634, -1.4531521
        %v667 = vadd.f32 %v635, -1.4531521
        %v668 = vadd.f32 %v636, -1.4531521
        %v669 = vadd.f32 %v637, -1.4531521
        %v670 = vadd.f32 %v638, -1.4531521
        %v671 = vadd.f32 %v639, -1.4531521
        %v672 = vadd.f32 %v640, -1.4531521
        %v673 = vadd.f32 %v641, -1.4531521
        %v674 = vadd.f32 %v642, -1.4531521
        %v675 = vadd.f32 %v643, -1.4531521
        %v676 = vmul.f32 %v644, %v580
        %v677 = vmul.f32 %v645, %v581
        %v678 = vmul.f32 %v646, %v582
        %v679 = vmul.f32 %v647, %v583
        %v680 = vmul.f32 %v648, %v584
        %v681 = vmul.f32 %v649, %v585
        %v682 = vmul.f32 %v650, %v586
        %v683 = vmul.f32 %v651, %v587
        %v684 = vmul.f32 %v652, %v588
        %v685 = vmul.f32 %v653, %v589
        %v686 = vmul.f32 %v654, %v590
        %v687 = vmul.f32 %v655, %v591
        %v688 = vmul.f32 %v656, %v592
        %v689 = vmul.f32 %v657, %v593
        %v690 = vmul.f32 %v658, %v594
        %v691 = vmul.f32 %v659, %v595
        %v692 = vmul.f32 %v660, %v596
        %v693 = vmul.f32 %v661, %v597
        %v694 = vmul.f32 %v662, %v598
        %v695 = vmul.f32 %v663, %v599
        %v696 = vmul.f32 %v664, %v600
        %v697 = vmul.f32 %v665, %v601
        %v698 = vmul.f32 %v666, %v602
        %v699 = vmul.f32 %v667, %v603
        %v700 = vmul.f32 %v668, %v604
        %v701 = vmul.f32 %v669, %v605
        %v702 = vmul.f32 %v670, %v606
        %v703 = vmul.f32 %v671, %v607
        %v704 = vmul.f32 %v672, %v608
        %v705 = vmul.f32 %v673, %v609
        %v706 = vmul.f32 %v674, %v610
        %v707 = vmul.f32 %v675, %v611
        %v708 = vadd.f32 %v676, 1.4214138
        %v709 = vadd.f32 %v677, 1.4214138
        %v710 = vadd.f32 %v678, 1.4214138
        %v711 = vadd.f32 %v679, 1.4214138
        %v712 = vadd.f32 %v680, 1.4214138
        %v713 = vadd.f32 %v681, 1.4214138
        %v714 = vadd.f32 %v682, 1.4214138
        %v715 = vadd.f32 %v683, 1.4214138
        %v716 = vadd.f32 %v684, 1.4214138
        %v717 = vadd.f32 %v685, 1.4214138
        %v718 = vadd.f32 %v686, 1.4214138
        %v719 = vadd.f32 %v687, 1.4214138
        %v720 = vadd.f32 %v688, 1.4214138
        %v721 = vadd.f32 %v689, 1.4214138
        %v722 = vadd.f32 %v690, 1.4214138
        %v723 = vadd.f32 %v691, 1.4214138
        %v724 = vadd.f32 %v692, 1.4214138
        %v725 = vadd.f32 %v693, 1.4214138
        %v726 = vadd.f32 %v694, 1.4214138
        %v727 = vadd.f32 %v695, 1.4214138
        %v728 = vadd.f32 %v696, 1.4214138
        %v729 = vadd.f32 %v697, 1.4214138
        %v730 = vadd.f32 %v698, 1.4214138
        %v731 = vadd.f32 %v699, 1.4214138
        %v732 = vadd.f32 %v700, 1.4214138
        %v733 = vadd.f32 %v701, 1.4214138
        %v734 = vadd.f32 %v702, 1.4214138
        %v735 = vadd.f32 %v703, 1.4214138
        %v736 = vadd.f32 %v704, 1.4214138
        %v737 = vadd.f32 %v705, 1.4214138
        %v738 = vadd.f32 %v706, 1.4214138
        %v739 = vadd.f32 %v707, 1.4214138
        %v740 = vmul.f32 %v708, %v580
        %v741 = vmul.f32 %v709, %v581
        %v742 = vmul.f32 %v710, %v582
        %v743 = vmul.f32 %v711, %v583
        %v744 = vmul.f32 %v712, %v584
        %v745 = vmul.f32 %v713, %v585
        %v746 = vmul.f32 %v714, %v586
        %v747 = vmul.f32 %v715, %v587
        %v748 = vmul.f32 %v716, %v588
        %v749 = vmul.f32 %v717, %v589
        %v750 = vmul.f32 %v718, %v590
        %v751 = vmul.f32 %v719, %v591
        %v752 = vmul.f32 %v720, %v592
        %v753 = vmul.f32 %v721, %v593
        %v754 = vmul.f32 %v722, %v594
        %v755 = vmul.f32 %v723, %v595
        %v756 = vmul.f32 %v724, %v596
        %v757 = vmul.f32 %v725, %v597
        %v758 = vmul.f32 %v726, %v598
        %v759 = vmul.f32 %v727, %v599
        %v760 = vmul.f32 %v728, %v600
        %v761 = vmul.f32 %v729, %v601
        %v762 = vmul.f32 %v730, %v602
        %v763 = vmul.f32 %v731, %v603
        %v764 = vmul.f32 %v732, %v604
        %v765 = vmul.f32 %v733, %v605
        %v766 = vmul.f32 %v734, %v606
        %v767 = vmul.f32 %v735, %v607
        %v768 = vmul.f32 %v736, %v608
        %v769 = vmul.f32 %v737, %v609
        %v770 = vmul.f32 %v738, %v610
        %v771 = vmul.f32 %v739, %v611
        %v772 = vadd.f32 %v740, -0.28449672
        %v773 = vadd.f32 %v741, -0.28449672
        %v774 = vadd.f32 %v742, -0.28449672
        %v775 = vadd.f32 %v743, -0.28449672
        %v776 = vadd.f32 %v744, -0.28449672
        %v777 = vadd.f32 %v745, -0.28449672
        %v778 = vadd.f32 %v746, -0.28449672
        %v779 = vadd.f32 %v747, -0.28449672
        %v780 = vadd.f32 %v748, -0.28449672
        %v781 = vadd.f32 %v749, -0.28449672
        %v782 = vadd.f32 %v750, -0.28449672
        %v783 = vadd.f32 %v751, -0.28449672
        %v784 = vadd.f32 %v752, -0.28449672
        %v785 = vadd.f32 %v753, -0.28449672
        %v786 = vadd.f32 %v754, -0.28449672
        %v787 = vadd.f32 %v755, -0.28449672
        %v788 = vadd.f32 %v756, -0.28449672
        %v789 = vadd.f32 %v757, -0.28449672
        %v790 = vadd.f32 %v758, -0.28449672
        %v791 = vadd.f32 %v759, -0.28449672
        %v792 = vadd.f32 %v760, -0.28449672
        %v793 = vadd.f32 %v761, -0.28449672
        %v794 = vadd.f32 %v762, -0.28449672
        %v795 = vadd.f32 %v763, -0.28449672
        %v796 = vadd.f32 %v764, -0.28449672
        %v797 = vadd.f32 %v765, -0.28449672
        %v798 = vadd.f32 %v766, -0.28449672
        %v799 = vadd.f32 %v767, -0.28449672
        %v800 = vadd.f32 %v768, -0.28449672
        %v801 = vadd.f32 %v769, -0.28449672
        %v802 = vadd.f32 %v770, -0.28449672
        %v803 = vadd.f32 %v771, -0.28449672
        %v804 = vmul.f32 %v772, %v580
        %v805 = vmul.f32 %v773, %v581
        %v806 = vmul.f32 %v774, %v582
        %v807 = vmul.f32 %v775, %v583
        %v808 = vmul.f32 %v776, %v584
        %v809 = vmul.f32 %v777, %v585
        %v810 = vmul.f32 %v778, %v586
        %v811 = vmul.f32 %v779, %v587
        %v812 = vmul.f32 %v780, %v588
        %v813 = vmul.f32 %v781, %v589
        %v814 = vmul.f32 %v782, %v590
        %v815 = vmul.f32 %v783, %v591
        %v816 = vmul.f32 %v784, %v592
        %v817 = vmul.f32 %v785, %v593
        %v818 = vmul.f32 %v786, %v594
        %v819 = vmul.f32 %v787, %v595
        %v820 = vmul.f32 %v788, %v596
        %v821 = vmul.f32 %v789, %v597
        %v822 = vmul.f32 %v790, %v598
        %v823 = vmul.f32 %v791, %v599
        %v824 = vmul.f32 %v792, %v600
        %v825 = vmul.f32 %v793, %v601
        %v826 = vmul.f32 %v794, %v602
        %v827 = vmul.f32 %v795, %v603
        %v828 = vmul.f32 %v796, %v604
        %v829 = vmul.f32 %v797, %v605
        %v830 = vmul.f32 %v798, %v606
        %v831 = vmul.f32 %v799, %v607
        %v832 = vmul.f32 %v800, %v608
        %v833 = vmul.f32 %v801, %v609
        %v834 = vmul.f32 %v802, %v610
        %v835 = vmul.f32 %v803, %v611
        %v836 = vadd.f32 %v804, 0.2548296
        %v837 = vadd.f32 %v805, 0.2548296
        %v838 = vadd.f32 %v806, 0.2548296
        %v839 = vadd.f32 %v807, 0.2548296
        %v840 = vadd.f32 %v808, 0.2548296
        %v841 = vadd.f32 %v809, 0.2548296
        %v842 = vadd.f32 %v810, 0.2548296
        %v843 = vadd.f32 %v811, 0.2548296
        %v844 = vadd.f32 %v812, 0.2548296
        %v845 = vadd.f32 %v813, 0.2548296
        %v846 = vadd.f32 %v814, 0.2548296
        %v847 = vadd.f32 %v815, 0.2548296
        %v848 = vadd.f32 %v816, 0.2548296
        %v849 = vadd.f32 %v817, 0.2548296
        %v850 = vadd.f32 %v818, 0.2548296
        %v851 = vadd.f32 %v819, 0.2548296
        %v852 = vadd.f32 %v820, 0.2548296
        %v853 = vadd.f32 %v821, 0.2548296
        %v854 = vadd.f32 %v822, 0.2548296
        %v855 = vadd.f32 %v823, 0.2548296
        %v856 = vadd.f32 %v824, 0.2548296
        %v857 = vadd.f32 %v825, 0.2548296
        %v858 = vadd.f32 %v826, 0.2548296
        %v859 = vadd.f32 %v827, 0.2548296
        %v860 = vadd.f32 %v828, 0.2548296
        %v861 = vadd.f32 %v829, 0.2548296
        %v862 = vadd.f32 %v830, 0.2548296
        %v863 = vadd.f32 %v831, 0.2548296
        %v864 = vadd.f32 %v832, 0.2548296
        %v865 = vadd.f32 %v833, 0.2548296
        %v866 = vadd.f32 %v834, 0.2548296
        %v867 = vadd.f32 %v835, 0.2548296
        %v868 = vmul.f32 %v836, %v580
        %v869 = vmul.f32 %v837, %v581
        %v870 = vmul.f32 %v838, %v582
        %v871 = vmul.f32 %v839, %v583
        %v872 = vmul.f32 %v840, %v584
        %v873 = vmul.f32 %v841, %v585
        %v874 = vmul.f32 %v842, %v586
        %v875 = vmul.f32 %v843, %v587
        %v876 = vmul.f32 %v844, %v588
        %v877 = vmul.f32 %v845, %v589
        %v878 = vmul.f32 %v846, %v590
        %v879 = vmul.f32 %v847, %v591
        %v880 = vmul.f32 %v848, %v592
        %v881 = vmul.f32 %v849, %v593
        %v882 = vmul.f32 %v850, %v594
        %v883 = vmul.f32 %v851, %v595
        %v884 = vmul.f32 %v852, %v596
        %v885 = vmul.f32 %v853, %v597
        %v886 = vmul.f32 %v854, %v598
        %v887 = vmul.f32 %v855, %v599
        %v888 = vmul.f32 %v856, %v600
        %v889 = vmul.f32 %v857, %v601
        %v890 = vmul.f32 %v858, %v602
        %v891 = vmul.f32 %v859, %v603
        %v892 = vmul.f32 %v860, %v604
        %v893 = vmul.f32 %v861, %v605
        %v894 = vmul.f32 %v862, %v606
        %v895 = vmul.f32 %v863, %v607
        %v896 = vmul.f32 %v864, %v608
        %v897 = vmul.f32 %v865, %v609
        %v898 = vmul.f32 %v866, %v610
        %v899 = vmul.f32 %v867, %v611
        %v900 = vsub.f32 0.0, %v484
        %v901 = vsub.f32 0.0, %v485
        %v902 = vsub.f32 0.0, %v486
        %v903 = vsub.f32 0.0, %v487
        %v904 = vsub.f32 0.0, %v488
        %v905 = vsub.f32 0.0, %v489
        %v906 = vsub.f32 0.0, %v490
        %v907 = vsub.f32 0.0, %v491
        %v908 = vsub.f32 0.0, %v492
        %v909 = vsub.f32 0.0, %v493
        %v910 = vsub.f32 0.0, %v494
        %v911 = vsub.f32 0.0, %v495
        %v912 = vsub.f32 0.0, %v496
        %v913 = vsub.f32 0.0, %v497
        %v914 = vsub.f32 0.0, %v498
        %v915 = vsub.f32 0.0, %v499
        %v916 = vsub.f32 0.0, %v500
        %v917 = vsub.f32 0.0, %v501
        %v918 = vsub.f32 0.0, %v502
        %v919 = vsub.f32 0.0, %v503
        %v920 = vsub.f32 0.0, %v504
        %v921 = vsub.f32 0.0, %v505
        %v922 = vsub.f32 0.0, %v506
        %v923 = vsub.f32 0.0, %v507
        %v924 = vsub.f32 0.0, %v508
        %v925 = vsub.f32 0.0, %v509
        %v926 = vsub.f32 0.0, %v510
        %v927 = vsub.f32 0.0, %v511
        %v928 = vsub.f32 0.0, %v512
        %v929 = vsub.f32 0.0, %v513
        %v930 = vsub.f32 0.0, %v514
        %v931 = vsub.f32 0.0, %v515
        %v932 = vmul.f32 %v900, %v484
        %v933 = vmul.f32 %v901, %v485
        %v934 = vmul.f32 %v902, %v486
        %v935 = vmul.f32 %v903, %v487
        %v936 = vmul.f32 %v904, %v488
        %v937 = vmul.f32 %v905, %v489
        %v938 = vmul.f32 %v906, %v490
        %v939 = vmul.f32 %v907, %v491
        %v940 = vmul.f32 %v908, %v492
        %v941 = vmul.f32 %v909, %v493
        %v942 = vmul.f32 %v910, %v494
        %v943 = vmul.f32 %v911, %v495
        %v944 = vmul.f32 %v912, %v496
        %v945 = vmul.f32 %v913, %v497
        %v946 = vmul.f32 %v914, %v498
        %v947 = vmul.f32 %v915, %v499
        %v948 = vmul.f32 %v916, %v500
        %v949 = vmul.f32 %v917, %v501
        %v950 = vmul.f32 %v918, %v502
        %v951 = vmul.f32 %v919, %v503
        %v952 = vmul.f32 %v920, %v504
        %v953 = vmul.f32 %v921, %v505
        %v954 = vmul.f32 %v922, %v506
        %v955 = vmul.f32 %v923, %v507
        %v956 = vmul.f32 %v924, %v508
        %v957 = vmul.f32 %v925, %v509
        %v958 = vmul.f32 %v926, %v510
        %v959 = vmul.f32 %v927, %v511
        %v960 = vmul.f32 %v928, %v512
        %v961 = vmul.f32 %v929, %v513
        %v962 = vmul.f32 %v930, %v514
        %v963 = vmul.f32 %v931, %v515
        %v964 = vmul.f32 %v932, 1.442695
        %v965 = vpow.pop %v964
        %v966 = vmul.f32 %v933, 1.442695
        %v967 = vpow.pop %v966
        %v968 = vmul.f32 %v934, 1.442695
        %v969 = vpow.pop %v968
        %v970 = vmul.f32 %v935, 1.442695
        %v971 = vpow.pop %v970
        %v972 = vmul.f32 %v936, 1.442695
        %v973 = vpow.pop %v972
        %v974 = vmul.f32 %v937, 1.442695
        %v975 = vpow.pop %v974
        %v976 = vmul.f32 %v938, 1.442695
        %v977 = vpow.pop %v976
        %v978 = vmul.f32 %v939, 1.442695
        %v979 = vpow.pop %v978
        %v980 = vmul.f32 %v940, 1.442695
        %v981 = vpow.pop %v980
        %v982 = vmul.f32 %v941, 1.442695
        %v983 = vpow.pop %v982
        %v984 = vmul.f32 %v942, 1.442695
        %v985 = vpow.pop %v984
        %v986 = vmul.f32 %v943, 1.442695
        %v987 = vpow.pop %v986
        %v988 = vmul.f32 %v944, 1.442695
        %v989 = vpow.pop %v988
        %v990 = vmul.f32 %v945, 1.442695
        %v991 = vpow.pop %v990
        %v992 = vmul.f32 %v946, 1.442695
        %v993 = vpow.pop %v992
        %v994 = vmul.f32 %v947, 1.442695
        %v995 = vpow.pop %v994
        %v996 = vmul.f32 %v948, 1.442695
        %v997 = vpow.pop %v996
        %v998 = vmul.f32 %v949, 1.442695
        %v999 = vpow.pop %v998
        %v1000 = vmul.f32 %v950, 1.442695
        %v1001 = vpow.pop %v1000
        %v1002 = vmul.f32 %v951, 1.442695
        %v1003 = vpow.pop %v1002
        %v1004 = vmul.f32 %v952, 1.442695
        %v1005 = vpow.pop %v1004
        %v1006 = vmul.f32 %v953, 1.442695
        %v1007 = vpow.pop %v1006
        %v1008 = vmul.f32 %v954, 1.442695
        %v1009 = vpow.pop %v1008
        %v1010 = vmul.f32 %v955, 1.442695
        %v1011 = vpow.pop %v1010
        %v1012 = vmul.f32 %v956, 1.442695
        %v1013 = vpow.pop %v1012
        %v1014 = vmul.f32 %v957, 1.442695
        %v1015 = vpow.pop %v1014
        %v1016 = vmul.f32 %v958, 1.442695
        %v1017 = vpow.pop %v1016
        %v1018 = vmul.f32 %v959, 1.442695
        %v1019 = vpow.pop %v1018
        %v1020 = vmul.f32 %v960, 1.442695
        %v1021 = vpow.pop %v1020
        %v1022 = vmul.f32 %v961, 1.442695
        %v1023 = vpow.pop %v1022
        %v1024 = vmul.f32 %v962, 1.442695
        %v1025 = vpow.pop %v1024
        %v1026 = vmul.f32 %v963, 1.442695
        %v1027 = vpow.pop %v1026
        %v1028 = vmul.f32 %v868, %v965
        %v1029 = vmul.f32 %v869, %v967
        %v1030 = vmul.f32 %v870, %v969
        %v1031 = vmul.f32 %v871, %v971
        %v1032 = vmul.f32 %v872, %v973
        %v1033 = vmul.f32 %v873, %v975
        %v1034 = vmul.f32 %v874, %v977
        %v1035 = vmul.f32 %v875, %v979
        %v1036 = vmul.f32 %v876, %v981
        %v1037 = vmul.f32 %v877, %v983
        %v1038 = vmul.f32 %v878, %v985
        %v1039 = vmul.f32 %v879, %v987
        %v1040 = vmul.f32 %v880, %v989
        %v1041 = vmul.f32 %v881, %v991
        %v1042 = vmul.f32 %v882, %v993
        %v1043 = vmul.f32 %v883, %v995
        %v1044 = vmul.f32 %v884, %v997
        %v1045 = vmul.f32 %v885, %v999
        %v1046 = vmul.f32 %v886, %v1001
        %v1047 = vmul.f32 %v887, %v1003
        %v1048 = vmul.f32 %v888, %v1005
        %v1049 = vmul.f32 %v889, %v1007
        %v1050 = vmul.f32 %v890, %v1009
        %v1051 = vmul.f32 %v891, %v1011
        %v1052 = vmul.f32 %v892, %v1013
        %v1053 = vmul.f32 %v893, %v1015
        %v1054 = vmul.f32 %v894, %v1017
        %v1055 = vmul.f32 %v895, %v1019
        %v1056 = vmul.f32 %v896, %v1021
        %v1057 = vmul.f32 %v897, %v1023
        %v1058 = vmul.f32 %v898, %v1025
        %v1059 = vmul.f32 %v899, %v1027
        %v1060 = vsub.f32 1.0, %v1028
        %v1061 = vsub.f32 1.0, %v1029
        %v1062 = vsub.f32 1.0, %v1030
        %v1063 = vsub.f32 1.0, %v1031
        %v1064 = vsub.f32 1.0, %v1032
        %v1065 = vsub.f32 1.0, %v1033
        %v1066 = vsub.f32 1.0, %v1034
        %v1067 = vsub.f32 1.0, %v1035
        %v1068 = vsub.f32 1.0, %v1036
        %v1069 = vsub.f32 1.0, %v1037
        %v1070 = vsub.f32 1.0, %v1038
        %v1071 = vsub.f32 1.0, %v1039
        %v1072 = vsub.f32 1.0, %v1040
        %v1073 = vsub.f32 1.0, %v1041
        %v1074 = vsub.f32 1.0, %v1042
        %v1075 = vsub.f32 1.0, %v1043
        %v1076 = vsub.f32 1.0, %v1044
        %v1077 = vsub.f32 1.0, %v1045
        %v1078 = vsub.f32 1.0, %v1046
        %v1079 = vsub.f32 1.0, %v1047
        %v1080 = vsub.f32 1.0, %v1048
        %v1081 = vsub.f32 1.0, %v1049
        %v1082 = vsub.f32 1.0, %v1050
        %v1083 = vsub.f32 1.0, %v1051
        %v1084 = vsub.f32 1.0, %v1052
        %v1085 = vsub.f32 1.0, %v1053
        %v1086 = vsub.f32 1.0, %v1054
        %v1087 = vsub.f32 1.0, %v1055
        %v1088 = vsub.f32 1.0, %v1056
        %v1089 = vsub.f32 1.0, %v1057
        %v1090 = vsub.f32 1.0, %v1058
        %v1091 = vsub.f32 1.0, %v1059
        %v1092 = vmul.f32 %v452, %v1060
        %v1093 = vmul.f32 %v453, %v1061
        %v1094 = vmul.f32 %v454, %v1062
        %v1095 = vmul.f32 %v455, %v1063
        %v1096 = vmul.f32 %v456, %v1064
        %v1097 = vmul.f32 %v457, %v1065
        %v1098 = vmul.f32 %v458, %v1066
        %v1099 = vmul.f32 %v459, %v1067
        %v1100 = vmul.f32 %v460, %v1068
        %v1101 = vmul.f32 %v461, %v1069
        %v1102 = vmul.f32 %v462, %v1070
        %v1103 = vmul.f32 %v463, %v1071
        %v1104 = vmul.f32 %v464, %v1072
        %v1105 = vmul.f32 %v465, %v1073
        %v1106 = vmul.f32 %v466, %v1074
        %v1107 = vmul.f32 %v467, %v1075
        %v1108 = vmul.f32 %v468, %v1076
        %v1109 = vmul.f32 %v469, %v1077
        %v1110 = vmul.f32 %v470, %v1078
        %v1111 = vmul.f32 %v471, %v1079
        %v1112 = vmul.f32 %v472, %v1080
        %v1113 = vmul.f32 %v473, %v1081
        %v1114 = vmul.f32 %v474, %v1082
        %v1115 = vmul.f32 %v475, %v1083
        %v1116 = vmul.f32 %v476, %v1084
        %v1117 = vmul.f32 %v477, %v1085
        %v1118 = vmul.f32 %v478, %v1086
        %v1119 = vmul.f32 %v479, %v1087
        %v1120 = vmul.f32 %v480, %v1088
        %v1121 = vmul.f32 %v481, %v1089
        %v1122 = vmul.f32 %v482, %v1090
        %v1123 = vmul.f32 %v483, %v1091
        %v1124 = vadd.f32 %v1092, 1.0
        %v1125 = vadd.f32 %v1093, 1.0
        %v1126 = vadd.f32 %v1094, 1.0
        %v1127 = vadd.f32 %v1095, 1.0
        %v1128 = vadd.f32 %v1096, 1.0
        %v1129 = vadd.f32 %v1097, 1.0
        %v1130 = vadd.f32 %v1098, 1.0
        %v1131 = vadd.f32 %v1099, 1.0
        %v1132 = vadd.f32 %v1100, 1.0
        %v1133 = vadd.f32 %v1101, 1.0
        %v1134 = vadd.f32 %v1102, 1.0
        %v1135 = vadd.f32 %v1103, 1.0
        %v1136 = vadd.f32 %v1104, 1.0
        %v1137 = vadd.f32 %v1105, 1.0
        %v1138 = vadd.f32 %v1106, 1.0
        %v1139 = vadd.f32 %v1107, 1.0
        %v1140 = vadd.f32 %v1108, 1.0
        %v1141 = vadd.f32 %v1109, 1.0
        %v1142 = vadd.f32 %v1110, 1.0
        %v1143 = vadd.f32 %v1111, 1.0
        %v1144 = vadd.f32 %v1112, 1.0
        %v1145 = vadd.f32 %v1113, 1.0
        %v1146 = vadd.f32 %v1114, 1.0
        %v1147 = vadd.f32 %v1115, 1.0
        %v1148 = vadd.f32 %v1116, 1.0
        %v1149 = vadd.f32 %v1117, 1.0
        %v1150 = vadd.f32 %v1118, 1.0
        %v1151 = vadd.f32 %v1119, 1.0
        %v1152 = vadd.f32 %v1120, 1.0
        %v1153 = vadd.f32 %v1121, 1.0
        %v1154 = vadd.f32 %v1122, 1.0
        %v1155 = vadd.f32 %v1123, 1.0
        %v1156 = vmul.f32 %v356, %v1124
        %v1157 = vmul.f32 %v357, %v1125
        %v1158 = vmul.f32 %v358, %v1126
        %v1159 = vmul.f32 %v359, %v1127
        %v1160 = vmul.f32 %v360, %v1128
        %v1161 = vmul.f32 %v361, %v1129
        %v1162 = vmul.f32 %v362, %v1130
        %v1163 = vmul.f32 %v363, %v1131
        %v1164 = vmul.f32 %v364, %v1132
        %v1165 = vmul.f32 %v365, %v1133
        %v1166 = vmul.f32 %v366, %v1134
        %v1167 = vmul.f32 %v367, %v1135
        %v1168 = vmul.f32 %v368, %v1136
        %v1169 = vmul.f32 %v369, %v1137
        %v1170 = vmul.f32 %v370, %v1138
        %v1171 = vmul.f32 %v371, %v1139
        %v1172 = vmul.f32 %v372, %v1140
        %v1173 = vmul.f32 %v373, %v1141
        %v1174 = vmul.f32 %v374, %v1142
        %v1175 = vmul.f32 %v375, %v1143
        %v1176 = vmul.f32 %v376, %v1144
        %v1177 = vmul.f32 %v377, %v1145
        %v1178 = vmul.f32 %v378, %v1146
        %v1179 = vmul.f32 %v379, %v1147
        %v1180 = vmul.f32 %v380, %v1148
        %v1181 = vmul.f32 %v381, %v1149
        %v1182 = vmul.f32 %v382, %v1150
        %v1183 = vmul.f32 %v383, %v1151
        %v1184 = vmul.f32 %v384, %v1152
        %v1185 = vmul.f32 %v385, %v1153
        %v1186 = vmul.f32 %v386, %v1154
        %v1187 = vmul.f32 %v387, %v1155
        %1188 = vst [vmem:[%s213] sm:$0xff] %v1156
        %1189 = vst [vmem:[%s213 + $0x8] sm:$0xff] %v1157
        %1190 = vst [vmem:[%s213 + $0x10] sm:$0xff] %v1158
        %1191 = vst [vmem:[%s213 + $0x18] sm:$0xff] %v1159
        %1192 = vst [vmem:[%s213 + $0x20] sm:$0xff] %v1160
        %1193 = vst [vmem:[%s213 + $0x28] sm:$0xff] %v1161
        %1194 = vst [vmem:[%s213 + $0x30] sm:$0xff] %v1162
        %1195 = vst [vmem:[%s213 + $0x38] sm:$0xff] %v1163
        %1196 = vst [vmem:[%s213 + $0x40] sm:$0xff] %v1164
        %1197 = vst [vmem:[%s213 + $0x48] sm:$0xff] %v1165
        %1198 = vst [vmem:[%s213 + $0x50] sm:$0xff] %v1166
        %1199 = vst [vmem:[%s213 + $0x58] sm:$0xff] %v1167
        %1200 = vst [vmem:[%s213 + $0x60] sm:$0xff] %v1168
        %1201 = vst [vmem:[%s213 + $0x68] sm:$0xff] %v1169
        %1202 = vst [vmem:[%s213 + $0x70] sm:$0xff] %v1170
        %1203 = vst [vmem:[%s213 + $0x78] sm:$0xff] %v1171
        %1204 = vst [vmem:[%s213 + $0x80] sm:$0xff] %v1172
        %1205 = vst [vmem:[%s213 + $0x88] sm:$0xff] %v1173
        %1206 = vst [vmem:[%s213 + $0x90] sm:$0xff] %v1174
        %1207 = vst [vmem:[%s213 + $0x98] sm:$0xff] %v1175
        %1208 = vst [vmem:[%s213 + $0xa0] sm:$0xff] %v1176
        %1209 = vst [vmem:[%s213 + $0xa8] sm:$0xff] %v1177
        %1210 = vst [vmem:[%s213 + $0xb0] sm:$0xff] %v1178
        %1211 = vst [vmem:[%s213 + $0xb8] sm:$0xff] %v1179
        %1212 = vst [vmem:[%s213 + $0xc0] sm:$0xff] %v1180
        %1213 = vst [vmem:[%s213 + $0xc8] sm:$0xff] %v1181
        %1214 = vst [vmem:[%s213 + $0xd0] sm:$0xff] %v1182
        %1215 = vst [vmem:[%s213 + $0xd8] sm:$0xff] %v1183
        %1216 = vst [vmem:[%s213 + $0xe0] sm:$0xff] %v1184
        %1217 = vst [vmem:[%s213 + $0xe8] sm:$0xff] %v1185
        %1218 = vst [vmem:[%s213 + $0xf0] sm:$0xff] %v1186
        %1219 = vst [vmem:[%s213 + $0xf8] sm:$0xff] %v1187
        %s1220 = sand.u32 %s97, 1
        %s1221 = scalar_lea.sflag [#allocation4], %s1220
        %s1222 = sand.u32 %s97, 1
        %s1223 = smul.addr %s1222, 256
        %s1224 = scalar_lea.vmem [#allocation8], %s1223
        // Predicated region
        $region45: #{unet_up_forward.17} parent=31 // pred_check
          %p1225 = pneg %p107
        $region46: #{unet_up_forward.17} parent=31 // pred_check_branch
          %1227 = sbr.rel (%p1225) target = $region48
        $region47: #{unet_up_forward.17} parent=31 // pred_region
          %s1229 = ssub.s32 4096, 4096
          %1230 = vsyncadd %s1221, %s1229
          %s1231 = smul.addr %s21, 32
          %s1232 = smul.addr %s1231, 128
          %s1233 = scalar_lea.hbm %s3, %s1232
          %s1234 = sshll.u32 %s1224, 4
          %s1235 = int_to_ptr.vmem [resolvable:$true] %s1234
          %1240 = dma.vmem_to_hbm [thread:$0]  %s1235, 4096, %s1233, %s1221, 128, 128, 8
        $region48: #{unet_up_forward.17} parent=31 // pred_fallthru
          _
      $region32: #{unet_up_forward.17} parent=5 // pred_fallthru
        _
      %p1241 = scmp.le.s32.totalorder 2, %s16
      // Predicated region
      $region49: #{unet_up_forward.17} parent=5 // pred_check
        %p1242 = pneg %p1241
      $region50: #{unet_up_forward.17} parent=5 // pred_check_branch
        %1244 = sbr.rel (%p1242) target = $region52
      $region51: #{unet_up_forward.17} parent=5 // pred_region
        %s1245 = ssub.s32 %s16, 2
        // Predicated region
        $region53: #{unet_up_forward.17} parent=51 // pred_check
          %p1246 = pneg %p113
        $region54: #{unet_up_forward.17} parent=51 // pred_check_branch
          %1248 = sbr.rel (%p1246) target = $region56
        $region55: #{unet_up_forward.17} parent=51 // pred_region
          %s1249 = sand.u32 %s98, 1
          %s1250 = scalar_lea.sflag [#allocation4], %s1249
          %s1251 = sand.u32 %s98, 1
          %s1252 = smul.addr %s1251, 256
          %s1253 = scalar_lea.vmem [#allocation8], %s1252
          %1254 = dma.done %s1250, 4096
        $region56: #{unet_up_forward.17} parent=51 // pred_fallthru
          _
      $region52: #{unet_up_forward.17} parent=5 // pred_fallthru
        _
    $region6: #{unet_up_forward.17} parent=1 // loop_footer
      %s20 = sadd.s32 1, %s16
    $region7: #{unet_up_forward.17} parent=1 // loop_footer_branch
      %15 = sbr.rel target = $region3
    $region8: #{unet_up_forward.17} parent=1 // loop_exit
      _
    %1255 = vsyncpa [#allocation3], 1
    %s1256 = scalar_lea.sflag [#allocation3], 1
    %1257 = vsyncpa %s1256, 1
    %1258 = vsyncpa [#allocation6], 1
    %1259 = vsyncpa [#allocation4], 1
    %s1260 = scalar_lea.sflag [#allocation4], 1
    %1261 = vsyncpa %s1260, 1

// kernel: unet_up_forward.11
$region0: #{unet_up_forward.11}
  #allocation0 [shape = 'u32[]', space=smem, size = 0x4, offset = 0x4, fixed_abs, tag = 'smem constant byte address 0x4 - core index']
  #allocation1 [shape = 'u32[144,128]{1,0:T(1,128)}', space=vmem, size = 0x12000, scoped, tag = 'internal scratch']
  %s0 = inlined_call_operand.hbm [shape: bf16[2,256,128], index: 0, kind: input, shape index: {}]
  %s1 = inlined_call_operand.hbm [shape: f32[1,128], index: 1, kind: input, shape index: {}]
  %s2 = inlined_call_operand.hbm [shape: f32[1,128], index: 2, kind: input, shape index: {}]
  %s3 = inlined_call_operand.hbm [shape: bf16[2,18,18,128], index: 3, kind: output, shape index: {}]
  %s4 = sld [smem:[#allocation0]]
  $region57: #{unet_up_forward.11} parent=0
    _
  %s6 = ssub.s32 1, %s4
  %s7 = scalar_select 0, %s6, %s4
  $region1: #{unet_up_forward.11} parent=0
    #allocation2 [shape = 'u8[131072]{0}', space=vmem, size = 0x20000, scoped, tag = 'input window, operand 0']
    #allocation3 [shape = 's32[2]{0}', space=sflag, size = 0x8, scoped, tag = 'scoped memory for unet_up_forward.11']
    #allocation4 [shape = 's32[2]{0}', space=sflag, size = 0x8, scoped, tag = 'scoped memory for unet_up_forward.11']
    #allocation5 [shape = 'u8[512]{0}', space=vmem, size = 0x400, scoped, tag = 'input window, operand 1, single buffered']
    #allocation6 [shape = 's32[1]{0}', space=sflag, size = 0x4, scoped, tag = 'scoped memory for unet_up_forward.11']
    #allocation7 [shape = 'u8[512]{0}', space=vmem, size = 0x400, scoped, tag = 'input window, operand 2, single buffered']
    #allocation8 [shape = 'u8[221184]{0}', space=vmem, size = 0x36000, scoped, tag = 'output window, operand 0']
    %8 = vsyncpa [#allocation3], 0
    %s9 = scalar_lea.sflag [#allocation3], 1
    %10 = vsyncpa %s9, 0
    %11 = vsyncpa [#allocation6], 0
    %12 = vsyncpa [#allocation4], 0
    %s13 = scalar_lea.sflag [#allocation4], 1
    %14 = vsyncpa %s13, 0
    loop: start=0, step=1, limit=4
    $region2: #{unet_up_forward.11} parent=1 // loop_pre_header
      _
    $region3: #{unet_up_forward.11} parent=1 // loop_header
      %s16 = sphi 0, %s20
      %p17 = scmp.ge.s32.totalorder %s16, 4
      %s26 = sphi 0, %s28
      %s29 = sphi 0, %s26
      %s30 = sphi 0, %s29
      %s46 = sphi 0, %s30
      %s50 = sphi 0, %s50
      %s52 = sphi 0, %s50
      %s53 = sphi 0, %s52
      %s67 = sphi 0, %s53
      %s71 = sphi 0, %s71
      %s73 = sphi 0, %s71
      %s74 = sphi 0, %s73
      %s88 = sphi 0, %s74
      %s94 = sphi 0, %s96
      %s97 = sphi 0, %s94
      %s98 = sphi 0, %s97
      %s114 = sphi 0, %s98
    $region4: #{unet_up_forward.11} parent=1 // loop_header_branch
      %19 = sbr.rel (%p17) target = $region8
    $region5: #{unet_up_forward.11} parent=1 // loop_body
      %s21 = ssub.s32 %s16, 1
      %s22 = ssub.s32 %s16, 2
      %s23 = sadd.s32 %s16, 1
      %s24 = ssub.s32 %s16, %s23
      %p25 = scmp.eq.s32.totalorder %s24, 0
      %s27 = sadd.s32 %s26, 1
      %s28 = scalar_select %p25, %s26, %s27
      %p31 = pneg %p25
      %p32 = scmp.eq.s32.totalorder %s16, 1
      %p33 = por %p31, %p32
      %p34 = scmp.ne.s32.totalorder %s26, %s29
      %p35 = scmp.eq.s32.totalorder %s16, 0
      %p36 = por %p34, %p35
      %p37 = scmp.ne.s32.totalorder %s26, %s29
      %p38 = scmp.eq.s32.totalorder %s21, 1
      %p39 = por %p37, %p38
      %p40 = scmp.ne.s32.totalorder %s29, %s30
      %p41 = scmp.eq.s32.totalorder %s21, 0
      %p42 = por %p40, %p41
      %p43 = scmp.ne.s32.totalorder %s29, %s30
      %p44 = scmp.eq.s32.totalorder %s22, 1
      %p45 = por %p43, %p44
      %p47 = scmp.ne.s32.totalorder %s30, %s46
      %p48 = scmp.eq.s32.totalorder %s22, 0
      %p49 = por %p47, %p48
      %s51 = sadd.s32 %s50, 1
      %p54 = scmp.eq.s32.totalorder %s16, 1
      %p55 = scmp.ne.s32.totalorder %s50, %s52
      %p56 = scmp.eq.s32.totalorder %s16, 0
      %p57 = por %p55, %p56
      %p58 = scmp.ne.s32.totalorder %s50, %s52
      %p59 = scmp.eq.s32.totalorder %s21, 1
      %p60 = por %p58, %p59
      %p61 = scmp.ne.s32.totalorder %s52, %s53
      %p62 = scmp.eq.s32.totalorder %s21, 0
      %p63 = por %p61, %p62
      %p64 = scmp.ne.s32.totalorder %s52, %s53
      %p65 = scmp.eq.s32.totalorder %s22, 1
      %p66 = por %p64, %p65
      %p68 = scmp.ne.s32.totalorder %s53, %s67
      %p69 = scmp.eq.s32.totalorder %s22, 0
      %p70 = por %p68, %p69
      %s72 = sadd.s32 %s71, 1
      %p75 = scmp.eq.s32.totalorder %s16, 1
      %p76 = scmp.ne.s32.totalorder %s71, %s73
      %p77 = scmp.eq.s32.totalorder %s16, 0
      %p78 = por %p76, %p77
      %p79 = scmp.ne.s32.totalorder %s71, %s73
      %p80 = scmp.eq.s32.totalorder %s21, 1
      %p81 = por %p79, %p80
      %p82 = scmp.ne.s32.totalorder %s73, %s74
      %p83 = scmp.eq.s32.totalorder %s21, 0
      %p84 = por %p82, %p83
      %p85 = scmp.ne.s32.totalorder %s73, %s74
      %p86 = scmp.eq.s32.totalorder %s22, 1
      %p87 = por %p85, %p86
      %p89 = scmp.ne.s32.totalorder %s74, %s88
      %p90 = scmp.eq.s32.totalorder %s22, 0
      %p91 = por %p89, %p90
      %s92 = ssub.s32 %s16, %s23
      %p93 = scmp.eq.s32.totalorder %s92, 0
      %s95 = sadd.s32 %s94, 1
      %s96 = scalar_select %p93, %s94, %s95
      %p99 = pneg %p93
      %p100 = scmp.eq.s32.totalorder %s16, 1
      %p101 = por %p99, %p100
      %p102 = scmp.ne.s32.totalorder %s94, %s97
      %p103 = scmp.eq.s32.totalorder %s16, 0
      %p104 = por %p102, %p103
      %p105 = scmp.ne.s32.totalorder %s94, %s97
      %p106 = scmp.eq.s32.totalorder %s21, 1
      %p107 = por %p105, %p106
      %p108 = scmp.ne.s32.totalorder %s97, %s98
      %p109 = scmp.eq.s32.totalorder %s21, 0
      %p110 = por %p108, %p109
      %p111 = scmp.ne.s32.totalorder %s97, %s98
      %p112 = scmp.eq.s32.totalorder %s22, 1
      %p113 = por %p111, %p112
      %p115 = scmp.ne.s32.totalorder %s98, %s114
      %p116 = scmp.eq.s32.totalorder %s22, 0
      %p117 = por %p115, %p116
      %p118 = scmp.le.s32.totalorder 1, %s16
      %p119 = scmp.lt.s32.totalorder %s16, 3
      %p120 = pnand %p118, %p119
      %p121 = pneg %p120
      // Predicated region
      $region9: #{unet_up_forward.11} parent=5 // pred_check
        _
      $region10: #{unet_up_forward.11} parent=5 // pred_check_branch
        %123 = sbr.rel (%p120) target = $region12
      $region11: #{unet_up_forward.11} parent=5 // pred_region
        %s124 = ssub.s32 %s16, 1
        // Predicated region
        $region13: #{unet_up_forward.11} parent=11 // pred_check
          %p125 = pneg %p63
        $region14: #{unet_up_forward.11} parent=11 // pred_check_branch
          %127 = sbr.rel (%p125) target = $region16
        $region15: #{unet_up_forward.11} parent=11 // pred_region
          %s129 = ssub.s32 16, 16
          %130 = vsyncadd [#allocation6], %s129
          %s132 = sshll.u32 [#allocation5], 4
          %s133 = int_to_ptr.vmem [resolvable:$true] %s132
          %135 = dma.hbm_to_vmem [thread:$0]  %s1, 16, %s133, [#allocation6]
        $region16: #{unet_up_forward.11} parent=11 // pred_fallthru
          _
        // Predicated region
        $region17: #{unet_up_forward.11} parent=11 // pred_check
          %p136 = pneg %p84
        $region18: #{unet_up_forward.11} parent=11 // pred_check_branch
          %138 = sbr.rel (%p136) target = $region20
        $region19: #{unet_up_forward.11} parent=11 // pred_region
          %s140 = ssub.s32 16, 16
          %141 = vsyncadd [#allocation6], %s140
          %s143 = sshll.u32 [#allocation7], 4
          %s144 = int_to_ptr.vmem [resolvable:$true] %s143
          %146 = dma.hbm_to_vmem [thread:$0]  %s2, 16, %s144, [#allocation6]
        $region20: #{unet_up_forward.11} parent=11 // pred_fallthru
          _
      $region12: #{unet_up_forward.11} parent=5 // pred_fallthru
        _
      %p147 = scmp.lt.s32.totalorder %s16, 2
      // Predicated region
      $region21: #{unet_up_forward.11} parent=5 // pred_check
        %p148 = pneg %p147
      $region22: #{unet_up_forward.11} parent=5 // pred_check_branch
        %150 = sbr.rel (%p148) target = $region24
      $region23: #{unet_up_forward.11} parent=5 // pred_region
        // Predicated region
        $region25: #{unet_up_forward.11} parent=23 // pred_check
          %p151 = pneg %p36
        $region26: #{unet_up_forward.11} parent=23 // pred_check_branch
          %153 = sbr.rel (%p151) target = $region28
        $region27: #{unet_up_forward.11} parent=23 // pred_region
          %s154 = sand.u32 %s26, 1
          %s155 = scalar_lea.sflag [#allocation3], %s154
          %s156 = sand.u32 %s26, 1
          %s157 = smul.addr %s156, 128
          %s158 = scalar_lea.vmem [#allocation2], %s157
          %s160 = ssub.s32 2048, 2048
          %161 = vsyncadd %s155, %s160
          %s162 = smul.addr %s16, 32
          %s163 = smul.addr %s162, 64
          %s164 = scalar_lea.hbm %s0, %s163
          %s165 = sshll.u32 %s158, 4
          %s166 = int_to_ptr.vmem [resolvable:$true] %s165
          %171 = dma.hbm_to_vmem [thread:$0]  %s164, 2048, %s166, %s155, 64, 64, 4
        $region28: #{unet_up_forward.11} parent=23 // pred_fallthru
          _
      $region24: #{unet_up_forward.11} parent=5 // pred_fallthru
        _
      %p172 = scmp.le.s32.totalorder 1, %s16
      %p173 = scmp.lt.s32.totalorder %s16, 3
      %p174 = pnand %p172, %p173
      %p175 = pneg %p174
      // Predicated region
      $region29: #{unet_up_forward.11} parent=5 // pred_check
        _
      $region30: #{unet_up_forward.11} parent=5 // pred_check_branch
        %177 = sbr.rel (%p174) target = $region32
      $region31: #{unet_up_forward.11} parent=5 // pred_region
        %s178 = ssub.s32 %s16, 1
        %s179 = sand.u32 %s29, 1
        %s180 = scalar_lea.sflag [#allocation3], %s179
        %s181 = sand.u32 %s29, 1
        %s182 = smul.addr %s181, 128
        %s183 = scalar_lea.vmem [#allocation2], %s182
        // Predicated region
        $region33: #{unet_up_forward.11} parent=31 // pred_check
          %p184 = pneg %p42
        $region34: #{unet_up_forward.11} parent=31 // pred_check_branch
          %186 = sbr.rel (%p184) target = $region36
        $region35: #{unet_up_forward.11} parent=31 // pred_region
          %187 = dma.done %s180, 2048
        $region36: #{unet_up_forward.11} parent=31 // pred_fallthru
          _
        // Predicated region
        $region37: #{unet_up_forward.11} parent=31 // pred_check
          %p188 = pneg %p63
        $region38: #{unet_up_forward.11} parent=31 // pred_check_branch
          %190 = sbr.rel (%p188) target = $region40
        $region39: #{unet_up_forward.11} parent=31 // pred_region
          %191 = dma.done [#allocation6], 16
        $region40: #{unet_up_forward.11} parent=31 // pred_fallthru
          _
        // Predicated region
        $region41: #{unet_up_forward.11} parent=31 // pred_check
          %p192 = pneg %p84
        $region42: #{unet_up_forward.11} parent=31 // pred_check_branch
          %194 = sbr.rel (%p192) target = $region44
        $region43: #{unet_up_forward.11} parent=31 // pred_region
          %195 = dma.done [#allocation6], 16
        $region44: #{unet_up_forward.11} parent=31 // pred_fallthru
          _
        %s196 = sand.u32 %s29, 1
        %s197 = scalar_lea.sflag [#allocation3], %s196
        %s198 = sand.u32 %s29, 1
        %s199 = smul.addr %s198, 128
        %s200 = scalar_lea.vmem [#allocation2], %s199
        %p201 = pneg %p42
        %p202 = pneg %p39
        %p203 = pneg %p63
        %p204 = pneg %p60
        %p205 = pneg %p84
        %p206 = pneg %p81
        %p207 = pneg %p110
        %p208 = pneg %p107
        %s209 = sand.u32 %s97, 1
        %s210 = scalar_lea.sflag [#allocation4], %s209
        %s211 = sand.u32 %s97, 1
        %s212 = smul.addr %s211, 216
        %s213 = scalar_lea.vmem [#allocation8], %s212
        %v215 = vld [vmem:[%s183] sm:$0xf]
        %v216 = vld [vmem:[%s183 + $0x4] sm:$0xf]
        %v217 = vld [vmem:[%s183 + $0x8] sm:$0xf]
        %v218 = vld [vmem:[%s183 + $0xc] sm:$0xf]
        %v219 = vld [vmem:[%s183 + $0x10] sm:$0xf]
        %v220 = vld [vmem:[%s183 + $0x14] sm:$0xf]
        %v221 = vld [vmem:[%s183 + $0x18] sm:$0xf]
        %v222 = vld [vmem:[%s183 + $0x1c] sm:$0xf]
        %v223 = vld [vmem:[%s183 + $0x20] sm:$0xf]
        %v224 = vld [vmem:[%s183 + $0x24] sm:$0xf]
        %v225 = vld [vmem:[%s183 + $0x28] sm:$0xf]
        %v226 = vld [vmem:[%s183 + $0x2c] sm:$0xf]
        %v227 = vld [vmem:[%s183 + $0x30] sm:$0xf]
        %v228 = vld [vmem:[%s183 + $0x34] sm:$0xf]
        %v229 = vld [vmem:[%s183 + $0x38] sm:$0xf]
        %v230 = vld [vmem:[%s183 + $0x3c] sm:$0xf]
        %v231 = vld [vmem:[%s183 + $0x40] sm:$0xf]
        %v232 = vld [vmem:[%s183 + $0x44] sm:$0xf]
        %v233 = vld [vmem:[%s183 + $0x48] sm:$0xf]
        %v234 = vld [vmem:[%s183 + $0x4c] sm:$0xf]
        %v235 = vld [vmem:[%s183 + $0x50] sm:$0xf]
        %v236 = vld [vmem:[%s183 + $0x54] sm:$0xf]
        %v237 = vld [vmem:[%s183 + $0x58] sm:$0xf]
        %v238 = vld [vmem:[%s183 + $0x5c] sm:$0xf]
        %v239 = vld [vmem:[%s183 + $0x60] sm:$0xf]
        %v240 = vld [vmem:[%s183 + $0x64] sm:$0xf]
        %v241 = vld [vmem:[%s183 + $0x68] sm:$0xf]
        %v242 = vld [vmem:[%s183 + $0x6c] sm:$0xf]
        %v243 = vld [vmem:[%s183 + $0x70] sm:$0xf]
        %v244 = vld [vmem:[%s183 + $0x74] sm:$0xf]
        %v245 = vld [vmem:[%s183 + $0x78] sm:$0xf]
        %v246 = vld [vmem:[%s183 + $0x7c] sm:$0xf]
        %v247 = vunpack.c.l.bf16 %v215
        %v248 = vunpack.c.l.bf16 %v216
        %v249 = vunpack.c.l.bf16 %v217
        %v250 = vunpack.c.l.bf16 %v218
        %v251 = vunpack.c.l.bf16 %v219
        %v252 = vunpack.c.l.bf16 %v220
        %v253 = vunpack.c.l.bf16 %v221
        %v254 = vunpack.c.l.bf16 %v222
        %v255 = vunpack.c.l.bf16 %v223
        %v256 = vunpack.c.l.bf16 %v224
        %v257 = vunpack.c.l.bf16 %v225
        %v258 = vunpack.c.l.bf16 %v226
        %v259 = vunpack.c.l.bf16 %v227
        %v260 = vunpack.c.l.bf16 %v228
        %v261 = vunpack.c.l.bf16 %v229
        %v262 = vunpack.c.l.bf16 %v230
        %v263 = vunpack.c.l.bf16 %v231
        %v264 = vunpack.c.l.bf16 %v232
        %v265 = vunpack.c.l.bf16 %v233
        %v266 = vunpack.c.l.bf16 %v234
        %v267 = vunpack.c.l.bf16 %v235
        %v268 = vunpack.c.l.bf16 %v236
        %v269 = vunpack.c.l.bf16 %v237
        %v270 = vunpack.c.l.bf16 %v238
        %v271 = vunpack.c.l.bf16 %v239
        %v272 = vunpack.c.l.bf16 %v240
        %v273 = vunpack.c.l.bf16 %v241
        %v274 = vunpack.c.l.bf16 %v242
        %v275 = vunpack.c.l.bf16 %v243
        %v276 = vunpack.c.l.bf16 %v244
        %v277 = vunpack.c.l.bf16 %v245
        %v278 = vunpack.c.l.bf16 %v246
        %v279 = vld [vmem:[#allocation5] sm:$0x1]
        %v281 = vlaneseq
        %v282 = vshrl.u32 %v281, 7
        %v283 = vsub.s32 0, %v282
        %v284 = vrot.slane %v279, %v283
        %v286 = vmul.f32 %v247, %v284
        %v287 = vmul.f32 %v248, %v284
        %v288 = vmul.f32 %v249, %v284
        %v289 = vmul.f32 %v250, %v284
        %v290 = vmul.f32 %v251, %v284
        %v291 = vmul.f32 %v252, %v284
        %v292 = vmul.f32 %v253, %v284
        %v293 = vmul.f32 %v254, %v284
        %v294 = vmul.f32 %v255, %v284
        %v295 = vmul.f32 %v256, %v284
        %v296 = vmul.f32 %v257, %v284
        %v297 = vmul.f32 %v258, %v284
        %v298 = vmul.f32 %v259, %v284
        %v299 = vmul.f32 %v260, %v284
        %v300 = vmul.f32 %v261, %v284
        %v301 = vmul.f32 %v262, %v284
        %v302 = vmul.f32 %v263, %v284
        %v303 = vmul.f32 %v264, %v284
        %v304 = vmul.f32 %v265, %v284
        %v305 = vmul.f32 %v266, %v284
        %v306 = vmul.f32 %v267, %v284
        %v307 = vmul.f32 %v268, %v284
        %v308 = vmul.f32 %v269, %v284
        %v309 = vmul.f32 %v270, %v284
        %v310 = vmul.f32 %v271, %v284
        %v311 = vmul.f32 %v272, %v284
        %v312 = vmul.f32 %v273, %v284
        %v313 = vmul.f32 %v274, %v284
        %v314 = vmul.f32 %v275, %v284
        %v315 = vmul.f32 %v276, %v284
        %v316 = vmul.f32 %v277, %v284
        %v317 = vmul.f32 %v278, %v284
        %v318 = vld [vmem:[#allocation7] sm:$0x1]
        %v320 = vlaneseq
        %v321 = vshrl.u32 %v320, 7
        %v322 = vsub.s32 0, %v321
        %v323 = vrot.slane %v318, %v322
        %v325 = vadd.f32 %v286, %v323
        %v326 = vadd.f32 %v287, %v323
        %v327 = vadd.f32 %v288, %v323
        %v328 = vadd.f32 %v289, %v323
        %v329 = vadd.f32 %v290, %v323
        %v330 = vadd.f32 %v291, %v323
        %v331 = vadd.f32 %v292, %v323
        %v332 = vadd.f32 %v293, %v323
        %v333 = vadd.f32 %v294, %v323
        %v334 = vadd.f32 %v295, %v323
        %v335 = vadd.f32 %v296, %v323
        %v336 = vadd.f32 %v297, %v323
        %v337 = vadd.f32 %v298, %v323
        %v338 = vadd.f32 %v299, %v323
        %v339 = vadd.f32 %v300, %v323
        %v340 = vadd.f32 %v301, %v323
        %v341 = vadd.f32 %v302, %v323
        %v342 = vadd.f32 %v303, %v323
        %v343 = vadd.f32 %v304, %v323
        %v344 = vadd.f32 %v305, %v323
        %v345 = vadd.f32 %v306, %v323
        %v346 = vadd.f32 %v307, %v323
        %v347 = vadd.f32 %v308, %v323
        %v348 = vadd.f32 %v309, %v323
        %v349 = vadd.f32 %v310, %v323
        %v350 = vadd.f32 %v311, %v323
        %v351 = vadd.f32 %v312, %v323
        %v352 = vadd.f32 %v313, %v323
        %v353 = vadd.f32 %v314, %v323
        %v354 = vadd.f32 %v315, %v323
        %v355 = vadd.f32 %v316, %v323
        %v356 = vadd.f32 %v317, %v323
        %v357 = vmul.f32 %v325, 0.5
        %v358 = vmul.f32 %v326, 0.5
        %v359 = vmul.f32 %v327, 0.5
        %v360 = vmul.f32 %v328, 0.5
        %v361 = vmul.f32 %v329, 0.5
        %v362 = vmul.f32 %v330, 0.5
        %v363 = vmul.f32 %v331, 0.5
        %v364 = vmul.f32 %v332, 0.5
        %v365 = vmul.f32 %v333, 0.5
        %v366 = vmul.f32 %v334, 0.5
        %v367 = vmul.f32 %v335, 0.5
        %v368 = vmul.f32 %v336, 0.5
        %v369 = vmul.f32 %v337, 0.5
        %v370 = vmul.f32 %v338, 0.5
        %v371 = vmul.f32 %v339, 0.5
        %v372 = vmul.f32 %v340, 0.5
        %v373 = vmul.f32 %v341, 0.5
        %v374 = vmul.f32 %v342, 0.5
        %v375 = vmul.f32 %v343, 0.5
        %v376 = vmul.f32 %v344, 0.5
        %v377 = vmul.f32 %v345, 0.5
        %v378 = vmul.f32 %v346, 0.5
        %v379 = vmul.f32 %v347, 0.5
        %v380 = vmul.f32 %v348, 0.5
        %v381 = vmul.f32 %v349, 0.5
        %v382 = vmul.f32 %v350, 0.5
        %v383 = vmul.f32 %v351, 0.5
        %v384 = vmul.f32 %v352, 0.5
        %v385 = vmul.f32 %v353, 0.5
        %v386 = vmul.f32 %v354, 0.5
        %v387 = vmul.f32 %v355, 0.5
        %v388 = vmul.f32 %v356, 0.5
        %v389 = vmul.f32 %v325, 0.70710677
        %v390 = vmul.f32 %v326, 0.70710677
        %v391 = vmul.f32 %v327, 0.70710677
        %v392 = vmul.f32 %v328, 0.70710677
        %v393 = vmul.f32 %v329, 0.70710677
        %v394 = vmul.f32 %v330, 0.70710677
        %v395 = vmul.f32 %v331, 0.70710677
        %v396 = vmul.f32 %v332, 0.70710677
        %v397 = vmul.f32 %v333, 0.70710677
        %v398 = vmul.f32 %v334, 0.70710677
        %v399 = vmul.f32 %v335, 0.70710677
        %v400 = vmul.f32 %v336, 0.70710677
        %v401 = vmul.f32 %v337, 0.70710677
        %v402 = vmul.f32 %v338, 0.70710677
        %v403 = vmul.f32 %v339, 0.70710677
        %v404 = vmul.f32 %v340, 0.70710677
        %v405 = vmul.f32 %v341, 0.70710677
        %v406 = vmul.f32 %v342, 0.70710677
        %v407 = vmul.f32 %v343, 0.70710677
        %v408 = vmul.f32 %v344, 0.70710677
        %v409 = vmul.f32 %v345, 0.70710677
        %v410 = vmul.f32 %v346, 0.70710677
        %v411 = vmul.f32 %v347, 0.70710677
        %v412 = vmul.f32 %v348, 0.70710677
        %v413 = vmul.f32 %v349, 0.70710677
        %v414 = vmul.f32 %v350, 0.70710677
        %v415 = vmul.f32 %v351, 0.70710677
        %v416 = vmul.f32 %v352, 0.70710677
        %v417 = vmul.f32 %v353, 0.70710677
        %v418 = vmul.f32 %v354, 0.70710677
        %v419 = vmul.f32 %v355, 0.70710677
        %v420 = vmul.f32 %v356, 0.70710677
        %vm421 = vcmp.ge.f32.partialorder %v389, 0.0
        %vm422 = vcmp.ge.f32.partialorder %v390, 0.0
        %vm423 = vcmp.ge.f32.partialorder %v391, 0.0
        %vm424 = vcmp.ge.f32.partialorder %v392, 0.0
        %vm425 = vcmp.ge.f32.partialorder %v393, 0.0
        %vm426 = vcmp.ge.f32.partialorder %v394, 0.0
        %vm427 = vcmp.ge.f32.partialorder %v395, 0.0
        %vm428 = vcmp.ge.f32.partialorder %v396, 0.0
        %vm429 = vcmp.ge.f32.partialorder %v397, 0.0
        %vm430 = vcmp.ge.f32.partialorder %v398, 0.0
        %vm431 = vcmp.ge.f32.partialorder %v399, 0.0
        %vm432 = vcmp.ge.f32.partialorder %v400, 0.0
        %vm433 = vcmp.ge.f32.partialorder %v401, 0.0
        %vm434 = vcmp.ge.f32.partialorder %v402, 0.0
        %vm435 = vcmp.ge.f32.partialorder %v403, 0.0
        %vm436 = vcmp.ge.f32.partialorder %v404, 0.0
        %vm437 = vcmp.ge.f32.partialorder %v405, 0.0
        %vm438 = vcmp.ge.f32.partialorder %v406, 0.0
        %vm439 = vcmp.ge.f32.partialorder %v407, 0.0
        %vm440 = vcmp.ge.f32.partialorder %v408, 0.0
        %vm441 = vcmp.ge.f32.partialorder %v409, 0.0
        %vm442 = vcmp.ge.f32.partialorder %v410, 0.0
        %vm443 = vcmp.ge.f32.partialorder %v411, 0.0
        %vm444 = vcmp.ge.f32.partialorder %v412, 0.0
        %vm445 = vcmp.ge.f32.partialorder %v413, 0.0
        %vm446 = vcmp.ge.f32.partialorder %v414, 0.0
        %vm447 = vcmp.ge.f32.partialorder %v415, 0.0
        %vm448 = vcmp.ge.f32.partialorder %v416, 0.0
        %vm449 = vcmp.ge.f32.partialorder %v417, 0.0
        %vm450 = vcmp.ge.f32.partialorder %v418, 0.0
        %vm451 = vcmp.ge.f32.partialorder %v419, 0.0
        %vm452 = vcmp.ge.f32.partialorder %v420, 0.0
        %v453 = vsel %vm421, 1.0, -1.0
        %v454 = vsel %vm422, 1.0, -1.0
        %v455 = vsel %vm423, 1.0, -1.0
        %v456 = vsel %vm424, 1.0, -1.0
        %v457 = vsel %vm425, 1.0, -1.0
        %v458 = vsel %vm426, 1.0, -1.0
        %v459 = vsel %vm427, 1.0, -1.0
        %v460 = vsel %vm428, 1.0, -1.0
        %v461 = vsel %vm429, 1.0, -1.0
        %v462 = vsel %vm430, 1.0, -1.0
        %v463 = vsel %vm431, 1.0, -1.0
        %v464 = vsel %vm432, 1.0, -1.0
        %v465 = vsel %vm433, 1.0, -1.0
        %v466 = vsel %vm434, 1.0, -1.0
        %v467 = vsel %vm435, 1.0, -1.0
        %v468 = vsel %vm436, 1.0, -1.0
        %v469 = vsel %vm437, 1.0, -1.0
        %v470 = vsel %vm438, 1.0, -1.0
        %v471 = vsel %vm439, 1.0, -1.0
        %v472 = vsel %vm440, 1.0, -1.0
        %v473 = vsel %vm441, 1.0, -1.0
        %v474 = vsel %vm442, 1.0, -1.0
        %v475 = vsel %vm443, 1.0, -1.0
        %v476 = vsel %vm444, 1.0, -1.0
        %v477 = vsel %vm445, 1.0, -1.0
        %v478 = vsel %vm446, 1.0, -1.0
        %v479 = vsel %vm447, 1.0, -1.0
        %v480 = vsel %vm448, 1.0, -1.0
        %v481 = vsel %vm449, 1.0, -1.0
        %v482 = vsel %vm450, 1.0, -1.0
        %v483 = vsel %vm451, 1.0, -1.0
        %v484 = vsel %vm452, 1.0, -1.0
        %v485 = vand.u32 2147483647, %v389
        %v486 = vand.u32 2147483647, %v390
        %v487 = vand.u32 2147483647, %v391
        %v488 = vand.u32 2147483647, %v392
        %v489 = vand.u32 2147483647, %v393
        %v490 = vand.u32 2147483647, %v394
        %v491 = vand.u32 2147483647, %v395
        %v492 = vand.u32 2147483647, %v396
        %v493 = vand.u32 2147483647, %v397
        %v494 = vand.u32 2147483647, %v398
        %v495 = vand.u32 2147483647, %v399
        %v496 = vand.u32 2147483647, %v400
        %v497 = vand.u32 2147483647, %v401
        %v498 = vand.u32 2147483647, %v402
        %v499 = vand.u32 2147483647, %v403
        %v500 = vand.u32 2147483647, %v404
        %v501 = vand.u32 2147483647, %v405
        %v502 = vand.u32 2147483647, %v406
        %v503 = vand.u32 2147483647, %v407
        %v504 = vand.u32 2147483647, %v408
        %v505 = vand.u32 2147483647, %v409
        %v506 = vand.u32 2147483647, %v410
        %v507 = vand.u32 2147483647, %v411
        %v508 = vand.u32 2147483647, %v412
        %v509 = vand.u32 2147483647, %v413
        %v510 = vand.u32 2147483647, %v414
        %v511 = vand.u32 2147483647, %v415
        %v512 = vand.u32 2147483647, %v416
        %v513 = vand.u32 2147483647, %v417
        %v514 = vand.u32 2147483647, %v418
        %v515 = vand.u32 2147483647, %v419
        %v516 = vand.u32 2147483647, %v420
        %v517 = vmul.f32 %v485, 0.3275911
        %v518 = vmul.f32 %v486, 0.3275911
        %v519 = vmul.f32 %v487, 0.3275911
        %v520 = vmul.f32 %v488, 0.3275911
        %v521 = vmul.f32 %v489, 0.3275911
        %v522 = vmul.f32 %v490, 0.3275911
        %v523 = vmul.f32 %v491, 0.3275911
        %v524 = vmul.f32 %v492, 0.3275911
        %v525 = vmul.f32 %v493, 0.3275911
        %v526 = vmul.f32 %v494, 0.3275911
        %v527 = vmul.f32 %v495, 0.3275911
        %v528 = vmul.f32 %v496, 0.3275911
        %v529 = vmul.f32 %v497, 0.3275911
        %v530 = vmul.f32 %v498, 0.3275911
        %v531 = vmul.f32 %v499, 0.3275911
        %v532 = vmul.f32 %v500, 0.3275911
        %v533 = vmul.f32 %v501, 0.3275911
        %v534 = vmul.f32 %v502, 0.3275911
        %v535 = vmul.f32 %v503, 0.3275911
        %v536 = vmul.f32 %v504, 0.3275911
        %v537 = vmul.f32 %v505, 0.3275911
        %v538 = vmul.f32 %v506, 0.3275911
        %v539 = vmul.f32 %v507, 0.3275911
        %v540 = vmul.f32 %v508, 0.3275911
        %v541 = vmul.f32 %v509, 0.3275911
        %v542 = vmul.f32 %v510, 0.3275911
        %v543 = vmul.f32 %v511, 0.3275911
        %v544 = vmul.f32 %v512, 0.3275911
        %v545 = vmul.f32 %v513, 0.3275911
        %v546 = vmul.f32 %v514, 0.3275911
        %v547 = vmul.f32 %v515, 0.3275911
        %v548 = vmul.f32 %v516, 0.3275911
        %v549 = vadd.f32 %v517, 1.0
        %v550 = vadd.f32 %v518, 1.0
        %v551 = vadd.f32 %v519, 1.0
        %v552 = vadd.f32 %v520, 1.0
        %v553 = vadd.f32 %v521, 1.0
        %v554 = vadd.f32 %v522, 1.0
        %v555 = vadd.f32 %v523, 1.0
        %v556 = vadd.f32 %v524, 1.0
        %v557 = vadd.f32 %v525, 1.0
        %v558 = vadd.f32 %v526, 1.0
        %v559 = vadd.f32 %v527, 1.0
        %v560 = vadd.f32 %v528, 1.0
        %v561 = vadd.f32 %v529, 1.0
        %v562 = vadd.f32 %v530, 1.0
        %v563 = vadd.f32 %v531, 1.0
        %v564 = vadd.f32 %v532, 1.0
        %v565 = vadd.f32 %v533, 1.0
        %v566 = vadd.f32 %v534, 1.0
        %v567 = vadd.f32 %v535, 1.0
        %v568 = vadd.f32 %v536, 1.0
        %v569 = vadd.f32 %v537, 1.0
        %v570 = vadd.f32 %v538, 1.0
        %v571 = vadd.f32 %v539, 1.0
        %v572 = vadd.f32 %v540, 1.0
        %v573 = vadd.f32 %v541, 1.0
        %v574 = vadd.f32 %v542, 1.0
        %v575 = vadd.f32 %v543, 1.0
        %v576 = vadd.f32 %v544, 1.0
        %v577 = vadd.f32 %v545, 1.0
        %v578 = vadd.f32 %v546, 1.0
        %v579 = vadd.f32 %v547, 1.0
        %v580 = vadd.f32 %v548, 1.0
        %v581 = vrcp.pop %v549
        %v582 = vrcp.pop %v550
        %v583 = vrcp.pop %v551
        %v584 = vrcp.pop %v552
        %v585 = vrcp.pop %v553
        %v586 = vrcp.pop %v554
        %v587 = vrcp.pop %v555
        %v588 = vrcp.pop %v556
        %v589 = vrcp.pop %v557
        %v590 = vrcp.pop %v558
        %v591 = vrcp.pop %v559
        %v592 = vrcp.pop %v560
        %v593 = vrcp.pop %v561
        %v594 = vrcp.pop %v562
        %v595 = vrcp.pop %v563
        %v596 = vrcp.pop %v564
        %v597 = vrcp.pop %v565
        %v598 = vrcp.pop %v566
        %v599 = vrcp.pop %v567
        %v600 = vrcp.pop %v568
        %v601 = vrcp.pop %v569
        %v602 = vrcp.pop %v570
        %v603 = vrcp.pop %v571
        %v604 = vrcp.pop %v572
        %v605 = vrcp.pop %v573
        %v606 = vrcp.pop %v574
        %v607 = vrcp.pop %v575
        %v608 = vrcp.pop %v576
        %v609 = vrcp.pop %v577
        %v610 = vrcp.pop %v578
        %v611 = vrcp.pop %v579
        %v612 = vrcp.pop %v580
        %v613 = vmul.f32 %v581, 1.0614054
        %v614 = vmul.f32 %v582, 1.0614054
        %v615 = vmul.f32 %v583, 1.0614054
        %v616 = vmul.f32 %v584, 1.0614054
        %v617 = vmul.f32 %v585, 1.0614054
        %v618 = vmul.f32 %v586, 1.0614054
        %v619 = vmul.f32 %v587, 1.0614054
        %v620 = vmul.f32 %v588, 1.0614054
        %v621 = vmul.f32 %v589, 1.0614054
        %v622 = vmul.f32 %v590, 1.0614054
        %v623 = vmul.f32 %v591, 1.0614054
        %v624 = vmul.f32 %v592, 1.0614054
        %v625 = vmul.f32 %v593, 1.0614054
        %v626 = vmul.f32 %v594, 1.0614054
        %v627 = vmul.f32 %v595, 1.0614054
        %v628 = vmul.f32 %v596, 1.0614054
        %v629 = vmul.f32 %v597, 1.0614054
        %v630 = vmul.f32 %v598, 1.0614054
        %v631 = vmul.f32 %v599, 1.0614054
        %v632 = vmul.f32 %v600, 1.0614054
        %v633 = vmul.f32 %v601, 1.0614054
        %v634 = vmul.f32 %v602, 1.0614054
        %v635 = vmul.f32 %v603, 1.0614054
        %v636 = vmul.f32 %v604, 1.0614054
        %v637 = vmul.f32 %v605, 1.0614054
        %v638 = vmul.f32 %v606, 1.0614054
        %v639 = vmul.f32 %v607, 1.0614054
        %v640 = vmul.f32 %v608, 1.0614054
        %v641 = vmul.f32 %v609, 1.0614054
        %v642 = vmul.f32 %v610, 1.0614054
        %v643 = vmul.f32 %v611, 1.0614054
        %v644 = vmul.f32 %v612, 1.0614054
        %v645 = vadd.f32 %v613, -1.4531521
        %v646 = vadd.f32 %v614, -1.4531521
        %v647 = vadd.f32 %v615, -1.4531521
        %v648 = vadd.f32 %v616, -1.4531521
        %v649 = vadd.f32 %v617, -1.4531521
        %v650 = vadd.f32 %v618, -1.4531521
        %v651 = vadd.f32 %v619, -1.4531521
        %v652 = vadd.f32 %v620, -1.4531521
        %v653 = vadd.f32 %v621, -1.4531521
        %v654 = vadd.f32 %v622, -1.4531521
        %v655 = vadd.f32 %v623, -1.4531521
        %v656 = vadd.f32 %v624, -1.4531521
        %v657 = vadd.f32 %v625, -1.4531521
        %v658 = vadd.f32 %v626, -1.4531521
        %v659 = vadd.f32 %v627, -1.4531521
        %v660 = vadd.f32 %v628, -1.4531521
        %v661 = vadd.f32 %v629, -1.4531521
        %v662 = vadd.f32 %v630, -1.4531521
        %v663 = vadd.f32 %v631, -1.4531521
        %v664 = vadd.f32 %v632, -1.4531521
        %v665 = vadd.f32 %v633, -1.4531521
        %v666 = vadd.f32 %v634, -1.4531521
        %v667 = vadd.f32 %v635, -1.4531521
        %v668 = vadd.f32 %v636, -1.4531521
        %v669 = vadd.f32 %v637, -1.4531521
        %v670 = vadd.f32 %v638, -1.4531521
        %v671 = vadd.f32 %v639, -1.4531521
        %v672 = vadd.f32 %v640, -1.4531521
        %v673 = vadd.f32 %v641, -1.4531521
        %v674 = vadd.f32 %v642, -1.4531521
        %v675 = vadd.f32 %v643, -1.4531521
        %v676 = vadd.f32 %v644, -1.4531521
        %v677 = vmul.f32 %v645, %v581
        %v678 = vmul.f32 %v646, %v582
        %v679 = vmul.f32 %v647, %v583
        %v680 = vmul.f32 %v648, %v584
        %v681 = vmul.f32 %v649, %v585
        %v682 = vmul.f32 %v650, %v586
        %v683 = vmul.f32 %v651, %v587
        %v684 = vmul.f32 %v652, %v588
        %v685 = vmul.f32 %v653, %v589
        %v686 = vmul.f32 %v654, %v590
        %v687 = vmul.f32 %v655, %v591
        %v688 = vmul.f32 %v656, %v592
        %v689 = vmul.f32 %v657, %v593
        %v690 = vmul.f32 %v658, %v594
        %v691 = vmul.f32 %v659, %v595
        %v692 = vmul.f32 %v660, %v596
        %v693 = vmul.f32 %v661, %v597
        %v694 = vmul.f32 %v662, %v598
        %v695 = vmul.f32 %v663, %v599
        %v696 = vmul.f32 %v664, %v600
        %v697 = vmul.f32 %v665, %v601
        %v698 = vmul.f32 %v666, %v602
        %v699 = vmul.f32 %v667, %v603
        %v700 = vmul.f32 %v668, %v604
        %v701 = vmul.f32 %v669, %v605
        %v702 = vmul.f32 %v670, %v606
        %v703 = vmul.f32 %v671, %v607
        %v704 = vmul.f32 %v672, %v608
        %v705 = vmul.f32 %v673, %v609
        %v706 = vmul.f32 %v674, %v610
        %v707 = vmul.f32 %v675, %v611
        %v708 = vmul.f32 %v676, %v612
        %v709 = vadd.f32 %v677, 1.4214138
        %v710 = vadd.f32 %v678, 1.4214138
        %v711 = vadd.f32 %v679, 1.4214138
        %v712 = vadd.f32 %v680, 1.4214138
        %v713 = vadd.f32 %v681, 1.4214138
        %v714 = vadd.f32 %v682, 1.4214138
        %v715 = vadd.f32 %v683, 1.4214138
        %v716 = vadd.f32 %v684, 1.4214138
        %v717 = vadd.f32 %v685, 1.4214138
        %v718 = vadd.f32 %v686, 1.4214138
        %v719 = vadd.f32 %v687, 1.4214138
        %v720 = vadd.f32 %v688, 1.4214138
        %v721 = vadd.f32 %v689, 1.4214138
        %v722 = vadd.f32 %v690, 1.4214138
        %v723 = vadd.f32 %v691, 1.4214138
        %v724 = vadd.f32 %v692, 1.4214138
        %v725 = vadd.f32 %v693, 1.4214138
        %v726 = vadd.f32 %v694, 1.4214138
        %v727 = vadd.f32 %v695, 1.4214138
        %v728 = vadd.f32 %v696, 1.4214138
        %v729 = vadd.f32 %v697, 1.4214138
        %v730 = vadd.f32 %v698, 1.4214138
        %v731 = vadd.f32 %v699, 1.4214138
        %v732 = vadd.f32 %v700, 1.4214138
        %v733 = vadd.f32 %v701, 1.4214138
        %v734 = vadd.f32 %v702, 1.4214138
        %v735 = vadd.f32 %v703, 1.4214138
        %v736 = vadd.f32 %v704, 1.4214138
        %v737 = vadd.f32 %v705, 1.4214138
        %v738 = vadd.f32 %v706, 1.4214138
        %v739 = vadd.f32 %v707, 1.4214138
        %v740 = vadd.f32 %v708, 1.4214138
        %v741 = vmul.f32 %v709, %v581
        %v742 = vmul.f32 %v710, %v582
        %v743 = vmul.f32 %v711, %v583
        %v744 = vmul.f32 %v712, %v584
        %v745 = vmul.f32 %v713, %v585
        %v746 = vmul.f32 %v714, %v586
        %v747 = vmul.f32 %v715, %v587
        %v748 = vmul.f32 %v716, %v588
        %v749 = vmul.f32 %v717, %v589
        %v750 = vmul.f32 %v718, %v590
        %v751 = vmul.f32 %v719, %v591
        %v752 = vmul.f32 %v720, %v592
        %v753 = vmul.f32 %v721, %v593
        %v754 = vmul.f32 %v722, %v594
        %v755 = vmul.f32 %v723, %v595
        %v756 = vmul.f32 %v724, %v596
        %v757 = vmul.f32 %v725, %v597
        %v758 = vmul.f32 %v726, %v598
        %v759 = vmul.f32 %v727, %v599
        %v760 = vmul.f32 %v728, %v600
        %v761 = vmul.f32 %v729, %v601
        %v762 = vmul.f32 %v730, %v602
        %v763 = vmul.f32 %v731, %v603
        %v764 = vmul.f32 %v732, %v604
        %v765 = vmul.f32 %v733, %v605
        %v766 = vmul.f32 %v734, %v606
        %v767 = vmul.f32 %v735, %v607
        %v768 = vmul.f32 %v736, %v608
        %v769 = vmul.f32 %v737, %v609
        %v770 = vmul.f32 %v738, %v610
        %v771 = vmul.f32 %v739, %v611
        %v772 = vmul.f32 %v740, %v612
        %v773 = vadd.f32 %v741, -0.28449672
        %v774 = vadd.f32 %v742, -0.28449672
        %v775 = vadd.f32 %v743, -0.28449672
        %v776 = vadd.f32 %v744, -0.28449672
        %v777 = vadd.f32 %v745, -0.28449672
        %v778 = vadd.f32 %v746, -0.28449672
        %v779 = vadd.f32 %v747, -0.28449672
        %v780 = vadd.f32 %v748, -0.28449672
        %v781 = vadd.f32 %v749, -0.28449672
        %v782 = vadd.f32 %v750, -0.28449672
        %v783 = vadd.f32 %v751, -0.28449672
        %v784 = vadd.f32 %v752, -0.28449672
        %v785 = vadd.f32 %v753, -0.28449672
        %v786 = vadd.f32 %v754, -0.28449672
        %v787 = vadd.f32 %v755, -0.28449672
        %v788 = vadd.f32 %v756, -0.28449672
        %v789 = vadd.f32 %v757, -0.28449672
        %v790 = vadd.f32 %v758, -0.28449672
        %v791 = vadd.f32 %v759, -0.28449672
        %v792 = vadd.f32 %v760, -0.28449672
        %v793 = vadd.f32 %v761, -0.28449672
        %v794 = vadd.f32 %v762, -0.28449672
        %v795 = vadd.f32 %v763, -0.28449672
        %v796 = vadd.f32 %v764, -0.28449672
        %v797 = vadd.f32 %v765, -0.28449672
        %v798 = vadd.f32 %v766, -0.28449672
        %v799 = vadd.f32 %v767, -0.28449672
        %v800 = vadd.f32 %v768, -0.28449672
        %v801 = vadd.f32 %v769, -0.28449672
        %v802 = vadd.f32 %v770, -0.28449672
        %v803 = vadd.f32 %v771, -0.28449672
        %v804 = vadd.f32 %v772, -0.28449672
        %v805 = vmul.f32 %v773, %v581
        %v806 = vmul.f32 %v774, %v582
        %v807 = vmul.f32 %v775, %v583
        %v808 = vmul.f32 %v776, %v584
        %v809 = vmul.f32 %v777, %v585
        %v810 = vmul.f32 %v778, %v586
        %v811 = vmul.f32 %v779, %v587
        %v812 = vmul.f32 %v780, %v588
        %v813 = vmul.f32 %v781, %v589
        %v814 = vmul.f32 %v782, %v590
        %v815 = vmul.f32 %v783, %v591
        %v816 = vmul.f32 %v784, %v592
        %v817 = vmul.f32 %v785, %v593
        %v818 = vmul.f32 %v786, %v594
        %v819 = vmul.f32 %v787, %v595
        %v820 = vmul.f32 %v788, %v596
        %v821 = vmul.f32 %v789, %v597
        %v822 = vmul.f32 %v790, %v598
        %v823 = vmul.f32 %v791, %v599
        %v824 = vmul.f32 %v792, %v600
        %v825 = vmul.f32 %v793, %v601
        %v826 = vmul.f32 %v794, %v602
        %v827 = vmul.f32 %v795, %v603
        %v828 = vmul.f32 %v796, %v604
        %v829 = vmul.f32 %v797, %v605
        %v830 = vmul.f32 %v798, %v606
        %v831 = vmul.f32 %v799, %v607
        %v832 = vmul.f32 %v800, %v608
        %v833 = vmul.f32 %v801, %v609
        %v834 = vmul.f32 %v802, %v610
        %v835 = vmul.f32 %v803, %v611
        %v836 = vmul.f32 %v804, %v612
        %v837 = vadd.f32 %v805, 0.2548296
        %v838 = vadd.f32 %v806, 0.2548296
        %v839 = vadd.f32 %v807, 0.2548296
        %v840 = vadd.f32 %v808, 0.2548296
        %v841 = vadd.f32 %v809, 0.2548296
        %v842 = vadd.f32 %v810, 0.2548296
        %v843 = vadd.f32 %v811, 0.2548296
        %v844 = vadd.f32 %v812, 0.2548296
        %v845 = vadd.f32 %v813, 0.2548296
        %v846 = vadd.f32 %v814, 0.2548296
        %v847 = vadd.f32 %v815, 0.2548296
        %v848 = vadd.f32 %v816, 0.2548296
        %v849 = vadd.f32 %v817, 0.2548296
        %v850 = vadd.f32 %v818, 0.2548296
        %v851 = vadd.f32 %v819, 0.2548296
        %v852 = vadd.f32 %v820, 0.2548296
        %v853 = vadd.f32 %v821, 0.2548296
        %v854 = vadd.f32 %v822, 0.2548296
        %v855 = vadd.f32 %v823, 0.2548296
        %v856 = vadd.f32 %v824, 0.2548296
        %v857 = vadd.f32 %v825, 0.2548296
        %v858 = vadd.f32 %v826, 0.2548296
        %v859 = vadd.f32 %v827, 0.2548296
        %v860 = vadd.f32 %v828, 0.2548296
        %v861 = vadd.f32 %v829, 0.2548296
        %v862 = vadd.f32 %v830, 0.2548296
        %v863 = vadd.f32 %v831, 0.2548296
        %v864 = vadd.f32 %v832, 0.2548296
        %v865 = vadd.f32 %v833, 0.2548296
        %v866 = vadd.f32 %v834, 0.2548296
        %v867 = vadd.f32 %v835, 0.2548296
        %v868 = vadd.f32 %v836, 0.2548296
        %v869 = vmul.f32 %v837, %v581
        %v870 = vmul.f32 %v838, %v582
        %v871 = vmul.f32 %v839, %v583
        %v872 = vmul.f32 %v840, %v584
        %v873 = vmul.f32 %v841, %v585
        %v874 = vmul.f32 %v842, %v586
        %v875 = vmul.f32 %v843, %v587
        %v876 = vmul.f32 %v844, %v588
        %v877 = vmul.f32 %v845, %v589
        %v878 = vmul.f32 %v846, %v590
        %v879 = vmul.f32 %v847, %v591
        %v880 = vmul.f32 %v848, %v592
        %v881 = vmul.f32 %v849, %v593
        %v882 = vmul.f32 %v850, %v594
        %v883 = vmul.f32 %v851, %v595
        %v884 = vmul.f32 %v852, %v596
        %v885 = vmul.f32 %v853, %v597
        %v886 = vmul.f32 %v854, %v598
        %v887 = vmul.f32 %v855, %v599
        %v888 = vmul.f32 %v856, %v600
        %v889 = vmul.f32 %v857, %v601
        %v890 = vmul.f32 %v858, %v602
        %v891 = vmul.f32 %v859, %v603
        %v892 = vmul.f32 %v860, %v604
        %v893 = vmul.f32 %v861, %v605
        %v894 = vmul.f32 %v862, %v606
        %v895 = vmul.f32 %v863, %v607
        %v896 = vmul.f32 %v864, %v608
        %v897 = vmul.f32 %v865, %v609
        %v898 = vmul.f32 %v866, %v610
        %v899 = vmul.f32 %v867, %v611
        %v900 = vmul.f32 %v868, %v612
        %v901 = vsub.f32 0.0, %v485
        %v902 = vsub.f32 0.0, %v486
        %v903 = vsub.f32 0.0, %v487
        %v904 = vsub.f32 0.0, %v488
        %v905 = vsub.f32 0.0, %v489
        %v906 = vsub.f32 0.0, %v490
        %v907 = vsub.f32 0.0, %v491
        %v908 = vsub.f32 0.0, %v492
        %v909 = vsub.f32 0.0, %v493
        %v910 = vsub.f32 0.0, %v494
        %v911 = vsub.f32 0.0, %v495
        %v912 = vsub.f32 0.0, %v496
        %v913 = vsub.f32 0.0, %v497
        %v914 = vsub.f32 0.0, %v498
        %v915 = vsub.f32 0.0, %v499
        %v916 = vsub.f32 0.0, %v500
        %v917 = vsub.f32 0.0, %v501
        %v918 = vsub.f32 0.0, %v502
        %v919 = vsub.f32 0.0, %v503
        %v920 = vsub.f32 0.0, %v504
        %v921 = vsub.f32 0.0, %v505
        %v922 = vsub.f32 0.0, %v506
        %v923 = vsub.f32 0.0, %v507
        %v924 = vsub.f32 0.0, %v508
        %v925 = vsub.f32 0.0, %v509
        %v926 = vsub.f32 0.0, %v510
        %v927 = vsub.f32 0.0, %v511
        %v928 = vsub.f32 0.0, %v512
        %v929 = vsub.f32 0.0, %v513
        %v930 = vsub.f32 0.0, %v514
        %v931 = vsub.f32 0.0, %v515
        %v932 = vsub.f32 0.0, %v516
        %v933 = vmul.f32 %v901, %v485
        %v934 = vmul.f32 %v902, %v486
        %v935 = vmul.f32 %v903, %v487
        %v936 = vmul.f32 %v904, %v488
        %v937 = vmul.f32 %v905, %v489
        %v938 = vmul.f32 %v906, %v490
        %v939 = vmul.f32 %v907, %v491
        %v940 = vmul.f32 %v908, %v492
        %v941 = vmul.f32 %v909, %v493
        %v942 = vmul.f32 %v910, %v494
        %v943 = vmul.f32 %v911, %v495
        %v944 = vmul.f32 %v912, %v496
        %v945 = vmul.f32 %v913, %v497
        %v946 = vmul.f32 %v914, %v498
        %v947 = vmul.f32 %v915, %v499
        %v948 = vmul.f32 %v916, %v500
        %v949 = vmul.f32 %v917, %v501
        %v950 = vmul.f32 %v918, %v502
        %v951 = vmul.f32 %v919, %v503
        %v952 = vmul.f32 %v920, %v504
        %v953 = vmul.f32 %v921, %v505
        %v954 = vmul.f32 %v922, %v506
        %v955 = vmul.f32 %v923, %v507
        %v956 = vmul.f32 %v924, %v508
        %v957 = vmul.f32 %v925, %v509
        %v958 = vmul.f32 %v926, %v510
        %v959 = vmul.f32 %v927, %v511
        %v960 = vmul.f32 %v928, %v512
        %v961 = vmul.f32 %v929, %v513
        %v962 = vmul.f32 %v930, %v514
        %v963 = vmul.f32 %v931, %v515
        %v964 = vmul.f32 %v932, %v516
        %v965 = vmul.f32 %v933, 1.442695
        %v966 = vpow.pop %v965
        %v967 = vmul.f32 %v934, 1.442695
        %v968 = vpow.pop %v967
        %v969 = vmul.f32 %v935, 1.442695
        %v970 = vpow.pop %v969
        %v971 = vmul.f32 %v936, 1.442695
        %v972 = vpow.pop %v971
        %v973 = vmul.f32 %v937, 1.442695
        %v974 = vpow.pop %v973
        %v975 = vmul.f32 %v938, 1.442695
        %v976 = vpow.pop %v975
        %v977 = vmul.f32 %v939, 1.442695
        %v978 = vpow.pop %v977
        %v979 = vmul.f32 %v940, 1.442695
        %v980 = vpow.pop %v979
        %v981 = vmul.f32 %v941, 1.442695
        %v982 = vpow.pop %v981
        %v983 = vmul.f32 %v942, 1.442695
        %v984 = vpow.pop %v983
        %v985 = vmul.f32 %v943, 1.442695
        %v986 = vpow.pop %v985
        %v987 = vmul.f32 %v944, 1.442695
        %v988 = vpow.pop %v987
        %v989 = vmul.f32 %v945, 1.442695
        %v990 = vpow.pop %v989
        %v991 = vmul.f32 %v946, 1.442695
        %v992 = vpow.pop %v991
        %v993 = vmul.f32 %v947, 1.442695
        %v994 = vpow.pop %v993
        %v995 = vmul.f32 %v948, 1.442695
        %v996 = vpow.pop %v995
        %v997 = vmul.f32 %v949, 1.442695
        %v998 = vpow.pop %v997
        %v999 = vmul.f32 %v950, 1.442695
        %v1000 = vpow.pop %v999
        %v1001 = vmul.f32 %v951, 1.442695
        %v1002 = vpow.pop %v1001
        %v1003 = vmul.f32 %v952, 1.442695
        %v1004 = vpow.pop %v1003
        %v1005 = vmul.f32 %v953, 1.442695
        %v1006 = vpow.pop %v1005
        %v1007 = vmul.f32 %v954, 1.442695
        %v1008 = vpow.pop %v1007
        %v1009 = vmul.f32 %v955, 1.442695
        %v1010 = vpow.pop %v1009
        %v1011 = vmul.f32 %v956, 1.442695
        %v1012 = vpow.pop %v1011
        %v1013 = vmul.f32 %v957, 1.442695
        %v1014 = vpow.pop %v1013
        %v1015 = vmul.f32 %v958, 1.442695
        %v1016 = vpow.pop %v1015
        %v1017 = vmul.f32 %v959, 1.442695
        %v1018 = vpow.pop %v1017
        %v1019 = vmul.f32 %v960, 1.442695
        %v1020 = vpow.pop %v1019
        %v1021 = vmul.f32 %v961, 1.442695
        %v1022 = vpow.pop %v1021
        %v1023 = vmul.f32 %v962, 1.442695
        %v1024 = vpow.pop %v1023
        %v1025 = vmul.f32 %v963, 1.442695
        %v1026 = vpow.pop %v1025
        %v1027 = vmul.f32 %v964, 1.442695
        %v1028 = vpow.pop %v1027
        %v1029 = vmul.f32 %v869, %v966
        %v1030 = vmul.f32 %v870, %v968
        %v1031 = vmul.f32 %v871, %v970
        %v1032 = vmul.f32 %v872, %v972
        %v1033 = vmul.f32 %v873, %v974
        %v1034 = vmul.f32 %v874, %v976
        %v1035 = vmul.f32 %v875, %v978
        %v1036 = vmul.f32 %v876, %v980
        %v1037 = vmul.f32 %v877, %v982
        %v1038 = vmul.f32 %v878, %v984
        %v1039 = vmul.f32 %v879, %v986
        %v1040 = vmul.f32 %v880, %v988
        %v1041 = vmul.f32 %v881, %v990
        %v1042 = vmul.f32 %v882, %v992
        %v1043 = vmul.f32 %v883, %v994
        %v1044 = vmul.f32 %v884, %v996
        %v1045 = vmul.f32 %v885, %v998
        %v1046 = vmul.f32 %v886, %v1000
        %v1047 = vmul.f32 %v887, %v1002
        %v1048 = vmul.f32 %v888, %v1004
        %v1049 = vmul.f32 %v889, %v1006
        %v1050 = vmul.f32 %v890, %v1008
        %v1051 = vmul.f32 %v891, %v1010
        %v1052 = vmul.f32 %v892, %v1012
        %v1053 = vmul.f32 %v893, %v1014
        %v1054 = vmul.f32 %v894, %v1016
        %v1055 = vmul.f32 %v895, %v1018
        %v1056 = vmul.f32 %v896, %v1020
        %v1057 = vmul.f32 %v897, %v1022
        %v1058 = vmul.f32 %v898, %v1024
        %v1059 = vmul.f32 %v899, %v1026
        %v1060 = vmul.f32 %v900, %v1028
        %v1061 = vsub.f32 1.0, %v1029
        %v1062 = vsub.f32 1.0, %v1030
        %v1063 = vsub.f32 1.0, %v1031
        %v1064 = vsub.f32 1.0, %v1032
        %v1065 = vsub.f32 1.0, %v1033
        %v1066 = vsub.f32 1.0, %v1034
        %v1067 = vsub.f32 1.0, %v1035
        %v1068 = vsub.f32 1.0, %v1036
        %v1069 = vsub.f32 1.0, %v1037
        %v1070 = vsub.f32 1.0, %v1038
        %v1071 = vsub.f32 1.0, %v1039
        %v1072 = vsub.f32 1.0, %v1040
        %v1073 = vsub.f32 1.0, %v1041
        %v1074 = vsub.f32 1.0, %v1042
        %v1075 = vsub.f32 1.0, %v1043
        %v1076 = vsub.f32 1.0, %v1044
        %v1077 = vsub.f32 1.0, %v1045
        %v1078 = vsub.f32 1.0, %v1046
        %v1079 = vsub.f32 1.0, %v1047
        %v1080 = vsub.f32 1.0, %v1048
        %v1081 = vsub.f32 1.0, %v1049
        %v1082 = vsub.f32 1.0, %v1050
        %v1083 = vsub.f32 1.0, %v1051
        %v1084 = vsub.f32 1.0, %v1052
        %v1085 = vsub.f32 1.0, %v1053
        %v1086 = vsub.f32 1.0, %v1054
        %v1087 = vsub.f32 1.0, %v1055
        %v1088 = vsub.f32 1.0, %v1056
        %v1089 = vsub.f32 1.0, %v1057
        %v1090 = vsub.f32 1.0, %v1058
        %v1091 = vsub.f32 1.0, %v1059
        %v1092 = vsub.f32 1.0, %v1060
        %v1093 = vmul.f32 %v453, %v1061
        %v1094 = vmul.f32 %v454, %v1062
        %v1095 = vmul.f32 %v455, %v1063
        %v1096 = vmul.f32 %v456, %v1064
        %v1097 = vmul.f32 %v457, %v1065
        %v1098 = vmul.f32 %v458, %v1066
        %v1099 = vmul.f32 %v459, %v1067
        %v1100 = vmul.f32 %v460, %v1068
        %v1101 = vmul.f32 %v461, %v1069
        %v1102 = vmul.f32 %v462, %v1070
        %v1103 = vmul.f32 %v463, %v1071
        %v1104 = vmul.f32 %v464, %v1072
        %v1105 = vmul.f32 %v465, %v1073
        %v1106 = vmul.f32 %v466, %v1074
        %v1107 = vmul.f32 %v467, %v1075
        %v1108 = vmul.f32 %v468, %v1076
        %v1109 = vmul.f32 %v469, %v1077
        %v1110 = vmul.f32 %v470, %v1078
        %v1111 = vmul.f32 %v471, %v1079
        %v1112 = vmul.f32 %v472, %v1080
        %v1113 = vmul.f32 %v473, %v1081
        %v1114 = vmul.f32 %v474, %v1082
        %v1115 = vmul.f32 %v475, %v1083
        %v1116 = vmul.f32 %v476, %v1084
        %v1117 = vmul.f32 %v477, %v1085
        %v1118 = vmul.f32 %v478, %v1086
        %v1119 = vmul.f32 %v479, %v1087
        %v1120 = vmul.f32 %v480, %v1088
        %v1121 = vmul.f32 %v481, %v1089
        %v1122 = vmul.f32 %v482, %v1090
        %v1123 = vmul.f32 %v483, %v1091
        %v1124 = vmul.f32 %v484, %v1092
        %v1125 = vadd.f32 %v1093, 1.0
        %v1126 = vadd.f32 %v1094, 1.0
        %v1127 = vadd.f32 %v1095, 1.0
        %v1128 = vadd.f32 %v1096, 1.0
        %v1129 = vadd.f32 %v1097, 1.0
        %v1130 = vadd.f32 %v1098, 1.0
        %v1131 = vadd.f32 %v1099, 1.0
        %v1132 = vadd.f32 %v1100, 1.0
        %v1133 = vadd.f32 %v1101, 1.0
        %v1134 = vadd.f32 %v1102, 1.0
        %v1135 = vadd.f32 %v1103, 1.0
        %v1136 = vadd.f32 %v1104, 1.0
        %v1137 = vadd.f32 %v1105, 1.0
        %v1138 = vadd.f32 %v1106, 1.0
        %v1139 = vadd.f32 %v1107, 1.0
        %v1140 = vadd.f32 %v1108, 1.0
        %v1141 = vadd.f32 %v1109, 1.0
        %v1142 = vadd.f32 %v1110, 1.0
        %v1143 = vadd.f32 %v1111, 1.0
        %v1144 = vadd.f32 %v1112, 1.0
        %v1145 = vadd.f32 %v1113, 1.0
        %v1146 = vadd.f32 %v1114, 1.0
        %v1147 = vadd.f32 %v1115, 1.0
        %v1148 = vadd.f32 %v1116, 1.0
        %v1149 = vadd.f32 %v1117, 1.0
        %v1150 = vadd.f32 %v1118, 1.0
        %v1151 = vadd.f32 %v1119, 1.0
        %v1152 = vadd.f32 %v1120, 1.0
        %v1153 = vadd.f32 %v1121, 1.0
        %v1154 = vadd.f32 %v1122, 1.0
        %v1155 = vadd.f32 %v1123, 1.0
        %v1156 = vadd.f32 %v1124, 1.0
        %v1157 = vmul.f32 %v357, %v1125
        %v1158 = vmul.f32 %v358, %v1126
        %v1159 = vmul.f32 %v359, %v1127
        %v1160 = vmul.f32 %v360, %v1128
        %v1161 = vmul.f32 %v361, %v1129
        %v1162 = vmul.f32 %v362, %v1130
        %v1163 = vmul.f32 %v363, %v1131
        %v1164 = vmul.f32 %v364, %v1132
        %v1165 = vmul.f32 %v365, %v1133
        %v1166 = vmul.f32 %v366, %v1134
        %v1167 = vmul.f32 %v367, %v1135
        %v1168 = vmul.f32 %v368, %v1136
        %v1169 = vmul.f32 %v369, %v1137
        %v1170 = vmul.f32 %v370, %v1138
        %v1171 = vmul.f32 %v371, %v1139
        %v1172 = vmul.f32 %v372, %v1140
        %v1173 = vmul.f32 %v373, %v1141
        %v1174 = vmul.f32 %v374, %v1142
        %v1175 = vmul.f32 %v375, %v1143
        %v1176 = vmul.f32 %v376, %v1144
        %v1177 = vmul.f32 %v377, %v1145
        %v1178 = vmul.f32 %v378, %v1146
        %v1179 = vmul.f32 %v379, %v1147
        %v1180 = vmul.f32 %v380, %v1148
        %v1181 = vmul.f32 %v381, %v1149
        %v1182 = vmul.f32 %v382, %v1150
        %v1183 = vmul.f32 %v383, %v1151
        %v1184 = vmul.f32 %v384, %v1152
        %v1185 = vmul.f32 %v385, %v1153
        %v1186 = vmul.f32 %v386, %v1154
        %v1187 = vmul.f32 %v387, %v1155
        %v1188 = vmul.f32 %v388, %v1156
        %v1189 = vpack.c.bf16 %v1158, %v1157
        %v1190 = vpack.c.bf16 %v1160, %v1159
        %v1191 = vpack.c.bf16 %v1162, %v1161
        %v1192 = vpack.c.bf16 %v1164, %v1163
        %v1193 = vpack.c.bf16 %v1166, %v1165
        %v1194 = vpack.c.bf16 %v1168, %v1167
        %v1195 = vpack.c.bf16 %v1170, %v1169
        %v1196 = vpack.c.bf16 %v1172, %v1171
        %v1197 = vpack.c.bf16 %v1174, %v1173
        %v1198 = vpack.c.bf16 %v1176, %v1175
        %v1199 = vpack.c.bf16 %v1178, %v1177
        %v1200 = vpack.c.bf16 %v1180, %v1179
        %v1201 = vpack.c.bf16 %v1182, %v1181
        %v1202 = vpack.c.bf16 %v1184, %v1183
        %v1203 = vpack.c.bf16 %v1186, %v1185
        %v1204 = vpack.c.bf16 %v1188, %v1187
        %1205 = vst [vmem:[%s213] sm:$0xf] 0
        %1206 = vst [vmem:[%s213 + $0x4] sm:$0xf] 0
        %1207 = vst [vmem:[%s213 + $0x8] sm:$0x1] 0
        %1208 = vst [vmem:[%s213 + $0xc] sm:$0xf] 0
        %1209 = vst [vmem:[%s213 + $0x10] sm:$0xf] 0
        %1210 = vst [vmem:[%s213 + $0x14] sm:$0x1] 0
        %1211 = vst [vmem:[%s213 + $0x18] sm:$0xf] 0
        %1212 = vst [vmem:[%s213 + $0x1c] sm:$0xf] 0
        %1213 = vst [vmem:[%s213 + $0x20] sm:$0x1] 0
        %1214 = vst [vmem:[%s213 + $0x24] sm:$0xf] 0
        %1215 = vst [vmem:[%s213 + $0x28] sm:$0xf] 0
        %1216 = vst [vmem:[%s213 + $0x2c] sm:$0x1] 0
        %1217 = vst [vmem:[%s213 + $0x30] sm:$0xf] 0
        %1218 = vst [vmem:[%s213 + $0x34] sm:$0xf] 0
        %1219 = vst [vmem:[%s213 + $0x38] sm:$0x1] 0
        %1220 = vst [vmem:[%s213 + $0x3c] sm:$0xf] 0
        %1221 = vst [vmem:[%s213 + $0x40] sm:$0xf] 0
        %1222 = vst [vmem:[%s213 + $0x44] sm:$0x1] 0
        %1223 = vst [vmem:[%s213 + $0x48] sm:$0xf] 0
        %1224 = vst [vmem:[%s213 + $0x4c] sm:$0xf] 0
        %1225 = vst [vmem:[%s213 + $0x50] sm:$0x1] 0
        %1226 = vst [vmem:[%s213 + $0x54] sm:$0xf] 0
        %1227 = vst [vmem:[%s213 + $0x58] sm:$0xf] 0
        %1228 = vst [vmem:[%s213 + $0x5c] sm:$0x1] 0
        %1229 = vst [vmem:[%s213 + $0x60] sm:$0xf] 0
        %1230 = vst [vmem:[%s213 + $0x64] sm:$0xf] 0
        %1231 = vst [vmem:[%s213 + $0x68] sm:$0x1] 0
        %1232 = vst [vmem:[%s213 + $0x6c] sm:$0xf] 0
        %1233 = vst [vmem:[%s213 + $0x70] sm:$0xf] 0
        %1234 = vst [vmem:[%s213 + $0x74] sm:$0x1] 0
        %1235 = vst [vmem:[%s213 + $0x78] sm:$0xf] 0
        %1236 = vst [vmem:[%s213 + $0x7c] sm:$0xf] 0
        %1237 = vst [vmem:[%s213 + $0x80] sm:$0x1] 0
        %1238 = vst [vmem:[%s213 + $0x84] sm:$0xf] 0
        %1239 = vst [vmem:[%s213 + $0x88] sm:$0xf] 0
        %1240 = vst [vmem:[%s213 + $0x8c] sm:$0x1] 0
        %1241 = vst [vmem:[%s213 + $0x90] sm:$0xf] 0
        %1242 = vst [vmem:[%s213 + $0x94] sm:$0xf] 0
        %1243 = vst [vmem:[%s213 + $0x98] sm:$0x1] 0
        %1244 = vst [vmem:[%s213 + $0x9c] sm:$0xf] 0
        %1245 = vst [vmem:[%s213 + $0xa0] sm:$0xf] 0
        %1246 = vst [vmem:[%s213 + $0xa4] sm:$0x1] 0
        %1247 = vst [vmem:[%s213 + $0xa8] sm:$0xf] 0
        %1248 = vst [vmem:[%s213 + $0xac] sm:$0xf] 0
        %1249 = vst [vmem:[%s213 + $0xb0] sm:$0x1] 0
        %1250 = vst [vmem:[%s213 + $0xb4] sm:$0xf] 0
        %1251 = vst [vmem:[%s213 + $0xb8] sm:$0xf] 0
        %1252 = vst [vmem:[%s213 + $0xbc] sm:$0x1] 0
        %1253 = vst [vmem:[%s213 + $0xc0] sm:$0xf] 0
        %1254 = vst [vmem:[%s213 + $0xc4] sm:$0xf] 0
        %1255 = vst [vmem:[%s213 + $0xc8] sm:$0x1] 0
        %1256 = vst [vmem:[%s213 + $0xcc] sm:$0xf] 0
        %1257 = vst [vmem:[%s213 + $0xd0] sm:$0xf] 0
        %1258 = vst [vmem:[%s213 + $0xd4] sm:$0x1] 0
        %v1275 = vunpack.c.l.b16 %v1189
        %v1276 = vunpack.c.h.b16 %v1189
        %v1277 = vunpack.c.l.b16 %v1190
        %v1278 = vunpack.c.h.b16 %v1190
        %v1279 = vunpack.c.l.b16 %v1191
        %v1280 = vunpack.c.h.b16 %v1191
        %v1281 = vunpack.c.l.b16 %v1192
        %v1282 = vunpack.c.h.b16 %v1192
        %v1283 = vunpack.c.l.b16 %v1193
        %v1284 = vunpack.c.h.b16 %v1193
        %v1285 = vunpack.c.l.b16 %v1194
        %v1286 = vunpack.c.h.b16 %v1194
        %v1287 = vunpack.c.l.b16 %v1195
        %v1288 = vunpack.c.h.b16 %v1195
        %v1289 = vunpack.c.l.b16 %v1196
        %v1290 = vunpack.c.h.b16 %v1196
        %v1291 = vunpack.c.l.b16 %v1197
        %v1292 = vunpack.c.h.b16 %v1197
        %v1293 = vunpack.c.l.b16 %v1198
        %v1294 = vunpack.c.h.b16 %v1198
        %v1295 = vunpack.c.l.b16 %v1199
        %v1296 = vunpack.c.h.b16 %v1199
        %v1297 = vunpack.c.l.b16 %v1200
        %v1298 = vunpack.c.h.b16 %v1200
        %v1299 = vunpack.c.l.b16 %v1201
        %v1300 = vunpack.c.h.b16 %v1201
        %v1301 = vunpack.c.l.b16 %v1202
        %v1302 = vunpack.c.h.b16 %v1202
        %v1303 = vunpack.c.l.b16 %v1203
        %v1304 = vunpack.c.h.b16 %v1203
        %v1305 = vunpack.c.l.b16 %v1204
        %v1306 = vunpack.c.h.b16 %v1204
        %v1307 = vpack.c.b16 %v1275, %v1275
        %v1308 = vpack.c.b16 %v1276, %v1276
        %v1309 = vpack.c.b16 %v1277, %v1277
        %v1310 = vpack.c.b16 %v1278, %v1278
        %v1311 = vpack.c.b16 %v1279, %v1279
        %v1312 = vpack.c.b16 %v1280, %v1280
        %v1313 = vpack.c.b16 %v1281, %v1281
        %v1314 = vpack.c.b16 %v1282, %v1282
        %v1315 = vpack.c.b16 %v1283, %v1283
        %v1316 = vpack.c.b16 %v1284, %v1284
        %v1317 = vpack.c.b16 %v1285, %v1285
        %v1318 = vpack.c.b16 %v1286, %v1286
        %v1319 = vpack.c.b16 %v1287, %v1287
        %v1320 = vpack.c.b16 %v1288, %v1288
        %v1321 = vpack.c.b16 %v1289, %v1289
        %v1322 = vpack.c.b16 %v1290, %v1290
        %v1323 = vpack.c.b16 %v1291, %v1291
        %v1324 = vpack.c.b16 %v1292, %v1292
        %v1325 = vpack.c.b16 %v1293, %v1293
        %v1326 = vpack.c.b16 %v1294, %v1294
        %v1327 = vpack.c.b16 %v1295, %v1295
        %v1328 = vpack.c.b16 %v1296, %v1296
        %v1329 = vpack.c.b16 %v1297, %v1297
        %v1330 = vpack.c.b16 %v1298, %v1298
        %v1331 = vpack.c.b16 %v1299, %v1299
        %v1332 = vpack.c.b16 %v1300, %v1300
        %v1333 = vpack.c.b16 %v1301, %v1301
        %v1334 = vpack.c.b16 %v1302, %v1302
        %v1335 = vpack.c.b16 %v1303, %v1303
        %v1336 = vpack.c.b16 %v1304, %v1304
        %v1337 = vpack.c.b16 %v1305, %v1305
        %v1338 = vpack.c.b16 %v1306, %v1306
        %vm1339 = vsmask.f32 256
        %vm1340 = vsmask.f32 4368
        %vm1341 = vmor %vm1339, %vm1340
        %v1343 = vshrl.u32 %v1307, 16
        %v1345 = vrot.slane %v1343, 7
        %v1346 = vshll.u32 %v1307, 16
        %v1348 = vor.u32 %v1345, %v1346
        %v1349 = vrot.slane %v1345, 4
        %v1351 = vshrl.u32 %v1308, 16
        %v1353 = vrot.slane %v1351, 7
        %v1354 = vshll.u32 %v1308, 16
        %v1356 = vor.u32 %v1353, %v1354
        %v1357 = vsel %vm1341, %v1349, %v1356
        %v1358 = vrot.slane %v1353, 4
        %v1360 = vshrl.u32 %v1309, 16
        %v1362 = vrot.slane %v1360, 7
        %v1363 = vshll.u32 %v1309, 16
        %v1365 = vor.u32 %v1362, %v1363
        %v1366 = vrot.slane %v1362, 4
        %v1368 = vshrl.u32 %v1310, 16
        %v1370 = vrot.slane %v1368, 7
        %v1371 = vshll.u32 %v1310, 16
        %v1373 = vor.u32 %v1370, %v1371
        %v1374 = vsel %vm1341, %v1366, %v1373
        %v1375 = vrot.slane %v1370, 4
        %v1377 = vshrl.u32 %v1311, 16
        %v1379 = vrot.slane %v1377, 7
        %v1380 = vshll.u32 %v1311, 16
        %v1382 = vor.u32 %v1379, %v1380
        %v1383 = vrot.slane %v1379, 4
        %v1385 = vshrl.u32 %v1312, 16
        %v1387 = vrot.slane %v1385, 7
        %v1388 = vshll.u32 %v1312, 16
        %v1390 = vor.u32 %v1387, %v1388
        %v1391 = vsel %vm1341, %v1383, %v1390
        %v1392 = vrot.slane %v1387, 4
        %v1394 = vshrl.u32 %v1313, 16
        %v1396 = vrot.slane %v1394, 7
        %v1397 = vshll.u32 %v1313, 16
        %v1399 = vor.u32 %v1396, %v1397
        %v1400 = vrot.slane %v1396, 4
        %v1402 = vshrl.u32 %v1314, 16
        %v1404 = vrot.slane %v1402, 7
        %v1405 = vshll.u32 %v1314, 16
        %v1407 = vor.u32 %v1404, %v1405
        %v1408 = vsel %vm1341, %v1400, %v1407
        %v1409 = vrot.slane %v1404, 4
        %v1411 = vshrl.u32 %v1315, 16
        %v1413 = vrot.slane %v1411, 7
        %v1414 = vshll.u32 %v1315, 16
        %v1416 = vor.u32 %v1413, %v1414
        %v1417 = vrot.slane %v1413, 4
        %v1419 = vshrl.u32 %v1316, 16
        %v1421 = vrot.slane %v1419, 7
        %v1422 = vshll.u32 %v1316, 16
        %v1424 = vor.u32 %v1421, %v1422
        %v1425 = vsel %vm1341, %v1417, %v1424
        %v1426 = vrot.slane %v1421, 4
        %v1428 = vshrl.u32 %v1317, 16
        %v1430 = vrot.slane %v1428, 7
        %v1431 = vshll.u32 %v1317, 16
        %v1433 = vor.u32 %v1430, %v1431
        %v1434 = vrot.slane %v1430, 4
        %v1436 = vshrl.u32 %v1318, 16
        %v1438 = vrot.slane %v1436, 7
        %v1439 = vshll.u32 %v1318, 16
        %v1441 = vor.u32 %v1438, %v1439
        %v1442 = vsel %vm1341, %v1434, %v1441
        %v1443 = vrot.slane %v1438, 4
        %v1445 = vshrl.u32 %v1319, 16
        %v1447 = vrot.slane %v1445, 7
        %v1448 = vshll.u32 %v1319, 16
        %v1450 = vor.u32 %v1447, %v1448
        %v1451 = vrot.slane %v1447, 4
        %v1453 = vshrl.u32 %v1320, 16
        %v1455 = vrot.slane %v1453, 7
        %v1456 = vshll.u32 %v1320, 16
        %v1458 = vor.u32 %v1455, %v1456
        %v1459 = vsel %vm1341, %v1451, %v1458
        %v1460 = vrot.slane %v1455, 4
        %v1462 = vshrl.u32 %v1321, 16
        %v1464 = vrot.slane %v1462, 7
        %v1465 = vshll.u32 %v1321, 16
        %v1467 = vor.u32 %v1464, %v1465
        %v1468 = vrot.slane %v1464, 4
        %v1470 = vshrl.u32 %v1322, 16
        %v1472 = vrot.slane %v1470, 7
        %v1473 = vshll.u32 %v1322, 16
        %v1475 = vor.u32 %v1472, %v1473
        %v1476 = vsel %vm1341, %v1468, %v1475
        %v1477 = vrot.slane %v1472, 4
        %v1479 = vshrl.u32 %v1323, 16
        %v1481 = vrot.slane %v1479, 7
        %v1482 = vshll.u32 %v1323, 16
        %v1484 = vor.u32 %v1481, %v1482
        %v1485 = vrot.slane %v1481, 4
        %v1487 = vshrl.u32 %v1324, 16
        %v1489 = vrot.slane %v1487, 7
        %v1490 = vshll.u32 %v1324, 16
        %v1492 = vor.u32 %v1489, %v1490
        %v1493 = vsel %vm1341, %v1485, %v1492
        %v1494 = vrot.slane %v1489, 4
        %v1496 = vshrl.u32 %v1325, 16
        %v1498 = vrot.slane %v1496, 7
        %v1499 = vshll.u32 %v1325, 16
        %v1501 = vor.u32 %v1498, %v1499
        %v1502 = vrot.slane %v1498, 4
        %v1504 = vshrl.u32 %v1326, 16
        %v1506 = vrot.slane %v1504, 7
        %v1507 = vshll.u32 %v1326, 16
        %v1509 = vor.u32 %v1506, %v1507
        %v1510 = vsel %vm1341, %v1502, %v1509
        %v1511 = vrot.slane %v1506, 4
        %v1513 = vshrl.u32 %v1327, 16
        %v1515 = vrot.slane %v1513, 7
        %v1516 = vshll.u32 %v1327, 16
        %v1518 = vor.u32 %v1515, %v1516
        %v1519 = vrot.slane %v1515, 4
        %v1521 = vshrl.u32 %v1328, 16
        %v1523 = vrot.slane %v1521, 7
        %v1524 = vshll.u32 %v1328, 16
        %v1526 = vor.u32 %v1523, %v1524
        %v1527 = vsel %vm1341, %v1519, %v1526
        %v1528 = vrot.slane %v1523, 4
        %v1530 = vshrl.u32 %v1329, 16
        %v1532 = vrot.slane %v1530, 7
        %v1533 = vshll.u32 %v1329, 16
        %v1535 = vor.u32 %v1532, %v1533
        %v1536 = vrot.slane %v1532, 4
        %v1538 = vshrl.u32 %v1330, 16
        %v1540 = vrot.slane %v1538, 7
        %v1541 = vshll.u32 %v1330, 16
        %v1543 = vor.u32 %v1540, %v1541
        %v1544 = vsel %vm1341, %v1536, %v1543
        %v1545 = vrot.slane %v1540, 4
        %v1547 = vshrl.u32 %v1331, 16
        %v1549 = vrot.slane %v1547, 7
        %v1550 = vshll.u32 %v1331, 16
        %v1552 = vor.u32 %v1549, %v1550
        %v1553 = vrot.slane %v1549, 4
        %v1555 = vshrl.u32 %v1332, 16
        %v1557 = vrot.slane %v1555, 7
        %v1558 = vshll.u32 %v1332, 16
        %v1560 = vor.u32 %v1557, %v1558
        %v1561 = vsel %vm1341, %v1553, %v1560
        %v1562 = vrot.slane %v1557, 4
        %v1564 = vshrl.u32 %v1333, 16
        %v1566 = vrot.slane %v1564, 7
        %v1567 = vshll.u32 %v1333, 16
        %v1569 = vor.u32 %v1566, %v1567
        %v1570 = vrot.slane %v1566, 4
        %v1572 = vshrl.u32 %v1334, 16
        %v1574 = vrot.slane %v1572, 7
        %v1575 = vshll.u32 %v1334, 16
        %v1577 = vor.u32 %v1574, %v1575
        %v1578 = vsel %vm1341, %v1570, %v1577
        %v1579 = vrot.slane %v1574, 4
        %v1581 = vshrl.u32 %v1335, 16
        %v1583 = vrot.slane %v1581, 7
        %v1584 = vshll.u32 %v1335, 16
        %v1586 = vor.u32 %v1583, %v1584
        %v1587 = vrot.slane %v1583, 4
        %v1589 = vshrl.u32 %v1336, 16
        %v1591 = vrot.slane %v1589, 7
        %v1592 = vshll.u32 %v1336, 16
        %v1594 = vor.u32 %v1591, %v1592
        %v1595 = vsel %vm1341, %v1587, %v1594
        %v1596 = vrot.slane %v1591, 4
        %v1598 = vshrl.u32 %v1337, 16
        %v1600 = vrot.slane %v1598, 7
        %v1601 = vshll.u32 %v1337, 16
        %v1603 = vor.u32 %v1600, %v1601
        %v1604 = vrot.slane %v1600, 4
        %v1606 = vshrl.u32 %v1338, 16
        %v1608 = vrot.slane %v1606, 7
        %v1609 = vshll.u32 %v1338, 16
        %v1611 = vor.u32 %v1608, %v1609
        %v1612 = vsel %vm1341, %v1604, %v1611
        %v1613 = vrot.slane %v1608, 4
        %s1662 = scalar_lea.vmem %s213, 12 [#allocation8]
        %vm1663 = vcmask 1043456
        %vm1664 = vsmask.f32 7938
        %vm1665 = vmand %vm1663, %vm1664
        %v1666 = vld [vmem:[%s1662] sm:$0xf]
        %v1667 = vsel %vm1665, %v1348, %v1666
        %1668 = vst [vmem:[%s1662] sm:$0xf] %v1667
        %1669 = vst [vmem:[%s1662 + $0x4] sm:$0xf] %v1357
        %vm1670 = vcmask 1040384
        %vm1671 = vmand %vm1670, %vm1339
        %v1672 = vld [vmem:[%s1662 + $0x8] sm:$0x1]
        %v1673 = vsel %vm1671, %v1358, %v1672
        %1674 = vst [vmem:[%s1662 + $0x8] sm:$0x1] %v1673
        %v1675 = vld [vmem:[%s1662 + $0xc] sm:$0xf]
        %v1676 = vsel %vm1665, %v1365, %v1675
        %1677 = vst [vmem:[%s1662 + $0xc] sm:$0xf] %v1676
        %1678 = vst [vmem:[%s1662 + $0x10] sm:$0xf] %v1374
        %v1679 = vld [vmem:[%s1662 + $0x14] sm:$0x1]
        %v1680 = vsel %vm1671, %v1375, %v1679
        %1681 = vst [vmem:[%s1662 + $0x14] sm:$0x1] %v1680
        %v1682 = vld [vmem:[%s1662 + $0x18] sm:$0xf]
        %v1683 = vsel %vm1665, %v1382, %v1682
        %1684 = vst [vmem:[%s1662 + $0x18] sm:$0xf] %v1683
        %1685 = vst [vmem:[%s1662 + $0x1c] sm:$0xf] %v1391
        %v1686 = vld [vmem:[%s1662 + $0x20] sm:$0x1]
        %v1687 = vsel %vm1671, %v1392, %v1686
        %1688 = vst [vmem:[%s1662 + $0x20] sm:$0x1] %v1687
        %v1689 = vld [vmem:[%s1662 + $0x24] sm:$0xf]
        %v1690 = vsel %vm1665, %v1399, %v1689
        %1691 = vst [vmem:[%s1662 + $0x24] sm:$0xf] %v1690
        %1692 = vst [vmem:[%s1662 + $0x28] sm:$0xf] %v1408
        %v1693 = vld [vmem:[%s1662 + $0x2c] sm:$0x1]
        %v1694 = vsel %vm1671, %v1409, %v1693
        %1695 = vst [vmem:[%s1662 + $0x2c] sm:$0x1] %v1694
        %v1696 = vld [vmem:[%s1662 + $0x30] sm:$0xf]
        %v1697 = vsel %vm1665, %v1416, %v1696
        %1698 = vst [vmem:[%s1662 + $0x30] sm:$0xf] %v1697
        %1699 = vst [vmem:[%s1662 + $0x34] sm:$0xf] %v1425
        %v1700 = vld [vmem:[%s1662 + $0x38] sm:$0x1]
        %v1701 = vsel %vm1671, %v1426, %v1700
        %1702 = vst [vmem:[%s1662 + $0x38] sm:$0x1] %v1701
        %v1703 = vld [vmem:[%s1662 + $0x3c] sm:$0xf]
        %v1704 = vsel %vm1665, %v1433, %v1703
        %1705 = vst [vmem:[%s1662 + $0x3c] sm:$0xf] %v1704
        %1706 = vst [vmem:[%s1662 + $0x40] sm:$0xf] %v1442
        %v1707 = vld [vmem:[%s1662 + $0x44] sm:$0x1]
        %v1708 = vsel %vm1671, %v1443, %v1707
        %1709 = vst [vmem:[%s1662 + $0x44] sm:$0x1] %v1708
        %v1710 = vld [vmem:[%s1662 + $0x48] sm:$0xf]
        %v1711 = vsel %vm1665, %v1450, %v1710
        %1712 = vst [vmem:[%s1662 + $0x48] sm:$0xf] %v1711
        %1713 = vst [vmem:[%s1662 + $0x4c] sm:$0xf] %v1459
        %v1714 = vld [vmem:[%s1662 + $0x50] sm:$0x1]
        %v1715 = vsel %vm1671, %v1460, %v1714
        %1716 = vst [vmem:[%s1662 + $0x50] sm:$0x1] %v1715
        %v1717 = vld [vmem:[%s1662 + $0x54] sm:$0xf]
        %v1718 = vsel %vm1665, %v1467, %v1717
        %1719 = vst [vmem:[%s1662 + $0x54] sm:$0xf] %v1718
        %1720 = vst [vmem:[%s1662 + $0x58] sm:$0xf] %v1476
        %v1721 = vld [vmem:[%s1662 + $0x5c] sm:$0x1]
        %v1722 = vsel %vm1671, %v1477, %v1721
        %1723 = vst [vmem:[%s1662 + $0x5c] sm:$0x1] %v1722
        %v1724 = vld [vmem:[%s1662 + $0x60] sm:$0xf]
        %v1725 = vsel %vm1665, %v1484, %v1724
        %1726 = vst [vmem:[%s1662 + $0x60] sm:$0xf] %v1725
        %1727 = vst [vmem:[%s1662 + $0x64] sm:$0xf] %v1493
        %v1728 = vld [vmem:[%s1662 + $0x68] sm:$0x1]
        %v1729 = vsel %vm1671, %v1494, %v1728
        %1730 = vst [vmem:[%s1662 + $0x68] sm:$0x1] %v1729
        %v1731 = vld [vmem:[%s1662 + $0x6c] sm:$0xf]
        %v1732 = vsel %vm1665, %v1501, %v1731
        %1733 = vst [vmem:[%s1662 + $0x6c] sm:$0xf] %v1732
        %1734 = vst [vmem:[%s1662 + $0x70] sm:$0xf] %v1510
        %v1735 = vld [vmem:[%s1662 + $0x74] sm:$0x1]
        %v1736 = vsel %vm1671, %v1511, %v1735
        %1737 = vst [vmem:[%s1662 + $0x74] sm:$0x1] %v1736
        %v1738 = vld [vmem:[%s1662 + $0x78] sm:$0xf]
        %v1739 = vsel %vm1665, %v1518, %v1738
        %1740 = vst [vmem:[%s1662 + $0x78] sm:$0xf] %v1739
        %1741 = vst [vmem:[%s1662 + $0x7c] sm:$0xf] %v1527
        %v1742 = vld [vmem:[%s1662 + $0x80] sm:$0x1]
        %v1743 = vsel %vm1671, %v1528, %v1742
        %1744 = vst [vmem:[%s1662 + $0x80] sm:$0x1] %v1743
        %v1745 = vld [vmem:[%s1662 + $0x84] sm:$0xf]
        %v1746 = vsel %vm1665, %v1535, %v1745
        %1747 = vst [vmem:[%s1662 + $0x84] sm:$0xf] %v1746
        %1748 = vst [vmem:[%s1662 + $0x88] sm:$0xf] %v1544
        %v1749 = vld [vmem:[%s1662 + $0x8c] sm:$0x1]
        %v1750 = vsel %vm1671, %v1545, %v1749
        %1751 = vst [vmem:[%s1662 + $0x8c] sm:$0x1] %v1750
        %v1752 = vld [vmem:[%s1662 + $0x90] sm:$0xf]
        %v1753 = vsel %vm1665, %v1552, %v1752
        %1754 = vst [vmem:[%s1662 + $0x90] sm:$0xf] %v1753
        %1755 = vst [vmem:[%s1662 + $0x94] sm:$0xf] %v1561
        %v1756 = vld [vmem:[%s1662 + $0x98] sm:$0x1]
        %v1757 = vsel %vm1671, %v1562, %v1756
        %1758 = vst [vmem:[%s1662 + $0x98] sm:$0x1] %v1757
        %v1759 = vld [vmem:[%s1662 + $0x9c] sm:$0xf]
        %v1760 = vsel %vm1665, %v1569, %v1759
        %1761 = vst [vmem:[%s1662 + $0x9c] sm:$0xf] %v1760
        %1762 = vst [vmem:[%s1662 + $0xa0] sm:$0xf] %v1578
        %v1763 = vld [vmem:[%s1662 + $0xa4] sm:$0x1]
        %v1764 = vsel %vm1671, %v1579, %v1763
        %1765 = vst [vmem:[%s1662 + $0xa4] sm:$0x1] %v1764
        %v1766 = vld [vmem:[%s1662 + $0xa8] sm:$0xf]
        %v1767 = vsel %vm1665, %v1586, %v1766
        %1768 = vst [vmem:[%s1662 + $0xa8] sm:$0xf] %v1767
        %1769 = vst [vmem:[%s1662 + $0xac] sm:$0xf] %v1595
        %v1770 = vld [vmem:[%s1662 + $0xb0] sm:$0x1]
        %v1771 = vsel %vm1671, %v1596, %v1770
        %1772 = vst [vmem:[%s1662 + $0xb0] sm:$0x1] %v1771
        %v1773 = vld [vmem:[%s1662 + $0xb4] sm:$0xf]
        %v1774 = vsel %vm1665, %v1603, %v1773
        %1775 = vst [vmem:[%s1662 + $0xb4] sm:$0xf] %v1774
        %1776 = vst [vmem:[%s1662 + $0xb8] sm:$0xf] %v1612
        %v1777 = vld [vmem:[%s1662 + $0xbc] sm:$0x1]
        %v1778 = vsel %vm1671, %v1613, %v1777
        %1779 = vst [vmem:[%s1662 + $0xbc] sm:$0x1] %v1778
        %s1780 = sand.u32 %s97, 1
        %s1781 = scalar_lea.sflag [#allocation4], %s1780
        %s1782 = sand.u32 %s97, 1
        %s1783 = smul.addr %s1782, 216
        %s1784 = scalar_lea.vmem [#allocation8], %s1783
        // Predicated region
        $region45: #{unet_up_forward.11} parent=31 // pred_check
          %p1785 = pneg %p107
        $region46: #{unet_up_forward.11} parent=31 // pred_check_branch
          %1787 = sbr.rel (%p1785) target = $region48
        $region47: #{unet_up_forward.11} parent=31 // pred_region
          %s1789 = ssub.s32 3456, 3456
          %1790 = vsyncadd %s1781, %s1789
          %s1791 = smul.addr %s21, 54
          %s1792 = smul.addr %s1791, 64
          %s1793 = scalar_lea.hbm %s3, %s1792
          %s1794 = sshll.u32 %s1784, 4
          %s1795 = int_to_ptr.vmem [resolvable:$true] %s1794
          %1800 = dma.vmem_to_hbm [thread:$0]  %s1795, 3456, %s1793, %s1781, 64, 64, 4
        $region48: #{unet_up_forward.11} parent=31 // pred_fallthru
          _
      $region32: #{unet_up_forward.11} parent=5 // pred_fallthru
        _
      %p1801 = scmp.le.s32.totalorder 2, %s16
      // Predicated region
      $region49: #{unet_up_forward.11} parent=5 // pred_check
        %p1802 = pneg %p1801
      $region50: #{unet_up_forward.11} parent=5 // pred_check_branch
        %1804 = sbr.rel (%p1802) target = $region52
      $region51: #{unet_up_forward.11} parent=5 // pred_region
        %s1805 = ssub.s32 %s16, 2
        // Predicated region
        $region53: #{unet_up_forward.11} parent=51 // pred_check
          %p1806 = pneg %p113
        $region54: #{unet_up_forward.11} parent=51 // pred_check_branch
          %1808 = sbr.rel (%p1806) target = $region56
        $region55: #{unet_up_forward.11} parent=51 // pred_region
          %s1809 = sand.u32 %s98, 1
          %s1810 = scalar_lea.sflag [#allocation4], %s1809
          %s1811 = sand.u32 %s98, 1
          %s1812 = smul.addr %s1811, 216
          %s1813 = scalar_lea.vmem [#allocation8], %s1812
          %1814 = dma.done %s1810, 3456
        $region56: #{unet_up_forward.11} parent=51 // pred_fallthru
          _
      $region52: #{unet_up_forward.11} parent=5 // pred_fallthru
        _
    $region6: #{unet_up_forward.11} parent=1 // loop_footer
      %s20 = sadd.s32 1, %s16
    $region7: #{unet_up_forward.11} parent=1 // loop_footer_branch
      %15 = sbr.rel target = $region3
    $region8: #{unet_up_forward.11} parent=1 // loop_exit
      _
    %1815 = vsyncpa [#allocation3], 1
    %s1816 = scalar_lea.sflag [#allocation3], 1
    %1817 = vsyncpa %s1816, 1
    %1818 = vsyncpa [#allocation6], 1
    %1819 = vsyncpa [#allocation4], 1
    %s1820 = scalar_lea.sflag [#allocation4], 1
    %1821 = vsyncpa %s1820, 1

// kernel: unet_up_forward.10
$region0: #{unet_up_forward.10}
  #allocation0 [shape = 'u32[]', space=smem, size = 0x4, offset = 0x4, fixed_abs, tag = 'smem constant byte address 0x4 - core index']
  #allocation1 [shape = 'u32[144,128]{1,0:T(1,128)}', space=vmem, size = 0x12000, scoped, tag = 'internal scratch']
  %s0 = inlined_call_operand.hbm [shape: bf16[2,18,18,128], index: 0, kind: input, shape index: {}]
  %s1 = inlined_call_operand.hbm [shape: bf16[9,128,128], index: 1, kind: input, shape index: {}]
  %s2 = inlined_call_operand.hbm [shape: bf16[2,256,128], index: 2, kind: output, shape index: {0}]
  %s3 = inlined_call_operand.hbm [shape: f32[2,2,128], index: 3, kind: output, shape index: {1}]
  %4 = xla_tuple %s2, %s3
  %s5 = sld [smem:[#allocation0]]
  $region57: #{unet_up_forward.10} parent=0
    _
  %s7 = ssub.s32 1, %s5
  %s8 = scalar_select 0, %s7, %s5
  $region1: #{unet_up_forward.10} parent=0
    #allocation2 [shape = 'u8[221184]{0}', space=vmem, size = 0x36000, scoped, tag = 'input window, operand 0']
    #allocation3 [shape = 's32[2]{0}', space=sflag, size = 0x8, scoped, tag = 'scoped memory for unet_up_forward.10']
    #allocation4 [shape = 's32[2]{0}', space=sflag, size = 0x8, scoped, tag = 'scoped memory for unet_up_forward.10']
    #allocation5 [shape = 'u8[294912]{0}', space=vmem, size = 0x48000, scoped, tag = 'input window, operand 1, single buffered']
    #allocation6 [shape = 's32[1]{0}', space=sflag, size = 0x4, scoped, tag = 'scoped memory for unet_up_forward.10']
    #allocation7 [shape = 'u8[131072]{0}', space=vmem, size = 0x20000, scoped, tag = 'output window, operand 0']
    #allocation8 [shape = 'u8[2048]{0}', space=vmem, size = 0x800, scoped, tag = 'output window, operand 1']
    #allocation9 [shape = 's32[2]{0}', space=sflag, size = 0x8, scoped, tag = 'scoped memory for unet_up_forward.10']
    %9 = vsyncpa [#allocation3], 0
    %s10 = scalar_lea.sflag [#allocation3], 1
    %11 = vsyncpa %s10, 0
    %12 = vsyncpa [#allocation6], 0
    %13 = vsyncpa [#allocation4], 0
    %s14 = scalar_lea.sflag [#allocation4], 1
    %15 = vsyncpa %s14, 0
    %16 = vsyncpa [#allocation9], 0
    %s17 = scalar_lea.sflag [#allocation9], 1
    %18 = vsyncpa %s17, 0
    loop: start=0, step=1, limit=4
    $region2: #{unet_up_forward.10} parent=1 // loop_pre_header
      _
    $region3: #{unet_up_forward.10} parent=1 // loop_header
      %s20 = sphi 0, %s24
      %p21 = scmp.ge.s32.totalorder %s20, 4
      %s30 = sphi 0, %s32
      %s33 = sphi 0, %s30
      %s34 = sphi 0, %s33
      %s50 = sphi 0, %s34
      %s54 = sphi 0, %s54
      %s56 = sphi 0, %s54
      %s57 = sphi 0, %s56
      %s71 = sphi 0, %s57
      %s77 = sphi 0, %s79
      %s80 = sphi 0, %s77
      %s81 = sphi 0, %s80
      %s97 = sphi 0, %s81
      %s103 = sphi 0, %s105
      %s106 = sphi 0, %s103
      %s107 = sphi 0, %s106
      %s123 = sphi 0, %s107
    $region4: #{unet_up_forward.10} parent=1 // loop_header_branch
      %23 = sbr.rel (%p21) target = $region8
    $region5: #{unet_up_forward.10} parent=1 // loop_body
      %s25 = ssub.s32 %s20, 1
      %s26 = ssub.s32 %s20, 2
      %s27 = sadd.s32 %s20, 1
      %s28 = ssub.s32 %s20, %s27
      %p29 = scmp.eq.s32.totalorder %s28, 0
      %s31 = sadd.s32 %s30, 1
      %s32 = scalar_select %p29, %s30, %s31
      %p35 = pneg %p29
      %p36 = scmp.eq.s32.totalorder %s20, 1
      %p37 = por %p35, %p36
      %p38 = scmp.ne.s32.totalorder %s30, %s33
      %p39 = scmp.eq.s32.totalorder %s20, 0
      %p40 = por %p38, %p39
      %p41 = scmp.ne.s32.totalorder %s30, %s33
      %p42 = scmp.eq.s32.totalorder %s25, 1
      %p43 = por %p41, %p42
      %p44 = scmp.ne.s32.totalorder %s33, %s34
      %p45 = scmp.eq.s32.totalorder %s25, 0
      %p46 = por %p44, %p45
      %p47 = scmp.ne.s32.totalorder %s33, %s34
      %p48 = scmp.eq.s32.totalorder %s26, 1
      %p49 = por %p47, %p48
      %p51 = scmp.ne.s32.totalorder %s34, %s50
      %p52 = scmp.eq.s32.totalorder %s26, 0
      %p53 = por %p51, %p52
      %s55 = sadd.s32 %s54, 1
      %p58 = scmp.eq.s32.totalorder %s20, 1
      %p59 = scmp.ne.s32.totalorder %s54, %s56
      %p60 = scmp.eq.s32.totalorder %s20, 0
      %p61 = por %p59, %p60
      %p62 = scmp.ne.s32.totalorder %s54, %s56
      %p63 = scmp.eq.s32.totalorder %s25, 1
      %p64 = por %p62, %p63
      %p65 = scmp.ne.s32.totalorder %s56, %s57
      %p66 = scmp.eq.s32.totalorder %s25, 0
      %p67 = por %p65, %p66
      %p68 = scmp.ne.s32.totalorder %s56, %s57
      %p69 = scmp.eq.s32.totalorder %s26, 1
      %p70 = por %p68, %p69
      %p72 = scmp.ne.s32.totalorder %s57, %s71
      %p73 = scmp.eq.s32.totalorder %s26, 0
      %p74 = por %p72, %p73
      %s75 = ssub.s32 %s20, %s27
      %p76 = scmp.eq.s32.totalorder %s75, 0
      %s78 = sadd.s32 %s77, 1
      %s79 = scalar_select %p76, %s77, %s78
      %p82 = pneg %p76
      %p83 = scmp.eq.s32.totalorder %s20, 1
      %p84 = por %p82, %p83
      %p85 = scmp.ne.s32.totalorder %s77, %s80
      %p86 = scmp.eq.s32.totalorder %s20, 0
      %p87 = por %p85, %p86
      %p88 = scmp.ne.s32.totalorder %s77, %s80
      %p89 = scmp.eq.s32.totalorder %s25, 1
      %p90 = por %p88, %p89
      %p91 = scmp.ne.s32.totalorder %s80, %s81
      %p92 = scmp.eq.s32.totalorder %s25, 0
      %p93 = por %p91, %p92
      %p94 = scmp.ne.s32.totalorder %s80, %s81
      %p95 = scmp.eq.s32.totalorder %s26, 1
      %p96 = por %p94, %p95
      %p98 = scmp.ne.s32.totalorder %s81, %s97
      %p99 = scmp.eq.s32.totalorder %s26, 0
      %p100 = por %p98, %p99
      %s101 = ssub.s32 %s20, %s27
      %p102 = scmp.eq.s32.totalorder %s101, 0
      %s104 = sadd.s32 %s103, 1
      %s105 = scalar_select %p102, %s103, %s104
      %p108 = pneg %p102
      %p109 = scmp.eq.s32.totalorder %s20, 1
      %p110 = por %p108, %p109
      %p111 = scmp.ne.s32.totalorder %s103, %s106
      %p112 = scmp.eq.s32.totalorder %s20, 0
      %p113 = por %p111, %p112
      %p114 = scmp.ne.s32.totalorder %s103, %s106
      %p115 = scmp.eq.s32.totalorder %s25, 1
      %p116 = por %p114, %p115
      %p117 = scmp.ne.s32.totalorder %s106, %s107
      %p118 = scmp.eq.s32.totalorder %s25, 0
      %p119 = por %p117, %p118
      %p120 = scmp.ne.s32.totalorder %s106, %s107
      %p121 = scmp.eq.s32.totalorder %s26, 1
      %p122 = por %p120, %p121
      %p124 = scmp.ne.s32.totalorder %s107, %s123
      %p125 = scmp.eq.s32.totalorder %s26, 0
      %p126 = por %p124, %p125
      %p127 = scmp.le.s32.totalorder 1, %s20
      %p128 = scmp.lt.s32.totalorder %s20, 3
      %p129 = pnand %p127, %p128
      %p130 = pneg %p129
      // Predicated region
      $region9: #{unet_up_forward.10} parent=5 // pred_check
        _
      $region10: #{unet_up_forward.10} parent=5 // pred_check_branch
        %132 = sbr.rel (%p129) target = $region12
      $region11: #{unet_up_forward.10} parent=5 // pred_region
        %s133 = ssub.s32 %s20, 1
        // Predicated region
        $region13: #{unet_up_forward.10} parent=11 // pred_check
          %p134 = pneg %p67
        $region14: #{unet_up_forward.10} parent=11 // pred_check_branch
          %136 = sbr.rel (%p134) target = $region16
        $region15: #{unet_up_forward.10} parent=11 // pred_region
          %s138 = ssub.s32 9216, 9216
          %139 = vsyncadd [#allocation6], %s138
          %s140 = sshll.u32 [#allocation5], 4
          %s141 = int_to_ptr.vmem [resolvable:$true] %s140
          %146 = dma.hbm_to_vmem [thread:$0]  %s1, 9216, %s141, [#allocation6], 64, 64, 4
        $region16: #{unet_up_forward.10} parent=11 // pred_fallthru
          _
      $region12: #{unet_up_forward.10} parent=5 // pred_fallthru
        _
      %p147 = scmp.lt.s32.totalorder %s20, 2
      // Predicated region
      $region17: #{unet_up_forward.10} parent=5 // pred_check
        %p148 = pneg %p147
      $region18: #{unet_up_forward.10} parent=5 // pred_check_branch
        %150 = sbr.rel (%p148) target = $region20
      $region19: #{unet_up_forward.10} parent=5 // pred_region
        // Predicated region
        $region21: #{unet_up_forward.10} parent=19 // pred_check
          %p151 = pneg %p40
        $region22: #{unet_up_forward.10} parent=19 // pred_check_branch
          %153 = sbr.rel (%p151) target = $region24
        $region23: #{unet_up_forward.10} parent=19 // pred_region
          %s154 = sand.u32 %s30, 1
          %s155 = scalar_lea.sflag [#allocation3], %s154
          %s156 = sand.u32 %s30, 1
          %s157 = smul.addr %s156, 216
          %s158 = scalar_lea.vmem [#allocation2], %s157
          %s160 = ssub.s32 3456, 3456
          %161 = vsyncadd %s155, %s160
          %s162 = smul.addr %s20, 54
          %s163 = smul.addr %s162, 64
          %s164 = scalar_lea.hbm %s0, %s163
          %s165 = sshll.u32 %s158, 4
          %s166 = int_to_ptr.vmem [resolvable:$true] %s165
          %171 = dma.hbm_to_vmem [thread:$0]  %s164, 3456, %s166, %s155, 64, 64, 4
        $region24: #{unet_up_forward.10} parent=19 // pred_fallthru
          _
      $region20: #{unet_up_forward.10} parent=5 // pred_fallthru
        _
      %p172 = scmp.le.s32.totalorder 1, %s20
      %p173 = scmp.lt.s32.totalorder %s20, 3
      %p174 = pnand %p172, %p173
      %p175 = pneg %p174
      // Predicated region
      $region25: #{unet_up_forward.10} parent=5 // pred_check
        _
      $region26: #{unet_up_forward.10} parent=5 // pred_check_branch
        %177 = sbr.rel (%p174) target = $region28
      $region27: #{unet_up_forward.10} parent=5 // pred_region
        %s178 = ssub.s32 %s20, 1
        %s179 = sand.u32 %s33, 1
        %s180 = scalar_lea.sflag [#allocation3], %s179
        %s181 = sand.u32 %s33, 1
        %s182 = smul.addr %s181, 216
        %s183 = scalar_lea.vmem [#allocation2], %s182
        // Predicated region
        $region29: #{unet_up_forward.10} parent=27 // pred_check
          %p184 = pneg %p46
        $region30: #{unet_up_forward.10} parent=27 // pred_check_branch
          %186 = sbr.rel (%p184) target = $region32
        $region31: #{unet_up_forward.10} parent=27 // pred_region
          %187 = dma.done %s180, 3456
        $region32: #{unet_up_forward.10} parent=27 // pred_fallthru
          _
        // Predicated region
        $region33: #{unet_up_forward.10} parent=27 // pred_check
          %p188 = pneg %p67
        $region34: #{unet_up_forward.10} parent=27 // pred_check_branch
          %190 = sbr.rel (%p188) target = $region36
        $region35: #{unet_up_forward.10} parent=27 // pred_region
          %191 = dma.done [#allocation6], 9216
        $region36: #{unet_up_forward.10} parent=27 // pred_fallthru
          _
        %s192 = sand.u32 %s33, 1
        %s193 = scalar_lea.sflag [#allocation3], %s192
        %s194 = sand.u32 %s33, 1
        %s195 = smul.addr %s194, 216
        %s196 = scalar_lea.vmem [#allocation2], %s195
        %p197 = pneg %p46
        %p198 = pneg %p43
        %p199 = pneg %p67
        %p200 = pneg %p64
        %p201 = pneg %p93
        %p202 = pneg %p90
        %s203 = sand.u32 %s80, 1
        %s204 = scalar_lea.sflag [#allocation4], %s203
        %s205 = sand.u32 %s80, 1
        %s206 = smul.addr %s205, 128
        %s207 = scalar_lea.vmem [#allocation7], %s206
        %p208 = pneg %p119
        %p209 = pneg %p116
        %s210 = sand.u32 %s106, 1
        %s211 = scalar_lea.sflag [#allocation9], %s210
        %s212 = sand.u32 %s106, 1
        %s213 = smul.addr %s212, 2
        %s214 = scalar_lea.vmem [#allocation8], %s213
        %v216 = vld [vmem:[%s183] sm:$0xf]
        %v217 = vld [vmem:[%s183 + $0x4] sm:$0xf]
        %v218 = vld [vmem:[%s183 + $0xc] sm:$0xf]
        %v219 = vld [vmem:[%s183 + $0x10] sm:$0xf]
        %v220 = vld [vmem:[%s183 + $0x18] sm:$0xf]
        %v221 = vld [vmem:[%s183 + $0x1c] sm:$0xf]
        %v222 = vld [vmem:[%s183 + $0x24] sm:$0xf]
        %v223 = vld [vmem:[%s183 + $0x28] sm:$0xf]
        %v224 = vld [vmem:[%s183 + $0x30] sm:$0xf]
        %v225 = vld [vmem:[%s183 + $0x34] sm:$0xf]
        %v226 = vld [vmem:[%s183 + $0x3c] sm:$0xf]
        %v227 = vld [vmem:[%s183 + $0x40] sm:$0xf]
        %v228 = vld [vmem:[%s183 + $0x48] sm:$0xf]
        %v229 = vld [vmem:[%s183 + $0x4c] sm:$0xf]
        %v230 = vld [vmem:[%s183 + $0x54] sm:$0xf]
        %v231 = vld [vmem:[%s183 + $0x58] sm:$0xf]
        %v232 = vld [vmem:[%s183 + $0x60] sm:$0xf]
        %v233 = vld [vmem:[%s183 + $0x64] sm:$0xf]
        %v234 = vld [vmem:[%s183 + $0x6c] sm:$0xf]
        %v235 = vld [vmem:[%s183 + $0x70] sm:$0xf]
        %v236 = vld [vmem:[%s183 + $0x78] sm:$0xf]
        %v237 = vld [vmem:[%s183 + $0x7c] sm:$0xf]
        %v238 = vld [vmem:[%s183 + $0x84] sm:$0xf]
        %v239 = vld [vmem:[%s183 + $0x88] sm:$0xf]
        %v240 = vld [vmem:[%s183 + $0x90] sm:$0xf]
        %v241 = vld [vmem:[%s183 + $0x94] sm:$0xf]
        %v242 = vld [vmem:[%s183 + $0x9c] sm:$0xf]
        %v243 = vld [vmem:[%s183 + $0xa0] sm:$0xf]
        %v244 = vld [vmem:[%s183 + $0xa8] sm:$0xf]
        %v245 = vld [vmem:[%s183 + $0xac] sm:$0xf]
        %v246 = vld [vmem:[%s183 + $0xb4] sm:$0xf]
        %v247 = vld [vmem:[%s183 + $0xb8] sm:$0xf]
        %v248 = vld [vmem:[%s183 + $0xc0] sm:$0xf]
        %v249 = vld [vmem:[%s183 + $0xc4] sm:$0xf]
        %v250 = vld [vmem:[%s183 + $0xcc] sm:$0xf]
        %v251 = vld [vmem:[%s183 + $0xd0] sm:$0xf]
        %v252 = vld [vmem:[#allocation5] sm:$0xf]
        %v253 = vld [vmem:[#allocation5 + $0x4] sm:$0xf]
        %v254 = vld [vmem:[#allocation5 + $0x8] sm:$0xf]
        %v255 = vld [vmem:[#allocation5 + $0xc] sm:$0xf]
        %v256 = vld [vmem:[#allocation5 + $0x10] sm:$0xf]
        %v257 = vld [vmem:[#allocation5 + $0x14] sm:$0xf]
        %v258 = vld [vmem:[#allocation5 + $0x18] sm:$0xf]
        %v259 = vld [vmem:[#allocation5 + $0x1c] sm:$0xf]
        %v260 = vld [vmem:[#allocation5 + $0x20] sm:$0xf]
        %v261 = vld [vmem:[#allocation5 + $0x24] sm:$0xf]
        %v262 = vld [vmem:[#allocation5 + $0x28] sm:$0xf]
        %v263 = vld [vmem:[#allocation5 + $0x2c] sm:$0xf]
        %v264 = vld [vmem:[#allocation5 + $0x30] sm:$0xf]
        %v265 = vld [vmem:[#allocation5 + $0x34] sm:$0xf]
        %v266 = vld [vmem:[#allocation5 + $0x38] sm:$0xf]
        %v267 = vld [vmem:[#allocation5 + $0x3c] sm:$0xf]
        %v304 = vunpack.c.l.b16 %v216
        %v305 = vunpack.c.l.b16 %v217
        %v306 = vunpack.c.l.b16 %v218
        %v307 = vunpack.c.l.b16 %v219
        %v308 = vunpack.c.l.b16 %v220
        %v309 = vunpack.c.l.b16 %v221
        %v310 = vunpack.c.l.b16 %v222
        %v311 = vunpack.c.l.b16 %v223
        %v312 = vunpack.c.l.b16 %v224
        %v313 = vunpack.c.l.b16 %v225
        %v314 = vunpack.c.l.b16 %v226
        %v315 = vunpack.c.l.b16 %v227
        %v316 = vunpack.c.l.b16 %v228
        %v317 = vunpack.c.l.b16 %v229
        %v318 = vunpack.c.l.b16 %v230
        %v319 = vunpack.c.l.b16 %v231
        %v320 = vunpack.c.l.b16 %v232
        %v321 = vunpack.c.l.b16 %v233
        %v322 = vunpack.c.l.b16 %v234
        %v323 = vunpack.c.l.b16 %v235
        %v324 = vunpack.c.l.b16 %v236
        %v325 = vunpack.c.l.b16 %v237
        %v326 = vunpack.c.l.b16 %v238
        %v327 = vunpack.c.l.b16 %v239
        %v328 = vunpack.c.l.b16 %v240
        %v329 = vunpack.c.l.b16 %v241
        %v330 = vunpack.c.l.b16 %v242
        %v331 = vunpack.c.l.b16 %v243
        %v332 = vunpack.c.l.b16 %v244
        %v333 = vunpack.c.l.b16 %v245
        %v334 = vunpack.c.l.b16 %v246
        %v335 = vunpack.c.l.b16 %v247
        %v336 = vunpack.c.l.b16 %v248
        %v337 = vunpack.c.l.b16 %v249
        %v338 = vunpack.c.l.b16 %v250
        %v339 = vunpack.c.l.b16 %v251
        %v340 = vpack.c.b16 %v305, %v304
        %v341 = vpack.c.b16 %v307, %v306
        %v342 = vpack.c.b16 %v309, %v308
        %v343 = vpack.c.b16 %v311, %v310
        %v344 = vpack.c.b16 %v313, %v312
        %v345 = vpack.c.b16 %v315, %v314
        %v346 = vpack.c.b16 %v317, %v316
        %v347 = vpack.c.b16 %v319, %v318
        %v348 = vpack.c.b16 %v321, %v320
        %v349 = vpack.c.b16 %v323, %v322
        %v350 = vpack.c.b16 %v325, %v324
        %v351 = vpack.c.b16 %v327, %v326
        %v352 = vpack.c.b16 %v329, %v328
        %v353 = vpack.c.b16 %v331, %v330
        %v354 = vpack.c.b16 %v333, %v332
        %v355 = vpack.c.b16 %v335, %v334
        %v356 = vpack.c.b16 %v337, %v336
        %v357 = vpack.c.b16 %v339, %v338
        %v392 = vunpack.c.l.b16 %v252
        %v393 = vunpack.c.l.b16 %v253
        %v394 = vunpack.c.l.b16 %v254
        %v395 = vunpack.c.l.b16 %v255
        %v396 = vunpack.c.l.b16 %v256
        %v397 = vunpack.c.l.b16 %v257
        %v398 = vunpack.c.l.b16 %v258
        %v399 = vunpack.c.l.b16 %v259
        %v400 = vunpack.c.l.b16 %v260
        %v401 = vunpack.c.l.b16 %v261
        %v402 = vunpack.c.l.b16 %v262
        %v403 = vunpack.c.l.b16 %v263
        %v404 = vunpack.c.l.b16 %v264
        %v405 = vunpack.c.l.b16 %v265
        %v406 = vunpack.c.l.b16 %v266
        %v407 = vunpack.c.l.b16 %v267
        %v408 = vpack.c.b16 %v393, %v392
        %v409 = vpack.c.b16 %v395, %v394
        %v410 = vpack.c.b16 %v397, %v396
        %v411 = vpack.c.b16 %v399, %v398
        %v412 = vpack.c.b16 %v401, %v400
        %v413 = vpack.c.b16 %v403, %v402
        %v414 = vpack.c.b16 %v405, %v404
        %v415 = vpack.c.b16 %v407, %v406
        %424 = vmatprep.subr.bf16.mxu0 0
        %425 = vmatpush1.bf16.msra.mxu0 %v408
        %426 = vmatprep.subr.bf16.mxu0 0
        %427 = vmatpush1.bf16.msra.mxu0 %v409
        %428 = vmatprep.subr.bf16.mxu0 0
        %429 = vmatpush1.bf16.msra.mxu0 %v410
        %430 = vmatprep.subr.bf16.mxu0 0
        %431 = vmatpush1.bf16.msra.mxu0 %v411
        %432 = vmatprep.subr.bf16.mxu0 0
        %433 = vmatpush1.bf16.msra.mxu0 %v412
        %434 = vmatprep.subr.bf16.mxu0 0
        %435 = vmatpush1.bf16.msra.mxu0 %v413
        %436 = vmatprep.subr.bf16.mxu0 0
        %437 = vmatpush1.bf16.msra.mxu0 %v414
        %438 = vmatprep.subr.bf16.mxu0 0
        %439 = vmatpush1.bf16.msra.mxu0 %v415
        %440 = vmatprep.subr.bf16.mxu0 0
        %441 = vmatpush1.bf16.msra.mxu0 0
        %442 = vmatprep.subr.bf16.mxu0 0
        %443 = vmatpush1.bf16.msra.mxu0 0
        %444 = vmatprep.subr.bf16.mxu0 0
        %445 = vmatpush1.bf16.msra.mxu0 0
        %446 = vmatprep.subr.bf16.mxu0 0
        %447 = vmatpush1.bf16.msra.mxu0 0
        %448 = vmatprep.subr.bf16.mxu0 0
        %449 = vmatpush1.bf16.msra.mxu0 0
        %450 = vmatprep.subr.bf16.mxu0 0
        %451 = vmatpush1.bf16.msra.mxu0 0
        %452 = vmatprep.subr.bf16.mxu0 0
        %453 = vmatpush1.bf16.msra.mxu0 0
        %454 = vmatprep.subr.bf16.mxu0 0
        %455 = vmatpush1.bf16.msra.mxu0 0
        %456 = vmatprep.mubr.bf16.mxu0 0
        %457 = vmatmul.mubr.bf16.gmra.mrb[0].mxu0 %v340
        %v458 = vpop.f32.mrb[0].mxu0
        %v459 = vadd.f32 0.0, %v458
        %v460 = vpop.f32.mrb[0].mxu0
        %v461 = vpop.f32.mrb[0].mxu0
        %v462 = vadd.f32 0.0, %v461
        %v463 = vpop.f32.mrb[0].mxu0
        %464 = vmatprep.mubr.bf16.mxu0 0
        %465 = vmatmul.mubr.bf16.gmra.mrb[0].mxu0 %v341
        %v466 = vpop.f32.mrb[0].mxu0
        %v467 = vadd.f32 0.0, %v466
        %v468 = vpop.f32.mrb[0].mxu0
        %v469 = vpop.f32.mrb[0].mxu0
        %v470 = vadd.f32 0.0, %v469
        %v471 = vpop.f32.mrb[0].mxu0
        %472 = vmatprep.mubr.bf16.mxu0 0
        %473 = vmatmul.mubr.bf16.gmra.mrb[0].mxu0 %v342
        %v474 = vpop.f32.mrb[0].mxu0
        %v475 = vadd.f32 0.0, %v474
        %v476 = vpop.f32.mrb[0].mxu0
        %v477 = vpop.f32.mrb[0].mxu0
        %v478 = vadd.f32 0.0, %v477
        %v479 = vpop.f32.mrb[0].mxu0
        %480 = vmatprep.mubr.bf16.mxu0 0
        %481 = vmatmul.mubr.bf16.gmra.mrb[0].mxu0 %v343
        %v482 = vpop.f32.mrb[0].mxu0
        %v483 = vadd.f32 0.0, %v482
        %v484 = vpop.f32.mrb[0].mxu0
        %v485 = vpop.f32.mrb[0].mxu0
        %v486 = vadd.f32 0.0, %v485
        %v487 = vpop.f32.mrb[0].mxu0
        %488 = vmatprep.mubr.bf16.mxu0 0
        %489 = vmatmul.mubr.bf16.gmra.mrb[0].mxu0 %v344
        %v490 = vpop.f32.mrb[0].mxu0
        %v491 = vadd.f32 0.0, %v490
        %v492 = vpop.f32.mrb[0].mxu0
        %v493 = vpop.f32.mrb[0].mxu0
        %v494 = vadd.f32 0.0, %v493
        %v495 = vpop.f32.mrb[0].mxu0
        %496 = vmatprep.mubr.bf16.mxu0 0
        %497 = vmatmul.mubr.bf16.gmra.mrb[0].mxu0 %v345
        %v498 = vpop.f32.mrb[0].mxu0
        %v499 = vadd.f32 0.0, %v498
        %v500 = vpop.f32.mrb[0].mxu0
        %v501 = vpop.f32.mrb[0].mxu0
        %v502 = vadd.f32 0.0, %v501
        %v503 = vpop.f32.mrb[0].mxu0
        %504 = vmatprep.mubr.bf16.mxu0 0
        %505 = vmatmul.mubr.bf16.gmra.mrb[0].mxu0 %v346
        %v506 = vpop.f32.mrb[0].mxu0
        %v507 = vadd.f32 0.0, %v506
        %v508 = vpop.f32.mrb[0].mxu0
        %v509 = vpop.f32.mrb[0].mxu0
        %v510 = vadd.f32 0.0, %v509
        %v511 = vpop.f32.mrb[0].mxu0
        %512 = vmatprep.mubr.bf16.mxu0 0
        %513 = vmatmul.mubr.bf16.gmra.mrb[0].mxu0 %v347
        %v514 = vpop.f32.mrb[0].mxu0
        %v515 = vadd.f32 0.0, %v514
        %v516 = vpop.f32.mrb[0].mxu0
        %v517 = vpop.f32.mrb[0].mxu0
        %v518 = vadd.f32 0.0, %v517
        %v519 = vpop.f32.mrb[0].mxu0
        %520 = vmatprep.mubr.bf16.mxu0 0
        %521 = vmatmul.mubr.bf16.gmra.mrb[0].mxu0 %v348
        %v522 = vpop.f32.mrb[0].mxu0
        %v523 = vadd.f32 0.0, %v522
        %v524 = vpop.f32.mrb[0].mxu0
        %v525 = vpop.f32.mrb[0].mxu0
        %v526 = vadd.f32 0.0, %v525
        %v527 = vpop.f32.mrb[0].mxu0
        %528 = vmatprep.mubr.bf16.mxu0 0
        %529 = vmatmul.mubr.bf16.gmra.mrb[0].mxu0 %v349
        %v530 = vpop.f32.mrb[0].mxu0
        %v531 = vadd.f32 0.0, %v530
        %v532 = vpop.f32.mrb[0].mxu0
        %v533 = vpop.f32.mrb[0].mxu0
        %v534 = vadd.f32 0.0, %v533
        %v535 = vpop.f32.mrb[0].mxu0
        %536 = vmatprep.mubr.bf16.mxu0 0
        %537 = vmatmul.mubr.bf16.gmra.mrb[0].mxu0 %v350
        %v538 = vpop.f32.mrb[0].mxu0
        %v539 = vadd.f32 0.0, %v538
        %v540 = vpop.f32.mrb[0].mxu0
        %v541 = vpop.f32.mrb[0].mxu0
        %v542 = vadd.f32 0.0, %v541
        %v543 = vpop.f32.mrb[0].mxu0
        %544 = vmatprep.mubr.bf16.mxu0 0
        %545 = vmatmul.mubr.bf16.gmra.mrb[0].mxu0 %v351
        %v546 = vpop.f32.mrb[0].mxu0
        %v547 = vadd.f32 0.0, %v546
        %v548 = vpop.f32.mrb[0].mxu0
        %v549 = vpop.f32.mrb[0].mxu0
        %v550 = vadd.f32 0.0, %v549
        %v551 = vpop.f32.mrb[0].mxu0
        %552 = vmatprep.mubr.bf16.mxu0 0
        %553 = vmatmul.mubr.bf16.gmra.mrb[0].mxu0 %v352
        %v554 = vpop.f32.mrb[0].mxu0
        %v555 = vadd.f32 0.0, %v554
        %v556 = vpop.f32.mrb[0].mxu0
        %v557 = vpop.f32.mrb[0].mxu0
        %v558 = vadd.f32 0.0, %v557
        %v559 = vpop.f32.mrb[0].mxu0
        %560 = vmatprep.mubr.bf16.mxu0 0
        %561 = vmatmul.mubr.bf16.gmra.mrb[0].mxu0 %v353
        %v562 = vpop.f32.mrb[0].mxu0
        %v563 = vadd.f32 0.0, %v562
        %v564 = vpop.f32.mrb[0].mxu0
        %v565 = vpop.f32.mrb[0].mxu0
        %v566 = vadd.f32 0.0, %v565
        %v567 = vpop.f32.mrb[0].mxu0
        %568 = vmatprep.mubr.bf16.mxu0 0
        %569 = vmatmul.mubr.bf16.gmra.mrb[0].mxu0 %v354
        %v570 = vpop.f32.mrb[0].mxu0
        %v571 = vadd.f32 0.0, %v570
        %v572 = vpop.f32.mrb[0].mxu0
        %v573 = vpop.f32.mrb[0].mxu0
        %v574 = vadd.f32 0.0, %v573
        %v575 = vpop.f32.mrb[0].mxu0
        %576 = vmatprep.mubr.bf16.mxu0 0
        %577 = vmatmul.mubr.bf16.gmra.mrb[0].mxu0 %v355
        %v578 = vpop.f32.mrb[0].mxu0
        %v579 = vadd.f32 0.0, %v578
        %v580 = vpop.f32.mrb[0].mxu0
        %v581 = vpop.f32.mrb[0].mxu0
        %v582 = vadd.f32 0.0, %v581
        %v583 = vpop.f32.mrb[0].mxu0
        %584 = vmatprep.mubr.bf16.mxu0 0
        %585 = vmatmul.mubr.bf16.gmra.mrb[0].mxu0 %v356
        %v586 = vpop.f32.mrb[0].mxu0
        %v587 = vpop.f32.mrb[0].mxu0
        %v588 = vpop.f32.mrb[0].mxu0
        %v589 = vpop.f32.mrb[0].mxu0
        %590 = vmatprep.mubr.bf16.mxu0 0
        %591 = vmatmul.mubr.bf16.gmra.mrb[0].mxu0 %v357
        %v592 = vpop.f32.mrb[0].mxu0
        %v593 = vpop.f32.mrb[0].mxu0
        %v594 = vpop.f32.mrb[0].mxu0
        %v595 = vpop.f32.mrb[0].mxu0
        %596 = vdwg.mxu0
        %v597 = vadd.f32 %v459, 0.0
        %v598 = vadd.f32 %v462, 0.0
        %v599 = vadd.f32 %v467, 0.0
        %v600 = vadd.f32 %v470, 0.0
        %v601 = vadd.f32 %v475, 0.0
        %v602 = vadd.f32 %v478, 0.0
        %v603 = vadd.f32 %v483, 0.0
        %v604 = vadd.f32 %v486, 0.0
        %v605 = vadd.f32 %v491, 0.0
        %v606 = vadd.f32 %v494, 0.0
        %v607 = vadd.f32 %v499, 0.0
        %v608 = vadd.f32 %v502, 0.0
        %v609 = vadd.f32 %v507, 0.0
        %v610 = vadd.f32 %v510, 0.0
        %v611 = vadd.f32 %v515, 0.0
        %v612 = vadd.f32 %v518, 0.0
        %v613 = vadd.f32 %v523, 0.0
        %v614 = vadd.f32 %v526, 0.0
        %v615 = vadd.f32 %v531, 0.0
        %v616 = vadd.f32 %v534, 0.0
        %v617 = vadd.f32 %v539, 0.0
        %v618 = vadd.f32 %v542, 0.0
        %v619 = vadd.f32 %v547, 0.0
        %v620 = vadd.f32 %v550, 0.0
        %v621 = vadd.f32 %v555, 0.0
        %v622 = vadd.f32 %v558, 0.0
        %v623 = vadd.f32 %v563, 0.0
        %v624 = vadd.f32 %v566, 0.0
        %v625 = vadd.f32 %v571, 0.0
        %v626 = vadd.f32 %v574, 0.0
        %v627 = vadd.f32 %v579, 0.0
        %v628 = vadd.f32 %v582, 0.0
        %s629 = scalar_lea.vmem [#allocation5], 192
        %v630 = vld [vmem:[%s629] sm:$0xf]
        %v631 = vld [vmem:[%s629 + $0x4] sm:$0xf]
        %v632 = vld [vmem:[%s629 + $0x8] sm:$0xf]
        %v633 = vld [vmem:[%s629 + $0xc] sm:$0xf]
        %v634 = vld [vmem:[%s629 + $0x10] sm:$0xf]
        %v635 = vld [vmem:[%s629 + $0x14] sm:$0xf]
        %v636 = vld [vmem:[%s629 + $0x18] sm:$0xf]
        %v637 = vld [vmem:[%s629 + $0x1c] sm:$0xf]
        %v638 = vld [vmem:[%s629 + $0x20] sm:$0xf]
        %v639 = vld [vmem:[%s629 + $0x24] sm:$0xf]
        %v640 = vld [vmem:[%s629 + $0x28] sm:$0xf]
        %v641 = vld [vmem:[%s629 + $0x2c] sm:$0xf]
        %v642 = vld [vmem:[%s629 + $0x30] sm:$0xf]
        %v643 = vld [vmem:[%s629 + $0x34] sm:$0xf]
        %v644 = vld [vmem:[%s629 + $0x38] sm:$0xf]
        %v645 = vld [vmem:[%s629 + $0x3c] sm:$0xf]
        %v662 = vunpack.c.l.b16 %v630
        %v663 = vunpack.c.l.b16 %v631
        %v664 = vunpack.c.l.b16 %v632
        %v665 = vunpack.c.l.b16 %v633
        %v666 = vunpack.c.l.b16 %v634
        %v667 = vunpack.c.l.b16 %v635
        %v668 = vunpack.c.l.b16 %v636
        %v669 = vunpack.c.l.b16 %v637
        %v670 = vunpack.c.l.b16 %v638
        %v671 = vunpack.c.l.b16 %v639
        %v672 = vunpack.c.l.b16 %v640
        %v673 = vunpack.c.l.b16 %v641
        %v674 = vunpack.c.l.b16 %v642
        %v675 = vunpack.c.l.b16 %v643
        %v676 = vunpack.c.l.b16 %v644
        %v677 = vunpack.c.l.b16 %v645
        %v678 = vpack.c.b16 %v663, %v662
        %v679 = vpack.c.b16 %v665, %v664
        %v680 = vpack.c.b16 %v667, %v666
        %v681 = vpack.c.b16 %v669, %v668
        %v682 = vpack.c.b16 %v671, %v670
        %v683 = vpack.c.b16 %v673, %v672
        %v684 = vpack.c.b16 %v675, %v674
        %v685 = vpack.c.b16 %v677, %v676
        %694 = vmatprep.subr.bf16.mxu0 0
        %695 = vmatpush1.bf16.msra.mxu0 %v678
        %696 = vmatprep.subr.bf16.mxu0 0
        %697 = vmatpush1.bf16.msra.mxu0 %v679
        %698 = vmatprep.subr.bf16.mxu0 0
        %699 = vmatpush1.bf16.msra.mxu0 %v680
        %700 = vmatprep.subr.bf16.mxu0 0
        %701 = vmatpush1.bf16.msra.mxu0 %v681
        %702 = vmatprep.subr.bf16.mxu0 0
        %703 = vmatpush1.bf16.msra.mxu0 %v682
        %704 = vmatprep.subr.bf16.mxu0 0
        %705 = vmatpush1.bf16.msra.mxu0 %v683
        %706 = vmatprep.subr.bf16.mxu0 0
        %707 = vmatpush1.bf16.msra.mxu0 %v684
        %708 = vmatprep.subr.bf16.mxu0 0
        %709 = vmatpush1.bf16.msra.mxu0 %v685
        %710 = vmatprep.subr.bf16.mxu0 0
        %711 = vmatpush1.bf16.msra.mxu0 0
        %712 = vmatprep.subr.bf16.mxu0 0
        %713 = vmatpush1.bf16.msra.mxu0 0
        %714 = vmatprep.subr.bf16.mxu0 0
        %715 = vmatpush1.bf16.msra.mxu0 0
        %716 = vmatprep.subr.bf16.mxu0 0
        %717 = vmatpush1.bf16.msra.mxu0 0
        %718 = vmatprep.subr.bf16.mxu0 0
        %719 = vmatpush1.bf16.msra.mxu0 0
        %720 = vmatprep.subr.bf16.mxu0 0
        %721 = vmatpush1.bf16.msra.mxu0 0
        %722 = vmatprep.subr.bf16.mxu0 0
        %723 = vmatpush1.bf16.msra.mxu0 0
        %724 = vmatprep.subr.bf16.mxu0 0
        %725 = vmatpush1.bf16.msra.mxu0 0
        %726 = vmatprep.mubr.bf16.mxu0 0
        %727 = vmatmul.mubr.bf16.gmra.mrb[0].mxu0 %v340
        %v728 = vpop.f32.mrb[0].mxu0
        %v729 = vpop.f32.mrb[0].mxu0
        %v730 = vpop.f32.mrb[0].mxu0
        %v731 = vpop.f32.mrb[0].mxu0
        %732 = vmatprep.mubr.bf16.mxu0 0
        %733 = vmatmul.mubr.bf16.gmra.mrb[0].mxu0 %v341
        %v734 = vpop.f32.mrb[0].mxu0
        %v735 = vadd.f32 0.0, %v734
        %v736 = vpop.f32.mrb[0].mxu0
        %v737 = vpop.f32.mrb[0].mxu0
        %v738 = vadd.f32 0.0, %v737
        %v739 = vpop.f32.mrb[0].mxu0
        %740 = vmatprep.mubr.bf16.mxu0 0
        %741 = vmatmul.mubr.bf16.gmra.mrb[0].mxu0 %v342
        %v742 = vpop.f32.mrb[0].mxu0
        %v743 = vadd.f32 0.0, %v742
        %v744 = vpop.f32.mrb[0].mxu0
        %v745 = vpop.f32.mrb[0].mxu0
        %v746 = vadd.f32 0.0, %v745
        %v747 = vpop.f32.mrb[0].mxu0
        %748 = vmatprep.mubr.bf16.mxu0 0
        %749 = vmatmul.mubr.bf16.gmra.mrb[0].mxu0 %v343
        %v750 = vpop.f32.mrb[0].mxu0
        %v751 = vadd.f32 0.0, %v750
        %v752 = vpop.f32.mrb[0].mxu0
        %v753 = vpop.f32.mrb[0].mxu0
        %v754 = vadd.f32 0.0, %v753
        %v755 = vpop.f32.mrb[0].mxu0
        %756 = vmatprep.mubr.bf16.mxu0 0
        %757 = vmatmul.mubr.bf16.gmra.mrb[0].mxu0 %v344
        %v758 = vpop.f32.mrb[0].mxu0
        %v759 = vadd.f32 0.0, %v758
        %v760 = vpop.f32.mrb[0].mxu0
        %v761 = vpop.f32.mrb[0].mxu0
        %v762 = vadd.f32 0.0, %v761
        %v763 = vpop.f32.mrb[0].mxu0
        %764 = vmatprep.mubr.bf16.mxu0 0
        %765 = vmatmul.mubr.bf16.gmra.mrb[0].mxu0 %v345
        %v766 = vpop.f32.mrb[0].mxu0
        %v767 = vadd.f32 0.0, %v766
        %v768 = vpop.f32.mrb[0].mxu0
        %v769 = vpop.f32.mrb[0].mxu0
        %v770 = vadd.f32 0.0, %v769
        %v771 = vpop.f32.mrb[0].mxu0
        %772 = vmatprep.mubr.bf16.mxu0 0
        %773 = vmatmul.mubr.bf16.gmra.mrb[0].mxu0 %v346
        %v774 = vpop.f32.mrb[0].mxu0
        %v775 = vadd.f32 0.0, %v774
        %v776 = vpop.f32.mrb[0].mxu0
        %v777 = vpop.f32.mrb[0].mxu0
        %v778 = vadd.f32 0.0, %v777
        %v779 = vpop.f32.mrb[0].mxu0
        %780 = vmatprep.mubr.bf16.mxu0 0
        %781 = vmatmul.mubr.bf16.gmra.mrb[0].mxu0 %v347
        %v782 = vpop.f32.mrb[0].mxu0
        %v783 = vadd.f32 0.0, %v782
        %v784 = vpop.f32.mrb[0].mxu0
        %v785 = vpop.f32.mrb[0].mxu0
        %v786 = vadd.f32 0.0, %v785
        %v787 = vpop.f32.mrb[0].mxu0
        %788 = vmatprep.mubr.bf16.mxu0 0
        %789 = vmatmul.mubr.bf16.gmra.mrb[0].mxu0 %v348
        %v790 = vpop.f32.mrb[0].mxu0
        %v791 = vadd.f32 0.0, %v790
        %v792 = vpop.f32.mrb[0].mxu0
        %v793 = vpop.f32.mrb[0].mxu0
        %v794 = vadd.f32 0.0, %v793
        %v795 = vpop.f32.mrb[0].mxu0
        %796 = vmatprep.mubr.bf16.mxu0 0
        %797 = vmatmul.mubr.bf16.gmra.mrb[0].mxu0 %v349
        %v798 = vpop.f32.mrb[0].mxu0
        %v799 = vadd.f32 0.0, %v798
        %v800 = vpop.f32.mrb[0].mxu0
        %v801 = vpop.f32.mrb[0].mxu0
        %v802 = vadd.f32 0.0, %v801
        %v803 = vpop.f32.mrb[0].mxu0
        %804 = vmatprep.mubr.bf16.mxu0 0
        %805 = vmatmul.mubr.bf16.gmra.mrb[0].mxu0 %v350
        %v806 = vpop.f32.mrb[0].mxu0
        %v807 = vadd.f32 0.0, %v806
        %v808 = vpop.f32.mrb[0].mxu0
        %v809 = vpop.f32.mrb[0].mxu0
        %v810 = vadd.f32 0.0, %v809
        %v811 = vpop.f32.mrb[0].mxu0
        %812 = vmatprep.mubr.bf16.mxu0 0
        %813 = vmatmul.mubr.bf16.gmra.mrb[0].mxu0 %v351
        %v814 = vpop.f32.mrb[0].mxu0
        %v815 = vadd.f32 0.0, %v814
        %v816 = vpop.f32.mrb[0].mxu0
        %v817 = vpop.f32.mrb[0].mxu0
        %v818 = vadd.f32 0.0, %v817
        %v819 = vpop.f32.mrb[0].mxu0
        %820 = vmatprep.mubr.bf16.mxu0 0
        %821 = vmatmul.mubr.bf16.gmra.mrb[0].mxu0 %v352
        %v822 = vpop.f32.mrb[0].mxu0
        %v823 = vadd.f32 0.0, %v822
        %v824 = vpop.f32.mrb[0].mxu0
        %v825 = vpop.f32.mrb[0].mxu0
        %v826 = vadd.f32 0.0, %v825
        %v827 = vpop.f32.mrb[0].mxu0
        %828 = vmatprep.mubr.bf16.mxu0 0
        %829 = vmatmul.mubr.bf16.gmra.mrb[0].mxu0 %v353
        %v830 = vpop.f32.mrb[0].mxu0
        %v831 = vadd.f32 0.0, %v830
        %v832 = vpop.f32.mrb[0].mxu0
        %v833 = vpop.f32.mrb[0].mxu0
        %v834 = vadd.f32 0.0, %v833
        %v835 = vpop.f32.mrb[0].mxu0
        %836 = vmatprep.mubr.bf16.mxu0 0
        %837 = vmatmul.mubr.bf16.gmra.mrb[0].mxu0 %v354
        %v838 = vpop.f32.mrb[0].mxu0
        %v839 = vadd.f32 0.0, %v838
        %v840 = vpop.f32.mrb[0].mxu0
        %v841 = vpop.f32.mrb[0].mxu0
        %v842 = vadd.f32 0.0, %v841
        %v843 = vpop.f32.mrb[0].mxu0
        %844 = vmatprep.mubr.bf16.mxu0 0
        %845 = vmatmul.mubr.bf16.gmra.mrb[0].mxu0 %v355
        %v846 = vpop.f32.mrb[0].mxu0
        %v847 = vadd.f32 0.0, %v846
        %v848 = vpop.f32.mrb[0].mxu0
        %v849 = vpop.f32.mrb[0].mxu0
        %v850 = vadd.f32 0.0, %v849
        %v851 = vpop.f32.mrb[0].mxu0
        %852 = vmatprep.mubr.bf16.mxu0 0
        %853 = vmatmul.mubr.bf16.gmra.mrb[0].mxu0 %v356
        %v854 = vpop.f32.mrb[0].mxu0
        %v855 = vadd.f32 0.0, %v854
        %v856 = vpop.f32.mrb[0].mxu0
        %v857 = vpop.f32.mrb[0].mxu0
        %v858 = vadd.f32 0.0, %v857
        %v859 = vpop.f32.mrb[0].mxu0
        %860 = vmatprep.mubr.bf16.mxu0 0
        %861 = vmatmul.mubr.bf16.gmra.mrb[0].mxu0 %v357
        %v862 = vpop.f32.mrb[0].mxu0
        %v863 = vpop.f32.mrb[0].mxu0
        %v864 = vpop.f32.mrb[0].mxu0
        %v865 = vpop.f32.mrb[0].mxu0
        %866 = vdwg.mxu0
        %v867 = vadd.f32 %v597, %v735
        %v868 = vadd.f32 %v598, %v738
        %v869 = vadd.f32 %v599, %v743
        %v870 = vadd.f32 %v600, %v746
        %v871 = vadd.f32 %v601, %v751
        %v872 = vadd.f32 %v602, %v754
        %v873 = vadd.f32 %v603, %v759
        %v874 = vadd.f32 %v604, %v762
        %v875 = vadd.f32 %v605, %v767
        %v876 = vadd.f32 %v606, %v770
        %v877 = vadd.f32 %v607, %v775
        %v878 = vadd.f32 %v608, %v778
        %v879 = vadd.f32 %v609, %v783
        %v880 = vadd.f32 %v610, %v786
        %v881 = vadd.f32 %v611, %v791
        %v882 = vadd.f32 %v612, %v794
        %v883 = vadd.f32 %v613, %v799
        %v884 = vadd.f32 %v614, %v802
        %v885 = vadd.f32 %v615, %v807
        %v886 = vadd.f32 %v616, %v810
        %v887 = vadd.f32 %v617, %v815
        %v888 = vadd.f32 %v618, %v818
        %v889 = vadd.f32 %v619, %v823
        %v890 = vadd.f32 %v620, %v826
        %v891 = vadd.f32 %v621, %v831
        %v892 = vadd.f32 %v622, %v834
        %v893 = vadd.f32 %v623, %v839
        %v894 = vadd.f32 %v624, %v842
        %v895 = vadd.f32 %v625, %v847
        %v896 = vadd.f32 %v626, %v850
        %v897 = vadd.f32 %v627, %v855
        %v898 = vadd.f32 %v628, %v858
        %s899 = scalar_lea.vmem [#allocation5], 384
        %v900 = vld [vmem:[%s899] sm:$0xf]
        %v901 = vld [vmem:[%s899 + $0x4] sm:$0xf]
        %v902 = vld [vmem:[%s899 + $0x8] sm:$0xf]
        %v903 = vld [vmem:[%s899 + $0xc] sm:$0xf]
        %v904 = vld [vmem:[%s899 + $0x10] sm:$0xf]
        %v905 = vld [vmem:[%s899 + $0x14] sm:$0xf]
        %v906 = vld [vmem:[%s899 + $0x18] sm:$0xf]
        %v907 = vld [vmem:[%s899 + $0x1c] sm:$0xf]
        %v908 = vld [vmem:[%s899 + $0x20] sm:$0xf]
        %v909 = vld [vmem:[%s899 + $0x24] sm:$0xf]
        %v910 = vld [vmem:[%s899 + $0x28] sm:$0xf]
        %v911 = vld [vmem:[%s899 + $0x2c] sm:$0xf]
        %v912 = vld [vmem:[%s899 + $0x30] sm:$0xf]
        %v913 = vld [vmem:[%s899 + $0x34] sm:$0xf]
        %v914 = vld [vmem:[%s899 + $0x38] sm:$0xf]
        %v915 = vld [vmem:[%s899 + $0x3c] sm:$0xf]
        %v932 = vunpack.c.l.b16 %v900
        %v933 = vunpack.c.l.b16 %v901
        %v934 = vunpack.c.l.b16 %v902
        %v935 = vunpack.c.l.b16 %v903
        %v936 = vunpack.c.l.b16 %v904
        %v937 = vunpack.c.l.b16 %v905
        %v938 = vunpack.c.l.b16 %v906
        %v939 = vunpack.c.l.b16 %v907
        %v940 = vunpack.c.l.b16 %v908
        %v941 = vunpack.c.l.b16 %v909
        %v942 = vunpack.c.l.b16 %v910
        %v943 = vunpack.c.l.b16 %v911
        %v944 = vunpack.c.l.b16 %v912
        %v945 = vunpack.c.l.b16 %v913
        %v946 = vunpack.c.l.b16 %v914
        %v947 = vunpack.c.l.b16 %v915
        %v948 = vpack.c.b16 %v933, %v932
        %v949 = vpack.c.b16 %v935, %v934
        %v950 = vpack.c.b16 %v937, %v936
        %v951 = vpack.c.b16 %v939, %v938
        %v952 = vpack.c.b16 %v941, %v940
        %v953 = vpack.c.b16 %v943, %v942
        %v954 = vpack.c.b16 %v945, %v944
        %v955 = vpack.c.b16 %v947, %v946
        %964 = vmatprep.subr.bf16.mxu0 0
        %965 = vmatpush1.bf16.msra.mxu0 %v948
        %966 = vmatprep.subr.bf16.mxu0 0
        %967 = vmatpush1.bf16.msra.mxu0 %v949
        %968 = vmatprep.subr.bf16.mxu0 0
        %969 = vmatpush1.bf16.msra.mxu0 %v950
        %970 = vmatprep.subr.bf16.mxu0 0
        %971 = vmatpush1.bf16.msra.mxu0 %v951
        %972 = vmatprep.subr.bf16.mxu0 0
        %973 = vmatpush1.bf16.msra.mxu0 %v952
        %974 = vmatprep.subr.bf16.mxu0 0
        %975 = vmatpush1.bf16.msra.mxu0 %v953
        %976 = vmatprep.subr.bf16.mxu0 0
        %977 = vmatpush1.bf16.msra.mxu0 %v954
        %978 = vmatprep.subr.bf16.mxu0 0
        %979 = vmatpush1.bf16.msra.mxu0 %v955
        %980 = vmatprep.subr.bf16.mxu0 0
        %981 = vmatpush1.bf16.msra.mxu0 0
        %982 = vmatprep.subr.bf16.mxu0 0
        %983 = vmatpush1.bf16.msra.mxu0 0
        %984 = vmatprep.subr.bf16.mxu0 0
        %985 = vmatpush1.bf16.msra.mxu0 0
        %986 = vmatprep.subr.bf16.mxu0 0
        %987 = vmatpush1.bf16.msra.mxu0 0
        %988 = vmatprep.subr.bf16.mxu0 0
        %989 = vmatpush1.bf16.msra.mxu0 0
        %990 = vmatprep.subr.bf16.mxu0 0
        %991 = vmatpush1.bf16.msra.mxu0 0
        %992 = vmatprep.subr.bf16.mxu0 0
        %993 = vmatpush1.bf16.msra.mxu0 0
        %994 = vmatprep.subr.bf16.mxu0 0
        %995 = vmatpush1.bf16.msra.mxu0 0
        %996 = vmatprep.mubr.bf16.mxu0 0
        %997 = vmatmul.mubr.bf16.gmra.mrb[0].mxu0 %v340
        %v998 = vpop.f32.mrb[0].mxu0
        %v999 = vpop.f32.mrb[0].mxu0
        %v1000 = vpop.f32.mrb[0].mxu0
        %v1001 = vpop.f32.mrb[0].mxu0
        %1002 = vmatprep.mubr.bf16.mxu0 0
        %1003 = vmatmul.mubr.bf16.gmra.mrb[0].mxu0 %v341
        %v1004 = vpop.f32.mrb[0].mxu0
        %v1005 = vpop.f32.mrb[0].mxu0
        %v1006 = vpop.f32.mrb[0].mxu0
        %v1007 = vpop.f32.mrb[0].mxu0
        %1008 = vmatprep.mubr.bf16.mxu0 0
        %1009 = vmatmul.mubr.bf16.gmra.mrb[0].mxu0 %v342
        %v1010 = vpop.f32.mrb[0].mxu0
        %v1011 = vadd.f32 0.0, %v1010
        %v1012 = vpop.f32.mrb[0].mxu0
        %v1013 = vpop.f32.mrb[0].mxu0
        %v1014 = vadd.f32 0.0, %v1013
        %v1015 = vpop.f32.mrb[0].mxu0
        %1016 = vmatprep.mubr.bf16.mxu0 0
        %1017 = vmatmul.mubr.bf16.gmra.mrb[0].mxu0 %v343
        %v1018 = vpop.f32.mrb[0].mxu0
        %v1019 = vadd.f32 0.0, %v1018
        %v1020 = vpop.f32.mrb[0].mxu0
        %v1021 = vpop.f32.mrb[0].mxu0
        %v1022 = vadd.f32 0.0, %v1021
        %v1023 = vpop.f32.mrb[0].mxu0
        %1024 = vmatprep.mubr.bf16.mxu0 0
        %1025 = vmatmul.mubr.bf16.gmra.mrb[0].mxu0 %v344
        %v1026 = vpop.f32.mrb[0].mxu0
        %v1027 = vadd.f32 0.0, %v1026
        %v1028 = vpop.f32.mrb[0].mxu0
        %v1029 = vpop.f32.mrb[0].mxu0
        %v1030 = vadd.f32 0.0, %v1029
        %v1031 = vpop.f32.mrb[0].mxu0
        %1032 = vmatprep.mubr.bf16.mxu0 0
        %1033 = vmatmul.mubr.bf16.gmra.mrb[0].mxu0 %v345
        %v1034 = vpop.f32.mrb[0].mxu0
        %v1035 = vadd.f32 0.0, %v1034
        %v1036 = vpop.f32.mrb[0].mxu0
        %v1037 = vpop.f32.mrb[0].mxu0
        %v1038 = vadd.f32 0.0, %v1037
        %v1039 = vpop.f32.mrb[0].mxu0
        %1040 = vmatprep.mubr.bf16.mxu0 0
        %1041 = vmatmul.mubr.bf16.gmra.mrb[0].mxu0 %v346
        %v1042 = vpop.f32.mrb[0].mxu0
        %v1043 = vadd.f32 0.0, %v1042
        %v1044 = vpop.f32.mrb[0].mxu0
        %v1045 = vpop.f32.mrb[0].mxu0
        %v1046 = vadd.f32 0.0, %v1045
        %v1047 = vpop.f32.mrb[0].mxu0
        %1048 = vmatprep.mubr.bf16.mxu0 0
        %1049 = vmatmul.mubr.bf16.gmra.mrb[0].mxu0 %v347
        %v1050 = vpop.f32.mrb[0].mxu0
        %v1051 = vadd.f32 0.0, %v1050
        %v1052 = vpop.f32.mrb[0].mxu0
        %v1053 = vpop.f32.mrb[0].mxu0
        %v1054 = vadd.f32 0.0, %v1053
        %v1055 = vpop.f32.mrb[0].mxu0
        %1056 = vmatprep.mubr.bf16.mxu0 0
        %1057 = vmatmul.mubr.bf16.gmra.mrb[0].mxu0 %v348
        %v1058 = vpop.f32.mrb[0].mxu0
        %v1059 = vadd.f32 0.0, %v1058
        %v1060 = vpop.f32.mrb[0].mxu0
        %v1061 = vpop.f32.mrb[0].mxu0
        %v1062 = vadd.f32 0.0, %v1061
        %v1063 = vpop.f32.mrb[0].mxu0
        %1064 = vmatprep.mubr.bf16.mxu0 0
        %1065 = vmatmul.mubr.bf16.gmra.mrb[0].mxu0 %v349
        %v1066 = vpop.f32.mrb[0].mxu0
        %v1067 = vadd.f32 0.0, %v1066
        %v1068 = vpop.f32.mrb[0].mxu0
        %v1069 = vpop.f32.mrb[0].mxu0
        %v1070 = vadd.f32 0.0, %v1069
        %v1071 = vpop.f32.mrb[0].mxu0
        %1072 = vmatprep.mubr.bf16.mxu0 0
        %1073 = vmatmul.mubr.bf16.gmra.mrb[0].mxu0 %v350
        %v1074 = vpop.f32.mrb[0].mxu0
        %v1075 = vadd.f32 0.0, %v1074
        %v1076 = vpop.f32.mrb[0].mxu0
        %v1077 = vpop.f32.mrb[0].mxu0
        %v1078 = vadd.f32 0.0, %v1077
        %v1079 = vpop.f32.mrb[0].mxu0
        %1080 = vmatprep.mubr.bf16.mxu0 0
        %1081 = vmatmul.mubr.bf16.gmra.mrb[0].mxu0 %v351
        %v1082 = vpop.f32.mrb[0].mxu0
        %v1083 = vadd.f32 0.0, %v1082
        %v1084 = vpop.f32.mrb[0].mxu0
        %v1085 = vpop.f32.mrb[0].mxu0
        %v1086 = vadd.f32 0.0, %v1085
        %v1087 = vpop.f32.mrb[0].mxu0
        %1088 = vmatprep.mubr.bf16.mxu0 0
        %1089 = vmatmul.mubr.bf16.gmra.mrb[0].mxu0 %v352
        %v1090 = vpop.f32.mrb[0].mxu0
        %v1091 = vadd.f32 0.0, %v1090
        %v1092 = vpop.f32.mrb[0].mxu0
        %v1093 = vpop.f32.mrb[0].mxu0
        %v1094 = vadd.f32 0.0, %v1093
        %v1095 = vpop.f32.mrb[0].mxu0
        %1096 = vmatprep.mubr.bf16.mxu0 0
        %1097 = vmatmul.mubr.bf16.gmra.mrb[0].mxu0 %v353
        %v1098 = vpop.f32.mrb[0].mxu0
        %v1099 = vadd.f32 0.0, %v1098
        %v1100 = vpop.f32.mrb[0].mxu0
        %v1101 = vpop.f32.mrb[0].mxu0
        %v1102 = vadd.f32 0.0, %v1101
        %v1103 = vpop.f32.mrb[0].mxu0
        %1104 = vmatprep.mubr.bf16.mxu0 0
        %1105 = vmatmul.mubr.bf16.gmra.mrb[0].mxu0 %v354
        %v1106 = vpop.f32.mrb[0].mxu0
        %v1107 = vadd.f32 0.0, %v1106
        %v1108 = vpop.f32.mrb[0].mxu0
        %v1109 = vpop.f32.mrb[0].mxu0
        %v1110 = vadd.f32 0.0, %v1109
        %v1111 = vpop.f32.mrb[0].mxu0
        %1112 = vmatprep.mubr.bf16.mxu0 0
        %1113 = vmatmul.mubr.bf16.gmra.mrb[0].mxu0 %v355
        %v1114 = vpop.f32.mrb[0].mxu0
        %v1115 = vadd.f32 0.0, %v1114
        %v1116 = vpop.f32.mrb[0].mxu0
        %v1117 = vpop.f32.mrb[0].mxu0
        %v1118 = vadd.f32 0.0, %v1117
        %v1119 = vpop.f32.mrb[0].mxu0
        %1120 = vmatprep.mubr.bf16.mxu0 0
        %1121 = vmatmul.mubr.bf16.gmra.mrb[0].mxu0 %v356
        %v1122 = vpop.f32.mrb[0].mxu0
        %v1123 = vadd.f32 0.0, %v1122
        %v1124 = vpop.f32.mrb[0].mxu0
        %v1125 = vpop.f32.mrb[0].mxu0
        %v1126 = vadd.f32 0.0, %v1125
        %v1127 = vpop.f32.mrb[0].mxu0
        %1128 = vmatprep.mubr.bf16.mxu0 0
        %1129 = vmatmul.mubr.bf16.gmra.mrb[0].mxu0 %v357
        %v1130 = vpop.f32.mrb[0].mxu0
        %v1131 = vadd.f32 0.0, %v1130
        %v1132 = vpop.f32.mrb[0].mxu0
        %v1133 = vpop.f32.mrb[0].mxu0
        %v1134 = vadd.f32 0.0, %v1133
        %v1135 = vpop.f32.mrb[0].mxu0
        %1136 = vdwg.mxu0
        %v1137 = vadd.f32 %v867, %v1011
        %v1138 = vadd.f32 %v868, %v1014
        %v1139 = vadd.f32 %v869, %v1019
        %v1140 = vadd.f32 %v870, %v1022
        %v1141 = vadd.f32 %v871, %v1027
        %v1142 = vadd.f32 %v872, %v1030
        %v1143 = vadd.f32 %v873, %v1035
        %v1144 = vadd.f32 %v874, %v1038
        %v1145 = vadd.f32 %v875, %v1043
        %v1146 = vadd.f32 %v876, %v1046
        %v1147 = vadd.f32 %v877, %v1051
        %v1148 = vadd.f32 %v878, %v1054
        %v1149 = vadd.f32 %v879, %v1059
        %v1150 = vadd.f32 %v880, %v1062
        %v1151 = vadd.f32 %v881, %v1067
        %v1152 = vadd.f32 %v882, %v1070
        %v1153 = vadd.f32 %v883, %v1075
        %v1154 = vadd.f32 %v884, %v1078
        %v1155 = vadd.f32 %v885, %v1083
        %v1156 = vadd.f32 %v886, %v1086
        %v1157 = vadd.f32 %v887, %v1091
        %v1158 = vadd.f32 %v888, %v1094
        %v1159 = vadd.f32 %v889, %v1099
        %v1160 = vadd.f32 %v890, %v1102
        %v1161 = vadd.f32 %v891, %v1107
        %v1162 = vadd.f32 %v892, %v1110
        %v1163 = vadd.f32 %v893, %v1115
        %v1164 = vadd.f32 %v894, %v1118
        %v1165 = vadd.f32 %v895, %v1123
        %v1166 = vadd.f32 %v896, %v1126
        %v1167 = vadd.f32 %v897, %v1131
        %v1168 = vadd.f32 %v898, %v1134
        %v1169 = vld [vmem:[%s183] sm:$0xf]
        %v1170 = vld [vmem:[%s183 + $0x4] sm:$0xf]
        %v1171 = vld [vmem:[%s183 + $0x8] sm:$0x1]
        %v1172 = vld [vmem:[%s183 + $0xc] sm:$0xf]
        %v1173 = vld [vmem:[%s183 + $0x10] sm:$0xf]
        %v1174 = vld [vmem:[%s183 + $0x14] sm:$0x1]
        %v1175 = vld [vmem:[%s183 + $0x18] sm:$0xf]
        %v1176 = vld [vmem:[%s183 + $0x1c] sm:$0xf]
        %v1177 = vld [vmem:[%s183 + $0x20] sm:$0x1]
        %v1178 = vld [vmem:[%s183 + $0x24] sm:$0xf]
        %v1179 = vld [vmem:[%s183 + $0x28] sm:$0xf]
        %v1180 = vld [vmem:[%s183 + $0x2c] sm:$0x1]
        %v1181 = vld [vmem:[%s183 + $0x30] sm:$0xf]
        %v1182 = vld [vmem:[%s183 + $0x34] sm:$0xf]
        %v1183 = vld [vmem:[%s183 + $0x38] sm:$0x1]
        %v1184 = vld [vmem:[%s183 + $0x3c] sm:$0xf]
        %v1185 = vld [vmem:[%s183 + $0x40] sm:$0xf]
        %v1186 = vld [vmem:[%s183 + $0x44] sm:$0x1]
        %v1187 = vld [vmem:[%s183 + $0x48] sm:$0xf]
        %v1188 = vld [vmem:[%s183 + $0x4c] sm:$0xf]
        %v1189 = vld [vmem:[%s183 + $0x50] sm:$0x1]
        %v1190 = vld [vmem:[%s183 + $0x54] sm:$0xf]
        %v1191 = vld [vmem:[%s183 + $0x58] sm:$0xf]
        %v1192 = vld [vmem:[%s183 + $0x5c] sm:$0x1]
        %v1193 = vld [vmem:[%s183 + $0x60] sm:$0xf]
        %v1194 = vld [vmem:[%s183 + $0x64] sm:$0xf]
        %v1195 = vld [vmem:[%s183 + $0x68] sm:$0x1]
        %v1196 = vld [vmem:[%s183 + $0x6c] sm:$0xf]
        %v1197 = vld [vmem:[%s183 + $0x70] sm:$0xf]
        %v1198 = vld [vmem:[%s183 + $0x74] sm:$0x1]
        %v1199 = vld [vmem:[%s183 + $0x78] sm:$0xf]
        %v1200 = vld [vmem:[%s183 + $0x7c] sm:$0xf]
        %v1201 = vld [vmem:[%s183 + $0x80] sm:$0x1]
        %v1202 = vld [vmem:[%s183 + $0x84] sm:$0xf]
        %v1203 = vld [vmem:[%s183 + $0x88] sm:$0xf]
        %v1204 = vld [vmem:[%s183 + $0x8c] sm:$0x1]
        %v1205 = vld [vmem:[%s183 + $0x90] sm:$0xf]
        %v1206 = vld [vmem:[%s183 + $0x94] sm:$0xf]
        %v1207 = vld [vmem:[%s183 + $0x98] sm:$0x1]
        %v1208 = vld [vmem:[%s183 + $0x9c] sm:$0xf]
        %v1209 = vld [vmem:[%s183 + $0xa0] sm:$0xf]
        %v1210 = vld [vmem:[%s183 + $0xa4] sm:$0x1]
        %v1211 = vld [vmem:[%s183 + $0xa8] sm:$0xf]
        %v1212 = vld [vmem:[%s183 + $0xac] sm:$0xf]
        %v1213 = vld [vmem:[%s183 + $0xb0] sm:$0x1]
        %v1214 = vld [vmem:[%s183 + $0xb4] sm:$0xf]
        %v1215 = vld [vmem:[%s183 + $0xb8] sm:$0xf]
        %v1216 = vld [vmem:[%s183 + $0xbc] sm:$0x1]
        %v1217 = vld [vmem:[%s183 + $0xc0] sm:$0xf]
        %v1218 = vld [vmem:[%s183 + $0xc4] sm:$0xf]
        %v1219 = vld [vmem:[%s183 + $0xc8] sm:$0x1]
        %v1220 = vld [vmem:[%s183 + $0xcc] sm:$0xf]
        %v1221 = vld [vmem:[%s183 + $0xd0] sm:$0xf]
        %v1222 = vld [vmem:[%s183 + $0xd4] sm:$0x1]
        %vm1223 = vsmask.f32 3328
        %vm1224 = vsmask.f32 7440
        %vm1225 = vmor %vm1223, %vm1224
        %v1227 = vshrl.u32 %v1169, 16
        %v1229 = vrot.slane %v1227, 4
        %v1230 = vshll.u32 %v1169, 16
        %v1232 = vrot.slane %v1230, 5
        %v1233 = vor.u32 %v1229, %v1232
        %v1234 = vrot.slane %v1233, 4
        %v1236 = vshll.u32 %v1170, 16
        %v1238 = vrot.slane %v1236, 5
        %v1239 = vsel %vm1225, %v1234, %v1238
        %v1240 = vshrl.u32 %v1170, 16
        %v1242 = vrot.slane %v1240, 4
        %v1243 = vor.u32 %v1242, %v1238
        %v1244 = vrot.slane %v1243, 4
        %v1246 = vshll.u32 %v1171, 16
        %v1248 = vrot.slane %v1246, 5
        %v1249 = vsel %vm1225, %v1244, %v1248
        %v1251 = vshrl.u32 %v1172, 16
        %v1253 = vrot.slane %v1251, 4
        %v1254 = vshll.u32 %v1172, 16
        %v1256 = vrot.slane %v1254, 5
        %v1257 = vor.u32 %v1253, %v1256
        %v1258 = vrot.slane %v1257, 4
        %v1260 = vshll.u32 %v1173, 16
        %v1262 = vrot.slane %v1260, 5
        %v1263 = vsel %vm1225, %v1258, %v1262
        %v1264 = vshrl.u32 %v1173, 16
        %v1266 = vrot.slane %v1264, 4
        %v1267 = vor.u32 %v1266, %v1262
        %v1268 = vrot.slane %v1267, 4
        %v1270 = vshll.u32 %v1174, 16
        %v1272 = vrot.slane %v1270, 5
        %v1273 = vsel %vm1225, %v1268, %v1272
        %v1275 = vshrl.u32 %v1175, 16
        %v1277 = vrot.slane %v1275, 4
        %v1278 = vshll.u32 %v1175, 16
        %v1280 = vrot.slane %v1278, 5
        %v1281 = vor.u32 %v1277, %v1280
        %v1282 = vrot.slane %v1281, 4
        %v1284 = vshll.u32 %v1176, 16
        %v1286 = vrot.slane %v1284, 5
        %v1287 = vsel %vm1225, %v1282, %v1286
        %v1288 = vshrl.u32 %v1176, 16
        %v1290 = vrot.slane %v1288, 4
        %v1291 = vor.u32 %v1290, %v1286
        %v1292 = vrot.slane %v1291, 4
        %v1294 = vshll.u32 %v1177, 16
        %v1296 = vrot.slane %v1294, 5
        %v1297 = vsel %vm1225, %v1292, %v1296
        %v1299 = vshrl.u32 %v1178, 16
        %v1301 = vrot.slane %v1299, 4
        %v1302 = vshll.u32 %v1178, 16
        %v1304 = vrot.slane %v1302, 5
        %v1305 = vor.u32 %v1301, %v1304
        %v1306 = vrot.slane %v1305, 4
        %v1308 = vshll.u32 %v1179, 16
        %v1310 = vrot.slane %v1308, 5
        %v1311 = vsel %vm1225, %v1306, %v1310
        %v1312 = vshrl.u32 %v1179, 16
        %v1314 = vrot.slane %v1312, 4
        %v1315 = vor.u32 %v1314, %v1310
        %v1316 = vrot.slane %v1315, 4
        %v1318 = vshll.u32 %v1180, 16
        %v1320 = vrot.slane %v1318, 5
        %v1321 = vsel %vm1225, %v1316, %v1320
        %v1323 = vshrl.u32 %v1181, 16
        %v1325 = vrot.slane %v1323, 4
        %v1326 = vshll.u32 %v1181, 16
        %v1328 = vrot.slane %v1326, 5
        %v1329 = vor.u32 %v1325, %v1328
        %v1330 = vrot.slane %v1329, 4
        %v1332 = vshll.u32 %v1182, 16
        %v1334 = vrot.slane %v1332, 5
        %v1335 = vsel %vm1225, %v1330, %v1334
        %v1336 = vshrl.u32 %v1182, 16
        %v1338 = vrot.slane %v1336, 4
        %v1339 = vor.u32 %v1338, %v1334
        %v1340 = vrot.slane %v1339, 4
        %v1342 = vshll.u32 %v1183, 16
        %v1344 = vrot.slane %v1342, 5
        %v1345 = vsel %vm1225, %v1340, %v1344
        %v1347 = vshrl.u32 %v1184, 16
        %v1349 = vrot.slane %v1347, 4
        %v1350 = vshll.u32 %v1184, 16
        %v1352 = vrot.slane %v1350, 5
        %v1353 = vor.u32 %v1349, %v1352
        %v1354 = vrot.slane %v1353, 4
        %v1356 = vshll.u32 %v1185, 16
        %v1358 = vrot.slane %v1356, 5
        %v1359 = vsel %vm1225, %v1354, %v1358
        %v1360 = vshrl.u32 %v1185, 16
        %v1362 = vrot.slane %v1360, 4
        %v1363 = vor.u32 %v1362, %v1358
        %v1364 = vrot.slane %v1363, 4
        %v1366 = vshll.u32 %v1186, 16
        %v1368 = vrot.slane %v1366, 5
        %v1369 = vsel %vm1225, %v1364, %v1368
        %v1371 = vshrl.u32 %v1187, 16
        %v1373 = vrot.slane %v1371, 4
        %v1374 = vshll.u32 %v1187, 16
        %v1376 = vrot.slane %v1374, 5
        %v1377 = vor.u32 %v1373, %v1376
        %v1378 = vrot.slane %v1377, 4
        %v1380 = vshll.u32 %v1188, 16
        %v1382 = vrot.slane %v1380, 5
        %v1383 = vsel %vm1225, %v1378, %v1382
        %v1384 = vshrl.u32 %v1188, 16
        %v1386 = vrot.slane %v1384, 4
        %v1387 = vor.u32 %v1386, %v1382
        %v1388 = vrot.slane %v1387, 4
        %v1390 = vshll.u32 %v1189, 16
        %v1392 = vrot.slane %v1390, 5
        %v1393 = vsel %vm1225, %v1388, %v1392
        %v1395 = vshrl.u32 %v1190, 16
        %v1397 = vrot.slane %v1395, 4
        %v1398 = vshll.u32 %v1190, 16
        %v1400 = vrot.slane %v1398, 5
        %v1401 = vor.u32 %v1397, %v1400
        %v1402 = vrot.slane %v1401, 4
        %v1404 = vshll.u32 %v1191, 16
        %v1406 = vrot.slane %v1404, 5
        %v1407 = vsel %vm1225, %v1402, %v1406
        %v1408 = vshrl.u32 %v1191, 16
        %v1410 = vrot.slane %v1408, 4
        %v1411 = vor.u32 %v1410, %v1406
        %v1412 = vrot.slane %v1411, 4
        %v1414 = vshll.u32 %v1192, 16
        %v1416 = vrot.slane %v1414, 5
        %v1417 = vsel %vm1225, %v1412, %v1416
        %v1419 = vshrl.u32 %v1193, 16
        %v1421 = vrot.slane %v1419, 4
        %v1422 = vshll.u32 %v1193, 16
        %v1424 = vrot.slane %v1422, 5
        %v1425 = vor.u32 %v1421, %v1424
        %v1426 = vrot.slane %v1425, 4
        %v1428 = vshll.u32 %v1194, 16
        %v1430 = vrot.slane %v1428, 5
        %v1431 = vsel %vm1225, %v1426, %v1430
        %v1432 = vshrl.u32 %v1194, 16
        %v1434 = vrot.slane %v1432, 4
        %v1435 = vor.u32 %v1434, %v1430
        %v1436 = vrot.slane %v1435, 4
        %v1438 = vshll.u32 %v1195, 16
        %v1440 = vrot.slane %v1438, 5
        %v1441 = vsel %vm1225, %v1436, %v1440
        %v1443 = vshrl.u32 %v1196, 16
        %v1445 = vrot.slane %v1443, 4
        %v1446 = vshll.u32 %v1196, 16
        %v1448 = vrot.slane %v1446, 5
        %v1449 = vor.u32 %v1445, %v1448
        %v1450 = vrot.slane %v1449, 4
        %v1452 = vshll.u32 %v1197, 16
        %v1454 = vrot.slane %v1452, 5
        %v1455 = vsel %vm1225, %v1450, %v1454
        %v1456 = vshrl.u32 %v1197, 16
        %v1458 = vrot.slane %v1456, 4
        %v1459 = vor.u32 %v1458, %v1454
        %v1460 = vrot.slane %v1459, 4
        %v1462 = vshll.u32 %v1198, 16
        %v1464 = vrot.slane %v1462, 5
        %v1465 = vsel %vm1225, %v1460, %v1464
        %v1467 = vshrl.u32 %v1199, 16
        %v1469 = vrot.slane %v1467, 4
        %v1470 = vshll.u32 %v1199, 16
        %v1472 = vrot.slane %v1470, 5
        %v1473 = vor.u32 %v1469, %v1472
        %v1474 = vrot.slane %v1473, 4
        %v1476 = vshll.u32 %v1200, 16
        %v1478 = vrot.slane %v1476, 5
        %v1479 = vsel %vm1225, %v1474, %v1478
        %v1480 = vshrl.u32 %v1200, 16
        %v1482 = vrot.slane %v1480, 4
        %v1483 = vor.u32 %v1482, %v1478
        %v1484 = vrot.slane %v1483, 4
        %v1486 = vshll.u32 %v1201, 16
        %v1488 = vrot.slane %v1486, 5
        %v1489 = vsel %vm1225, %v1484, %v1488
        %v1491 = vshrl.u32 %v1202, 16
        %v1493 = vrot.slane %v1491, 4
        %v1494 = vshll.u32 %v1202, 16
        %v1496 = vrot.slane %v1494, 5
        %v1497 = vor.u32 %v1493, %v1496
        %v1498 = vrot.slane %v1497, 4
        %v1500 = vshll.u32 %v1203, 16
        %v1502 = vrot.slane %v1500, 5
        %v1503 = vsel %vm1225, %v1498, %v1502
        %v1504 = vshrl.u32 %v1203, 16
        %v1506 = vrot.slane %v1504, 4
        %v1507 = vor.u32 %v1506, %v1502
        %v1508 = vrot.slane %v1507, 4
        %v1510 = vshll.u32 %v1204, 16
        %v1512 = vrot.slane %v1510, 5
        %v1513 = vsel %vm1225, %v1508, %v1512
        %v1515 = vshrl.u32 %v1205, 16
        %v1517 = vrot.slane %v1515, 4
        %v1518 = vshll.u32 %v1205, 16
        %v1520 = vrot.slane %v1518, 5
        %v1521 = vor.u32 %v1517, %v1520
        %v1522 = vrot.slane %v1521, 4
        %v1524 = vshll.u32 %v1206, 16
        %v1526 = vrot.slane %v1524, 5
        %v1527 = vsel %vm1225, %v1522, %v1526
        %v1528 = vshrl.u32 %v1206, 16
        %v1530 = vrot.slane %v1528, 4
        %v1531 = vor.u32 %v1530, %v1526
        %v1532 = vrot.slane %v1531, 4
        %v1534 = vshll.u32 %v1207, 16
        %v1536 = vrot.slane %v1534, 5
        %v1537 = vsel %vm1225, %v1532, %v1536
        %v1539 = vshrl.u32 %v1208, 16
        %v1541 = vrot.slane %v1539, 4
        %v1542 = vshll.u32 %v1208, 16
        %v1544 = vrot.slane %v1542, 5
        %v1545 = vor.u32 %v1541, %v1544
        %v1546 = vrot.slane %v1545, 4
        %v1548 = vshll.u32 %v1209, 16
        %v1550 = vrot.slane %v1548, 5
        %v1551 = vsel %vm1225, %v1546, %v1550
        %v1552 = vshrl.u32 %v1209, 16
        %v1554 = vrot.slane %v1552, 4
        %v1555 = vor.u32 %v1554, %v1550
        %v1556 = vrot.slane %v1555, 4
        %v1558 = vshll.u32 %v1210, 16
        %v1560 = vrot.slane %v1558, 5
        %v1561 = vsel %vm1225, %v1556, %v1560
        %v1563 = vshrl.u32 %v1211, 16
        %v1565 = vrot.slane %v1563, 4
        %v1566 = vshll.u32 %v1211, 16
        %v1568 = vrot.slane %v1566, 5
        %v1569 = vor.u32 %v1565, %v1568
        %v1570 = vrot.slane %v1569, 4
        %v1572 = vshll.u32 %v1212, 16
        %v1574 = vrot.slane %v1572, 5
        %v1575 = vsel %vm1225, %v1570, %v1574
        %v1576 = vshrl.u32 %v1212, 16
        %v1578 = vrot.slane %v1576, 4
        %v1579 = vor.u32 %v1578, %v1574
        %v1580 = vrot.slane %v1579, 4
        %v1582 = vshll.u32 %v1213, 16
        %v1584 = vrot.slane %v1582, 5
        %v1585 = vsel %vm1225, %v1580, %v1584
        %v1587 = vshrl.u32 %v1214, 16
        %v1589 = vrot.slane %v1587, 4
        %v1590 = vshll.u32 %v1214, 16
        %v1592 = vrot.slane %v1590, 5
        %v1593 = vor.u32 %v1589, %v1592
        %v1594 = vrot.slane %v1593, 4
        %v1596 = vshll.u32 %v1215, 16
        %v1598 = vrot.slane %v1596, 5
        %v1599 = vsel %vm1225, %v1594, %v1598
        %v1600 = vshrl.u32 %v1215, 16
        %v1602 = vrot.slane %v1600, 4
        %v1603 = vor.u32 %v1602, %v1598
        %v1604 = vrot.slane %v1603, 4
        %v1606 = vshll.u32 %v1216, 16
        %v1608 = vrot.slane %v1606, 5
        %v1609 = vsel %vm1225, %v1604, %v1608
        %v1611 = vshrl.u32 %v1217, 16
        %v1613 = vrot.slane %v1611, 4
        %v1614 = vshll.u32 %v1217, 16
        %v1616 = vrot.slane %v1614, 5
        %v1617 = vor.u32 %v1613, %v1616
        %v1618 = vrot.slane %v1617, 4
        %v1620 = vshll.u32 %v1218, 16
        %v1622 = vrot.slane %v1620, 5
        %v1623 = vsel %vm1225, %v1618, %v1622
        %v1624 = vshrl.u32 %v1218, 16
        %v1626 = vrot.slane %v1624, 4
        %v1627 = vor.u32 %v1626, %v1622
        %v1628 = vrot.slane %v1627, 4
        %v1630 = vshll.u32 %v1219, 16
        %v1632 = vrot.slane %v1630, 5
        %v1633 = vsel %vm1225, %v1628, %v1632
        %v1635 = vshrl.u32 %v1220, 16
        %v1637 = vrot.slane %v1635, 4
        %v1638 = vshll.u32 %v1220, 16
        %v1640 = vrot.slane %v1638, 5
        %v1641 = vor.u32 %v1637, %v1640
        %v1642 = vrot.slane %v1641, 4
        %v1644 = vshll.u32 %v1221, 16
        %v1646 = vrot.slane %v1644, 5
        %v1647 = vsel %vm1225, %v1642, %v1646
        %v1648 = vshrl.u32 %v1221, 16
        %v1650 = vrot.slane %v1648, 4
        %v1651 = vor.u32 %v1650, %v1646
        %v1652 = vrot.slane %v1651, 4
        %v1654 = vshll.u32 %v1222, 16
        %v1656 = vrot.slane %v1654, 5
        %v1657 = vsel %vm1225, %v1652, %v1656
        %s1658 = scalar_lea.vmem [#allocation5], 64
        %v1659 = vld [vmem:[%s1658] sm:$0xf]
        %v1660 = vld [vmem:[%s1658 + $0x4] sm:$0xf]
        %v1661 = vld [vmem:[%s1658 + $0x8] sm:$0xf]
        %v1662 = vld [vmem:[%s1658 + $0xc] sm:$0xf]
        %v1663 = vld [vmem:[%s1658 + $0x10] sm:$0xf]
        %v1664 = vld [vmem:[%s1658 + $0x14] sm:$0xf]
        %v1665 = vld [vmem:[%s1658 + $0x18] sm:$0xf]
        %v1666 = vld [vmem:[%s1658 + $0x1c] sm:$0xf]
        %v1667 = vld [vmem:[%s1658 + $0x20] sm:$0xf]
        %v1668 = vld [vmem:[%s1658 + $0x24] sm:$0xf]
        %v1669 = vld [vmem:[%s1658 + $0x28] sm:$0xf]
        %v1670 = vld [vmem:[%s1658 + $0x2c] sm:$0xf]
        %v1671 = vld [vmem:[%s1658 + $0x30] sm:$0xf]
        %v1672 = vld [vmem:[%s1658 + $0x34] sm:$0xf]
        %v1673 = vld [vmem:[%s1658 + $0x38] sm:$0xf]
        %v1674 = vld [vmem:[%s1658 + $0x3c] sm:$0xf]
        %v1675 = vunpack.c.l.b16 %v1239
        %v1676 = vunpack.c.l.b16 %v1249
        %v1677 = vunpack.c.l.b16 %v1263
        %v1678 = vunpack.c.l.b16 %v1273
        %v1679 = vunpack.c.l.b16 %v1287
        %v1680 = vunpack.c.l.b16 %v1297
        %v1681 = vunpack.c.l.b16 %v1311
        %v1682 = vunpack.c.l.b16 %v1321
        %v1683 = vunpack.c.l.b16 %v1335
        %v1684 = vunpack.c.l.b16 %v1345
        %v1685 = vunpack.c.l.b16 %v1359
        %v1686 = vunpack.c.l.b16 %v1369
        %v1687 = vunpack.c.l.b16 %v1383
        %v1688 = vunpack.c.l.b16 %v1393
        %v1689 = vunpack.c.l.b16 %v1407
        %v1690 = vunpack.c.l.b16 %v1417
        %v1691 = vunpack.c.l.b16 %v1431
        %v1692 = vunpack.c.l.b16 %v1441
        %v1693 = vunpack.c.l.b16 %v1455
        %v1694 = vunpack.c.l.b16 %v1465
        %v1695 = vunpack.c.l.b16 %v1479
        %v1696 = vunpack.c.l.b16 %v1489
        %v1697 = vunpack.c.l.b16 %v1503
        %v1698 = vunpack.c.l.b16 %v1513
        %v1699 = vunpack.c.l.b16 %v1527
        %v1700 = vunpack.c.l.b16 %v1537
        %v1701 = vunpack.c.l.b16 %v1551
        %v1702 = vunpack.c.l.b16 %v1561
        %v1703 = vunpack.c.l.b16 %v1575
        %v1704 = vunpack.c.l.b16 %v1585
        %v1705 = vunpack.c.l.b16 %v1599
        %v1706 = vunpack.c.l.b16 %v1609
        %v1707 = vunpack.c.l.b16 %v1623
        %v1708 = vunpack.c.l.b16 %v1633
        %v1709 = vunpack.c.l.b16 %v1647
        %v1710 = vunpack.c.l.b16 %v1657
        %v1711 = vpack.c.b16 %v1676, %v1675
        %v1712 = vpack.c.b16 %v1678, %v1677
        %v1713 = vpack.c.b16 %v1680, %v1679
        %v1714 = vpack.c.b16 %v1682, %v1681
        %v1715 = vpack.c.b16 %v1684, %v1683
        %v1716 = vpack.c.b16 %v1686, %v1685
        %v1717 = vpack.c.b16 %v1688, %v1687
        %v1718 = vpack.c.b16 %v1690, %v1689
        %v1719 = vpack.c.b16 %v1692, %v1691
        %v1720 = vpack.c.b16 %v1694, %v1693
        %v1721 = vpack.c.b16 %v1696, %v1695
        %v1722 = vpack.c.b16 %v1698, %v1697
        %v1723 = vpack.c.b16 %v1700, %v1699
        %v1724 = vpack.c.b16 %v1702, %v1701
        %v1725 = vpack.c.b16 %v1704, %v1703
        %v1726 = vpack.c.b16 %v1706, %v1705
        %v1727 = vpack.c.b16 %v1708, %v1707
        %v1728 = vpack.c.b16 %v1710, %v1709
        %v1763 = vunpack.c.l.b16 %v1659
        %v1764 = vunpack.c.l.b16 %v1660
        %v1765 = vunpack.c.l.b16 %v1661
        %v1766 = vunpack.c.l.b16 %v1662
        %v1767 = vunpack.c.l.b16 %v1663
        %v1768 = vunpack.c.l.b16 %v1664
        %v1769 = vunpack.c.l.b16 %v1665
        %v1770 = vunpack.c.l.b16 %v1666
        %v1771 = vunpack.c.l.b16 %v1667
        %v1772 = vunpack.c.l.b16 %v1668
        %v1773 = vunpack.c.l.b16 %v1669
        %v1774 = vunpack.c.l.b16 %v1670
        %v1775 = vunpack.c.l.b16 %v1671
        %v1776 = vunpack.c.l.b16 %v1672
        %v1777 = vunpack.c.l.b16 %v1673
        %v1778 = vunpack.c.l.b16 %v1674
        %v1779 = vpack.c.b16 %v1764, %v1763
        %v1780 = vpack.c.b16 %v1766, %v1765
        %v1781 = vpack.c.b16 %v1768, %v1767
        %v1782 = vpack.c.b16 %v1770, %v1769
        %v1783 = vpack.c.b16 %v1772, %v1771
        %v1784 = vpack.c.b16 %v1774, %v1773
        %v1785 = vpack.c.b16 %v1776, %v1775
        %v1786 = vpack.c.b16 %v1778, %v1777
        %1795 = vmatprep.subr.bf16.mxu0 0
        %1796 = vmatpush1.bf16.msra.mxu0 %v1779
        %1797 = vmatprep.subr.bf16.mxu0 0
        %1798 = vmatpush1.bf16.msra.mxu0 %v1780
        %1799 = vmatprep.subr.bf16.mxu0 0
        %1800 = vmatpush1.bf16.msra.mxu0 %v1781
        %1801 = vmatprep.subr.bf16.mxu0 0
        %1802 = vmatpush1.bf16.msra.mxu0 %v1782
        %1803 = vmatprep.subr.bf16.mxu0 0
        %1804 = vmatpush1.bf16.msra.mxu0 %v1783
        %1805 = vmatprep.subr.bf16.mxu0 0
        %1806 = vmatpush1.bf16.msra.mxu0 %v1784
        %1807 = vmatprep.subr.bf16.mxu0 0
        %1808 = vmatpush1.bf16.msra.mxu0 %v1785
        %1809 = vmatprep.subr.bf16.mxu0 0
        %1810 = vmatpush1.bf16.msra.mxu0 %v1786
        %1811 = vmatprep.subr.bf16.mxu0 0
        %1812 = vmatpush1.bf16.msra.mxu0 0
        %1813 = vmatprep.subr.bf16.mxu0 0
        %1814 = vmatpush1.bf16.msra.mxu0 0
        %1815 = vmatprep.subr.bf16.mxu0 0
        %1816 = vmatpush1.bf16.msra.mxu0 0
        %1817 = vmatprep.subr.bf16.mxu0 0
        %1818 = vmatpush1.bf16.msra.mxu0 0
        %1819 = vmatprep.subr.bf16.mxu0 0
        %1820 = vmatpush1.bf16.msra.mxu0 0
        %1821 = vmatprep.subr.bf16.mxu0 0
        %1822 = vmatpush1.bf16.msra.mxu0 0
        %1823 = vmatprep.subr.bf16.mxu0 0
        %1824 = vmatpush1.bf16.msra.mxu0 0
        %1825 = vmatprep.subr.bf16.mxu0 0
        %1826 = vmatpush1.bf16.msra.mxu0 0
        %1827 = vmatprep.mubr.bf16.mxu0 0
        %1828 = vmatmul.mubr.bf16.gmra.mrb[0].mxu0 %v1711
        %v1829 = vpop.f32.mrb[0].mxu0
        %v1830 = vadd.f32 0.0, %v1829
        %v1831 = vpop.f32.mrb[0].mxu0
        %v1832 = vpop.f32.mrb[0].mxu0
        %v1833 = vadd.f32 0.0, %v1832
        %v1834 = vpop.f32.mrb[0].mxu0
        %1835 = vmatprep.mubr.bf16.mxu0 0
        %1836 = vmatmul.mubr.bf16.gmra.mrb[0].mxu0 %v1712
        %v1837 = vpop.f32.mrb[0].mxu0
        %v1838 = vadd.f32 0.0, %v1837
        %v1839 = vpop.f32.mrb[0].mxu0
        %v1840 = vpop.f32.mrb[0].mxu0
        %v1841 = vadd.f32 0.0, %v1840
        %v1842 = vpop.f32.mrb[0].mxu0
        %1843 = vmatprep.mubr.bf16.mxu0 0
        %1844 = vmatmul.mubr.bf16.gmra.mrb[0].mxu0 %v1713
        %v1845 = vpop.f32.mrb[0].mxu0
        %v1846 = vadd.f32 0.0, %v1845
        %v1847 = vpop.f32.mrb[0].mxu0
        %v1848 = vpop.f32.mrb[0].mxu0
        %v1849 = vadd.f32 0.0, %v1848
        %v1850 = vpop.f32.mrb[0].mxu0
        %1851 = vmatprep.mubr.bf16.mxu0 0
        %1852 = vmatmul.mubr.bf16.gmra.mrb[0].mxu0 %v1714
        %v1853 = vpop.f32.mrb[0].mxu0
        %v1854 = vadd.f32 0.0, %v1853
        %v1855 = vpop.f32.mrb[0].mxu0
        %v1856 = vpop.f32.mrb[0].mxu0
        %v1857 = vadd.f32 0.0, %v1856
        %v1858 = vpop.f32.mrb[0].mxu0
        %1859 = vmatprep.mubr.bf16.mxu0 0
        %1860 = vmatmul.mubr.bf16.gmra.mrb[0].mxu0 %v1715
        %v1861 = vpop.f32.mrb[0].mxu0
        %v1862 = vadd.f32 0.0, %v1861
        %v1863 = vpop.f32.mrb[0].mxu0
        %v1864 = vpop.f32.mrb[0].mxu0
        %v1865 = vadd.f32 0.0, %v1864
        %v1866 = vpop.f32.mrb[0].mxu0
        %1867 = vmatprep.mubr.bf16.mxu0 0
        %1868 = vmatmul.mubr.bf16.gmra.mrb[0].mxu0 %v1716
        %v1869 = vpop.f32.mrb[0].mxu0
        %v1870 = vadd.f32 0.0, %v1869
        %v1871 = vpop.f32.mrb[0].mxu0
        %v1872 = vpop.f32.mrb[0].mxu0
        %v1873 = vadd.f32 0.0, %v1872
        %v1874 = vpop.f32.mrb[0].mxu0
        %1875 = vmatprep.mubr.bf16.mxu0 0
        %1876 = vmatmul.mubr.bf16.gmra.mrb[0].mxu0 %v1717
        %v1877 = vpop.f32.mrb[0].mxu0
        %v1878 = vadd.f32 0.0, %v1877
        %v1879 = vpop.f32.mrb[0].mxu0
        %v1880 = vpop.f32.mrb[0].mxu0
        %v1881 = vadd.f32 0.0, %v1880
        %v1882 = vpop.f32.mrb[0].mxu0
        %1883 = vmatprep.mubr.bf16.mxu0 0
        %1884 = vmatmul.mubr.bf16.gmra.mrb[0].mxu0 %v1718
        %v1885 = vpop.f32.mrb[0].mxu0
        %v1886 = vadd.f32 0.0, %v1885
        %v1887 = vpop.f32.mrb[0].mxu0
        %v1888 = vpop.f32.mrb[0].mxu0
        %v1889 = vadd.f32 0.0, %v1888
        %v1890 = vpop.f32.mrb[0].mxu0
        %1891 = vmatprep.mubr.bf16.mxu0 0
        %1892 = vmatmul.mubr.bf16.gmra.mrb[0].mxu0 %v1719
        %v1893 = vpop.f32.mrb[0].mxu0
        %v1894 = vadd.f32 0.0, %v1893
        %v1895 = vpop.f32.mrb[0].mxu0
        %v1896 = vpop.f32.mrb[0].mxu0
        %v1897 = vadd.f32 0.0, %v1896
        %v1898 = vpop.f32.mrb[0].mxu0
        %1899 = vmatprep.mubr.bf16.mxu0 0
        %1900 = vmatmul.mubr.bf16.gmra.mrb[0].mxu0 %v1720
        %v1901 = vpop.f32.mrb[0].mxu0
        %v1902 = vadd.f32 0.0, %v1901
        %v1903 = vpop.f32.mrb[0].mxu0
        %v1904 = vpop.f32.mrb[0].mxu0
        %v1905 = vadd.f32 0.0, %v1904
        %v1906 = vpop.f32.mrb[0].mxu0
        %1907 = vmatprep.mubr.bf16.mxu0 0
        %1908 = vmatmul.mubr.bf16.gmra.mrb[0].mxu0 %v1721
        %v1909 = vpop.f32.mrb[0].mxu0
        %v1910 = vadd.f32 0.0, %v1909
        %v1911 = vpop.f32.mrb[0].mxu0
        %v1912 = vpop.f32.mrb[0].mxu0
        %v1913 = vadd.f32 0.0, %v1912
        %v1914 = vpop.f32.mrb[0].mxu0
        %1915 = vmatprep.mubr.bf16.mxu0 0
        %1916 = vmatmul.mubr.bf16.gmra.mrb[0].mxu0 %v1722
        %v1917 = vpop.f32.mrb[0].mxu0
        %v1918 = vadd.f32 0.0, %v1917
        %v1919 = vpop.f32.mrb[0].mxu0
        %v1920 = vpop.f32.mrb[0].mxu0
        %v1921 = vadd.f32 0.0, %v1920
        %v1922 = vpop.f32.mrb[0].mxu0
        %1923 = vmatprep.mubr.bf16.mxu0 0
        %1924 = vmatmul.mubr.bf16.gmra.mrb[0].mxu0 %v1723
        %v1925 = vpop.f32.mrb[0].mxu0
        %v1926 = vadd.f32 0.0, %v1925
        %v1927 = vpop.f32.mrb[0].mxu0
        %v1928 = vpop.f32.mrb[0].mxu0
        %v1929 = vadd.f32 0.0, %v1928
        %v1930 = vpop.f32.mrb[0].mxu0
        %1931 = vmatprep.mubr.bf16.mxu0 0
        %1932 = vmatmul.mubr.bf16.gmra.mrb[0].mxu0 %v1724
        %v1933 = vpop.f32.mrb[0].mxu0
        %v1934 = vadd.f32 0.0, %v1933
        %v1935 = vpop.f32.mrb[0].mxu0
        %v1936 = vpop.f32.mrb[0].mxu0
        %v1937 = vadd.f32 0.0, %v1936
        %v1938 = vpop.f32.mrb[0].mxu0
        %1939 = vmatprep.mubr.bf16.mxu0 0
        %1940 = vmatmul.mubr.bf16.gmra.mrb[0].mxu0 %v1725
        %v1941 = vpop.f32.mrb[0].mxu0
        %v1942 = vadd.f32 0.0, %v1941
        %v1943 = vpop.f32.mrb[0].mxu0
        %v1944 = vpop.f32.mrb[0].mxu0
        %v1945 = vadd.f32 0.0, %v1944
        %v1946 = vpop.f32.mrb[0].mxu0
        %1947 = vmatprep.mubr.bf16.mxu0 0
        %1948 = vmatmul.mubr.bf16.gmra.mrb[0].mxu0 %v1726
        %v1949 = vpop.f32.mrb[0].mxu0
        %v1950 = vadd.f32 0.0, %v1949
        %v1951 = vpop.f32.mrb[0].mxu0
        %v1952 = vpop.f32.mrb[0].mxu0
        %v1953 = vadd.f32 0.0, %v1952
        %v1954 = vpop.f32.mrb[0].mxu0
        %1955 = vmatprep.mubr.bf16.mxu0 0
        %1956 = vmatmul.mubr.bf16.gmra.mrb[0].mxu0 %v1727
        %v1957 = vpop.f32.mrb[0].mxu0
        %v1958 = vpop.f32.mrb[0].mxu0
        %v1959 = vpop.f32.mrb[0].mxu0
        %v1960 = vpop.f32.mrb[0].mxu0
        %1961 = vmatprep.mubr.bf16.mxu0 0
        %1962 = vmatmul.mubr.bf16.gmra.mrb[0].mxu0 %v1728
        %v1963 = vpop.f32.mrb[0].mxu0
        %v1964 = vpop.f32.mrb[0].mxu0
        %v1965 = vpop.f32.mrb[0].mxu0
        %v1966 = vpop.f32.mrb[0].mxu0
        %1967 = vdwg.mxu0
        %v1968 = vadd.f32 %v1137, %v1830
        %v1969 = vadd.f32 %v1138, %v1833
        %v1970 = vadd.f32 %v1139, %v1838
        %v1971 = vadd.f32 %v1140, %v1841
        %v1972 = vadd.f32 %v1141, %v1846
        %v1973 = vadd.f32 %v1142, %v1849
        %v1974 = vadd.f32 %v1143, %v1854
        %v1975 = vadd.f32 %v1144, %v1857
        %v1976 = vadd.f32 %v1145, %v1862
        %v1977 = vadd.f32 %v1146, %v1865
        %v1978 = vadd.f32 %v1147, %v1870
        %v1979 = vadd.f32 %v1148, %v1873
        %v1980 = vadd.f32 %v1149, %v1878
        %v1981 = vadd.f32 %v1150, %v1881
        %v1982 = vadd.f32 %v1151, %v1886
        %v1983 = vadd.f32 %v1152, %v1889
        %v1984 = vadd.f32 %v1153, %v1894
        %v1985 = vadd.f32 %v1154, %v1897
        %v1986 = vadd.f32 %v1155, %v1902
        %v1987 = vadd.f32 %v1156, %v1905
        %v1988 = vadd.f32 %v1157, %v1910
        %v1989 = vadd.f32 %v1158, %v1913
        %v1990 = vadd.f32 %v1159, %v1918
        %v1991 = vadd.f32 %v1160, %v1921
        %v1992 = vadd.f32 %v1161, %v1926
        %v1993 = vadd.f32 %v1162, %v1929
        %v1994 = vadd.f32 %v1163, %v1934
        %v1995 = vadd.f32 %v1164, %v1937
        %v1996 = vadd.f32 %v1165, %v1942
        %v1997 = vadd.f32 %v1166, %v1945
        %v1998 = vadd.f32 %v1167, %v1950
        %v1999 = vadd.f32 %v1168, %v1953
        %s2000 = scalar_lea.vmem [#allocation5], 256
        %v2001 = vld [vmem:[%s2000] sm:$0xf]
        %v2002 = vld [vmem:[%s2000 + $0x4] sm:$0xf]
        %v2003 = vld [vmem:[%s2000 + $0x8] sm:$0xf]
        %v2004 = vld [vmem:[%s2000 + $0xc] sm:$0xf]
        %v2005 = vld [vmem:[%s2000 + $0x10] sm:$0xf]
        %v2006 = vld [vmem:[%s2000 + $0x14] sm:$0xf]
        %v2007 = vld [vmem:[%s2000 + $0x18] sm:$0xf]
        %v2008 = vld [vmem:[%s2000 + $0x1c] sm:$0xf]
        %v2009 = vld [vmem:[%s2000 + $0x20] sm:$0xf]
        %v2010 = vld [vmem:[%s2000 + $0x24] sm:$0xf]
        %v2011 = vld [vmem:[%s2000 + $0x28] sm:$0xf]
        %v2012 = vld [vmem:[%s2000 + $0x2c] sm:$0xf]
        %v2013 = vld [vmem:[%s2000 + $0x30] sm:$0xf]
        %v2014 = vld [vmem:[%s2000 + $0x34] sm:$0xf]
        %v2015 = vld [vmem:[%s2000 + $0x38] sm:$0xf]
        %v2016 = vld [vmem:[%s2000 + $0x3c] sm:$0xf]
        %v2033 = vunpack.c.l.b16 %v2001
        %v2034 = vunpack.c.l.b16 %v2002
        %v2035 = vunpack.c.l.b16 %v2003
        %v2036 = vunpack.c.l.b16 %v2004
        %v2037 = vunpack.c.l.b16 %v2005
        %v2038 = vunpack.c.l.b16 %v2006
        %v2039 = vunpack.c.l.b16 %v2007
        %v2040 = vunpack.c.l.b16 %v2008
        %v2041 = vunpack.c.l.b16 %v2009
        %v2042 = vunpack.c.l.b16 %v2010
        %v2043 = vunpack.c.l.b16 %v2011
        %v2044 = vunpack.c.l.b16 %v2012
        %v2045 = vunpack.c.l.b16 %v2013
        %v2046 = vunpack.c.l.b16 %v2014
        %v2047 = vunpack.c.l.b16 %v2015
        %v2048 = vunpack.c.l.b16 %v2016
        %v2049 = vpack.c.b16 %v2034, %v2033
        %v2050 = vpack.c.b16 %v2036, %v2035
        %v2051 = vpack.c.b16 %v2038, %v2037
        %v2052 = vpack.c.b16 %v2040, %v2039
        %v2053 = vpack.c.b16 %v2042, %v2041
        %v2054 = vpack.c.b16 %v2044, %v2043
        %v2055 = vpack.c.b16 %v2046, %v2045
        %v2056 = vpack.c.b16 %v2048, %v2047
        %2065 = vmatprep.subr.bf16.mxu0 0
        %2066 = vmatpush1.bf16.msra.mxu0 %v2049
        %2067 = vmatprep.subr.bf16.mxu0 0
        %2068 = vmatpush1.bf16.msra.mxu0 %v2050
        %2069 = vmatprep.subr.bf16.mxu0 0
        %2070 = vmatpush1.bf16.msra.mxu0 %v2051
        %2071 = vmatprep.subr.bf16.mxu0 0
        %2072 = vmatpush1.bf16.msra.mxu0 %v2052
        %2073 = vmatprep.subr.bf16.mxu0 0
        %2074 = vmatpush1.bf16.msra.mxu0 %v2053
        %2075 = vmatprep.subr.bf16.mxu0 0
        %2076 = vmatpush1.bf16.msra.mxu0 %v2054
        %2077 = vmatprep.subr.bf16.mxu0 0
        %2078 = vmatpush1.bf16.msra.mxu0 %v2055
        %2079 = vmatprep.subr.bf16.mxu0 0
        %2080 = vmatpush1.bf16.msra.mxu0 %v2056
        %2081 = vmatprep.subr.bf16.mxu0 0
        %2082 = vmatpush1.bf16.msra.mxu0 0
        %2083 = vmatprep.subr.bf16.mxu0 0
        %2084 = vmatpush1.bf16.msra.mxu0 0
        %2085 = vmatprep.subr.bf16.mxu0 0
        %2086 = vmatpush1.bf16.msra.mxu0 0
        %2087 = vmatprep.subr.bf16.mxu0 0
        %2088 = vmatpush1.bf16.msra.mxu0 0
        %2089 = vmatprep.subr.bf16.mxu0 0
        %2090 = vmatpush1.bf16.msra.mxu0 0
        %2091 = vmatprep.subr.bf16.mxu0 0
        %2092 = vmatpush1.bf16.msra.mxu0 0
        %2093 = vmatprep.subr.bf16.mxu0 0
        %2094 = vmatpush1.bf16.msra.mxu0 0
        %2095 = vmatprep.subr.bf16.mxu0 0
        %2096 = vmatpush1.bf16.msra.mxu0 0
        %2097 = vmatprep.mubr.bf16.mxu0 0
        %2098 = vmatmul.mubr.bf16.gmra.mrb[0].mxu0 %v1711
        %v2099 = vpop.f32.mrb[0].mxu0
        %v2100 = vpop.f32.mrb[0].mxu0
        %v2101 = vpop.f32.mrb[0].mxu0
        %v2102 = vpop.f32.mrb[0].mxu0
        %2103 = vmatprep.mubr.bf16.mxu0 0
        %2104 = vmatmul.mubr.bf16.gmra.mrb[0].mxu0 %v1712
        %v2105 = vpop.f32.mrb[0].mxu0
        %v2106 = vadd.f32 0.0, %v2105
        %v2107 = vpop.f32.mrb[0].mxu0
        %v2108 = vpop.f32.mrb[0].mxu0
        %v2109 = vadd.f32 0.0, %v2108
        %v2110 = vpop.f32.mrb[0].mxu0
        %2111 = vmatprep.mubr.bf16.mxu0 0
        %2112 = vmatmul.mubr.bf16.gmra.mrb[0].mxu0 %v1713
        %v2113 = vpop.f32.mrb[0].mxu0
        %v2114 = vadd.f32 0.0, %v2113
        %v2115 = vpop.f32.mrb[0].mxu0
        %v2116 = vpop.f32.mrb[0].mxu0
        %v2117 = vadd.f32 0.0, %v2116
        %v2118 = vpop.f32.mrb[0].mxu0
        %2119 = vmatprep.mubr.bf16.mxu0 0
        %2120 = vmatmul.mubr.bf16.gmra.mrb[0].mxu0 %v1714
        %v2121 = vpop.f32.mrb[0].mxu0
        %v2122 = vadd.f32 0.0, %v2121
        %v2123 = vpop.f32.mrb[0].mxu0
        %v2124 = vpop.f32.mrb[0].mxu0
        %v2125 = vadd.f32 0.0, %v2124
        %v2126 = vpop.f32.mrb[0].mxu0
        %2127 = vmatprep.mubr.bf16.mxu0 0
        %2128 = vmatmul.mubr.bf16.gmra.mrb[0].mxu0 %v1715
        %v2129 = vpop.f32.mrb[0].mxu0
        %v2130 = vadd.f32 0.0, %v2129
        %v2131 = vpop.f32.mrb[0].mxu0
        %v2132 = vpop.f32.mrb[0].mxu0
        %v2133 = vadd.f32 0.0, %v2132
        %v2134 = vpop.f32.mrb[0].mxu0
        %2135 = vmatprep.mubr.bf16.mxu0 0
        %2136 = vmatmul.mubr.bf16.gmra.mrb[0].mxu0 %v1716
        %v2137 = vpop.f32.mrb[0].mxu0
        %v2138 = vadd.f32 0.0, %v2137
        %v2139 = vpop.f32.mrb[0].mxu0
        %v2140 = vpop.f32.mrb[0].mxu0
        %v2141 = vadd.f32 0.0, %v2140
        %v2142 = vpop.f32.mrb[0].mxu0
        %2143 = vmatprep.mubr.bf16.mxu0 0
        %2144 = vmatmul.mubr.bf16.gmra.mrb[0].mxu0 %v1717
        %v2145 = vpop.f32.mrb[0].mxu0
        %v2146 = vadd.f32 0.0, %v2145
        %v2147 = vpop.f32.mrb[0].mxu0
        %v2148 = vpop.f32.mrb[0].mxu0
        %v2149 = vadd.f32 0.0, %v2148
        %v2150 = vpop.f32.mrb[0].mxu0
        %2151 = vmatprep.mubr.bf16.mxu0 0
        %2152 = vmatmul.mubr.bf16.gmra.mrb[0].mxu0 %v1718
        %v2153 = vpop.f32.mrb[0].mxu0
        %v2154 = vadd.f32 0.0, %v2153
        %v2155 = vpop.f32.mrb[0].mxu0
        %v2156 = vpop.f32.mrb[0].mxu0
        %v2157 = vadd.f32 0.0, %v2156
        %v2158 = vpop.f32.mrb[0].mxu0
        %2159 = vmatprep.mubr.bf16.mxu0 0
        %2160 = vmatmul.mubr.bf16.gmra.mrb[0].mxu0 %v1719
        %v2161 = vpop.f32.mrb[0].mxu0
        %v2162 = vadd.f32 0.0, %v2161
        %v2163 = vpop.f32.mrb[0].mxu0
        %v2164 = vpop.f32.mrb[0].mxu0
        %v2165 = vadd.f32 0.0, %v2164
        %v2166 = vpop.f32.mrb[0].mxu0
        %2167 = vmatprep.mubr.bf16.mxu0 0
        %2168 = vmatmul.mubr.bf16.gmra.mrb[0].mxu0 %v1720
        %v2169 = vpop.f32.mrb[0].mxu0
        %v2170 = vadd.f32 0.0, %v2169
        %v2171 = vpop.f32.mrb[0].mxu0
        %v2172 = vpop.f32.mrb[0].mxu0
        %v2173 = vadd.f32 0.0, %v2172
        %v2174 = vpop.f32.mrb[0].mxu0
        %2175 = vmatprep.mubr.bf16.mxu0 0
        %2176 = vmatmul.mubr.bf16.gmra.mrb[0].mxu0 %v1721
        %v2177 = vpop.f32.mrb[0].mxu0
        %v2178 = vadd.f32 0.0, %v2177
        %v2179 = vpop.f32.mrb[0].mxu0
        %v2180 = vpop.f32.mrb[0].mxu0
        %v2181 = vadd.f32 0.0, %v2180
        %v2182 = vpop.f32.mrb[0].mxu0
        %2183 = vmatprep.mubr.bf16.mxu0 0
        %2184 = vmatmul.mubr.bf16.gmra.mrb[0].mxu0 %v1722
        %v2185 = vpop.f32.mrb[0].mxu0
        %v2186 = vadd.f32 0.0, %v2185
        %v2187 = vpop.f32.mrb[0].mxu0
        %v2188 = vpop.f32.mrb[0].mxu0
        %v2189 = vadd.f32 0.0, %v2188
        %v2190 = vpop.f32.mrb[0].mxu0
        %2191 = vmatprep.mubr.bf16.mxu0 0
        %2192 = vmatmul.mubr.bf16.gmra.mrb[0].mxu0 %v1723
        %v2193 = vpop.f32.mrb[0].mxu0
        %v2194 = vadd.f32 0.0, %v2193
        %v2195 = vpop.f32.mrb[0].mxu0
        %v2196 = vpop.f32.mrb[0].mxu0
        %v2197 = vadd.f32 0.0, %v2196
        %v2198 = vpop.f32.mrb[0].mxu0
        %2199 = vmatprep.mubr.bf16.mxu0 0
        %2200 = vmatmul.mubr.bf16.gmra.mrb[0].mxu0 %v1724
        %v2201 = vpop.f32.mrb[0].mxu0
        %v2202 = vadd.f32 0.0, %v2201
        %v2203 = vpop.f32.mrb[0].mxu0
        %v2204 = vpop.f32.mrb[0].mxu0
        %v2205 = vadd.f32 0.0, %v2204
        %v2206 = vpop.f32.mrb[0].mxu0
        %2207 = vmatprep.mubr.bf16.mxu0 0
        %2208 = vmatmul.mubr.bf16.gmra.mrb[0].mxu0 %v1725
        %v2209 = vpop.f32.mrb[0].mxu0
        %v2210 = vadd.f32 0.0, %v2209
        %v2211 = vpop.f32.mrb[0].mxu0
        %v2212 = vpop.f32.mrb[0].mxu0
        %v2213 = vadd.f32 0.0, %v2212
        %v2214 = vpop.f32.mrb[0].mxu0
        %2215 = vmatprep.mubr.bf16.mxu0 0
        %2216 = vmatmul.mubr.bf16.gmra.mrb[0].mxu0 %v1726
        %v2217 = vpop.f32.mrb[0].mxu0
        %v2218 = vadd.f32 0.0, %v2217
        %v2219 = vpop.f32.mrb[0].mxu0
        %v2220 = vpop.f32.mrb[0].mxu0
        %v2221 = vadd.f32 0.0, %v2220
        %v2222 = vpop.f32.mrb[0].mxu0
        %2223 = vmatprep.mubr.bf16.mxu0 0
        %2224 = vmatmul.mubr.bf16.gmra.mrb[0].mxu0 %v1727
        %v2225 = vpop.f32.mrb[0].mxu0
        %v2226 = vadd.f32 0.0, %v2225
        %v2227 = vpop.f32.mrb[0].mxu0
        %v2228 = vpop.f32.mrb[0].mxu0
        %v2229 = vadd.f32 0.0, %v2228
        %v2230 = vpop.f32.mrb[0].mxu0
        %2231 = vmatprep.mubr.bf16.mxu0 0
        %2232 = vmatmul.mubr.bf16.gmra.mrb[0].mxu0 %v1728
        %v2233 = vpop.f32.mrb[0].mxu0
        %v2234 = vpop.f32.mrb[0].mxu0
        %v2235 = vpop.f32.mrb[0].mxu0
        %v2236 = vpop.f32.mrb[0].mxu0
        %2237 = vdwg.mxu0
        %v2238 = vadd.f32 %v1968, %v2106
        %v2239 = vadd.f32 %v1969, %v2109
        %v2240 = vadd.f32 %v1970, %v2114
        %v2241 = vadd.f32 %v1971, %v2117
        %v2242 = vadd.f32 %v1972, %v2122
        %v2243 = vadd.f32 %v1973, %v2125
        %v2244 = vadd.f32 %v1974, %v2130
        %v2245 = vadd.f32 %v1975, %v2133
        %v2246 = vadd.f32 %v1976, %v2138
        %v2247 = vadd.f32 %v1977, %v2141
        %v2248 = vadd.f32 %v1978, %v2146
        %v2249 = vadd.f32 %v1979, %v2149
        %v2250 = vadd.f32 %v1980, %v2154
        %v2251 = vadd.f32 %v1981, %v2157
        %v2252 = vadd.f32 %v1982, %v2162
        %v2253 = vadd.f32 %v1983, %v2165
        %v2254 = vadd.f32 %v1984, %v2170
        %v2255 = vadd.f32 %v1985, %v2173
        %v2256 = vadd.f32 %v1986, %v2178
        %v2257 = vadd.f32 %v1987, %v2181
        %v2258 = vadd.f32 %v1988, %v2186
        %v2259 = vadd.f32 %v1989, %v2189
        %v2260 = vadd.f32 %v1990, %v2194
        %v2261 = vadd.f32 %v1991, %v2197
        %v2262 = vadd.f32 %v1992, %v2202
        %v2263 = vadd.f32 %v1993, %v2205
        %v2264 = vadd.f32 %v1994, %v2210
        %v2265 = vadd.f32 %v1995, %v2213
        %v2266 = vadd.f32 %v1996, %v2218
        %v2267 = vadd.f32 %v1997, %v2221
        %v2268 = vadd.f32 %v1998, %v2226
        %v2269 = vadd.f32 %v1999, %v2229
        %s2270 = scalar_lea.vmem [#allocation5], 448
        %v2271 = vld [vmem:[%s2270] sm:$0xf]
        %v2272 = vld [vmem:[%s2270 + $0x4] sm:$0xf]
        %v2273 = vld [vmem:[%s2270 + $0x8] sm:$0xf]
        %v2274 = vld [vmem:[%s2270 + $0xc] sm:$0xf]
        %v2275 = vld [vmem:[%s2270 + $0x10] sm:$0xf]
        %v2276 = vld [vmem:[%s2270 + $0x14] sm:$0xf]
        %v2277 = vld [vmem:[%s2270 + $0x18] sm:$0xf]
        %v2278 = vld [vmem:[%s2270 + $0x1c] sm:$0xf]
        %v2279 = vld [vmem:[%s2270 + $0x20] sm:$0xf]
        %v2280 = vld [vmem:[%s2270 + $0x24] sm:$0xf]
        %v2281 = vld [vmem:[%s2270 + $0x28] sm:$0xf]
        %v2282 = vld [vmem:[%s2270 + $0x2c] sm:$0xf]
        %v2283 = vld [vmem:[%s2270 + $0x30] sm:$0xf]
        %v2284 = vld [vmem:[%s2270 + $0x34] sm:$0xf]
        %v2285 = vld [vmem:[%s2270 + $0x38] sm:$0xf]
        %v2286 = vld [vmem:[%s2270 + $0x3c] sm:$0xf]
        %v2303 = vunpack.c.l.b16 %v2271
        %v2304 = vunpack.c.l.b16 %v2272
        %v2305 = vunpack.c.l.b16 %v2273
        %v2306 = vunpack.c.l.b16 %v2274
        %v2307 = vunpack.c.l.b16 %v2275
        %v2308 = vunpack.c.l.b16 %v2276
        %v2309 = vunpack.c.l.b16 %v2277
        %v2310 = vunpack.c.l.b16 %v2278
        %v2311 = vunpack.c.l.b16 %v2279
        %v2312 = vunpack.c.l.b16 %v2280
        %v2313 = vunpack.c.l.b16 %v2281
        %v2314 = vunpack.c.l.b16 %v2282
        %v2315 = vunpack.c.l.b16 %v2283
        %v2316 = vunpack.c.l.b16 %v2284
        %v2317 = vunpack.c.l.b16 %v2285
        %v2318 = vunpack.c.l.b16 %v2286
        %v2319 = vpack.c.b16 %v2304, %v2303
        %v2320 = vpack.c.b16 %v2306, %v2305
        %v2321 = vpack.c.b16 %v2308, %v2307
        %v2322 = vpack.c.b16 %v2310, %v2309
        %v2323 = vpack.c.b16 %v2312, %v2311
        %v2324 = vpack.c.b16 %v2314, %v2313
        %v2325 = vpack.c.b16 %v2316, %v2315
        %v2326 = vpack.c.b16 %v2318, %v2317
        %2335 = vmatprep.subr.bf16.mxu0 0
        %2336 = vmatpush1.bf16.msra.mxu0 %v2319
        %2337 = vmatprep.subr.bf16.mxu0 0
        %2338 = vmatpush1.bf16.msra.mxu0 %v2320
        %2339 = vmatprep.subr.bf16.mxu0 0
        %2340 = vmatpush1.bf16.msra.mxu0 %v2321
        %2341 = vmatprep.subr.bf16.mxu0 0
        %2342 = vmatpush1.bf16.msra.mxu0 %v2322
        %2343 = vmatprep.subr.bf16.mxu0 0
        %2344 = vmatpush1.bf16.msra.mxu0 %v2323
        %2345 = vmatprep.subr.bf16.mxu0 0
        %2346 = vmatpush1.bf16.msra.mxu0 %v2324
        %2347 = vmatprep.subr.bf16.mxu0 0
        %2348 = vmatpush1.bf16.msra.mxu0 %v2325
        %2349 = vmatprep.subr.bf16.mxu0 0
        %2350 = vmatpush1.bf16.msra.mxu0 %v2326
        %2351 = vmatprep.subr.bf16.mxu0 0
        %2352 = vmatpush1.bf16.msra.mxu0 0
        %2353 = vmatprep.subr.bf16.mxu0 0
        %2354 = vmatpush1.bf16.msra.mxu0 0
        %2355 = vmatprep.subr.bf16.mxu0 0
        %2356 = vmatpush1.bf16.msra.mxu0 0
        %2357 = vmatprep.subr.bf16.mxu0 0
        %2358 = vmatpush1.bf16.msra.mxu0 0
        %2359 = vmatprep.subr.bf16.mxu0 0
        %2360 = vmatpush1.bf16.msra.mxu0 0
        %2361 = vmatprep.subr.bf16.mxu0 0
        %2362 = vmatpush1.bf16.msra.mxu0 0
        %2363 = vmatprep.subr.bf16.mxu0 0
        %2364 = vmatpush1.bf16.msra.mxu0 0
        %2365 = vmatprep.subr.bf16.mxu0 0
        %2366 = vmatpush1.bf16.msra.mxu0 0
        %2367 = vmatprep.mubr.bf16.mxu0 0
        %2368 = vmatmul.mubr.bf16.gmra.mrb[0].mxu0 %v1711
        %v2369 = vpop.f32.mrb[0].mxu0
        %v2370 = vpop.f32.mrb[0].mxu0
        %v2371 = vpop.f32.mrb[0].mxu0
        %v2372 = vpop.f32.mrb[0].mxu0
        %2373 = vmatprep.mubr.bf16.mxu0 0
        %2374 = vmatmul.mubr.bf16.gmra.mrb[0].mxu0 %v1712
        %v2375 = vpop.f32.mrb[0].mxu0
        %v2376 = vpop.f32.mrb[0].mxu0
        %v2377 = vpop.f32.mrb[0].mxu0
        %v2378 = vpop.f32.mrb[0].mxu0
        %2379 = vmatprep.mubr.bf16.mxu0 0
        %2380 = vmatmul.mubr.bf16.gmra.mrb[0].mxu0 %v1713
        %v2381 = vpop.f32.mrb[0].mxu0
        %v2382 = vadd.f32 0.0, %v2381
        %v2383 = vpop.f32.mrb[0].mxu0
        %v2384 = vpop.f32.mrb[0].mxu0
        %v2385 = vadd.f32 0.0, %v2384
        %v2386 = vpop.f32.mrb[0].mxu0
        %2387 = vmatprep.mubr.bf16.mxu0 0
        %2388 = vmatmul.mubr.bf16.gmra.mrb[0].mxu0 %v1714
        %v2389 = vpop.f32.mrb[0].mxu0
        %v2390 = vadd.f32 0.0, %v2389
        %v2391 = vpop.f32.mrb[0].mxu0
        %v2392 = vpop.f32.mrb[0].mxu0
        %v2393 = vadd.f32 0.0, %v2392
        %v2394 = vpop.f32.mrb[0].mxu0
        %2395 = vmatprep.mubr.bf16.mxu0 0
        %2396 = vmatmul.mubr.bf16.gmra.mrb[0].mxu0 %v1715
        %v2397 = vpop.f32.mrb[0].mxu0
        %v2398 = vadd.f32 0.0, %v2397
        %v2399 = vpop.f32.mrb[0].mxu0
        %v2400 = vpop.f32.mrb[0].mxu0
        %v2401 = vadd.f32 0.0, %v2400
        %v2402 = vpop.f32.mrb[0].mxu0
        %2403 = vmatprep.mubr.bf16.mxu0 0
        %2404 = vmatmul.mubr.bf16.gmra.mrb[0].mxu0 %v1716
        %v2405 = vpop.f32.mrb[0].mxu0
        %v2406 = vadd.f32 0.0, %v2405
        %v2407 = vpop.f32.mrb[0].mxu0
        %v2408 = vpop.f32.mrb[0].mxu0
        %v2409 = vadd.f32 0.0, %v2408
        %v2410 = vpop.f32.mrb[0].mxu0
        %2411 = vmatprep.mubr.bf16.mxu0 0
        %2412 = vmatmul.mubr.bf16.gmra.mrb[0].mxu0 %v1717
        %v2413 = vpop.f32.mrb[0].mxu0
        %v2414 = vadd.f32 0.0, %v2413
        %v2415 = vpop.f32.mrb[0].mxu0
        %v2416 = vpop.f32.mrb[0].mxu0
        %v2417 = vadd.f32 0.0, %v2416
        %v2418 = vpop.f32.mrb[0].mxu0
        %2419 = vmatprep.mubr.bf16.mxu0 0
        %2420 = vmatmul.mubr.bf16.gmra.mrb[0].mxu0 %v1718
        %v2421 = vpop.f32.mrb[0].mxu0
        %v2422 = vadd.f32 0.0, %v2421
        %v2423 = vpop.f32.mrb[0].mxu0
        %v2424 = vpop.f32.mrb[0].mxu0
        %v2425 = vadd.f32 0.0, %v2424
        %v2426 = vpop.f32.mrb[0].mxu0
        %2427 = vmatprep.mubr.bf16.mxu0 0
        %2428 = vmatmul.mubr.bf16.gmra.mrb[0].mxu0 %v1719
        %v2429 = vpop.f32.mrb[0].mxu0
        %v2430 = vadd.f32 0.0, %v2429
        %v2431 = vpop.f32.mrb[0].mxu0
        %v2432 = vpop.f32.mrb[0].mxu0
        %v2433 = vadd.f32 0.0, %v2432
        %v2434 = vpop.f32.mrb[0].mxu0
        %2435 = vmatprep.mubr.bf16.mxu0 0
        %2436 = vmatmul.mubr.bf16.gmra.mrb[0].mxu0 %v1720
        %v2437 = vpop.f32.mrb[0].mxu0
        %v2438 = vadd.f32 0.0, %v2437
        %v2439 = vpop.f32.mrb[0].mxu0
        %v2440 = vpop.f32.mrb[0].mxu0
        %v2441 = vadd.f32 0.0, %v2440
        %v2442 = vpop.f32.mrb[0].mxu0
        %2443 = vmatprep.mubr.bf16.mxu0 0
        %2444 = vmatmul.mubr.bf16.gmra.mrb[0].mxu0 %v1721
        %v2445 = vpop.f32.mrb[0].mxu0
        %v2446 = vadd.f32 0.0, %v2445
        %v2447 = vpop.f32.mrb[0].mxu0
        %v2448 = vpop.f32.mrb[0].mxu0
        %v2449 = vadd.f32 0.0, %v2448
        %v2450 = vpop.f32.mrb[0].mxu0
        %2451 = vmatprep.mubr.bf16.mxu0 0
        %2452 = vmatmul.mubr.bf16.gmra.mrb[0].mxu0 %v1722
        %v2453 = vpop.f32.mrb[0].mxu0
        %v2454 = vadd.f32 0.0, %v2453
        %v2455 = vpop.f32.mrb[0].mxu0
        %v2456 = vpop.f32.mrb[0].mxu0
        %v2457 = vadd.f32 0.0, %v2456
        %v2458 = vpop.f32.mrb[0].mxu0
        %2459 = vmatprep.mubr.bf16.mxu0 0
        %2460 = vmatmul.mubr.bf16.gmra.mrb[0].mxu0 %v1723
        %v2461 = vpop.f32.mrb[0].mxu0
        %v2462 = vadd.f32 0.0, %v2461
        %v2463 = vpop.f32.mrb[0].mxu0
        %v2464 = vpop.f32.mrb[0].mxu0
        %v2465 = vadd.f32 0.0, %v2464
        %v2466 = vpop.f32.mrb[0].mxu0
        %2467 = vmatprep.mubr.bf16.mxu0 0
        %2468 = vmatmul.mubr.bf16.gmra.mrb[0].mxu0 %v1724
        %v2469 = vpop.f32.mrb[0].mxu0
        %v2470 = vadd.f32 0.0, %v2469
        %v2471 = vpop.f32.mrb[0].mxu0
        %v2472 = vpop.f32.mrb[0].mxu0
        %v2473 = vadd.f32 0.0, %v2472
        %v2474 = vpop.f32.mrb[0].mxu0
        %2475 = vmatprep.mubr.bf16.mxu0 0
        %2476 = vmatmul.mubr.bf16.gmra.mrb[0].mxu0 %v1725
        %v2477 = vpop.f32.mrb[0].mxu0
        %v2478 = vadd.f32 0.0, %v2477
        %v2479 = vpop.f32.mrb[0].mxu0
        %v2480 = vpop.f32.mrb[0].mxu0
        %v2481 = vadd.f32 0.0, %v2480
        %v2482 = vpop.f32.mrb[0].mxu0
        %2483 = vmatprep.mubr.bf16.mxu0 0
        %2484 = vmatmul.mubr.bf16.gmra.mrb[0].mxu0 %v1726
        %v2485 = vpop.f32.mrb[0].mxu0
        %v2486 = vadd.f32 0.0, %v2485
        %v2487 = vpop.f32.mrb[0].mxu0
        %v2488 = vpop.f32.mrb[0].mxu0
        %v2489 = vadd.f32 0.0, %v2488
        %v2490 = vpop.f32.mrb[0].mxu0
        %2491 = vmatprep.mubr.bf16.mxu0 0
        %2492 = vmatmul.mubr.bf16.gmra.mrb[0].mxu0 %v1727
        %v2493 = vpop.f32.mrb[0].mxu0
        %v2494 = vadd.f32 0.0, %v2493
        %v2495 = vpop.f32.mrb[0].mxu0
        %v2496 = vpop.f32.mrb[0].mxu0
        %v2497 = vadd.f32 0.0, %v2496
        %v2498 = vpop.f32.mrb[0].mxu0
        %2499 = vmatprep.mubr.bf16.mxu0 0
        %2500 = vmatmul.mubr.bf16.gmra.mrb[0].mxu0 %v1728
        %v2501 = vpop.f32.mrb[0].mxu0
        %v2502 = vadd.f32 0.0, %v2501
        %v2503 = vpop.f32.mrb[0].mxu0
        %v2504 = vpop.f32.mrb[0].mxu0
        %v2505 = vadd.f32 0.0, %v2504
        %v2506 = vpop.f32.mrb[0].mxu0
        %2507 = vdwg.mxu0
        %v2508 = vadd.f32 %v2238, %v2382
        %v2509 = vadd.f32 %v2239, %v2385
        %v2510 = vadd.f32 %v2240, %v2390
        %v2511 = vadd.f32 %v2241, %v2393
        %v2512 = vadd.f32 %v2242, %v2398
        %v2513 = vadd.f32 %v2243, %v2401
        %v2514 = vadd.f32 %v2244, %v2406
        %v2515 = vadd.f32 %v2245, %v2409
        %v2516 = vadd.f32 %v2246, %v2414
        %v2517 = vadd.f32 %v2247, %v2417
        %v2518 = vadd.f32 %v2248, %v2422
        %v2519 = vadd.f32 %v2249, %v2425
        %v2520 = vadd.f32 %v2250, %v2430
        %v2521 = vadd.f32 %v2251, %v2433
        %v2522 = vadd.f32 %v2252, %v2438
        %v2523 = vadd.f32 %v2253, %v2441
        %v2524 = vadd.f32 %v2254, %v2446
        %v2525 = vadd.f32 %v2255, %v2449
        %v2526 = vadd.f32 %v2256, %v2454
        %v2527 = vadd.f32 %v2257, %v2457
        %v2528 = vadd.f32 %v2258, %v2462
        %v2529 = vadd.f32 %v2259, %v2465
        %v2530 = vadd.f32 %v2260, %v2470
        %v2531 = vadd.f32 %v2261, %v2473
        %v2532 = vadd.f32 %v2262, %v2478
        %v2533 = vadd.f32 %v2263, %v2481
        %v2534 = vadd.f32 %v2264, %v2486
        %v2535 = vadd.f32 %v2265, %v2489
        %v2536 = vadd.f32 %v2266, %v2494
        %v2537 = vadd.f32 %v2267, %v2497
        %v2538 = vadd.f32 %v2268, %v2502
        %v2539 = vadd.f32 %v2269, %v2505
        %v2540 = vld [vmem:[%s183] sm:$0xe]
        %v2541 = vld [vmem:[%s183 + $0xc] sm:$0xe]
        %v2542 = vld [vmem:[%s183 + $0x18] sm:$0xe]
        %v2543 = vld [vmem:[%s183 + $0x24] sm:$0xe]
        %v2544 = vld [vmem:[%s183 + $0x30] sm:$0xe]
        %v2545 = vld [vmem:[%s183 + $0x3c] sm:$0xe]
        %v2546 = vld [vmem:[%s183 + $0x48] sm:$0xe]
        %v2547 = vld [vmem:[%s183 + $0x54] sm:$0xe]
        %v2548 = vld [vmem:[%s183 + $0x60] sm:$0xe]
        %v2549 = vld [vmem:[%s183 + $0x6c] sm:$0xe]
        %v2550 = vld [vmem:[%s183 + $0x78] sm:$0xe]
        %v2551 = vld [vmem:[%s183 + $0x84] sm:$0xe]
        %v2552 = vld [vmem:[%s183 + $0x90] sm:$0xe]
        %v2553 = vld [vmem:[%s183 + $0x9c] sm:$0xe]
        %v2554 = vld [vmem:[%s183 + $0xa8] sm:$0xe]
        %v2555 = vld [vmem:[%s183 + $0xb4] sm:$0xe]
        %v2556 = vld [vmem:[%s183 + $0xc0] sm:$0xe]
        %v2557 = vld [vmem:[%s183 + $0xcc] sm:$0xe]
        %vm2612 = vcmask 1042432
        %vm2613 = vcmask 1046532
        %vm2614 = vmor %vm2612, %vm2613
        %v2615 = vrot.slane %v2540, 5
        %v2616 = vrot.slane %v2615, 4
        %v2617 = vrot.slane %v1170, 5
        %v2618 = vsel %vm2614, %v2616, %v2617
        %v2619 = vrot.slane %v2617, 4
        %v2620 = vrot.slane %v1171, 5
        %v2621 = vsel %vm2614, %v2619, %v2620
        %v2622 = vrot.slane %v2541, 5
        %v2623 = vrot.slane %v2622, 4
        %v2624 = vrot.slane %v1173, 5
        %v2625 = vsel %vm2614, %v2623, %v2624
        %v2626 = vrot.slane %v2624, 4
        %v2627 = vrot.slane %v1174, 5
        %v2628 = vsel %vm2614, %v2626, %v2627
        %v2629 = vrot.slane %v2542, 5
        %v2630 = vrot.slane %v2629, 4
        %v2631 = vrot.slane %v1176, 5
        %v2632 = vsel %vm2614, %v2630, %v2631
        %v2633 = vrot.slane %v2631, 4
        %v2634 = vrot.slane %v1177, 5
        %v2635 = vsel %vm2614, %v2633, %v2634
        %v2636 = vrot.slane %v2543, 5
        %v2637 = vrot.slane %v2636, 4
        %v2638 = vrot.slane %v1179, 5
        %v2639 = vsel %vm2614, %v2637, %v2638
        %v2640 = vrot.slane %v2638, 4
        %v2641 = vrot.slane %v1180, 5
        %v2642 = vsel %vm2614, %v2640, %v2641
        %v2643 = vrot.slane %v2544, 5
        %v2644 = vrot.slane %v2643, 4
        %v2645 = vrot.slane %v1182, 5
        %v2646 = vsel %vm2614, %v2644, %v2645
        %v2647 = vrot.slane %v2645, 4
        %v2648 = vrot.slane %v1183, 5
        %v2649 = vsel %vm2614, %v2647, %v2648
        %v2650 = vrot.slane %v2545, 5
        %v2651 = vrot.slane %v2650, 4
        %v2652 = vrot.slane %v1185, 5
        %v2653 = vsel %vm2614, %v2651, %v2652
        %v2654 = vrot.slane %v2652, 4
        %v2655 = vrot.slane %v1186, 5
        %v2656 = vsel %vm2614, %v2654, %v2655
        %v2657 = vrot.slane %v2546, 5
        %v2658 = vrot.slane %v2657, 4
        %v2659 = vrot.slane %v1188, 5
        %v2660 = vsel %vm2614, %v2658, %v2659
        %v2661 = vrot.slane %v2659, 4
        %v2662 = vrot.slane %v1189, 5
        %v2663 = vsel %vm2614, %v2661, %v2662
        %v2664 = vrot.slane %v2547, 5
        %v2665 = vrot.slane %v2664, 4
        %v2666 = vrot.slane %v1191, 5
        %v2667 = vsel %vm2614, %v2665, %v2666
        %v2668 = vrot.slane %v2666, 4
        %v2669 = vrot.slane %v1192, 5
        %v2670 = vsel %vm2614, %v2668, %v2669
        %v2671 = vrot.slane %v2548, 5
        %v2672 = vrot.slane %v2671, 4
        %v2673 = vrot.slane %v1194, 5
        %v2674 = vsel %vm2614, %v2672, %v2673
        %v2675 = vrot.slane %v2673, 4
        %v2676 = vrot.slane %v1195, 5
        %v2677 = vsel %vm2614, %v2675, %v2676
        %v2678 = vrot.slane %v2549, 5
        %v2679 = vrot.slane %v2678, 4
        %v2680 = vrot.slane %v1197, 5
        %v2681 = vsel %vm2614, %v2679, %v2680
        %v2682 = vrot.slane %v2680, 4
        %v2683 = vrot.slane %v1198, 5
        %v2684 = vsel %vm2614, %v2682, %v2683
        %v2685 = vrot.slane %v2550, 5
        %v2686 = vrot.slane %v2685, 4
        %v2687 = vrot.slane %v1200, 5
        %v2688 = vsel %vm2614, %v2686, %v2687
        %v2689 = vrot.slane %v2687, 4
        %v2690 = vrot.slane %v1201, 5
        %v2691 = vsel %vm2614, %v2689, %v2690
        %v2692 = vrot.slane %v2551, 5
        %v2693 = vrot.slane %v2692, 4
        %v2694 = vrot.slane %v1203, 5
        %v2695 = vsel %vm2614, %v2693, %v2694
        %v2696 = vrot.slane %v2694, 4
        %v2697 = vrot.slane %v1204, 5
        %v2698 = vsel %vm2614, %v2696, %v2697
        %v2699 = vrot.slane %v2552, 5
        %v2700 = vrot.slane %v2699, 4
        %v2701 = vrot.slane %v1206, 5
        %v2702 = vsel %vm2614, %v2700, %v2701
        %v2703 = vrot.slane %v2701, 4
        %v2704 = vrot.slane %v1207, 5
        %v2705 = vsel %vm2614, %v2703, %v2704
        %v2706 = vrot.slane %v2553, 5
        %v2707 = vrot.slane %v2706, 4
        %v2708 = vrot.slane %v1209, 5
        %v2709 = vsel %vm2614, %v2707, %v2708
        %v2710 = vrot.slane %v2708, 4
        %v2711 = vrot.slane %v1210, 5
        %v2712 = vsel %vm2614, %v2710, %v2711
        %v2713 = vrot.slane %v2554, 5
        %v2714 = vrot.slane %v2713, 4
        %v2715 = vrot.slane %v1212, 5
        %v2716 = vsel %vm2614, %v2714, %v2715
        %v2717 = vrot.slane %v2715, 4
        %v2718 = vrot.slane %v1213, 5
        %v2719 = vsel %vm2614, %v2717, %v2718
        %v2720 = vrot.slane %v2555, 5
        %v2721 = vrot.slane %v2720, 4
        %v2722 = vrot.slane %v1215, 5
        %v2723 = vsel %vm2614, %v2721, %v2722
        %v2724 = vrot.slane %v2722, 4
        %v2725 = vrot.slane %v1216, 5
        %v2726 = vsel %vm2614, %v2724, %v2725
        %v2727 = vrot.slane %v2556, 5
        %v2728 = vrot.slane %v2727, 4
        %v2729 = vrot.slane %v1218, 5
        %v2730 = vsel %vm2614, %v2728, %v2729
        %v2731 = vrot.slane %v2729, 4
        %v2732 = vrot.slane %v1219, 5
        %v2733 = vsel %vm2614, %v2731, %v2732
        %v2734 = vrot.slane %v2557, 5
        %v2735 = vrot.slane %v2734, 4
        %v2736 = vrot.slane %v1221, 5
        %v2737 = vsel %vm2614, %v2735, %v2736
        %v2738 = vrot.slane %v2736, 4
        %v2739 = vrot.slane %v1222, 5
        %v2740 = vsel %vm2614, %v2738, %v2739
        %s2741 = scalar_lea.vmem [#allocation5], 128
        %v2742 = vld [vmem:[%s2741] sm:$0xf]
        %v2743 = vld [vmem:[%s2741 + $0x4] sm:$0xf]
        %v2744 = vld [vmem:[%s2741 + $0x8] sm:$0xf]
        %v2745 = vld [vmem:[%s2741 + $0xc] sm:$0xf]
        %v2746 = vld [vmem:[%s2741 + $0x10] sm:$0xf]
        %v2747 = vld [vmem:[%s2741 + $0x14] sm:$0xf]
        %v2748 = vld [vmem:[%s2741 + $0x18] sm:$0xf]
        %v2749 = vld [vmem:[%s2741 + $0x1c] sm:$0xf]
        %v2750 = vld [vmem:[%s2741 + $0x20] sm:$0xf]
        %v2751 = vld [vmem:[%s2741 + $0x24] sm:$0xf]
        %v2752 = vld [vmem:[%s2741 + $0x28] sm:$0xf]
        %v2753 = vld [vmem:[%s2741 + $0x2c] sm:$0xf]
        %v2754 = vld [vmem:[%s2741 + $0x30] sm:$0xf]
        %v2755 = vld [vmem:[%s2741 + $0x34] sm:$0xf]
        %v2756 = vld [vmem:[%s2741 + $0x38] sm:$0xf]
        %v2757 = vld [vmem:[%s2741 + $0x3c] sm:$0xf]
        %v2758 = vunpack.c.l.b16 %v2618
        %v2759 = vunpack.c.l.b16 %v2621
        %v2760 = vunpack.c.l.b16 %v2625
        %v2761 = vunpack.c.l.b16 %v2628
        %v2762 = vunpack.c.l.b16 %v2632
        %v2763 = vunpack.c.l.b16 %v2635
        %v2764 = vunpack.c.l.b16 %v2639
        %v2765 = vunpack.c.l.b16 %v2642
        %v2766 = vunpack.c.l.b16 %v2646
        %v2767 = vunpack.c.l.b16 %v2649
        %v2768 = vunpack.c.l.b16 %v2653
        %v2769 = vunpack.c.l.b16 %v2656
        %v2770 = vunpack.c.l.b16 %v2660
        %v2771 = vunpack.c.l.b16 %v2663
        %v2772 = vunpack.c.l.b16 %v2667
        %v2773 = vunpack.c.l.b16 %v2670
        %v2774 = vunpack.c.l.b16 %v2674
        %v2775 = vunpack.c.l.b16 %v2677
        %v2776 = vunpack.c.l.b16 %v2681
        %v2777 = vunpack.c.l.b16 %v2684
        %v2778 = vunpack.c.l.b16 %v2688
        %v2779 = vunpack.c.l.b16 %v2691
        %v2780 = vunpack.c.l.b16 %v2695
        %v2781 = vunpack.c.l.b16 %v2698
        %v2782 = vunpack.c.l.b16 %v2702
        %v2783 = vunpack.c.l.b16 %v2705
        %v2784 = vunpack.c.l.b16 %v2709
        %v2785 = vunpack.c.l.b16 %v2712
        %v2786 = vunpack.c.l.b16 %v2716
        %v2787 = vunpack.c.l.b16 %v2719
        %v2788 = vunpack.c.l.b16 %v2723
        %v2789 = vunpack.c.l.b16 %v2726
        %v2790 = vunpack.c.l.b16 %v2730
        %v2791 = vunpack.c.l.b16 %v2733
        %v2792 = vunpack.c.l.b16 %v2737
        %v2793 = vunpack.c.l.b16 %v2740
        %v2794 = vpack.c.b16 %v2759, %v2758
        %v2795 = vpack.c.b16 %v2761, %v2760
        %v2796 = vpack.c.b16 %v2763, %v2762
        %v2797 = vpack.c.b16 %v2765, %v2764
        %v2798 = vpack.c.b16 %v2767, %v2766
        %v2799 = vpack.c.b16 %v2769, %v2768
        %v2800 = vpack.c.b16 %v2771, %v2770
        %v2801 = vpack.c.b16 %v2773, %v2772
        %v2802 = vpack.c.b16 %v2775, %v2774
        %v2803 = vpack.c.b16 %v2777, %v2776
        %v2804 = vpack.c.b16 %v2779, %v2778
        %v2805 = vpack.c.b16 %v2781, %v2780
        %v2806 = vpack.c.b16 %v2783, %v2782
        %v2807 = vpack.c.b16 %v2785, %v2784
        %v2808 = vpack.c.b16 %v2787, %v2786
        %v2809 = vpack.c.b16 %v2789, %v2788
        %v2810 = vpack.c.b16 %v2791, %v2790
        %v2811 = vpack.c.b16 %v2793, %v2792
        %v2846 = vunpack.c.l.b16 %v2742
        %v2847 = vunpack.c.l.b16 %v2743
        %v2848 = vunpack.c.l.b16 %v2744
        %v2849 = vunpack.c.l.b16 %v2745
        %v2850 = vunpack.c.l.b16 %v2746
        %v2851 = vunpack.c.l.b16 %v2747
        %v2852 = vunpack.c.l.b16 %v2748
        %v2853 = vunpack.c.l.b16 %v2749
        %v2854 = vunpack.c.l.b16 %v2750
        %v2855 = vunpack.c.l.b16 %v2751
        %v2856 = vunpack.c.l.b16 %v2752
        %v2857 = vunpack.c.l.b16 %v2753
        %v2858 = vunpack.c.l.b16 %v2754
        %v2859 = vunpack.c.l.b16 %v2755
        %v2860 = vunpack.c.l.b16 %v2756
        %v2861 = vunpack.c.l.b16 %v2757
        %v2862 = vpack.c.b16 %v2847, %v2846
        %v2863 = vpack.c.b16 %v2849, %v2848
        %v2864 = vpack.c.b16 %v2851, %v2850
        %v2865 = vpack.c.b16 %v2853, %v2852
        %v2866 = vpack.c.b16 %v2855, %v2854
        %v2867 = vpack.c.b16 %v2857, %v2856
        %v2868 = vpack.c.b16 %v2859, %v2858
        %v2869 = vpack.c.b16 %v2861, %v2860
        %2878 = vmatprep.subr.bf16.mxu0 0
        %2879 = vmatpush1.bf16.msra.mxu0 %v2862
        %2880 = vmatprep.subr.bf16.mxu0 0
        %2881 = vmatpush1.bf16.msra.mxu0 %v2863
        %2882 = vmatprep.subr.bf16.mxu0 0
        %2883 = vmatpush1.bf16.msra.mxu0 %v2864
        %2884 = vmatprep.subr.bf16.mxu0 0
        %2885 = vmatpush1.bf16.msra.mxu0 %v2865
        %2886 = vmatprep.subr.bf16.mxu0 0
        %2887 = vmatpush1.bf16.msra.mxu0 %v2866
        %2888 = vmatprep.subr.bf16.mxu0 0
        %2889 = vmatpush1.bf16.msra.mxu0 %v2867
        %2890 = vmatprep.subr.bf16.mxu0 0
        %2891 = vmatpush1.bf16.msra.mxu0 %v2868
        %2892 = vmatprep.subr.bf16.mxu0 0
        %2893 = vmatpush1.bf16.msra.mxu0 %v2869
        %2894 = vmatprep.subr.bf16.mxu0 0
        %2895 = vmatpush1.bf16.msra.mxu0 0
        %2896 = vmatprep.subr.bf16.mxu0 0
        %2897 = vmatpush1.bf16.msra.mxu0 0
        %2898 = vmatprep.subr.bf16.mxu0 0
        %2899 = vmatpush1.bf16.msra.mxu0 0
        %2900 = vmatprep.subr.bf16.mxu0 0
        %2901 = vmatpush1.bf16.msra.mxu0 0
        %2902 = vmatprep.subr.bf16.mxu0 0
        %2903 = vmatpush1.bf16.msra.mxu0 0
        %2904 = vmatprep.subr.bf16.mxu0 0
        %2905 = vmatpush1.bf16.msra.mxu0 0
        %2906 = vmatprep.subr.bf16.mxu0 0
        %2907 = vmatpush1.bf16.msra.mxu0 0
        %2908 = vmatprep.subr.bf16.mxu0 0
        %2909 = vmatpush1.bf16.msra.mxu0 0
        %2910 = vmatprep.mubr.bf16.mxu0 0
        %2911 = vmatmul.mubr.bf16.gmra.mrb[0].mxu0 %v2794
        %v2912 = vpop.f32.mrb[0].mxu0
        %v2913 = vadd.f32 0.0, %v2912
        %v2914 = vpop.f32.mrb[0].mxu0
        %v2915 = vpop.f32.mrb[0].mxu0
        %v2916 = vadd.f32 0.0, %v2915
        %v2917 = vpop.f32.mrb[0].mxu0
        %2918 = vmatprep.mubr.bf16.mxu0 0
        %2919 = vmatmul.mubr.bf16.gmra.mrb[0].mxu0 %v2795
        %v2920 = vpop.f32.mrb[0].mxu0
        %v2921 = vadd.f32 0.0, %v2920
        %v2922 = vpop.f32.mrb[0].mxu0
        %v2923 = vpop.f32.mrb[0].mxu0
        %v2924 = vadd.f32 0.0, %v2923
        %v2925 = vpop.f32.mrb[0].mxu0
        %2926 = vmatprep.mubr.bf16.mxu0 0
        %2927 = vmatmul.mubr.bf16.gmra.mrb[0].mxu0 %v2796
        %v2928 = vpop.f32.mrb[0].mxu0
        %v2929 = vadd.f32 0.0, %v2928
        %v2930 = vpop.f32.mrb[0].mxu0
        %v2931 = vpop.f32.mrb[0].mxu0
        %v2932 = vadd.f32 0.0, %v2931
        %v2933 = vpop.f32.mrb[0].mxu0
        %2934 = vmatprep.mubr.bf16.mxu0 0
        %2935 = vmatmul.mubr.bf16.gmra.mrb[0].mxu0 %v2797
        %v2936 = vpop.f32.mrb[0].mxu0
        %v2937 = vadd.f32 0.0, %v2936
        %v2938 = vpop.f32.mrb[0].mxu0
        %v2939 = vpop.f32.mrb[0].mxu0
        %v2940 = vadd.f32 0.0, %v2939
        %v2941 = vpop.f32.mrb[0].mxu0
        %2942 = vmatprep.mubr.bf16.mxu0 0
        %2943 = vmatmul.mubr.bf16.gmra.mrb[0].mxu0 %v2798
        %v2944 = vpop.f32.mrb[0].mxu0
        %v2945 = vadd.f32 0.0, %v2944
        %v2946 = vpop.f32.mrb[0].mxu0
        %v2947 = vpop.f32.mrb[0].mxu0
        %v2948 = vadd.f32 0.0, %v2947
        %v2949 = vpop.f32.mrb[0].mxu0
        %2950 = vmatprep.mubr.bf16.mxu0 0
        %2951 = vmatmul.mubr.bf16.gmra.mrb[0].mxu0 %v2799
        %v2952 = vpop.f32.mrb[0].mxu0
        %v2953 = vadd.f32 0.0, %v2952
        %v2954 = vpop.f32.mrb[0].mxu0
        %v2955 = vpop.f32.mrb[0].mxu0
        %v2956 = vadd.f32 0.0, %v2955
        %v2957 = vpop.f32.mrb[0].mxu0
        %2958 = vmatprep.mubr.bf16.mxu0 0
        %2959 = vmatmul.mubr.bf16.gmra.mrb[0].mxu0 %v2800
        %v2960 = vpop.f32.mrb[0].mxu0
        %v2961 = vadd.f32 0.0, %v2960
        %v2962 = vpop.f32.mrb[0].mxu0
        %v2963 = vpop.f32.mrb[0].mxu0
        %v2964 = vadd.f32 0.0, %v2963
        %v2965 = vpop.f32.mrb[0].mxu0
        %2966 = vmatprep.mubr.bf16.mxu0 0
        %2967 = vmatmul.mubr.bf16.gmra.mrb[0].mxu0 %v2801
        %v2968 = vpop.f32.mrb[0].mxu0
        %v2969 = vadd.f32 0.0, %v2968
        %v2970 = vpop.f32.mrb[0].mxu0
        %v2971 = vpop.f32.mrb[0].mxu0
        %v2972 = vadd.f32 0.0, %v2971
        %v2973 = vpop.f32.mrb[0].mxu0
        %2974 = vmatprep.mubr.bf16.mxu0 0
        %2975 = vmatmul.mubr.bf16.gmra.mrb[0].mxu0 %v2802
        %v2976 = vpop.f32.mrb[0].mxu0
        %v2977 = vadd.f32 0.0, %v2976
        %v2978 = vpop.f32.mrb[0].mxu0
        %v2979 = vpop.f32.mrb[0].mxu0
        %v2980 = vadd.f32 0.0, %v2979
        %v2981 = vpop.f32.mrb[0].mxu0
        %2982 = vmatprep.mubr.bf16.mxu0 0
        %2983 = vmatmul.mubr.bf16.gmra.mrb[0].mxu0 %v2803
        %v2984 = vpop.f32.mrb[0].mxu0
        %v2985 = vadd.f32 0.0, %v2984
        %v2986 = vpop.f32.mrb[0].mxu0
        %v2987 = vpop.f32.mrb[0].mxu0
        %v2988 = vadd.f32 0.0, %v2987
        %v2989 = vpop.f32.mrb[0].mxu0
        %2990 = vmatprep.mubr.bf16.mxu0 0
        %2991 = vmatmul.mubr.bf16.gmra.mrb[0].mxu0 %v2804
        %v2992 = vpop.f32.mrb[0].mxu0
        %v2993 = vadd.f32 0.0, %v2992
        %v2994 = vpop.f32.mrb[0].mxu0
        %v2995 = vpop.f32.mrb[0].mxu0
        %v2996 = vadd.f32 0.0, %v2995
        %v2997 = vpop.f32.mrb[0].mxu0
        %2998 = vmatprep.mubr.bf16.mxu0 0
        %2999 = vmatmul.mubr.bf16.gmra.mrb[0].mxu0 %v2805
        %v3000 = vpop.f32.mrb[0].mxu0
        %v3001 = vadd.f32 0.0, %v3000
        %v3002 = vpop.f32.mrb[0].mxu0
        %v3003 = vpop.f32.mrb[0].mxu0
        %v3004 = vadd.f32 0.0, %v3003
        %v3005 = vpop.f32.mrb[0].mxu0
        %3006 = vmatprep.mubr.bf16.mxu0 0
        %3007 = vmatmul.mubr.bf16.gmra.mrb[0].mxu0 %v2806
        %v3008 = vpop.f32.mrb[0].mxu0
        %v3009 = vadd.f32 0.0, %v3008
        %v3010 = vpop.f32.mrb[0].mxu0
        %v3011 = vpop.f32.mrb[0].mxu0
        %v3012 = vadd.f32 0.0, %v3011
        %v3013 = vpop.f32.mrb[0].mxu0
        %3014 = vmatprep.mubr.bf16.mxu0 0
        %3015 = vmatmul.mubr.bf16.gmra.mrb[0].mxu0 %v2807
        %v3016 = vpop.f32.mrb[0].mxu0
        %v3017 = vadd.f32 0.0, %v3016
        %v3018 = vpop.f32.mrb[0].mxu0
        %v3019 = vpop.f32.mrb[0].mxu0
        %v3020 = vadd.f32 0.0, %v3019
        %v3021 = vpop.f32.mrb[0].mxu0
        %3022 = vmatprep.mubr.bf16.mxu0 0
        %3023 = vmatmul.mubr.bf16.gmra.mrb[0].mxu0 %v2808
        %v3024 = vpop.f32.mrb[0].mxu0
        %v3025 = vadd.f32 0.0, %v3024
        %v3026 = vpop.f32.mrb[0].mxu0
        %v3027 = vpop.f32.mrb[0].mxu0
        %v3028 = vadd.f32 0.0, %v3027
        %v3029 = vpop.f32.mrb[0].mxu0
        %3030 = vmatprep.mubr.bf16.mxu0 0
        %3031 = vmatmul.mubr.bf16.gmra.mrb[0].mxu0 %v2809
        %v3032 = vpop.f32.mrb[0].mxu0
        %v3033 = vadd.f32 0.0, %v3032
        %v3034 = vpop.f32.mrb[0].mxu0
        %v3035 = vpop.f32.mrb[0].mxu0
        %v3036 = vadd.f32 0.0, %v3035
        %v3037 = vpop.f32.mrb[0].mxu0
        %3038 = vmatprep.mubr.bf16.mxu0 0
        %3039 = vmatmul.mubr.bf16.gmra.mrb[0].mxu0 %v2810
        %v3040 = vpop.f32.mrb[0].mxu0
        %v3041 = vpop.f32.mrb[0].mxu0
        %v3042 = vpop.f32.mrb[0].mxu0
        %v3043 = vpop.f32.mrb[0].mxu0
        %3044 = vmatprep.mubr.bf16.mxu0 0
        %3045 = vmatmul.mubr.bf16.gmra.mrb[0].mxu0 %v2811
        %v3046 = vpop.f32.mrb[0].mxu0
        %v3047 = vpop.f32.mrb[0].mxu0
        %v3048 = vpop.f32.mrb[0].mxu0
        %v3049 = vpop.f32.mrb[0].mxu0
        %3050 = vdwg.mxu0
        %v3051 = vadd.f32 %v2508, %v2913
        %v3052 = vadd.f32 %v2509, %v2916
        %v3053 = vadd.f32 %v2510, %v2921
        %v3054 = vadd.f32 %v2511, %v2924
        %v3055 = vadd.f32 %v2512, %v2929
        %v3056 = vadd.f32 %v2513, %v2932
        %v3057 = vadd.f32 %v2514, %v2937
        %v3058 = vadd.f32 %v2515, %v2940
        %v3059 = vadd.f32 %v2516, %v2945
        %v3060 = vadd.f32 %v2517, %v2948
        %v3061 = vadd.f32 %v2518, %v2953
        %v3062 = vadd.f32 %v2519, %v2956
        %v3063 = vadd.f32 %v2520, %v2961
        %v3064 = vadd.f32 %v2521, %v2964
        %v3065 = vadd.f32 %v2522, %v2969
        %v3066 = vadd.f32 %v2523, %v2972
        %v3067 = vadd.f32 %v2524, %v2977
        %v3068 = vadd.f32 %v2525, %v2980
        %v3069 = vadd.f32 %v2526, %v2985
        %v3070 = vadd.f32 %v2527, %v2988
        %v3071 = vadd.f32 %v2528, %v2993
        %v3072 = vadd.f32 %v2529, %v2996
        %v3073 = vadd.f32 %v2530, %v3001
        %v3074 = vadd.f32 %v2531, %v3004
        %v3075 = vadd.f32 %v2532, %v3009
        %v3076 = vadd.f32 %v2533, %v3012
        %v3077 = vadd.f32 %v2534, %v3017
        %v3078 = vadd.f32 %v2535, %v3020
        %v3079 = vadd.f32 %v2536, %v3025
        %v3080 = vadd.f32 %v2537, %v3028
        %v3081 = vadd.f32 %v2538, %v3033
        %v3082 = vadd.f32 %v2539, %v3036
        %s3083 = scalar_lea.vmem [#allocation5], 320
        %v3084 = vld [vmem:[%s3083] sm:$0xf]
        %v3085 = vld [vmem:[%s3083 + $0x4] sm:$0xf]
        %v3086 = vld [vmem:[%s3083 + $0x8] sm:$0xf]
        %v3087 = vld [vmem:[%s3083 + $0xc] sm:$0xf]
        %v3088 = vld [vmem:[%s3083 + $0x10] sm:$0xf]
        %v3089 = vld [vmem:[%s3083 + $0x14] sm:$0xf]
        %v3090 = vld [vmem:[%s3083 + $0x18] sm:$0xf]
        %v3091 = vld [vmem:[%s3083 + $0x1c] sm:$0xf]
        %v3092 = vld [vmem:[%s3083 + $0x20] sm:$0xf]
        %v3093 = vld [vmem:[%s3083 + $0x24] sm:$0xf]
        %v3094 = vld [vmem:[%s3083 + $0x28] sm:$0xf]
        %v3095 = vld [vmem:[%s3083 + $0x2c] sm:$0xf]
        %v3096 = vld [vmem:[%s3083 + $0x30] sm:$0xf]
        %v3097 = vld [vmem:[%s3083 + $0x34] sm:$0xf]
        %v3098 = vld [vmem:[%s3083 + $0x38] sm:$0xf]
        %v3099 = vld [vmem:[%s3083 + $0x3c] sm:$0xf]
        %v3116 = vunpack.c.l.b16 %v3084
        %v3117 = vunpack.c.l.b16 %v3085
        %v3118 = vunpack.c.l.b16 %v3086
        %v3119 = vunpack.c.l.b16 %v3087
        %v3120 = vunpack.c.l.b16 %v3088
        %v3121 = vunpack.c.l.b16 %v3089
        %v3122 = vunpack.c.l.b16 %v3090
        %v3123 = vunpack.c.l.b16 %v3091
        %v3124 = vunpack.c.l.b16 %v3092
        %v3125 = vunpack.c.l.b16 %v3093
        %v3126 = vunpack.c.l.b16 %v3094
        %v3127 = vunpack.c.l.b16 %v3095
        %v3128 = vunpack.c.l.b16 %v3096
        %v3129 = vunpack.c.l.b16 %v3097
        %v3130 = vunpack.c.l.b16 %v3098
        %v3131 = vunpack.c.l.b16 %v3099
        %v3132 = vpack.c.b16 %v3117, %v3116
        %v3133 = vpack.c.b16 %v3119, %v3118
        %v3134 = vpack.c.b16 %v3121, %v3120
        %v3135 = vpack.c.b16 %v3123, %v3122
        %v3136 = vpack.c.b16 %v3125, %v3124
        %v3137 = vpack.c.b16 %v3127, %v3126
        %v3138 = vpack.c.b16 %v3129, %v3128
        %v3139 = vpack.c.b16 %v3131, %v3130
        %3148 = vmatprep.subr.bf16.mxu0 0
        %3149 = vmatpush1.bf16.msra.mxu0 %v3132
        %3150 = vmatprep.subr.bf16.mxu0 0
        %3151 = vmatpush1.bf16.msra.mxu0 %v3133
        %3152 = vmatprep.subr.bf16.mxu0 0
        %3153 = vmatpush1.bf16.msra.mxu0 %v3134
        %3154 = vmatprep.subr.bf16.mxu0 0
        %3155 = vmatpush1.bf16.msra.mxu0 %v3135
        %3156 = vmatprep.subr.bf16.mxu0 0
        %3157 = vmatpush1.bf16.msra.mxu0 %v3136
        %3158 = vmatprep.subr.bf16.mxu0 0
        %3159 = vmatpush1.bf16.msra.mxu0 %v3137
        %3160 = vmatprep.subr.bf16.mxu0 0
        %3161 = vmatpush1.bf16.msra.mxu0 %v3138
        %3162 = vmatprep.subr.bf16.mxu0 0
        %3163 = vmatpush1.bf16.msra.mxu0 %v3139
        %3164 = vmatprep.subr.bf16.mxu0 0
        %3165 = vmatpush1.bf16.msra.mxu0 0
        %3166 = vmatprep.subr.bf16.mxu0 0
        %3167 = vmatpush1.bf16.msra.mxu0 0
        %3168 = vmatprep.subr.bf16.mxu0 0
        %3169 = vmatpush1.bf16.msra.mxu0 0
        %3170 = vmatprep.subr.bf16.mxu0 0
        %3171 = vmatpush1.bf16.msra.mxu0 0
        %3172 = vmatprep.subr.bf16.mxu0 0
        %3173 = vmatpush1.bf16.msra.mxu0 0
        %3174 = vmatprep.subr.bf16.mxu0 0
        %3175 = vmatpush1.bf16.msra.mxu0 0
        %3176 = vmatprep.subr.bf16.mxu0 0
        %3177 = vmatpush1.bf16.msra.mxu0 0
        %3178 = vmatprep.subr.bf16.mxu0 0
        %3179 = vmatpush1.bf16.msra.mxu0 0
        %3180 = vmatprep.mubr.bf16.mxu0 0
        %3181 = vmatmul.mubr.bf16.gmra.mrb[0].mxu0 %v2794
        %v3182 = vpop.f32.mrb[0].mxu0
        %v3183 = vpop.f32.mrb[0].mxu0
        %v3184 = vpop.f32.mrb[0].mxu0
        %v3185 = vpop.f32.mrb[0].mxu0
        %3186 = vmatprep.mubr.bf16.mxu0 0
        %3187 = vmatmul.mubr.bf16.gmra.mrb[0].mxu0 %v2795
        %v3188 = vpop.f32.mrb[0].mxu0
        %v3189 = vadd.f32 0.0, %v3188
        %v3190 = vpop.f32.mrb[0].mxu0
        %v3191 = vpop.f32.mrb[0].mxu0
        %v3192 = vadd.f32 0.0, %v3191
        %v3193 = vpop.f32.mrb[0].mxu0
        %3194 = vmatprep.mubr.bf16.mxu0 0
        %3195 = vmatmul.mubr.bf16.gmra.mrb[0].mxu0 %v2796
        %v3196 = vpop.f32.mrb[0].mxu0
        %v3197 = vadd.f32 0.0, %v3196
        %v3198 = vpop.f32.mrb[0].mxu0
        %v3199 = vpop.f32.mrb[0].mxu0
        %v3200 = vadd.f32 0.0, %v3199
        %v3201 = vpop.f32.mrb[0].mxu0
        %3202 = vmatprep.mubr.bf16.mxu0 0
        %3203 = vmatmul.mubr.bf16.gmra.mrb[0].mxu0 %v2797
        %v3204 = vpop.f32.mrb[0].mxu0
        %v3205 = vadd.f32 0.0, %v3204
        %v3206 = vpop.f32.mrb[0].mxu0
        %v3207 = vpop.f32.mrb[0].mxu0
        %v3208 = vadd.f32 0.0, %v3207
        %v3209 = vpop.f32.mrb[0].mxu0
        %3210 = vmatprep.mubr.bf16.mxu0 0
        %3211 = vmatmul.mubr.bf16.gmra.mrb[0].mxu0 %v2798
        %v3212 = vpop.f32.mrb[0].mxu0
        %v3213 = vadd.f32 0.0, %v3212
        %v3214 = vpop.f32.mrb[0].mxu0
        %v3215 = vpop.f32.mrb[0].mxu0
        %v3216 = vadd.f32 0.0, %v3215
        %v3217 = vpop.f32.mrb[0].mxu0
        %3218 = vmatprep.mubr.bf16.mxu0 0
        %3219 = vmatmul.mubr.bf16.gmra.mrb[0].mxu0 %v2799
        %v3220 = vpop.f32.mrb[0].mxu0
        %v3221 = vadd.f32 0.0, %v3220
        %v3222 = vpop.f32.mrb[0].mxu0
        %v3223 = vpop.f32.mrb[0].mxu0
        %v3224 = vadd.f32 0.0, %v3223
        %v3225 = vpop.f32.mrb[0].mxu0
        %3226 = vmatprep.mubr.bf16.mxu0 0
        %3227 = vmatmul.mubr.bf16.gmra.mrb[0].mxu0 %v2800
        %v3228 = vpop.f32.mrb[0].mxu0
        %v3229 = vadd.f32 0.0, %v3228
        %v3230 = vpop.f32.mrb[0].mxu0
        %v3231 = vpop.f32.mrb[0].mxu0
        %v3232 = vadd.f32 0.0, %v3231
        %v3233 = vpop.f32.mrb[0].mxu0
        %3234 = vmatprep.mubr.bf16.mxu0 0
        %3235 = vmatmul.mubr.bf16.gmra.mrb[0].mxu0 %v2801
        %v3236 = vpop.f32.mrb[0].mxu0
        %v3237 = vadd.f32 0.0, %v3236
        %v3238 = vpop.f32.mrb[0].mxu0
        %v3239 = vpop.f32.mrb[0].mxu0
        %v3240 = vadd.f32 0.0, %v3239
        %v3241 = vpop.f32.mrb[0].mxu0
        %3242 = vmatprep.mubr.bf16.mxu0 0
        %3243 = vmatmul.mubr.bf16.gmra.mrb[0].mxu0 %v2802
        %v3244 = vpop.f32.mrb[0].mxu0
        %v3245 = vadd.f32 0.0, %v3244
        %v3246 = vpop.f32.mrb[0].mxu0
        %v3247 = vpop.f32.mrb[0].mxu0
        %v3248 = vadd.f32 0.0, %v3247
        %v3249 = vpop.f32.mrb[0].mxu0
        %3250 = vmatprep.mubr.bf16.mxu0 0
        %3251 = vmatmul.mubr.bf16.gmra.mrb[0].mxu0 %v2803
        %v3252 = vpop.f32.mrb[0].mxu0
        %v3253 = vadd.f32 0.0, %v3252
        %v3254 = vpop.f32.mrb[0].mxu0
        %v3255 = vpop.f32.mrb[0].mxu0
        %v3256 = vadd.f32 0.0, %v3255
        %v3257 = vpop.f32.mrb[0].mxu0
        %3258 = vmatprep.mubr.bf16.mxu0 0
        %3259 = vmatmul.mubr.bf16.gmra.mrb[0].mxu0 %v2804
        %v3260 = vpop.f32.mrb[0].mxu0
        %v3261 = vadd.f32 0.0, %v3260
        %v3262 = vpop.f32.mrb[0].mxu0
        %v3263 = vpop.f32.mrb[0].mxu0
        %v3264 = vadd.f32 0.0, %v3263
        %v3265 = vpop.f32.mrb[0].mxu0
        %3266 = vmatprep.mubr.bf16.mxu0 0
        %3267 = vmatmul.mubr.bf16.gmra.mrb[0].mxu0 %v2805
        %v3268 = vpop.f32.mrb[0].mxu0
        %v3269 = vadd.f32 0.0, %v3268
        %v3270 = vpop.f32.mrb[0].mxu0
        %v3271 = vpop.f32.mrb[0].mxu0
        %v3272 = vadd.f32 0.0, %v3271
        %v3273 = vpop.f32.mrb[0].mxu0
        %3274 = vmatprep.mubr.bf16.mxu0 0
        %3275 = vmatmul.mubr.bf16.gmra.mrb[0].mxu0 %v2806
        %v3276 = vpop.f32.mrb[0].mxu0
        %v3277 = vadd.f32 0.0, %v3276
        %v3278 = vpop.f32.mrb[0].mxu0
        %v3279 = vpop.f32.mrb[0].mxu0
        %v3280 = vadd.f32 0.0, %v3279
        %v3281 = vpop.f32.mrb[0].mxu0
        %3282 = vmatprep.mubr.bf16.mxu0 0
        %3283 = vmatmul.mubr.bf16.gmra.mrb[0].mxu0 %v2807
        %v3284 = vpop.f32.mrb[0].mxu0
        %v3285 = vadd.f32 0.0, %v3284
        %v3286 = vpop.f32.mrb[0].mxu0
        %v3287 = vpop.f32.mrb[0].mxu0
        %v3288 = vadd.f32 0.0, %v3287
        %v3289 = vpop.f32.mrb[0].mxu0
        %3290 = vmatprep.mubr.bf16.mxu0 0
        %3291 = vmatmul.mubr.bf16.gmra.mrb[0].mxu0 %v2808
        %v3292 = vpop.f32.mrb[0].mxu0
        %v3293 = vadd.f32 0.0, %v3292
        %v3294 = vpop.f32.mrb[0].mxu0
        %v3295 = vpop.f32.mrb[0].mxu0
        %v3296 = vadd.f32 0.0, %v3295
        %v3297 = vpop.f32.mrb[0].mxu0
        %3298 = vmatprep.mubr.bf16.mxu0 0
        %3299 = vmatmul.mubr.bf16.gmra.mrb[0].mxu0 %v2809
        %v3300 = vpop.f32.mrb[0].mxu0
        %v3301 = vadd.f32 0.0, %v3300
        %v3302 = vpop.f32.mrb[0].mxu0
        %v3303 = vpop.f32.mrb[0].mxu0
        %v3304 = vadd.f32 0.0, %v3303
        %v3305 = vpop.f32.mrb[0].mxu0
        %3306 = vmatprep.mubr.bf16.mxu0 0
        %3307 = vmatmul.mubr.bf16.gmra.mrb[0].mxu0 %v2810
        %v3308 = vpop.f32.mrb[0].mxu0
        %v3309 = vadd.f32 0.0, %v3308
        %v3310 = vpop.f32.mrb[0].mxu0
        %v3311 = vpop.f32.mrb[0].mxu0
        %v3312 = vadd.f32 0.0, %v3311
        %v3313 = vpop.f32.mrb[0].mxu0
        %3314 = vmatprep.mubr.bf16.mxu0 0
        %3315 = vmatmul.mubr.bf16.gmra.mrb[0].mxu0 %v2811
        %v3316 = vpop.f32.mrb[0].mxu0
        %v3317 = vpop.f32.mrb[0].mxu0
        %v3318 = vpop.f32.mrb[0].mxu0
        %v3319 = vpop.f32.mrb[0].mxu0
        %3320 = vdwg.mxu0
        %v3321 = vadd.f32 %v3051, %v3189
        %v3322 = vadd.f32 %v3052, %v3192
        %v3323 = vadd.f32 %v3053, %v3197
        %v3324 = vadd.f32 %v3054, %v3200
        %v3325 = vadd.f32 %v3055, %v3205
        %v3326 = vadd.f32 %v3056, %v3208
        %v3327 = vadd.f32 %v3057, %v3213
        %v3328 = vadd.f32 %v3058, %v3216
        %v3329 = vadd.f32 %v3059, %v3221
        %v3330 = vadd.f32 %v3060, %v3224
        %v3331 = vadd.f32 %v3061, %v3229
        %v3332 = vadd.f32 %v3062, %v3232
        %v3333 = vadd.f32 %v3063, %v3237
        %v3334 = vadd.f32 %v3064, %v3240
        %v3335 = vadd.f32 %v3065, %v3245
        %v3336 = vadd.f32 %v3066, %v3248
        %v3337 = vadd.f32 %v3067, %v3253
        %v3338 = vadd.f32 %v3068, %v3256
        %v3339 = vadd.f32 %v3069, %v3261
        %v3340 = vadd.f32 %v3070, %v3264
        %v3341 = vadd.f32 %v3071, %v3269
        %v3342 = vadd.f32 %v3072, %v3272
        %v3343 = vadd.f32 %v3073, %v3277
        %v3344 = vadd.f32 %v3074, %v3280
        %v3345 = vadd.f32 %v3075, %v3285
        %v3346 = vadd.f32 %v3076, %v3288
        %v3347 = vadd.f32 %v3077, %v3293
        %v3348 = vadd.f32 %v3078, %v3296
        %v3349 = vadd.f32 %v3079, %v3301
        %v3350 = vadd.f32 %v3080, %v3304
        %v3351 = vadd.f32 %v3081, %v3309
        %v3352 = vadd.f32 %v3082, %v3312
        %s3353 = scalar_lea.vmem [#allocation5], 512
        %v3354 = vld [vmem:[%s3353] sm:$0xf]
        %v3355 = vld [vmem:[%s3353 + $0x4] sm:$0xf]
        %v3356 = vld [vmem:[%s3353 + $0x8] sm:$0xf]
        %v3357 = vld [vmem:[%s3353 + $0xc] sm:$0xf]
        %v3358 = vld [vmem:[%s3353 + $0x10] sm:$0xf]
        %v3359 = vld [vmem:[%s3353 + $0x14] sm:$0xf]
        %v3360 = vld [vmem:[%s3353 + $0x18] sm:$0xf]
        %v3361 = vld [vmem:[%s3353 + $0x1c] sm:$0xf]
        %v3362 = vld [vmem:[%s3353 + $0x20] sm:$0xf]
        %v3363 = vld [vmem:[%s3353 + $0x24] sm:$0xf]
        %v3364 = vld [vmem:[%s3353 + $0x28] sm:$0xf]
        %v3365 = vld [vmem:[%s3353 + $0x2c] sm:$0xf]
        %v3366 = vld [vmem:[%s3353 + $0x30] sm:$0xf]
        %v3367 = vld [vmem:[%s3353 + $0x34] sm:$0xf]
        %v3368 = vld [vmem:[%s3353 + $0x38] sm:$0xf]
        %v3369 = vld [vmem:[%s3353 + $0x3c] sm:$0xf]
        %v3386 = vunpack.c.l.b16 %v3354
        %v3387 = vunpack.c.l.b16 %v3355
        %v3388 = vunpack.c.l.b16 %v3356
        %v3389 = vunpack.c.l.b16 %v3357
        %v3390 = vunpack.c.l.b16 %v3358
        %v3391 = vunpack.c.l.b16 %v3359
        %v3392 = vunpack.c.l.b16 %v3360
        %v3393 = vunpack.c.l.b16 %v3361
        %v3394 = vunpack.c.l.b16 %v3362
        %v3395 = vunpack.c.l.b16 %v3363
        %v3396 = vunpack.c.l.b16 %v3364
        %v3397 = vunpack.c.l.b16 %v3365
        %v3398 = vunpack.c.l.b16 %v3366
        %v3399 = vunpack.c.l.b16 %v3367
        %v3400 = vunpack.c.l.b16 %v3368
        %v3401 = vunpack.c.l.b16 %v3369
        %v3402 = vpack.c.b16 %v3387, %v3386
        %v3403 = vpack.c.b16 %v3389, %v3388
        %v3404 = vpack.c.b16 %v3391, %v3390
        %v3405 = vpack.c.b16 %v3393, %v3392
        %v3406 = vpack.c.b16 %v3395, %v3394
        %v3407 = vpack.c.b16 %v3397, %v3396
        %v3408 = vpack.c.b16 %v3399, %v3398
        %v3409 = vpack.c.b16 %v3401, %v3400
        %3418 = vmatprep.subr.bf16.mxu0 0
        %3419 = vmatpush1.bf16.msra.mxu0 %v3402
        %3420 = vmatprep.subr.bf16.mxu0 0
        %3421 = vmatpush1.bf16.msra.mxu0 %v3403
        %3422 = vmatprep.subr.bf16.mxu0 0
        %3423 = vmatpush1.bf16.msra.mxu0 %v3404
        %3424 = vmatprep.subr.bf16.mxu0 0
        %3425 = vmatpush1.bf16.msra.mxu0 %v3405
        %3426 = vmatprep.subr.bf16.mxu0 0
        %3427 = vmatpush1.bf16.msra.mxu0 %v3406
        %3428 = vmatprep.subr.bf16.mxu0 0
        %3429 = vmatpush1.bf16.msra.mxu0 %v3407
        %3430 = vmatprep.subr.bf16.mxu0 0
        %3431 = vmatpush1.bf16.msra.mxu0 %v3408
        %3432 = vmatprep.subr.bf16.mxu0 0
        %3433 = vmatpush1.bf16.msra.mxu0 %v3409
        %3434 = vmatprep.subr.bf16.mxu0 0
        %3435 = vmatpush1.bf16.msra.mxu0 0
        %3436 = vmatprep.subr.bf16.mxu0 0
        %3437 = vmatpush1.bf16.msra.mxu0 0
        %3438 = vmatprep.subr.bf16.mxu0 0
        %3439 = vmatpush1.bf16.msra.mxu0 0
        %3440 = vmatprep.subr.bf16.mxu0 0
        %3441 = vmatpush1.bf16.msra.mxu0 0
        %3442 = vmatprep.subr.bf16.mxu0 0
        %3443 = vmatpush1.bf16.msra.mxu0 0
        %3444 = vmatprep.subr.bf16.mxu0 0
        %3445 = vmatpush1.bf16.msra.mxu0 0
        %3446 = vmatprep.subr.bf16.mxu0 0
        %3447 = vmatpush1.bf16.msra.mxu0 0
        %3448 = vmatprep.subr.bf16.mxu0 0
        %3449 = vmatpush1.bf16.msra.mxu0 0
        %3450 = vmatprep.mubr.bf16.mxu0 0
        %3451 = vmatmul.mubr.bf16.gmra.mrb[0].mxu0 %v2794
        %v3452 = vpop.f32.mrb[0].mxu0
        %v3453 = vpop.f32.mrb[0].mxu0
        %v3454 = vpop.f32.mrb[0].mxu0
        %v3455 = vpop.f32.mrb[0].mxu0
        %3456 = vmatprep.mubr.bf16.mxu0 0
        %3457 = vmatmul.mubr.bf16.gmra.mrb[0].mxu0 %v2795
        %v3458 = vpop.f32.mrb[0].mxu0
        %v3459 = vpop.f32.mrb[0].mxu0
        %v3460 = vpop.f32.mrb[0].mxu0
        %v3461 = vpop.f32.mrb[0].mxu0
        %3462 = vmatprep.mubr.bf16.mxu0 0
        %3463 = vmatmul.mubr.bf16.gmra.mrb[0].mxu0 %v2796
        %v3464 = vpop.f32.mrb[0].mxu0
        %v3465 = vadd.f32 0.0, %v3464
        %v3466 = vpop.f32.mrb[0].mxu0
        %v3467 = vpop.f32.mrb[0].mxu0
        %v3468 = vadd.f32 0.0, %v3467
        %v3469 = vpop.f32.mrb[0].mxu0
        %3470 = vmatprep.mubr.bf16.mxu0 0
        %3471 = vmatmul.mubr.bf16.gmra.mrb[0].mxu0 %v2797
        %v3472 = vpop.f32.mrb[0].mxu0
        %v3473 = vadd.f32 0.0, %v3472
        %v3474 = vpop.f32.mrb[0].mxu0
        %v3475 = vpop.f32.mrb[0].mxu0
        %v3476 = vadd.f32 0.0, %v3475
        %v3477 = vpop.f32.mrb[0].mxu0
        %3478 = vmatprep.mubr.bf16.mxu0 0
        %3479 = vmatmul.mubr.bf16.gmra.mrb[0].mxu0 %v2798
        %v3480 = vpop.f32.mrb[0].mxu0
        %v3481 = vadd.f32 0.0, %v3480
        %v3482 = vpop.f32.mrb[0].mxu0
        %v3483 = vpop.f32.mrb[0].mxu0
        %v3484 = vadd.f32 0.0, %v3483
        %v3485 = vpop.f32.mrb[0].mxu0
        %3486 = vmatprep.mubr.bf16.mxu0 0
        %3487 = vmatmul.mubr.bf16.gmra.mrb[0].mxu0 %v2799
        %v3488 = vpop.f32.mrb[0].mxu0
        %v3489 = vadd.f32 0.0, %v3488
        %v3490 = vpop.f32.mrb[0].mxu0
        %v3491 = vpop.f32.mrb[0].mxu0
        %v3492 = vadd.f32 0.0, %v3491
        %v3493 = vpop.f32.mrb[0].mxu0
        %3494 = vmatprep.mubr.bf16.mxu0 0
        %3495 = vmatmul.mubr.bf16.gmra.mrb[0].mxu0 %v2800
        %v3496 = vpop.f32.mrb[0].mxu0
        %v3497 = vadd.f32 0.0, %v3496
        %v3498 = vpop.f32.mrb[0].mxu0
        %v3499 = vpop.f32.mrb[0].mxu0
        %v3500 = vadd.f32 0.0, %v3499
        %v3501 = vpop.f32.mrb[0].mxu0
        %3502 = vmatprep.mubr.bf16.mxu0 0
        %3503 = vmatmul.mubr.bf16.gmra.mrb[0].mxu0 %v2801
        %v3504 = vpop.f32.mrb[0].mxu0
        %v3505 = vadd.f32 0.0, %v3504
        %v3506 = vpop.f32.mrb[0].mxu0
        %v3507 = vpop.f32.mrb[0].mxu0
        %v3508 = vadd.f32 0.0, %v3507
        %v3509 = vpop.f32.mrb[0].mxu0
        %3510 = vmatprep.mubr.bf16.mxu0 0
        %3511 = vmatmul.mubr.bf16.gmra.mrb[0].mxu0 %v2802
        %v3512 = vpop.f32.mrb[0].mxu0
        %v3513 = vadd.f32 0.0, %v3512
        %v3514 = vpop.f32.mrb[0].mxu0
        %v3515 = vpop.f32.mrb[0].mxu0
        %v3516 = vadd.f32 0.0, %v3515
        %v3517 = vpop.f32.mrb[0].mxu0
        %3518 = vmatprep.mubr.bf16.mxu0 0
        %3519 = vmatmul.mubr.bf16.gmra.mrb[0].mxu0 %v2803
        %v3520 = vpop.f32.mrb[0].mxu0
        %v3521 = vadd.f32 0.0, %v3520
        %v3522 = vpop.f32.mrb[0].mxu0
        %v3523 = vpop.f32.mrb[0].mxu0
        %v3524 = vadd.f32 0.0, %v3523
        %v3525 = vpop.f32.mrb[0].mxu0
        %3526 = vmatprep.mubr.bf16.mxu0 0
        %3527 = vmatmul.mubr.bf16.gmra.mrb[0].mxu0 %v2804
        %v3528 = vpop.f32.mrb[0].mxu0
        %v3529 = vadd.f32 0.0, %v3528
        %v3530 = vpop.f32.mrb[0].mxu0
        %v3531 = vpop.f32.mrb[0].mxu0
        %v3532 = vadd.f32 0.0, %v3531
        %v3533 = vpop.f32.mrb[0].mxu0
        %3534 = vmatprep.mubr.bf16.mxu0 0
        %3535 = vmatmul.mubr.bf16.gmra.mrb[0].mxu0 %v2805
        %v3536 = vpop.f32.mrb[0].mxu0
        %v3537 = vadd.f32 0.0, %v3536
        %v3538 = vpop.f32.mrb[0].mxu0
        %v3539 = vpop.f32.mrb[0].mxu0
        %v3540 = vadd.f32 0.0, %v3539
        %v3541 = vpop.f32.mrb[0].mxu0
        %3542 = vmatprep.mubr.bf16.mxu0 0
        %3543 = vmatmul.mubr.bf16.gmra.mrb[0].mxu0 %v2806
        %v3544 = vpop.f32.mrb[0].mxu0
        %v3545 = vadd.f32 0.0, %v3544
        %v3546 = vpop.f32.mrb[0].mxu0
        %v3547 = vpop.f32.mrb[0].mxu0
        %v3548 = vadd.f32 0.0, %v3547
        %v3549 = vpop.f32.mrb[0].mxu0
        %3550 = vmatprep.mubr.bf16.mxu0 0
        %3551 = vmatmul.mubr.bf16.gmra.mrb[0].mxu0 %v2807
        %v3552 = vpop.f32.mrb[0].mxu0
        %v3553 = vadd.f32 0.0, %v3552
        %v3554 = vpop.f32.mrb[0].mxu0
        %v3555 = vpop.f32.mrb[0].mxu0
        %v3556 = vadd.f32 0.0, %v3555
        %v3557 = vpop.f32.mrb[0].mxu0
        %3558 = vmatprep.mubr.bf16.mxu0 0
        %3559 = vmatmul.mubr.bf16.gmra.mrb[0].mxu0 %v2808
        %v3560 = vpop.f32.mrb[0].mxu0
        %v3561 = vadd.f32 0.0, %v3560
        %v3562 = vpop.f32.mrb[0].mxu0
        %v3563 = vpop.f32.mrb[0].mxu0
        %v3564 = vadd.f32 0.0, %v3563
        %v3565 = vpop.f32.mrb[0].mxu0
        %3566 = vmatprep.mubr.bf16.mxu0 0
        %3567 = vmatmul.mubr.bf16.gmra.mrb[0].mxu0 %v2809
        %v3568 = vpop.f32.mrb[0].mxu0
        %v3569 = vadd.f32 0.0, %v3568
        %v3570 = vpop.f32.mrb[0].mxu0
        %v3571 = vpop.f32.mrb[0].mxu0
        %v3572 = vadd.f32 0.0, %v3571
        %v3573 = vpop.f32.mrb[0].mxu0
        %3574 = vmatprep.mubr.bf16.mxu0 0
        %3575 = vmatmul.mubr.bf16.gmra.mrb[0].mxu0 %v2810
        %v3576 = vpop.f32.mrb[0].mxu0
        %v3577 = vadd.f32 0.0, %v3576
        %v3578 = vpop.f32.mrb[0].mxu0
        %v3579 = vpop.f32.mrb[0].mxu0
        %v3580 = vadd.f32 0.0, %v3579
        %v3581 = vpop.f32.mrb[0].mxu0
        %3582 = vmatprep.mubr.bf16.mxu0 0
        %3583 = vmatmul.mubr.bf16.gmra.mrb[0].mxu0 %v2811
        %v3584 = vpop.f32.mrb[0].mxu0
        %v3585 = vadd.f32 0.0, %v3584
        %v3586 = vpop.f32.mrb[0].mxu0
        %v3587 = vpop.f32.mrb[0].mxu0
        %v3588 = vadd.f32 0.0, %v3587
        %v3589 = vpop.f32.mrb[0].mxu0
        %3590 = vdwg.mxu0
        %v3591 = vadd.f32 %v3321, %v3465
        %v3592 = vadd.f32 %v3322, %v3468
        %v3593 = vadd.f32 %v3323, %v3473
        %v3594 = vadd.f32 %v3324, %v3476
        %v3595 = vadd.f32 %v3325, %v3481
        %v3596 = vadd.f32 %v3326, %v3484
        %v3597 = vadd.f32 %v3327, %v3489
        %v3598 = vadd.f32 %v3328, %v3492
        %v3599 = vadd.f32 %v3329, %v3497
        %v3600 = vadd.f32 %v3330, %v3500
        %v3601 = vadd.f32 %v3331, %v3505
        %v3602 = vadd.f32 %v3332, %v3508
        %v3603 = vadd.f32 %v3333, %v3513
        %v3604 = vadd.f32 %v3334, %v3516
        %v3605 = vadd.f32 %v3335, %v3521
        %v3606 = vadd.f32 %v3336, %v3524
        %v3607 = vadd.f32 %v3337, %v3529
        %v3608 = vadd.f32 %v3338, %v3532
        %v3609 = vadd.f32 %v3339, %v3537
        %v3610 = vadd.f32 %v3340, %v3540
        %v3611 = vadd.f32 %v3341, %v3545
        %v3612 = vadd.f32 %v3342, %v3548
        %v3613 = vadd.f32 %v3343, %v3553
        %v3614 = vadd.f32 %v3344, %v3556
        %v3615 = vadd.f32 %v3345, %v3561
        %v3616 = vadd.f32 %v3346, %v3564
        %v3617 = vadd.f32 %v3347, %v3569
        %v3618 = vadd.f32 %v3348, %v3572
        %v3619 = vadd.f32 %v3349, %v3577
        %v3620 = vadd.f32 %v3350, %v3580
        %v3621 = vadd.f32 %v3351, %v3585
        %v3622 = vadd.f32 %v3352, %v3588
        %v3623 = vpack.c.bf16 %v3592, %v3591
        %v3624 = vpack.c.bf16 %v3594, %v3593
        %v3625 = vpack.c.bf16 %v3596, %v3595
        %v3626 = vpack.c.bf16 %v3598, %v3597
        %v3627 = vpack.c.bf16 %v3600, %v3599
        %v3628 = vpack.c.bf16 %v3602, %v3601
        %v3629 = vpack.c.bf16 %v3604, %v3603
        %v3630 = vpack.c.bf16 %v3606, %v3605
        %v3631 = vpack.c.bf16 %v3608, %v3607
        %v3632 = vpack.c.bf16 %v3610, %v3609
        %v3633 = vpack.c.bf16 %v3612, %v3611
        %v3634 = vpack.c.bf16 %v3614, %v3613
        %v3635 = vpack.c.bf16 %v3616, %v3615
        %v3636 = vpack.c.bf16 %v3618, %v3617
        %v3637 = vpack.c.bf16 %v3620, %v3619
        %v3638 = vpack.c.bf16 %v3622, %v3621
        %v3655 = vunpack.c.l.b16 %v3623
        %v3656 = vunpack.c.h.b16 %v3623
        %v3657 = vunpack.c.l.b16 %v3624
        %v3658 = vunpack.c.h.b16 %v3624
        %v3659 = vunpack.c.l.b16 %v3625
        %v3660 = vunpack.c.h.b16 %v3625
        %v3661 = vunpack.c.l.b16 %v3626
        %v3662 = vunpack.c.h.b16 %v3626
        %v3663 = vunpack.c.l.b16 %v3627
        %v3664 = vunpack.c.h.b16 %v3627
        %v3665 = vunpack.c.l.b16 %v3628
        %v3666 = vunpack.c.h.b16 %v3628
        %v3667 = vunpack.c.l.b16 %v3629
        %v3668 = vunpack.c.h.b16 %v3629
        %v3669 = vunpack.c.l.b16 %v3630
        %v3670 = vunpack.c.h.b16 %v3630
        %v3671 = vunpack.c.l.b16 %v3631
        %v3672 = vunpack.c.h.b16 %v3631
        %v3673 = vunpack.c.l.b16 %v3632
        %v3674 = vunpack.c.h.b16 %v3632
        %v3675 = vunpack.c.l.b16 %v3633
        %v3676 = vunpack.c.h.b16 %v3633
        %v3677 = vunpack.c.l.b16 %v3634
        %v3678 = vunpack.c.h.b16 %v3634
        %v3679 = vunpack.c.l.b16 %v3635
        %v3680 = vunpack.c.h.b16 %v3635
        %v3681 = vunpack.c.l.b16 %v3636
        %v3682 = vunpack.c.h.b16 %v3636
        %v3683 = vunpack.c.l.b16 %v3637
        %v3684 = vunpack.c.h.b16 %v3637
        %v3685 = vunpack.c.l.b16 %v3638
        %v3686 = vunpack.c.h.b16 %v3638
        %v3687 = vpack.c.b16 %v3655, %v3655
        %v3688 = vpack.c.b16 %v3656, %v3656
        %v3689 = vpack.c.b16 %v3657, %v3657
        %v3690 = vpack.c.b16 %v3658, %v3658
        %v3691 = vpack.c.b16 %v3659, %v3659
        %v3692 = vpack.c.b16 %v3660, %v3660
        %v3693 = vpack.c.b16 %v3661, %v3661
        %v3694 = vpack.c.b16 %v3662, %v3662
        %v3695 = vpack.c.b16 %v3663, %v3663
        %v3696 = vpack.c.b16 %v3664, %v3664
        %v3697 = vpack.c.b16 %v3665, %v3665
        %v3698 = vpack.c.b16 %v3666, %v3666
        %v3699 = vpack.c.b16 %v3667, %v3667
        %v3700 = vpack.c.b16 %v3668, %v3668
        %v3701 = vpack.c.b16 %v3669, %v3669
        %v3702 = vpack.c.b16 %v3670, %v3670
        %v3703 = vpack.c.b16 %v3671, %v3671
        %v3704 = vpack.c.b16 %v3672, %v3672
        %v3705 = vpack.c.b16 %v3673, %v3673
        %v3706 = vpack.c.b16 %v3674, %v3674
        %v3707 = vpack.c.b16 %v3675, %v3675
        %v3708 = vpack.c.b16 %v3676, %v3676
        %v3709 = vpack.c.b16 %v3677, %v3677
        %v3710 = vpack.c.b16 %v3678, %v3678
        %v3711 = vpack.c.b16 %v3679, %v3679
        %v3712 = vpack.c.b16 %v3680, %v3680
        %v3713 = vpack.c.b16 %v3681, %v3681
        %v3714 = vpack.c.b16 %v3682, %v3682
        %v3715 = vpack.c.b16 %v3683, %v3683
        %v3716 = vpack.c.b16 %v3684, %v3684
        %v3717 = vpack.c.b16 %v3685, %v3685
        %v3718 = vpack.c.b16 %v3686, %v3686
        %3751 = vst [vmem:[%s207] sm:$0xf] %v3687
        %3752 = vst [vmem:[%s207 + $0x4] sm:$0xf] %v3688
        %3753 = vst [vmem:[%s207 + $0x8] sm:$0xf] %v3689
        %3754 = vst [vmem:[%s207 + $0xc] sm:$0xf] %v3690
        %3755 = vst [vmem:[%s207 + $0x10] sm:$0xf] %v3691
        %3756 = vst [vmem:[%s207 + $0x14] sm:$0xf] %v3692
        %3757 = vst [vmem:[%s207 + $0x18] sm:$0xf] %v3693
        %3758 = vst [vmem:[%s207 + $0x1c] sm:$0xf] %v3694
        %3759 = vst [vmem:[%s207 + $0x20] sm:$0xf] %v3695
        %3760 = vst [vmem:[%s207 + $0x24] sm:$0xf] %v3696
        %3761 = vst [vmem:[%s207 + $0x28] sm:$0xf] %v3697
        %3762 = vst [vmem:[%s207 + $0x2c] sm:$0xf] %v3698
        %3763 = vst [vmem:[%s207 + $0x30] sm:$0xf] %v3699
        %3764 = vst [vmem:[%s207 + $0x34] sm:$0xf] %v3700
        %3765 = vst [vmem:[%s207 + $0x38] sm:$0xf] %v3701
        %3766 = vst [vmem:[%s207 + $0x3c] sm:$0xf] %v3702
        %3767 = vst [vmem:[%s207 + $0x40] sm:$0xf] %v3703
        %3768 = vst [vmem:[%s207 + $0x44] sm:$0xf] %v3704
        %3769 = vst [vmem:[%s207 + $0x48] sm:$0xf] %v3705
        %3770 = vst [vmem:[%s207 + $0x4c] sm:$0xf] %v3706
        %3771 = vst [vmem:[%s207 + $0x50] sm:$0xf] %v3707
        %3772 = vst [vmem:[%s207 + $0x54] sm:$0xf] %v3708
        %3773 = vst [vmem:[%s207 + $0x58] sm:$0xf] %v3709
        %3774 = vst [vmem:[%s207 + $0x5c] sm:$0xf] %v3710
        %3775 = vst [vmem:[%s207 + $0x60] sm:$0xf] %v3711
        %3776 = vst [vmem:[%s207 + $0x64] sm:$0xf] %v3712
        %3777 = vst [vmem:[%s207 + $0x68] sm:$0xf] %v3713
        %3778 = vst [vmem:[%s207 + $0x6c] sm:$0xf] %v3714
        %3779 = vst [vmem:[%s207 + $0x70] sm:$0xf] %v3715
        %3780 = vst [vmem:[%s207 + $0x74] sm:$0xf] %v3716
        %3781 = vst [vmem:[%s207 + $0x78] sm:$0xf] %v3717
        %3782 = vst [vmem:[%s207 + $0x7c] sm:$0xf] %v3718
        %v3783 = vadd.f32 %v3591, %v3592
        %v3784 = vadd.f32 %v3783, %v3593
        %v3785 = vadd.f32 %v3784, %v3594
        %v3786 = vadd.f32 %v3785, %v3595
        %v3787 = vadd.f32 %v3786, %v3596
        %v3788 = vadd.f32 %v3787, %v3597
        %v3789 = vadd.f32 %v3788, %v3598
        %v3790 = vadd.f32 %v3789, %v3599
        %v3791 = vadd.f32 %v3790, %v3600
        %v3792 = vadd.f32 %v3791, %v3601
        %v3793 = vadd.f32 %v3792, %v3602
        %v3794 = vadd.f32 %v3793, %v3603
        %v3795 = vadd.f32 %v3794, %v3604
        %v3796 = vadd.f32 %v3795, %v3605
        %v3797 = vadd.f32 %v3796, %v3606
        %v3798 = vadd.f32 %v3797, %v3607
        %v3799 = vadd.f32 %v3798, %v3608
        %v3800 = vadd.f32 %v3799, %v3609
        %v3801 = vadd.f32 %v3800, %v3610
        %v3802 = vadd.f32 %v3801, %v3611
        %v3803 = vadd.f32 %v3802, %v3612
        %v3804 = vadd.f32 %v3803, %v3613
        %v3805 = vadd.f32 %v3804, %v3614
        %v3806 = vadd.f32 %v3805, %v3615
        %v3807 = vadd.f32 %v3806, %v3616
        %v3808 = vadd.f32 %v3807, %v3617
        %v3809 = vadd.f32 %v3808, %v3618
        %v3810 = vadd.f32 %v3809, %v3619
        %v3811 = vadd.f32 %v3810, %v3620
        %v3812 = vadd.f32 %v3811, %v3621
        %v3813 = vadd.f32 %v3812, %v3622
        %v3814 = vrot.slane %v3813, 4
        %v3815 = vadd.f32 %v3813, %v3814
        %v3816 = vrot.slane %v3815, 2
        %v3817 = vadd.f32 %v3815, %v3816
        %v3818 = vrot.slane %v3817, 1
        %v3819 = vadd.f32 %v3817, %v3818
        %v3820 = vmul.f32 %v3591, %v3591
        %v3821 = vmul.f32 %v3592, %v3592
        %v3822 = vmul.f32 %v3593, %v3593
        %v3823 = vmul.f32 %v3594, %v3594
        %v3824 = vmul.f32 %v3595, %v3595
        %v3825 = vmul.f32 %v3596, %v3596
        %v3826 = vmul.f32 %v3597, %v3597
        %v3827 = vmul.f32 %v3598, %v3598
        %v3828 = vmul.f32 %v3599, %v3599
        %v3829 = vmul.f32 %v3600, %v3600
        %v3830 = vmul.f32 %v3601, %v3601
        %v3831 = vmul.f32 %v3602, %v3602
        %v3832 = vmul.f32 %v3603, %v3603
        %v3833 = vmul.f32 %v3604, %v3604
        %v3834 = vmul.f32 %v3605, %v3605
        %v3835 = vmul.f32 %v3606, %v3606
        %v3836 = vmul.f32 %v3607, %v3607
        %v3837 = vmul.f32 %v3608, %v3608
        %v3838 = vmul.f32 %v3609, %v3609
        %v3839 = vmul.f32 %v3610, %v3610
        %v3840 = vmul.f32 %v3611, %v3611
        %v3841 = vmul.f32 %v3612, %v3612
        %v3842 = vmul.f32 %v3613, %v3613
        %v3843 = vmul.f32 %v3614, %v3614
        %v3844 = vmul.f32 %v3615, %v3615
        %v3845 = vmul.f32 %v3616, %v3616
        %v3846 = vmul.f32 %v3617, %v3617
        %v3847 = vmul.f32 %v3618, %v3618
        %v3848 = vmul.f32 %v3619, %v3619
        %v3849 = vmul.f32 %v3620, %v3620
        %v3850 = vmul.f32 %v3621, %v3621
        %v3851 = vmul.f32 %v3622, %v3622
        %v3852 = vadd.f32 %v3820, %v3821
        %v3853 = vadd.f32 %v3852, %v3822
        %v3854 = vadd.f32 %v3853, %v3823
        %v3855 = vadd.f32 %v3854, %v3824
        %v3856 = vadd.f32 %v3855, %v3825
        %v3857 = vadd.f32 %v3856, %v3826
        %v3858 = vadd.f32 %v3857, %v3827
        %v3859 = vadd.f32 %v3858, %v3828
        %v3860 = vadd.f32 %v3859, %v3829
        %v3861 = vadd.f32 %v3860, %v3830
        %v3862 = vadd.f32 %v3861, %v3831
        %v3863 = vadd.f32 %v3862, %v3832
        %v3864 = vadd.f32 %v3863, %v3833
        %v3865 = vadd.f32 %v3864, %v3834
        %v3866 = vadd.f32 %v3865, %v3835
        %v3867 = vadd.f32 %v3866, %v3836
        %v3868 = vadd.f32 %v3867, %v3837
        %v3869 = vadd.f32 %v3868, %v3838
        %v3870 = vadd.f32 %v3869, %v3839
        %v3871 = vadd.f32 %v3870, %v3840
        %v3872 = vadd.f32 %v3871, %v3841
        %v3873 = vadd.f32 %v3872, %v3842
        %v3874 = vadd.f32 %v3873, %v3843
        %v3875 = vadd.f32 %v3874, %v3844
        %v3876 = vadd.f32 %v3875, %v3845
        %v3877 = vadd.f32 %v3876, %v3846
        %v3878 = vadd.f32 %v3877, %v3847
        %v3879 = vadd.f32 %v3878, %v3848
        %v3880 = vadd.f32 %v3879, %v3849
        %v3881 = vadd.f32 %v3880, %v3850
        %v3882 = vadd.f32 %v3881, %v3851
        %v3883 = vrot.slane %v3882, 4
        %v3884 = vadd.f32 %v3882, %v3883
        %v3885 = vrot.slane %v3884, 2
        %v3886 = vadd.f32 %v3884, %v3885
        %v3887 = vrot.slane %v3886, 1
        %v3888 = vadd.f32 %v3886, %v3887
        %vm3889 = vcmask 1040384
        %v3890 = vsel %vm3889, %v3819, %v3888
        %3891 = vst [vmem:[%s214] sm:$0x3] %v3890
        %s3892 = sand.u32 %s80, 1
        %s3893 = scalar_lea.sflag [#allocation4], %s3892
        %s3894 = sand.u32 %s80, 1
        %s3895 = smul.addr %s3894, 128
        %s3896 = scalar_lea.vmem [#allocation7], %s3895
        %s3897 = sand.u32 %s106, 1
        %s3898 = scalar_lea.sflag [#allocation9], %s3897
        %s3899 = sand.u32 %s106, 1
        %s3900 = smul.addr %s3899, 2
        %s3901 = scalar_lea.vmem [#allocation8], %s3900
        // Predicated region
        $region37: #{unet_up_forward.10} parent=27 // pred_check
          %p3902 = pneg %p90
        $region38: #{unet_up_forward.10} parent=27 // pred_check_branch
          %3904 = sbr.rel (%p3902) target = $region40
        $region39: #{unet_up_forward.10} parent=27 // pred_region
          %s3906 = ssub.s32 2048, 2048
          %3907 = vsyncadd %s3893, %s3906
          %s3908 = smul.addr %s25, 32
          %s3909 = smul.addr %s3908, 64
          %s3910 = scalar_lea.hbm %s2, %s3909
          %s3911 = sshll.u32 %s3896, 4
          %s3912 = int_to_ptr.vmem [resolvable:$true] %s3911
          %3917 = dma.vmem_to_hbm [thread:$0]  %s3912, 2048, %s3910, %s3893, 64, 64, 4
        $region40: #{unet_up_forward.10} parent=27 // pred_fallthru
          _
        // Predicated region
        $region41: #{unet_up_forward.10} parent=27 // pred_check
          %p3918 = pneg %p116
        $region42: #{unet_up_forward.10} parent=27 // pred_check_branch
          %3920 = sbr.rel (%p3918) target = $region44
        $region43: #{unet_up_forward.10} parent=27 // pred_region
          %s3922 = ssub.s32 32, 32
          %3923 = vsyncadd %s3898, %s3922
          %s3924 = smul.addr %s25, 32
          %s3925 = scalar_lea.hbm %s3, %s3924
          %s3927 = sshll.u32 %s3901, 4
          %s3928 = int_to_ptr.vmem [resolvable:$true] %s3927
          %3930 = dma.vmem_to_hbm [thread:$0]  %s3928, 32, %s3925, %s3898
        $region44: #{unet_up_forward.10} parent=27 // pred_fallthru
          _
      $region28: #{unet_up_forward.10} parent=5 // pred_fallthru
        _
      %p3931 = scmp.le.s32.totalorder 2, %s20
      // Predicated region
      $region45: #{unet_up_forward.10} parent=5 // pred_check
        %p3932 = pneg %p3931
      $region46: #{unet_up_forward.10} parent=5 // pred_check_branch
        %3934 = sbr.rel (%p3932) target = $region48
      $region47: #{unet_up_forward.10} parent=5 // pred_region
        %s3935 = ssub.s32 %s20, 2
        // Predicated region
        $region49: #{unet_up_forward.10} parent=47 // pred_check
          %p3936 = pneg %p96
        $region50: #{unet_up_forward.10} parent=47 // pred_check_branch
          %3938 = sbr.rel (%p3936) target = $region52
        $region51: #{unet_up_forward.10} parent=47 // pred_region
          %s3939 = sand.u32 %s81, 1
          %s3940 = scalar_lea.sflag [#allocation4], %s3939
          %s3941 = sand.u32 %s81, 1
          %s3942 = smul.addr %s3941, 128
          %s3943 = scalar_lea.vmem [#allocation7], %s3942
          %3944 = dma.done %s3940, 2048
        $region52: #{unet_up_forward.10} parent=47 // pred_fallthru
          _
        // Predicated region
        $region53: #{unet_up_forward.10} parent=47 // pred_check
          %p3945 = pneg %p122
        $region54: #{unet_up_forward.10} parent=47 // pred_check_branch
          %3947 = sbr.rel (%p3945) target = $region56
        $region55: #{unet_up_forward.10} parent=47 // pred_region
          %s3948 = sand.u32 %s107, 1
          %s3949 = scalar_lea.sflag [#allocation9], %s3948
          %s3950 = sand.u32 %s107, 1
          %s3951 = smul.addr %s3950, 2
          %s3952 = scalar_lea.vmem [#allocation8], %s3951
          %3953 = dma.done %s3949, 32
        $region56: #{unet_up_forward.10} parent=47 // pred_fallthru
          _
      $region48: #{unet_up_forward.10} parent=5 // pred_fallthru
        _
    $region6: #{unet_up_forward.10} parent=1 // loop_footer
      %s24 = sadd.s32 1, %s20
    $region7: #{unet_up_forward.10} parent=1 // loop_footer_branch
      %19 = sbr.rel target = $region3
    $region8: #{unet_up_forward.10} parent=1 // loop_exit
      _
    %3954 = vsyncpa [#allocation3], 1
    %s3955 = scalar_lea.sflag [#allocation3], 1
    %3956 = vsyncpa %s3955, 1
    %3957 = vsyncpa [#allocation6], 1
    %3958 = vsyncpa [#allocation4], 1
    %s3959 = scalar_lea.sflag [#allocation4], 1
    %3960 = vsyncpa %s3959, 1
    %3961 = vsyncpa [#allocation9], 1
    %s3962 = scalar_lea.sflag [#allocation9], 1
    %3963 = vsyncpa %s3962, 1

</llo_original>
